<compile_context>
chip_gen: v5e
topology: v5e:2x2
jax: 0.10.0
libtpu: 0.0.40
codegen_flags: <defaults>
</compile_context>

<pallas_src>
import functools

import jax
import jax.numpy as jnp
from jax.experimental import pallas as pl
from jax.experimental.pallas import tpu as pltpu

# ----- model hyperparameters (match the PyTorch module, but small) ----------
FEATURE_DIM = 16
HIDDEN = 32
NUM_LAYERS = 2
NHEAD = 4
FFN = HIDDEN * 4            # 128
MAX_POS = 50
LN_EPS = 1e-5               # nn.LayerNorm default eps

SLAB_B_W = FFN              # lane width of slab B (holds qkv_w padded + ffn_w1)
assert 3 * HIDDEN <= SLAB_B_W

# slab-A per-layer block: [Wo (H rows) | ffn_W2 (FFN rows) | vec block (8 rows)]
A_LAYER_STRIDE = HIDDEN + FFN + 8
# slab-B per-layer block: [qkv_W (H rows) | ffn_W1 (H rows) | bias block (8 rows)]
B_LAYER_STRIDE = 2 * HIDDEN + 8

_HP = jax.lax.Precision.HIGHEST


def _round8(n):
    return (n + 7) // 8 * 8


def _slab_a_offsets(seq_len):
    """Static row offsets into slab A (shared by pack_params and the kernel)."""
    emb_w = 0
    embpos = _round8(FEATURE_DIM)
    head_w = embpos + _round8(seq_len)
    head_b = head_w + HIDDEN
    layer0 = head_b + 8
    total = layer0 + NUM_LAYERS * A_LAYER_STRIDE
    return dict(emb_w=emb_w, embpos=embpos, head_w=head_w,
                head_b=head_b, layer0=layer0, total=total)


def _layer_norm(x, w, b):
    mu = jnp.mean(x, axis=-1, keepdims=True)
    var = jnp.mean((x - mu) ** 2, axis=-1, keepdims=True)
    return (x - mu) * jax.lax.rsqrt(var + LN_EPS) * w + b


def _erf(z):
    # Abramowitz & Stegun 7.1.26, |error| < 1.5e-7 — only abs/exp/div/fma,
    # all of which have guaranteed Mosaic lowerings (exp rides the EUP slot).
    a1, a2, a3, a4, a5 = (0.254829592, -0.284496736, 1.421413741,
                          -1.453152027, 1.061405429)
    p = 0.3275911
    az = jnp.abs(z)
    t = 1.0 / (1.0 + p * az)
    poly = ((((a5 * t + a4) * t + a3) * t + a2) * t + a1) * t
    y = 1.0 - poly * jnp.exp(-az * az)
    return jnp.where(z >= 0, y, -y)


def _gelu_exact(x):
    return 0.5 * x * (1.0 + _erf(x * (1.0 / 2.0 ** 0.5)))


# ---------------------------------------------------------------------------
#                                   kernel
# ---------------------------------------------------------------------------
def complexity_transformer_kernel(seq_ref, slab_a_ref, slab_b_ref, out_ref,
                                  *, batch, seq):
    H, nh = HIDDEN, NHEAD
    dh = H // nh
    n_tok = batch * seq
    offs = _slab_a_offsets(seq)

    # ---- input embedding + (bias + positional encoding), broadcast over B ---
    emb_w = slab_a_ref[offs['emb_w']:offs['emb_w'] + FEATURE_DIM, :]   # (F, H)
    embpos = slab_a_ref[offs['embpos']:offs['embpos'] + seq, :]        # (S, H)
    x = jnp.dot(seq_ref[...], emb_w,
                preferred_element_type=jnp.float32, precision=_HP)     # (N, H)
    x = (x.reshape(batch, seq, H) + embpos[None, :, :]).reshape(n_tok, H)

    # ---- TransformerEncoder: post-norm layers (norm_first=False) ------------
    for l in range(NUM_LAYERS):
        a0 = offs['layer0'] + l * A_LAYER_STRIDE
        b0 = l * B_LAYER_STRIDE

        wo = slab_a_ref[a0:a0 + H, :]                                  # (H, H)
        w2 = slab_a_ref[a0 + H:a0 + H + FFN, :]                        # (FFN, H)
        vec = slab_a_ref[a0 + H + FFN:a0 + H + FFN + 8, :]             # (8, H)
        bo, ln1w, ln1b, ln2w, ln2b, b2 = [vec[i:i + 1, :] for i in range(6)]

        qkv_w = slab_b_ref[b0:b0 + H, :]                               # (H, 128)
        w1 = slab_b_ref[b0 + H:b0 + 2 * H, :]                          # (H, FFN)
        bias = slab_b_ref[b0 + 2 * H:b0 + 2 * H + 8, :]                # (8, 128)
        bqkv, b1 = bias[0:1, :], bias[1:2, :]

        # --- fused qkv projection (attention scale pre-folded into Wq/bq) ----
        qkv = jnp.dot(x, qkv_w, preferred_element_type=jnp.float32,
                      precision=_HP) + bqkv                            # (N, 128)

        # head-batched (nh*B, S, dh) tensors: ONE score einsum, ONE softmax and
        # ONE context einsum for all heads (vs. 4 of each previously).
        def head_batch(base):
            return jnp.concatenate(
                [qkv[:, base + h * dh: base + (h + 1) * dh].reshape(batch, seq, dh)
                 for h in range(nh)], axis=0)
        qg = head_batch(0)
        kg = head_batch(H)
        vg = head_batch(2 * H)

        s = jnp.einsum('gqd,gkd->gqk', qg, kg,
                       preferred_element_type=jnp.float32, precision=_HP)
        s = s - jnp.max(s, axis=-1, keepdims=True)                     # stable
        p = jnp.exp(s)
        attn = p / jnp.sum(p, axis=-1, keepdims=True)                  # exact
        ctx_g = jnp.einsum('gqk,gkd->gqd', attn, vg,
                           preferred_element_type=jnp.float32, precision=_HP)

        # relayout per-head context to (B*S, H) lanes and do ONE K=32 Wo matmul
        ctx = jnp.concatenate(
            [ctx_g[h * batch:(h + 1) * batch].reshape(n_tok, dh) for h in range(nh)],
            axis=-1)
        attn_out = jnp.dot(ctx, wo, preferred_element_type=jnp.float32,
                           precision=_HP) + bo

        x = _layer_norm(x + attn_out, ln1w, ln1b)

        # --- feed-forward block, exact erf GELU (activation='gelu') ----------
        h1 = jnp.dot(x, w1, preferred_element_type=jnp.float32,
                     precision=_HP) + b1
        h1 = _gelu_exact(h1)
        h2 = jnp.dot(h1, w2, preferred_element_type=jnp.float32,
                     precision=_HP) + b2
        x = _layer_norm(x + h2, ln2w, ln2b)

    # ---- fused heads on the last token (padding_mask is None) ---------------
    last = x.reshape(batch, seq, H)[:, seq - 1:seq, :].reshape(batch, H)
    head_w = slab_a_ref[offs['head_w']:offs['head_w'] + H, :]          # (H, 32)
    head_b = slab_a_ref[offs['head_b']:offs['head_b'] + 1, :]          # (1, 32)
    heads = jnp.dot(last, head_w, preferred_element_type=jnp.float32,
                    precision=_HP) + head_b                            # (B, 32)
    out_ref[...] = heads[:, 0:3]
    # TODO(synk): padding_mask (key masking + per-sequence last-valid-token
    # gather) not implemented; forward matches the padding_mask=None path.


# ---------------------------------------------------------------------------
#                one-time parameter packing (out of the hot path)
# ---------------------------------------------------------------------------
def pack_params(params, seq_len):
    """Pack the PyTorch-layout parameters into two contiguous f32 slabs.

    Called ONCE at setup — the per-call forward does zero parameter plumbing
    and the kernel sees exactly 3 input DMAs (activations + 2 slabs).
    """
    H = HIDDEN
    dh = H // NHEAD
    scale = 1.0 / float(dh) ** 0.5
    f32 = jnp.float32
    offs = _slab_a_offsets(seq_len)

    def f(x):
        return jnp.asarray(x, f32)

    blocks_a = []
    # input embedding weight (pre-transposed to (F, H))
    emb_w = f(params['emb_w']).T
    blocks_a.append(emb_w)
    if _round8(FEATURE_DIM) != FEATURE_DIM:
        blocks_a.append(jnp.zeros((_round8(FEATURE_DIM) - FEATURE_DIM, H), f32))
    # embedding bias + positional encoding, untiled (S, H)
    embpos = f(params['emb_b'])[None, :] + f(params['pos_emb'])[:seq_len]
    blocks_a.append(embpos)
    if _round8(seq_len) != seq_len:
        blocks_a.append(jnp.zeros((_round8(seq_len) - seq_len, H), f32))
    # fused [regressor | classifier] head, zero-padded to 32 lanes
    head_w = jnp.concatenate([f(params['reg_w']), f(params['cls_w'])], axis=0).T
    blocks_a.append(jnp.pad(head_w, ((0, 0), (0, H - head_w.shape[1]))))
    head_b = jnp.concatenate([f(params['reg_b']), f(params['cls_b'])])
    blocks_a.append(jnp.zeros((8, H), f32).at[0, :head_b.shape[0]].set(head_b))

    blocks_b = []
    for l in range(NUM_LAYERS):
        in_w = f(params['in_proj_w'][l])              # (3H, H), PyTorch [out,in]
        in_b = f(params['in_proj_b'][l])              # (3H,)
        wq, wk, wv = in_w[:H], in_w[H:2 * H], in_w[2 * H:]
        qkv_w = jnp.concatenate([wq.T * scale, wk.T, wv.T], axis=1)    # (H, 3H)
        qkv_w = jnp.pad(qkv_w, ((0, 0), (0, SLAB_B_W - 3 * H)))        # (H, 128)
        bqkv = jnp.concatenate([in_b[:H] * scale, in_b[H:]])           # (3H,)
        bias_blk = jnp.zeros((8, SLAB_B_W), f32)
        bias_blk = bias_blk.at[0, :3 * H].set(bqkv)
        bias_blk = bias_blk.at[1, :FFN].set(f(params['ff1_b'][l]))
        blocks_b += [qkv_w, f(params['ff1_w'][l]).T, bias_blk]

        vec_blk = jnp.zeros((8, H), f32)
        vec_blk = vec_blk.at[0].set(f(params['out_proj_b'][l]))
        vec_blk = vec_blk.at[1].set(f(params['ln1_w'][l]))
        vec_blk = vec_blk.at[2].set(f(params['ln1_b'][l]))
        vec_blk = vec_blk.at[3].set(f(params['ln2_w'][l]))
        vec_blk = vec_blk.at[4].set(f(params['ln2_b'][l]))
        vec_blk = vec_blk.at[5].set(f(params['ff2_b'][l]))
        blocks_a += [f(params['out_proj_w'][l]).T,       # Wo  (H, H)
                     f(params['ff2_w'][l]).T,            # W2  (FFN, H)
                     vec_blk]

    slab_a = jnp.concatenate(blocks_a, axis=0)
    slab_b = jnp.concatenate(blocks_b, axis=0)
    assert slab_a.shape == (offs['total'], H), slab_a.shape
    assert slab_b.shape == (NUM_LAYERS * B_LAYER_STRIDE, SLAB_B_W), slab_b.shape
    return slab_a, slab_b


# ---------------------------------------------------------------------------
#                           per-call jitted forward
# ---------------------------------------------------------------------------
@jax.jit
def complexity_transformer_forward(sequences, slab_a, slab_b):
    B, S, Fdim = sequences.shape
    n_tok = B * S
    seq2d = sequences.reshape(n_tok, Fdim).astype(jnp.float32)

    # Advisory cost estimate so XLA schedules around this tiny call.
    flops = (2 * n_tok * Fdim * HIDDEN
             + NUM_LAYERS * (2 * n_tok * HIDDEN * 3 * HIDDEN     # fused qkv
                             + 2 * 2 * n_tok * S * HIDDEN        # scores + ctx
                             + 2 * n_tok * HIDDEN * HIDDEN       # out proj
                             + 2 * 2 * n_tok * HIDDEN * FFN)     # feed-forward
             + 2 * B * HIDDEN * 3)
    transcendentals = NUM_LAYERS * (NHEAD * B * S * S + n_tok * FFN)
    bytes_accessed = 4 * (n_tok * Fdim + slab_a.size + slab_b.size + B * 3)

    vmem = pltpu.MemorySpace.VMEM
    out = pl.pallas_call(
        functools.partial(complexity_transformer_kernel, batch=B, seq=S),
        out_shape=jax.ShapeDtypeStruct((B, 3), jnp.float32),
        in_specs=[pl.BlockSpec(memory_space=vmem) for _ in range(3)],
        out_specs=pl.BlockSpec(memory_space=vmem),
        cost_estimate=pl.CostEstimate(flops=flops,
                                      transcendentals=transcendentals,
                                      bytes_accessed=bytes_accessed),
    )(seq2d, slab_a, slab_b)
    return out[:, 0:2], out[:, 2:3]


# ---------------------------------------------------------------------------
#                     parameter init + pure-JAX reference
# ---------------------------------------------------------------------------
def make_params(key):
    keys = jax.random.split(key, 24)
    it = iter(keys)

    def nrm(shape, scale=0.05):
        return (scale * jax.random.normal(next(it), shape)).astype(jnp.float32)

    return {
        'emb_w': nrm((HIDDEN, FEATURE_DIM)),          # nn.Linear weight [out, in]
        'emb_b': nrm((HIDDEN,)),
        'pos_emb': nrm((MAX_POS, HIDDEN)),            # nn.Embedding table
        'in_proj_w': nrm((NUM_LAYERS, 3 * HIDDEN, HIDDEN)),
        'in_proj_b': nrm((NUM_LAYERS, 3 * HIDDEN)),
        'out_proj_w': nrm((NUM_LAYERS, HIDDEN, HIDDEN)),
        'out_proj_b': nrm((NUM_LAYERS, HIDDEN)),
        'ln1_w': jnp.ones((NUM_LAYERS, HIDDEN), jnp.float32),
        'ln1_b': jnp.zeros((NUM_LAYERS, HIDDEN), jnp.float32),
        'ln2_w': jnp.ones((NUM_LAYERS, HIDDEN), jnp.float32),
        'ln2_b': jnp.zeros((NUM_LAYERS, HIDDEN), jnp.float32),
        'ff1_w': nrm((NUM_LAYERS, FFN, HIDDEN)),
        'ff1_b': nrm((NUM_LAYERS, FFN)),
        'ff2_w': nrm((NUM_LAYERS, HIDDEN, FFN)),
        'ff2_b': nrm((NUM_LAYERS, HIDDEN)),
        'reg_w': nrm((2, HIDDEN)),
        'reg_b': nrm((2,)),
        'cls_w': nrm((1, HIDDEN)),
        'cls_b': nrm((1,)),
    }


def reference_forward(sequences, params):
    """Pure-JAX reference matching the PyTorch forward (eval, no mask)."""
    B, S, _ = sequences.shape
    dh = HIDDEN // NHEAD
    x = jnp.dot(sequences, params['emb_w'].T, precision=_HP) + params['emb_b']
    x = x + params['pos_emb'][:S][None]
    for l in range(NUM_LAYERS):
        qkv = jnp.dot(x, params['in_proj_w'][l].T, precision=_HP) + params['in_proj_b'][l]
        q, k, v = jnp.split(qkv, 3, axis=-1)
        q = q.reshape(B, S, NHEAD, dh).transpose(0, 2, 1, 3)
        k = k.reshape(B, S, NHEAD, dh).transpose(0, 2, 1, 3)
        v = v.reshape(B, S, NHEAD, dh).transpose(0, 2, 1, 3)
        s = jnp.einsum('bhqd,bhkd->bhqk', q, k, precision=_HP) / dh ** 0.5
        a = jax.nn.softmax(s, axis=-1)
        ctx = jnp.einsum('bhqk,bhkd->bhqd', a, v, precision=_HP)
        ctx = ctx.transpose(0, 2, 1, 3).reshape(B, S, HIDDEN)
        attn_out = (jnp.dot(ctx, params['out_proj_w'][l].T, precision=_HP)
                    + params['out_proj_b'][l])
        x = _layer_norm(x + attn_out, params['ln1_w'][l], params['ln1_b'][l])
        h1 = jax.nn.gelu(jnp.dot(x, params['ff1_w'][l].T, precision=_HP)
                         + params['ff1_b'][l], approximate=False)
        h2 = jnp.dot(h1, params['ff2_w'][l].T, precision=_HP) + params['ff2_b'][l]
        x = _layer_norm(x + h2, params['ln2_w'][l], params['ln2_b'][l])
    last = x[:, -1, :]
    comp = jnp.dot(last, params['reg_w'].T, precision=_HP) + params['reg_b']
    succ = jnp.dot(last, params['cls_w'].T, precision=_HP) + params['cls_b']
    return comp, succ


if __name__ == "__main__":
    key = jax.random.PRNGKey(0)
    k_data, k_params = jax.random.split(key)
    B, S = 2, 8
    sequences = jax.random.normal(k_data, (B, S, FEATURE_DIM), dtype=jnp.float32)
    params = make_params(k_params)

    # one-time packing (hoisted out of the per-call path)
    slab_a, slab_b = jax.block_until_ready(pack_params(params, seq_len=S))

    complexities, success_logit = complexity_transformer_forward(
        sequences, slab_a, slab_b)
    complexities = jax.block_until_ready(complexities)
    success_logit = jax.block_until_ready(success_logit)

    ref_c, ref_s = reference_forward(sequences, params)
    assert complexities.shape == (B, 2) and success_logit.shape == (B, 1)
    # Tolerance covers the 1.5e-7 erf approximation and f32 rounding; both the
    # kernel and the reference use exact softmax and HIGHEST-precision matmuls.
    assert jnp.allclose(complexities, ref_c, atol=1e-3, rtol=1e-3)
    assert jnp.allclose(success_logit, ref_s, atol=1e-3, rtol=1e-3)

    print("KERNEL_OK")
</pallas_src>

<mosaic_0001>
module attributes {stable_mosaic.version = 11 : i64} {
  func.func @complexity_transformer_kernel(%arg0: memref<16x16xf32, #tpu.memory_space<vmem>>, %arg1: memref<400x32xf32, #tpu.memory_space<vmem>>, %arg2: memref<144x128xf32, #tpu.memory_space<vmem>>, %arg3: memref<2x3xf32, #tpu.memory_space<vmem>>) attributes {dimension_semantics = [], scalar_prefetch = 0 : i64, scratch_operands = 0 : i64, tpu.core_type = #tpu.core_type<tc>} {
    %c0 = arith.constant 0 : index
    %c0_0 = arith.constant 0 : index
    %0 = vector.load %arg1[%c0, %c0_0] : memref<400x32xf32, #tpu.memory_space<vmem>>, vector<16x32xf32>
    %c16 = arith.constant 16 : index
    %c0_1 = arith.constant 0 : index
    %1 = vector.load %arg1[%c16, %c0_1] : memref<400x32xf32, #tpu.memory_space<vmem>>, vector<8x32xf32>
    %c0_2 = arith.constant 0 : index
    %c0_3 = arith.constant 0 : index
    %2 = vector.load %arg0[%c0_2, %c0_3] : memref<16x16xf32, #tpu.memory_space<vmem>>, vector<16x16xf32>
    %cst = arith.constant dense<0.000000e+00> : vector<16x32xf32>
    %3 = tpu.matmul %2, %0, %cst {dimension_numbers = #tpu.dot_dimension_numbers<[1], [0], [0], [1], [0, 0, 1, 1], [], []>, precision = #tpu.contract_precision<fp32>} : vector<16x16xf32>, vector<16x32xf32>, vector<16x32xf32> -> vector<16x32xf32>
    %4 = vector.shape_cast %3 : vector<16x32xf32> to vector<2x8x32xf32>
    %5 = vector.shape_cast %1 : vector<8x32xf32> to vector<1x8x32xf32>
    %6 = vector.broadcast %5 : vector<1x8x32xf32> to vector<2x8x32xf32>
    %7 = arith.addf %4, %6 : vector<2x8x32xf32>
    %8 = vector.shape_cast %7 : vector<2x8x32xf32> to vector<16x32xf32>
    %c64 = arith.constant 64 : index
    %c0_4 = arith.constant 0 : index
    %9 = vector.load %arg1[%c64, %c0_4] : memref<400x32xf32, #tpu.memory_space<vmem>>, vector<32x32xf32>
    %c96 = arith.constant 96 : index
    %c0_5 = arith.constant 0 : index
    %10 = vector.load %arg1[%c96, %c0_5] : memref<400x32xf32, #tpu.memory_space<vmem>>, vector<128x32xf32>
    %c224 = arith.constant 224 : index
    %c0_6 = arith.constant 0 : index
    %11 = vector.load %arg1[%c224, %c0_6] : memref<400x32xf32, #tpu.memory_space<vmem>>, vector<8x32xf32>
    %12 = vector.extract_strided_slice %11 {offsets = [0, 0], sizes = [1, 32], strides = [1, 1]} : vector<8x32xf32> to vector<1x32xf32>
    %13 = vector.extract_strided_slice %11 {offsets = [1, 0], sizes = [1, 32], strides = [1, 1]} : vector<8x32xf32> to vector<1x32xf32>
    %14 = vector.extract_strided_slice %11 {offsets = [2, 0], sizes = [1, 32], strides = [1, 1]} : vector<8x32xf32> to vector<1x32xf32>
    %15 = vector.extract_strided_slice %11 {offsets = [3, 0], sizes = [1, 32], strides = [1, 1]} : vector<8x32xf32> to vector<1x32xf32>
    %16 = vector.extract_strided_slice %11 {offsets = [4, 0], sizes = [1, 32], strides = [1, 1]} : vector<8x32xf32> to vector<1x32xf32>
    %17 = vector.extract_strided_slice %11 {offsets = [5, 0], sizes = [1, 32], strides = [1, 1]} : vector<8x32xf32> to vector<1x32xf32>
    %c0_7 = arith.constant 0 : index
    %c0_8 = arith.constant 0 : index
    %18 = vector.load %arg2[%c0_7, %c0_8] : memref<144x128xf32, #tpu.memory_space<vmem>>, vector<32x128xf32>
    %c32 = arith.constant 32 : index
    %c0_9 = arith.constant 0 : index
    %19 = vector.load %arg2[%c32, %c0_9] : memref<144x128xf32, #tpu.memory_space<vmem>>, vector<32x128xf32>
    %c64_10 = arith.constant 64 : index
    %c0_11 = arith.constant 0 : index
    %20 = vector.load %arg2[%c64_10, %c0_11] : memref<144x128xf32, #tpu.memory_space<vmem>>, vector<8x128xf32>
    %21 = vector.extract_strided_slice %20 {offsets = [0, 0], sizes = [1, 128], strides = [1, 1]} : vector<8x128xf32> to vector<1x128xf32>
    %22 = vector.extract_strided_slice %20 {offsets = [1, 0], sizes = [1, 128], strides = [1, 1]} : vector<8x128xf32> to vector<1x128xf32>
    %cst_12 = arith.constant dense<0.000000e+00> : vector<16x128xf32>
    %23 = tpu.matmul %8, %18, %cst_12 {dimension_numbers = #tpu.dot_dimension_numbers<[1], [0], [0], [1], [0, 0, 1, 1], [], []>, precision = #tpu.contract_precision<fp32>} : vector<16x32xf32>, vector<32x128xf32>, vector<16x128xf32> -> vector<16x128xf32>
    %24 = vector.broadcast %21 : vector<1x128xf32> to vector<16x128xf32>
    %25 = arith.addf %23, %24 : vector<16x128xf32>
    %26 = vector.extract_strided_slice %25 {offsets = [0, 0], sizes = [16, 8], strides = [1, 1]} : vector<16x128xf32> to vector<16x8xf32>
    %27 = vector.shape_cast %26 : vector<16x8xf32> to vector<2x8x8xf32>
    %28 = vector.extract_strided_slice %25 {offsets = [0, 8], sizes = [16, 8], strides = [1, 1]} : vector<16x128xf32> to vector<16x8xf32>
    %29 = vector.shape_cast %28 : vector<16x8xf32> to vector<2x8x8xf32>
    %30 = vector.extract_strided_slice %25 {offsets = [0, 16], sizes = [16, 8], strides = [1, 1]} : vector<16x128xf32> to vector<16x8xf32>
    %31 = vector.shape_cast %30 : vector<16x8xf32> to vector<2x8x8xf32>
    %32 = vector.extract_strided_slice %25 {offsets = [0, 24], sizes = [16, 8], strides = [1, 1]} : vector<16x128xf32> to vector<16x8xf32>
    %33 = vector.shape_cast %32 : vector<16x8xf32> to vector<2x8x8xf32>
    %34 = tpu.concatenate %27, %29, %31, %33 in 0 : vector<2x8x8xf32>, vector<2x8x8xf32>, vector<2x8x8xf32>, vector<2x8x8xf32> -> vector<8x8x8xf32>
    %35 = vector.extract_strided_slice %25 {offsets = [0, 32], sizes = [16, 8], strides = [1, 1]} : vector<16x128xf32> to vector<16x8xf32>
    %36 = vector.shape_cast %35 : vector<16x8xf32> to vector<2x8x8xf32>
    %37 = vector.extract_strided_slice %25 {offsets = [0, 40], sizes = [16, 8], strides = [1, 1]} : vector<16x128xf32> to vector<16x8xf32>
    %38 = vector.shape_cast %37 : vector<16x8xf32> to vector<2x8x8xf32>
    %39 = vector.extract_strided_slice %25 {offsets = [0, 48], sizes = [16, 8], strides = [1, 1]} : vector<16x128xf32> to vector<16x8xf32>
    %40 = vector.shape_cast %39 : vector<16x8xf32> to vector<2x8x8xf32>
    %41 = vector.extract_strided_slice %25 {offsets = [0, 56], sizes = [16, 8], strides = [1, 1]} : vector<16x128xf32> to vector<16x8xf32>
    %42 = vector.shape_cast %41 : vector<16x8xf32> to vector<2x8x8xf32>
    %43 = tpu.concatenate %36, %38, %40, %42 in 0 : vector<2x8x8xf32>, vector<2x8x8xf32>, vector<2x8x8xf32>, vector<2x8x8xf32> -> vector<8x8x8xf32>
    %44 = vector.extract_strided_slice %25 {offsets = [0, 64], sizes = [16, 8], strides = [1, 1]} : vector<16x128xf32> to vector<16x8xf32>
    %45 = vector.shape_cast %44 : vector<16x8xf32> to vector<2x8x8xf32>
    %46 = vector.extract_strided_slice %25 {offsets = [0, 72], sizes = [16, 8], strides = [1, 1]} : vector<16x128xf32> to vector<16x8xf32>
    %47 = vector.shape_cast %46 : vector<16x8xf32> to vector<2x8x8xf32>
    %48 = vector.extract_strided_slice %25 {offsets = [0, 80], sizes = [16, 8], strides = [1, 1]} : vector<16x128xf32> to vector<16x8xf32>
    %49 = vector.shape_cast %48 : vector<16x8xf32> to vector<2x8x8xf32>
    %50 = vector.extract_strided_slice %25 {offsets = [0, 88], sizes = [16, 8], strides = [1, 1]} : vector<16x128xf32> to vector<16x8xf32>
    %51 = vector.shape_cast %50 : vector<16x8xf32> to vector<2x8x8xf32>
    %52 = tpu.concatenate %45, %47, %49, %51 in 0 : vector<2x8x8xf32>, vector<2x8x8xf32>, vector<2x8x8xf32>, vector<2x8x8xf32> -> vector<8x8x8xf32>
    "tpu.trace_start"() <{level = 10 : i32, message = "gqd,gkd->gqk"}> : () -> ()
    %cst_13 = arith.constant dense<0.000000e+00> : vector<8x8x8xf32>
    %53 = tpu.matmul %34, %43, %cst_13 {dimension_numbers = #tpu.dot_dimension_numbers<[2], [2], [1], [1], [0, 0, 0, 1, 1, 1], [0], [0]>, precision = #tpu.contract_precision<fp32>} : vector<8x8x8xf32>, vector<8x8x8xf32>, vector<8x8x8xf32> -> vector<8x8x8xf32>
    "tpu.trace_stop"() : () -> ()
    %cst_14 = arith.constant dense<0xFF800000> : vector<8x8xf32>
    %54 = vector.multi_reduction <maximumf>, %53, %cst_14 [2] : vector<8x8x8xf32> to vector<8x8xf32>
    %55 = vector.shape_cast %54 : vector<8x8xf32> to vector<8x8x1xf32>
    %56 = vector.broadcast %55 : vector<8x8x1xf32> to vector<8x8x8xf32>
    %57 = arith.subf %53, %56 : vector<8x8x8xf32>
    %58 = math.exp %57 : vector<8x8x8xf32>
    %cst_15 = arith.constant dense<0.000000e+00> : vector<8x8xf32>
    %59 = vector.multi_reduction <add>, %58, %cst_15 [2] : vector<8x8x8xf32> to vector<8x8xf32>
    %60 = vector.shape_cast %59 : vector<8x8xf32> to vector<8x8x1xf32>
    %61 = vector.broadcast %60 : vector<8x8x1xf32> to vector<8x8x8xf32>
    %62 = arith.divf %58, %61 : vector<8x8x8xf32>
    "tpu.trace_start"() <{level = 10 : i32, message = "gqk,gkd->gqd"}> : () -> ()
    %cst_16 = arith.constant dense<0.000000e+00> : vector<8x8x8xf32>
    %63 = tpu.matmul %62, %52, %cst_16 {dimension_numbers = #tpu.dot_dimension_numbers<[2], [1], [1], [2], [0, 0, 0, 1, 1, 2], [0], [0]>, precision = #tpu.contract_precision<fp32>} : vector<8x8x8xf32>, vector<8x8x8xf32>, vector<8x8x8xf32> -> vector<8x8x8xf32>
    "tpu.trace_stop"() : () -> ()
    %64 = vector.extract_strided_slice %63 {offsets = [0, 0, 0], sizes = [2, 8, 8], strides = [1, 1, 1]} : vector<8x8x8xf32> to vector<2x8x8xf32>
    %65 = vector.shape_cast %64 : vector<2x8x8xf32> to vector<16x8xf32>
    %66 = vector.extract_strided_slice %63 {offsets = [2, 0, 0], sizes = [2, 8, 8], strides = [1, 1, 1]} : vector<8x8x8xf32> to vector<2x8x8xf32>
    %67 = vector.shape_cast %66 : vector<2x8x8xf32> to vector<16x8xf32>
    %68 = vector.extract_strided_slice %63 {offsets = [4, 0, 0], sizes = [2, 8, 8], strides = [1, 1, 1]} : vector<8x8x8xf32> to vector<2x8x8xf32>
    %69 = vector.shape_cast %68 : vector<2x8x8xf32> to vector<16x8xf32>
    %70 = vector.extract_strided_slice %63 {offsets = [6, 0, 0], sizes = [2, 8, 8], strides = [1, 1, 1]} : vector<8x8x8xf32> to vector<2x8x8xf32>
    %71 = vector.shape_cast %70 : vector<2x8x8xf32> to vector<16x8xf32>
    %72 = tpu.concatenate %65, %67, %69, %71 in 1 : vector<16x8xf32>, vector<16x8xf32>, vector<16x8xf32>, vector<16x8xf32> -> vector<16x32xf32>
    %cst_17 = arith.constant dense<0.000000e+00> : vector<16x32xf32>
    %73 = tpu.matmul %72, %9, %cst_17 {dimension_numbers = #tpu.dot_dimension_numbers<[1], [0], [0], [1], [0, 0, 1, 1], [], []>, precision = #tpu.contract_precision<fp32>} : vector<16x32xf32>, vector<32x32xf32>, vector<16x32xf32> -> vector<16x32xf32>
    %74 = vector.broadcast %12 : vector<1x32xf32> to vector<16x32xf32>
    %75 = arith.addf %73, %74 : vector<16x32xf32>
    %76 = arith.addf %8, %75 : vector<16x32xf32>
    %cst_18 = arith.constant dense<0.000000e+00> : vector<16xf32>
    %77 = vector.multi_reduction <add>, %76, %cst_18 [1] : vector<16x32xf32> to vector<16xf32>
    %78 = vector.shape_cast %77 : vector<16xf32> to vector<16x1xf32>
    %cst_19 = arith.constant 3.200000e+01 : f32
    %79 = vector.broadcast %cst_19 : f32 to vector<16x1xf32>
    %80 = arith.divf %78, %79 : vector<16x1xf32>
    %81 = vector.broadcast %80 : vector<16x1xf32> to vector<16x32xf32>
    %82 = arith.subf %76, %81 : vector<16x32xf32>
    %83 = arith.mulf %82, %82 : vector<16x32xf32>
    %cst_20 = arith.constant dense<0.000000e+00> : vector<16xf32>
    %84 = vector.multi_reduction <add>, %83, %cst_20 [1] : vector<16x32xf32> to vector<16xf32>
    %85 = vector.shape_cast %84 : vector<16xf32> to vector<16x1xf32>
    %cst_21 = arith.constant 3.200000e+01 : f32
    %86 = vector.broadcast %cst_21 : f32 to vector<16x1xf32>
    %87 = arith.divf %85, %86 : vector<16x1xf32>
    %88 = vector.broadcast %80 : vector<16x1xf32> to vector<16x32xf32>
    %89 = arith.subf %76, %88 : vector<16x32xf32>
    %cst_22 = arith.constant 9.99999974E-6 : f32
    %90 = vector.broadcast %cst_22 : f32 to vector<16x1xf32>
    %91 = arith.addf %87, %90 : vector<16x1xf32>
    %92 = math.rsqrt %91 : vector<16x1xf32>
    %93 = vector.broadcast %92 : vector<16x1xf32> to vector<16x32xf32>
    %94 = arith.mulf %89, %93 : vector<16x32xf32>
    %95 = vector.broadcast %13 : vector<1x32xf32> to vector<16x32xf32>
    %96 = arith.mulf %94, %95 : vector<16x32xf32>
    %97 = vector.broadcast %14 : vector<1x32xf32> to vector<16x32xf32>
    %98 = arith.addf %96, %97 : vector<16x32xf32>
    %cst_23 = arith.constant dense<0.000000e+00> : vector<16x128xf32>
    %99 = tpu.matmul %98, %19, %cst_23 {dimension_numbers = #tpu.dot_dimension_numbers<[1], [0], [0], [1], [0, 0, 1, 1], [], []>, precision = #tpu.contract_precision<fp32>} : vector<16x32xf32>, vector<32x128xf32>, vector<16x128xf32> -> vector<16x128xf32>
    %100 = vector.broadcast %22 : vector<1x128xf32> to vector<16x128xf32>
    %101 = arith.addf %99, %100 : vector<16x128xf32>
    %cst_24 = arith.constant 5.000000e-01 : f32
    %102 = vector.broadcast %cst_24 : f32 to vector<16x128xf32>
    %103 = arith.mulf %102, %101 : vector<16x128xf32>
    %cst_25 = arith.constant 0.707106769 : f32
    %104 = vector.broadcast %cst_25 : f32 to vector<16x128xf32>
    %105 = arith.mulf %101, %104 : vector<16x128xf32>
    %106 = math.absf %105 : vector<16x128xf32>
    %cst_26 = arith.constant 0.327591091 : f32
    %107 = vector.broadcast %cst_26 : f32 to vector<16x128xf32>
    %108 = arith.mulf %107, %106 : vector<16x128xf32>
    %cst_27 = arith.constant 1.000000e+00 : f32
    %109 = vector.broadcast %cst_27 : f32 to vector<16x128xf32>
    %110 = arith.addf %109, %108 : vector<16x128xf32>
    %cst_28 = arith.constant 1.000000e+00 : f32
    %111 = vector.broadcast %cst_28 : f32 to vector<16x128xf32>
    %112 = arith.divf %111, %110 : vector<16x128xf32>
    %cst_29 = arith.constant 1.06140542 : f32
    %113 = vector.broadcast %cst_29 : f32 to vector<16x128xf32>
    %114 = arith.mulf %113, %112 : vector<16x128xf32>
    %cst_30 = arith.constant -1.45315206 : f32
    %115 = vector.broadcast %cst_30 : f32 to vector<16x128xf32>
    %116 = arith.addf %114, %115 : vector<16x128xf32>
    %117 = arith.mulf %116, %112 : vector<16x128xf32>
    %cst_31 = arith.constant 1.42141378 : f32
    %118 = vector.broadcast %cst_31 : f32 to vector<16x128xf32>
    %119 = arith.addf %117, %118 : vector<16x128xf32>
    %120 = arith.mulf %119, %112 : vector<16x128xf32>
    %cst_32 = arith.constant -0.284496725 : f32
    %121 = vector.broadcast %cst_32 : f32 to vector<16x128xf32>
    %122 = arith.addf %120, %121 : vector<16x128xf32>
    %123 = arith.mulf %122, %112 : vector<16x128xf32>
    %cst_33 = arith.constant 0.254829586 : f32
    %124 = vector.broadcast %cst_33 : f32 to vector<16x128xf32>
    %125 = arith.addf %123, %124 : vector<16x128xf32>
    %126 = arith.mulf %125, %112 : vector<16x128xf32>
    %cst_34 = arith.constant 0.000000e+00 : f32
    %127 = vector.broadcast %cst_34 : f32 to vector<16x128xf32>
    %128 = arith.subf %127, %106 : vector<16x128xf32>
    %129 = arith.mulf %128, %106 : vector<16x128xf32>
    %130 = math.exp %129 : vector<16x128xf32>
    %131 = arith.mulf %126, %130 : vector<16x128xf32>
    %cst_35 = arith.constant 1.000000e+00 : f32
    %132 = vector.broadcast %cst_35 : f32 to vector<16x128xf32>
    %133 = arith.subf %132, %131 : vector<16x128xf32>
    %cst_36 = arith.constant 0.000000e+00 : f32
    %134 = vector.broadcast %cst_36 : f32 to vector<16x128xf32>
    %135 = arith.cmpf oge, %105, %134 : vector<16x128xf32>
    %cst_37 = arith.constant 0.000000e+00 : f32
    %136 = vector.broadcast %cst_37 : f32 to vector<16x128xf32>
    %137 = arith.subf %136, %133 : vector<16x128xf32>
    %138 = arith.select %135, %133, %137 : vector<16x128xi1>, vector<16x128xf32>
    %cst_38 = arith.constant 1.000000e+00 : f32
    %139 = vector.broadcast %cst_38 : f32 to vector<16x128xf32>
    %140 = arith.addf %139, %138 : vector<16x128xf32>
    %141 = arith.mulf %103, %140 : vector<16x128xf32>
    %cst_39 = arith.constant dense<0.000000e+00> : vector<16x32xf32>
    %142 = tpu.matmul %141, %10, %cst_39 {dimension_numbers = #tpu.dot_dimension_numbers<[1], [0], [0], [1], [0, 0, 1, 1], [], []>, precision = #tpu.contract_precision<fp32>} : vector<16x128xf32>, vector<128x32xf32>, vector<16x32xf32> -> vector<16x32xf32>
    %143 = vector.broadcast %17 : vector<1x32xf32> to vector<16x32xf32>
    %144 = arith.addf %142, %143 : vector<16x32xf32>
    %145 = arith.addf %98, %144 : vector<16x32xf32>
    %cst_40 = arith.constant dense<0.000000e+00> : vector<16xf32>
    %146 = vector.multi_reduction <add>, %145, %cst_40 [1] : vector<16x32xf32> to vector<16xf32>
    %147 = vector.shape_cast %146 : vector<16xf32> to vector<16x1xf32>
    %cst_41 = arith.constant 3.200000e+01 : f32
    %148 = vector.broadcast %cst_41 : f32 to vector<16x1xf32>
    %149 = arith.divf %147, %148 : vector<16x1xf32>
    %150 = vector.broadcast %149 : vector<16x1xf32> to vector<16x32xf32>
    %151 = arith.subf %145, %150 : vector<16x32xf32>
    %152 = arith.mulf %151, %151 : vector<16x32xf32>
    %cst_42 = arith.constant dense<0.000000e+00> : vector<16xf32>
    %153 = vector.multi_reduction <add>, %152, %cst_42 [1] : vector<16x32xf32> to vector<16xf32>
    %154 = vector.shape_cast %153 : vector<16xf32> to vector<16x1xf32>
    %cst_43 = arith.constant 3.200000e+01 : f32
    %155 = vector.broadcast %cst_43 : f32 to vector<16x1xf32>
    %156 = arith.divf %154, %155 : vector<16x1xf32>
    %157 = vector.broadcast %149 : vector<16x1xf32> to vector<16x32xf32>
    %158 = arith.subf %145, %157 : vector<16x32xf32>
    %cst_44 = arith.constant 9.99999974E-6 : f32
    %159 = vector.broadcast %cst_44 : f32 to vector<16x1xf32>
    %160 = arith.addf %156, %159 : vector<16x1xf32>
    %161 = math.rsqrt %160 : vector<16x1xf32>
    %162 = vector.broadcast %161 : vector<16x1xf32> to vector<16x32xf32>
    %163 = arith.mulf %158, %162 : vector<16x32xf32>
    %164 = vector.broadcast %15 : vector<1x32xf32> to vector<16x32xf32>
    %165 = arith.mulf %163, %164 : vector<16x32xf32>
    %166 = vector.broadcast %16 : vector<1x32xf32> to vector<16x32xf32>
    %167 = arith.addf %165, %166 : vector<16x32xf32>
    %c232 = arith.constant 232 : index
    %c0_45 = arith.constant 0 : index
    %168 = vector.load %arg1[%c232, %c0_45] : memref<400x32xf32, #tpu.memory_space<vmem>>, vector<32x32xf32>
    %c264 = arith.constant 264 : index
    %c0_46 = arith.constant 0 : index
    %169 = vector.load %arg1[%c264, %c0_46] : memref<400x32xf32, #tpu.memory_space<vmem>>, vector<128x32xf32>
    %c392 = arith.constant 392 : index
    %c0_47 = arith.constant 0 : index
    %170 = vector.load %arg1[%c392, %c0_47] : memref<400x32xf32, #tpu.memory_space<vmem>>, vector<8x32xf32>
    %171 = vector.extract_strided_slice %170 {offsets = [0, 0], sizes = [1, 32], strides = [1, 1]} : vector<8x32xf32> to vector<1x32xf32>
    %172 = vector.extract_strided_slice %170 {offsets = [1, 0], sizes = [1, 32], strides = [1, 1]} : vector<8x32xf32> to vector<1x32xf32>
    %173 = vector.extract_strided_slice %170 {offsets = [2, 0], sizes = [1, 32], strides = [1, 1]} : vector<8x32xf32> to vector<1x32xf32>
    %174 = vector.extract_strided_slice %170 {offsets = [3, 0], sizes = [1, 32], strides = [1, 1]} : vector<8x32xf32> to vector<1x32xf32>
    %175 = vector.extract_strided_slice %170 {offsets = [4, 0], sizes = [1, 32], strides = [1, 1]} : vector<8x32xf32> to vector<1x32xf32>
    %176 = vector.extract_strided_slice %170 {offsets = [5, 0], sizes = [1, 32], strides = [1, 1]} : vector<8x32xf32> to vector<1x32xf32>
    %c72 = arith.constant 72 : index
    %c0_48 = arith.constant 0 : index
    %177 = vector.load %arg2[%c72, %c0_48] : memref<144x128xf32, #tpu.memory_space<vmem>>, vector<32x128xf32>
    %c104 = arith.constant 104 : index
    %c0_49 = arith.constant 0 : index
    %178 = vector.load %arg2[%c104, %c0_49] : memref<144x128xf32, #tpu.memory_space<vmem>>, vector<32x128xf32>
    %c136 = arith.constant 136 : index
    %c0_50 = arith.constant 0 : index
    %179 = vector.load %arg2[%c136, %c0_50] : memref<144x128xf32, #tpu.memory_space<vmem>>, vector<8x128xf32>
    %180 = vector.extract_strided_slice %179 {offsets = [0, 0], sizes = [1, 128], strides = [1, 1]} : vector<8x128xf32> to vector<1x128xf32>
    %181 = vector.extract_strided_slice %179 {offsets = [1, 0], sizes = [1, 128], strides = [1, 1]} : vector<8x128xf32> to vector<1x128xf32>
    %cst_51 = arith.constant dense<0.000000e+00> : vector<16x128xf32>
    %182 = tpu.matmul %167, %177, %cst_51 {dimension_numbers = #tpu.dot_dimension_numbers<[1], [0], [0], [1], [0, 0, 1, 1], [], []>, precision = #tpu.contract_precision<fp32>} : vector<16x32xf32>, vector<32x128xf32>, vector<16x128xf32> -> vector<16x128xf32>
    %183 = vector.broadcast %180 : vector<1x128xf32> to vector<16x128xf32>
    %184 = arith.addf %182, %183 : vector<16x128xf32>
    %185 = vector.extract_strided_slice %184 {offsets = [0, 0], sizes = [16, 8], strides = [1, 1]} : vector<16x128xf32> to vector<16x8xf32>
    %186 = vector.shape_cast %185 : vector<16x8xf32> to vector<2x8x8xf32>
    %187 = vector.extract_strided_slice %184 {offsets = [0, 8], sizes = [16, 8], strides = [1, 1]} : vector<16x128xf32> to vector<16x8xf32>
    %188 = vector.shape_cast %187 : vector<16x8xf32> to vector<2x8x8xf32>
    %189 = vector.extract_strided_slice %184 {offsets = [0, 16], sizes = [16, 8], strides = [1, 1]} : vector<16x128xf32> to vector<16x8xf32>
    %190 = vector.shape_cast %189 : vector<16x8xf32> to vector<2x8x8xf32>
    %191 = vector.extract_strided_slice %184 {offsets = [0, 24], sizes = [16, 8], strides = [1, 1]} : vector<16x128xf32> to vector<16x8xf32>
    %192 = vector.shape_cast %191 : vector<16x8xf32> to vector<2x8x8xf32>
    %193 = tpu.concatenate %186, %188, %190, %192 in 0 : vector<2x8x8xf32>, vector<2x8x8xf32>, vector<2x8x8xf32>, vector<2x8x8xf32> -> vector<8x8x8xf32>
    %194 = vector.extract_strided_slice %184 {offsets = [0, 32], sizes = [16, 8], strides = [1, 1]} : vector<16x128xf32> to vector<16x8xf32>
    %195 = vector.shape_cast %194 : vector<16x8xf32> to vector<2x8x8xf32>
    %196 = vector.extract_strided_slice %184 {offsets = [0, 40], sizes = [16, 8], strides = [1, 1]} : vector<16x128xf32> to vector<16x8xf32>
    %197 = vector.shape_cast %196 : vector<16x8xf32> to vector<2x8x8xf32>
    %198 = vector.extract_strided_slice %184 {offsets = [0, 48], sizes = [16, 8], strides = [1, 1]} : vector<16x128xf32> to vector<16x8xf32>
    %199 = vector.shape_cast %198 : vector<16x8xf32> to vector<2x8x8xf32>
    %200 = vector.extract_strided_slice %184 {offsets = [0, 56], sizes = [16, 8], strides = [1, 1]} : vector<16x128xf32> to vector<16x8xf32>
    %201 = vector.shape_cast %200 : vector<16x8xf32> to vector<2x8x8xf32>
    %202 = tpu.concatenate %195, %197, %199, %201 in 0 : vector<2x8x8xf32>, vector<2x8x8xf32>, vector<2x8x8xf32>, vector<2x8x8xf32> -> vector<8x8x8xf32>
    %203 = vector.extract_strided_slice %184 {offsets = [0, 64], sizes = [16, 8], strides = [1, 1]} : vector<16x128xf32> to vector<16x8xf32>
    %204 = vector.shape_cast %203 : vector<16x8xf32> to vector<2x8x8xf32>
    %205 = vector.extract_strided_slice %184 {offsets = [0, 72], sizes = [16, 8], strides = [1, 1]} : vector<16x128xf32> to vector<16x8xf32>
    %206 = vector.shape_cast %205 : vector<16x8xf32> to vector<2x8x8xf32>
    %207 = vector.extract_strided_slice %184 {offsets = [0, 80], sizes = [16, 8], strides = [1, 1]} : vector<16x128xf32> to vector<16x8xf32>
    %208 = vector.shape_cast %207 : vector<16x8xf32> to vector<2x8x8xf32>
    %209 = vector.extract_strided_slice %184 {offsets = [0, 88], sizes = [16, 8], strides = [1, 1]} : vector<16x128xf32> to vector<16x8xf32>
    %210 = vector.shape_cast %209 : vector<16x8xf32> to vector<2x8x8xf32>
    %211 = tpu.concatenate %204, %206, %208, %210 in 0 : vector<2x8x8xf32>, vector<2x8x8xf32>, vector<2x8x8xf32>, vector<2x8x8xf32> -> vector<8x8x8xf32>
    "tpu.trace_start"() <{level = 10 : i32, message = "gqd,gkd->gqk"}> : () -> ()
    %cst_52 = arith.constant dense<0.000000e+00> : vector<8x8x8xf32>
    %212 = tpu.matmul %193, %202, %cst_52 {dimension_numbers = #tpu.dot_dimension_numbers<[2], [2], [1], [1], [0, 0, 0, 1, 1, 1], [0], [0]>, precision = #tpu.contract_precision<fp32>} : vector<8x8x8xf32>, vector<8x8x8xf32>, vector<8x8x8xf32> -> vector<8x8x8xf32>
    "tpu.trace_stop"() : () -> ()
    %cst_53 = arith.constant dense<0xFF800000> : vector<8x8xf32>
    %213 = vector.multi_reduction <maximumf>, %212, %cst_53 [2] : vector<8x8x8xf32> to vector<8x8xf32>
    %214 = vector.shape_cast %213 : vector<8x8xf32> to vector<8x8x1xf32>
    %215 = vector.broadcast %214 : vector<8x8x1xf32> to vector<8x8x8xf32>
    %216 = arith.subf %212, %215 : vector<8x8x8xf32>
    %217 = math.exp %216 : vector<8x8x8xf32>
    %cst_54 = arith.constant dense<0.000000e+00> : vector<8x8xf32>
    %218 = vector.multi_reduction <add>, %217, %cst_54 [2] : vector<8x8x8xf32> to vector<8x8xf32>
    %219 = vector.shape_cast %218 : vector<8x8xf32> to vector<8x8x1xf32>
    %220 = vector.broadcast %219 : vector<8x8x1xf32> to vector<8x8x8xf32>
    %221 = arith.divf %217, %220 : vector<8x8x8xf32>
    "tpu.trace_start"() <{level = 10 : i32, message = "gqk,gkd->gqd"}> : () -> ()
    %cst_55 = arith.constant dense<0.000000e+00> : vector<8x8x8xf32>
    %222 = tpu.matmul %221, %211, %cst_55 {dimension_numbers = #tpu.dot_dimension_numbers<[2], [1], [1], [2], [0, 0, 0, 1, 1, 2], [0], [0]>, precision = #tpu.contract_precision<fp32>} : vector<8x8x8xf32>, vector<8x8x8xf32>, vector<8x8x8xf32> -> vector<8x8x8xf32>
    "tpu.trace_stop"() : () -> ()
    %223 = vector.extract_strided_slice %222 {offsets = [0, 0, 0], sizes = [2, 8, 8], strides = [1, 1, 1]} : vector<8x8x8xf32> to vector<2x8x8xf32>
    %224 = vector.shape_cast %223 : vector<2x8x8xf32> to vector<16x8xf32>
    %225 = vector.extract_strided_slice %222 {offsets = [2, 0, 0], sizes = [2, 8, 8], strides = [1, 1, 1]} : vector<8x8x8xf32> to vector<2x8x8xf32>
    %226 = vector.shape_cast %225 : vector<2x8x8xf32> to vector<16x8xf32>
    %227 = vector.extract_strided_slice %222 {offsets = [4, 0, 0], sizes = [2, 8, 8], strides = [1, 1, 1]} : vector<8x8x8xf32> to vector<2x8x8xf32>
    %228 = vector.shape_cast %227 : vector<2x8x8xf32> to vector<16x8xf32>
    %229 = vector.extract_strided_slice %222 {offsets = [6, 0, 0], sizes = [2, 8, 8], strides = [1, 1, 1]} : vector<8x8x8xf32> to vector<2x8x8xf32>
    %230 = vector.shape_cast %229 : vector<2x8x8xf32> to vector<16x8xf32>
    %231 = tpu.concatenate %224, %226, %228, %230 in 1 : vector<16x8xf32>, vector<16x8xf32>, vector<16x8xf32>, vector<16x8xf32> -> vector<16x32xf32>
    %cst_56 = arith.constant dense<0.000000e+00> : vector<16x32xf32>
    %232 = tpu.matmul %231, %168, %cst_56 {dimension_numbers = #tpu.dot_dimension_numbers<[1], [0], [0], [1], [0, 0, 1, 1], [], []>, precision = #tpu.contract_precision<fp32>} : vector<16x32xf32>, vector<32x32xf32>, vector<16x32xf32> -> vector<16x32xf32>
    %233 = vector.broadcast %171 : vector<1x32xf32> to vector<16x32xf32>
    %234 = arith.addf %232, %233 : vector<16x32xf32>
    %235 = arith.addf %167, %234 : vector<16x32xf32>
    %cst_57 = arith.constant dense<0.000000e+00> : vector<16xf32>
    %236 = vector.multi_reduction <add>, %235, %cst_57 [1] : vector<16x32xf32> to vector<16xf32>
    %237 = vector.shape_cast %236 : vector<16xf32> to vector<16x1xf32>
    %cst_58 = arith.constant 3.200000e+01 : f32
    %238 = vector.broadcast %cst_58 : f32 to vector<16x1xf32>
    %239 = arith.divf %237, %238 : vector<16x1xf32>
    %240 = vector.broadcast %239 : vector<16x1xf32> to vector<16x32xf32>
    %241 = arith.subf %235, %240 : vector<16x32xf32>
    %242 = arith.mulf %241, %241 : vector<16x32xf32>
    %cst_59 = arith.constant dense<0.000000e+00> : vector<16xf32>
    %243 = vector.multi_reduction <add>, %242, %cst_59 [1] : vector<16x32xf32> to vector<16xf32>
    %244 = vector.shape_cast %243 : vector<16xf32> to vector<16x1xf32>
    %cst_60 = arith.constant 3.200000e+01 : f32
    %245 = vector.broadcast %cst_60 : f32 to vector<16x1xf32>
    %246 = arith.divf %244, %245 : vector<16x1xf32>
    %247 = vector.broadcast %239 : vector<16x1xf32> to vector<16x32xf32>
    %248 = arith.subf %235, %247 : vector<16x32xf32>
    %cst_61 = arith.constant 9.99999974E-6 : f32
    %249 = vector.broadcast %cst_61 : f32 to vector<16x1xf32>
    %250 = arith.addf %246, %249 : vector<16x1xf32>
    %251 = math.rsqrt %250 : vector<16x1xf32>
    %252 = vector.broadcast %251 : vector<16x1xf32> to vector<16x32xf32>
    %253 = arith.mulf %248, %252 : vector<16x32xf32>
    %254 = vector.broadcast %172 : vector<1x32xf32> to vector<16x32xf32>
    %255 = arith.mulf %253, %254 : vector<16x32xf32>
    %256 = vector.broadcast %173 : vector<1x32xf32> to vector<16x32xf32>
    %257 = arith.addf %255, %256 : vector<16x32xf32>
    %cst_62 = arith.constant dense<0.000000e+00> : vector<16x128xf32>
    %258 = tpu.matmul %257, %178, %cst_62 {dimension_numbers = #tpu.dot_dimension_numbers<[1], [0], [0], [1], [0, 0, 1, 1], [], []>, precision = #tpu.contract_precision<fp32>} : vector<16x32xf32>, vector<32x128xf32>, vector<16x128xf32> -> vector<16x128xf32>
    %259 = vector.broadcast %181 : vector<1x128xf32> to vector<16x128xf32>
    %260 = arith.addf %258, %259 : vector<16x128xf32>
    %cst_63 = arith.constant 5.000000e-01 : f32
    %261 = vector.broadcast %cst_63 : f32 to vector<16x128xf32>
    %262 = arith.mulf %261, %260 : vector<16x128xf32>
    %cst_64 = arith.constant 0.707106769 : f32
    %263 = vector.broadcast %cst_64 : f32 to vector<16x128xf32>
    %264 = arith.mulf %260, %263 : vector<16x128xf32>
    %265 = math.absf %264 : vector<16x128xf32>
    %cst_65 = arith.constant 0.327591091 : f32
    %266 = vector.broadcast %cst_65 : f32 to vector<16x128xf32>
    %267 = arith.mulf %266, %265 : vector<16x128xf32>
    %cst_66 = arith.constant 1.000000e+00 : f32
    %268 = vector.broadcast %cst_66 : f32 to vector<16x128xf32>
    %269 = arith.addf %268, %267 : vector<16x128xf32>
    %cst_67 = arith.constant 1.000000e+00 : f32
    %270 = vector.broadcast %cst_67 : f32 to vector<16x128xf32>
    %271 = arith.divf %270, %269 : vector<16x128xf32>
    %cst_68 = arith.constant 1.06140542 : f32
    %272 = vector.broadcast %cst_68 : f32 to vector<16x128xf32>
    %273 = arith.mulf %272, %271 : vector<16x128xf32>
    %cst_69 = arith.constant -1.45315206 : f32
    %274 = vector.broadcast %cst_69 : f32 to vector<16x128xf32>
    %275 = arith.addf %273, %274 : vector<16x128xf32>
    %276 = arith.mulf %275, %271 : vector<16x128xf32>
    %cst_70 = arith.constant 1.42141378 : f32
    %277 = vector.broadcast %cst_70 : f32 to vector<16x128xf32>
    %278 = arith.addf %276, %277 : vector<16x128xf32>
    %279 = arith.mulf %278, %271 : vector<16x128xf32>
    %cst_71 = arith.constant -0.284496725 : f32
    %280 = vector.broadcast %cst_71 : f32 to vector<16x128xf32>
    %281 = arith.addf %279, %280 : vector<16x128xf32>
    %282 = arith.mulf %281, %271 : vector<16x128xf32>
    %cst_72 = arith.constant 0.254829586 : f32
    %283 = vector.broadcast %cst_72 : f32 to vector<16x128xf32>
    %284 = arith.addf %282, %283 : vector<16x128xf32>
    %285 = arith.mulf %284, %271 : vector<16x128xf32>
    %cst_73 = arith.constant 0.000000e+00 : f32
    %286 = vector.broadcast %cst_73 : f32 to vector<16x128xf32>
    %287 = arith.subf %286, %265 : vector<16x128xf32>
    %288 = arith.mulf %287, %265 : vector<16x128xf32>
    %289 = math.exp %288 : vector<16x128xf32>
    %290 = arith.mulf %285, %289 : vector<16x128xf32>
    %cst_74 = arith.constant 1.000000e+00 : f32
    %291 = vector.broadcast %cst_74 : f32 to vector<16x128xf32>
    %292 = arith.subf %291, %290 : vector<16x128xf32>
    %cst_75 = arith.constant 0.000000e+00 : f32
    %293 = vector.broadcast %cst_75 : f32 to vector<16x128xf32>
    %294 = arith.cmpf oge, %264, %293 : vector<16x128xf32>
    %cst_76 = arith.constant 0.000000e+00 : f32
    %295 = vector.broadcast %cst_76 : f32 to vector<16x128xf32>
    %296 = arith.subf %295, %292 : vector<16x128xf32>
    %297 = arith.select %294, %292, %296 : vector<16x128xi1>, vector<16x128xf32>
    %cst_77 = arith.constant 1.000000e+00 : f32
    %298 = vector.broadcast %cst_77 : f32 to vector<16x128xf32>
    %299 = arith.addf %298, %297 : vector<16x128xf32>
    %300 = arith.mulf %262, %299 : vector<16x128xf32>
    %cst_78 = arith.constant dense<0.000000e+00> : vector<16x32xf32>
    %301 = tpu.matmul %300, %169, %cst_78 {dimension_numbers = #tpu.dot_dimension_numbers<[1], [0], [0], [1], [0, 0, 1, 1], [], []>, precision = #tpu.contract_precision<fp32>} : vector<16x128xf32>, vector<128x32xf32>, vector<16x32xf32> -> vector<16x32xf32>
    %302 = vector.broadcast %176 : vector<1x32xf32> to vector<16x32xf32>
    %303 = arith.addf %301, %302 : vector<16x32xf32>
    %304 = arith.addf %257, %303 : vector<16x32xf32>
    %cst_79 = arith.constant dense<0.000000e+00> : vector<16xf32>
    %305 = vector.multi_reduction <add>, %304, %cst_79 [1] : vector<16x32xf32> to vector<16xf32>
    %306 = vector.shape_cast %305 : vector<16xf32> to vector<16x1xf32>
    %cst_80 = arith.constant 3.200000e+01 : f32
    %307 = vector.broadcast %cst_80 : f32 to vector<16x1xf32>
    %308 = arith.divf %306, %307 : vector<16x1xf32>
    %309 = vector.broadcast %308 : vector<16x1xf32> to vector<16x32xf32>
    %310 = arith.subf %304, %309 : vector<16x32xf32>
    %311 = arith.mulf %310, %310 : vector<16x32xf32>
    %cst_81 = arith.constant dense<0.000000e+00> : vector<16xf32>
    %312 = vector.multi_reduction <add>, %311, %cst_81 [1] : vector<16x32xf32> to vector<16xf32>
    %313 = vector.shape_cast %312 : vector<16xf32> to vector<16x1xf32>
    %cst_82 = arith.constant 3.200000e+01 : f32
    %314 = vector.broadcast %cst_82 : f32 to vector<16x1xf32>
    %315 = arith.divf %313, %314 : vector<16x1xf32>
    %316 = vector.broadcast %308 : vector<16x1xf32> to vector<16x32xf32>
    %317 = arith.subf %304, %316 : vector<16x32xf32>
    %cst_83 = arith.constant 9.99999974E-6 : f32
    %318 = vector.broadcast %cst_83 : f32 to vector<16x1xf32>
    %319 = arith.addf %315, %318 : vector<16x1xf32>
    %320 = math.rsqrt %319 : vector<16x1xf32>
    %321 = vector.broadcast %320 : vector<16x1xf32> to vector<16x32xf32>
    %322 = arith.mulf %317, %321 : vector<16x32xf32>
    %323 = vector.broadcast %174 : vector<1x32xf32> to vector<16x32xf32>
    %324 = arith.mulf %322, %323 : vector<16x32xf32>
    %325 = vector.broadcast %175 : vector<1x32xf32> to vector<16x32xf32>
    %326 = arith.addf %324, %325 : vector<16x32xf32>
    %327 = vector.shape_cast %326 : vector<16x32xf32> to vector<2x8x32xf32>
    %328 = vector.extract_strided_slice %327 {offsets = [0, 7, 0], sizes = [2, 1, 32], strides = [1, 1, 1]} : vector<2x8x32xf32> to vector<2x1x32xf32>
    %329 = vector.shape_cast %328 : vector<2x1x32xf32> to vector<2x32xf32>
    %c24 = arith.constant 24 : index
    %c0_84 = arith.constant 0 : index
    %330 = vector.load %arg1[%c24, %c0_84] : memref<400x32xf32, #tpu.memory_space<vmem>>, vector<32x32xf32>
    %c56 = arith.constant 56 : index
    %c0_85 = arith.constant 0 : index
    %331 = vector.load %arg1[%c56, %c0_85] : memref<400x32xf32, #tpu.memory_space<vmem>>, vector<1x32xf32>
    %cst_86 = arith.constant dense<0.000000e+00> : vector<2x32xf32>
    %332 = tpu.matmul %329, %330, %cst_86 {dimension_numbers = #tpu.dot_dimension_numbers<[1], [0], [0], [1], [0, 0, 1, 1], [], []>, precision = #tpu.contract_precision<fp32>} : vector<2x32xf32>, vector<32x32xf32>, vector<2x32xf32> -> vector<2x32xf32>
    %333 = vector.broadcast %331 : vector<1x32xf32> to vector<2x32xf32>
    %334 = arith.addf %332, %333 : vector<2x32xf32>
    %335 = vector.extract_strided_slice %334 {offsets = [0, 0], sizes = [2, 3], strides = [1, 1]} : vector<2x32xf32> to vector<2x3xf32>
    %c0_87 = arith.constant 0 : index
    %c0_88 = arith.constant 0 : index
    %336 = vector.load %arg3[%c0_87, %c0_88] : memref<2x3xf32, #tpu.memory_space<vmem>>, vector<2x3xf32>
    tpu.vector_store %arg3[%c0_87, %c0_88], %335 {strides = array<i32>} : memref<2x3xf32, #tpu.memory_space<vmem>>, vector<2x3xf32>,
    return
  }
}

</mosaic_0001>

<llo_original>
// kernel: complexity_transformer_forward.1
$region0: #{complexity_transformer_forward.1}
  #allocation0 [shape = 'u32[]', space=smem, size = 0x4, offset = 0x4, fixed_abs, tag = 'smem constant byte address 0x4 - core index']
  #allocation1 [shape = 'u32[72,128]{1,0:T(1,128)}', space=vmem, size = 0x9000, scoped, tag = 'internal scratch']
  %s0 = inlined_call_operand.vmem [shape: f32[16,16], index: 0, kind: input, shape index: {}]
  %s1 = inlined_call_operand.vmem [shape: f32[400,32], index: 1, kind: input, shape index: {}]
  %s2 = inlined_call_operand.vmem [shape: f32[144,128], index: 2, kind: input, shape index: {}]
  %s3 = inlined_call_operand.vmem [shape: f32[2,3], index: 3, kind: output, shape index: {}]
  %s4 = sld [smem:[#allocation0]]
  $region22: #{complexity_transformer_forward.1} parent=0
    _
  %s6 = ssub.s32 1, %s4
  %s7 = scalar_select 0, %s6, %s4
  // Predicated region
  $region2: #{complexity_transformer_forward.1} parent=0 // pred_check
    _
  $region3: #{complexity_transformer_forward.1} parent=0 // pred_check_branch
    %9 = sbr.rel (0) target = $region5
  $region4: #{complexity_transformer_forward.1} parent=0 // pred_region
    _
  $region5: #{complexity_transformer_forward.1} parent=0 // pred_fallthru
    _
  // Predicated region
  $region6: #{complexity_transformer_forward.1} parent=0 // pred_check
    _
  $region7: #{complexity_transformer_forward.1} parent=0 // pred_check_branch
    %11 = sbr.rel (0) target = $region9
  $region8: #{complexity_transformer_forward.1} parent=0 // pred_region
    _
  $region9: #{complexity_transformer_forward.1} parent=0 // pred_fallthru
    _
  // Predicated region
  $region10: #{complexity_transformer_forward.1} parent=0 // pred_check
    _
  $region11: #{complexity_transformer_forward.1} parent=0 // pred_check_branch
    %13 = sbr.rel (0) target = $region13
  $region12: #{complexity_transformer_forward.1} parent=0 // pred_region
    _
  $region13: #{complexity_transformer_forward.1} parent=0 // pred_fallthru
    _
  %v14 = vld [vmem:[%s1] sm:$0xff]
  %v15 = vld [vmem:[%s1 + $0x8] sm:$0xff]
  %v16 = vld [vmem:[%s1 + $0x10] sm:$0xff]
  %v17 = vld [vmem:[%s0] sm:$0xff]
  %v18 = vld [vmem:[%s0 + $0x8] sm:$0xff]
  %vm19 = vcmask 130048
  %v21 = vsel %vm19, %v17, 0
  %v24 = vsel %vm19, %v18, 0
  %26 = vmatpush.msra.mxu0 0.0
  %27 = vmatpush.msra.mxu0 0.0
  %28 = vmatpush.msra.mxu0 0.0
  %29 = vmatpush.msra.mxu0 0.0
  %30 = vmatpush.msra.mxu0 0.0
  %31 = vmatpush.msra.mxu0 0.0
  %32 = vmatpush.msra.mxu0 0.0
  %33 = vmatpush.msra.mxu0 0.0
  %34 = vmatpush.msra.mxu0 0.0
  %35 = vmatpush.msra.mxu0 0.0
  %36 = vmatpush.msra.mxu0 0.0
  %37 = vmatpush.msra.mxu0 0.0
  %38 = vmatpush.msra.mxu0 0.0
  %39 = vmatpush.msra.mxu0 0.0
  %v40 = vand.u32 %v15, 4294901760
  %41 = vmatpush.msra.mxu0 %v40
  %v42 = vand.u32 %v14, 4294901760
  %43 = vmatpush.msra.mxu0 %v42
  %v44 = vand.u32 %v21, 4294901760
  %v45 = vsub.f32 %v21, %v44
  %v46 = vand.u32 %v45, 4294901760
  %v47 = vsub.f32 %v45, %v46
  %v48 = vand.u32 %v47, 4294901760
  %49 = vmatmul.f32.gmra.mxu0 %v48
  %v50 = vpop.f32.mrf.mxu0
  %v51 = vadd.f32 0.0, %v50
  %v52 = vand.u32 %v24, 4294901760
  %v53 = vsub.f32 %v24, %v52
  %v54 = vand.u32 %v53, 4294901760
  %v55 = vsub.f32 %v53, %v54
  %v56 = vand.u32 %v55, 4294901760
  %57 = vmatmul.f32.gmra.mxu0 %v56
  %v58 = vpop.f32.mrf.mxu0
  %v59 = vadd.f32 0.0, %v58
  %60 = vdwg.mxu0
  %61 = vmatpush.msra.mxu0 0.0
  %62 = vmatpush.msra.mxu0 0.0
  %63 = vmatpush.msra.mxu0 0.0
  %64 = vmatpush.msra.mxu0 0.0
  %65 = vmatpush.msra.mxu0 0.0
  %66 = vmatpush.msra.mxu0 0.0
  %67 = vmatpush.msra.mxu0 0.0
  %68 = vmatpush.msra.mxu0 0.0
  %69 = vmatpush.msra.mxu0 0.0
  %70 = vmatpush.msra.mxu0 0.0
  %71 = vmatpush.msra.mxu0 0.0
  %72 = vmatpush.msra.mxu0 0.0
  %73 = vmatpush.msra.mxu0 0.0
  %74 = vmatpush.msra.mxu0 0.0
  %v75 = vand.u32 %v15, 4294901760
  %v76 = vsub.f32 %v15, %v75
  %v77 = vand.u32 %v76, 4294901760
  %v78 = vsub.f32 %v76, %v77
  %v79 = vand.u32 %v78, 4294901760
  %80 = vmatpush.msra.mxu0 %v79
  %v81 = vand.u32 %v14, 4294901760
  %v82 = vsub.f32 %v14, %v81
  %v83 = vand.u32 %v82, 4294901760
  %v84 = vsub.f32 %v82, %v83
  %v85 = vand.u32 %v84, 4294901760
  %86 = vmatpush.msra.mxu0 %v85
  %v87 = vand.u32 %v21, 4294901760
  %88 = vmatmul.f32.gmra.mxu0 %v87
  %v89 = vpop.f32.mrf.mxu0
  %v90 = vadd.f32 %v51, %v89
  %v91 = vand.u32 %v24, 4294901760
  %92 = vmatmul.f32.gmra.mxu0 %v91
  %v93 = vpop.f32.mrf.mxu0
  %v94 = vadd.f32 %v59, %v93
  %95 = vdwg.mxu0
  %96 = vmatpush.msra.mxu0 0.0
  %97 = vmatpush.msra.mxu0 0.0
  %98 = vmatpush.msra.mxu0 0.0
  %99 = vmatpush.msra.mxu0 0.0
  %100 = vmatpush.msra.mxu0 0.0
  %101 = vmatpush.msra.mxu0 0.0
  %102 = vmatpush.msra.mxu0 0.0
  %103 = vmatpush.msra.mxu0 0.0
  %104 = vmatpush.msra.mxu0 0.0
  %105 = vmatpush.msra.mxu0 0.0
  %106 = vmatpush.msra.mxu0 0.0
  %107 = vmatpush.msra.mxu0 0.0
  %108 = vmatpush.msra.mxu0 0.0
  %109 = vmatpush.msra.mxu0 0.0
  %v110 = vand.u32 %v15, 4294901760
  %v111 = vsub.f32 %v15, %v110
  %112 = vmatpush.msra.mxu0 %v111
  %v113 = vand.u32 %v14, 4294901760
  %v114 = vsub.f32 %v14, %v113
  %115 = vmatpush.msra.mxu0 %v114
  %v116 = vand.u32 %v21, 4294901760
  %v117 = vsub.f32 %v21, %v116
  %118 = vmatmul.f32.gmra.mxu0 %v117
  %v119 = vpop.f32.mrf.mxu0
  %v120 = vadd.f32 %v90, %v119
  %v121 = vand.u32 %v24, 4294901760
  %v122 = vsub.f32 %v24, %v121
  %123 = vmatmul.f32.gmra.mxu0 %v122
  %v124 = vpop.f32.mrf.mxu0
  %v125 = vadd.f32 %v94, %v124
  %126 = vdwg.mxu0
  %127 = vmatpush.msra.mxu0 0.0
  %128 = vmatpush.msra.mxu0 0.0
  %129 = vmatpush.msra.mxu0 0.0
  %130 = vmatpush.msra.mxu0 0.0
  %131 = vmatpush.msra.mxu0 0.0
  %132 = vmatpush.msra.mxu0 0.0
  %133 = vmatpush.msra.mxu0 0.0
  %134 = vmatpush.msra.mxu0 0.0
  %135 = vmatpush.msra.mxu0 0.0
  %136 = vmatpush.msra.mxu0 0.0
  %137 = vmatpush.msra.mxu0 0.0
  %138 = vmatpush.msra.mxu0 0.0
  %139 = vmatpush.msra.mxu0 0.0
  %140 = vmatpush.msra.mxu0 0.0
  %v141 = vand.u32 %v15, 4294901760
  %142 = vmatpush.msra.mxu0 %v141
  %v143 = vand.u32 %v14, 4294901760
  %144 = vmatpush.msra.mxu0 %v143
  %v145 = vand.u32 %v21, 4294901760
  %v146 = vsub.f32 %v21, %v145
  %v147 = vand.u32 %v146, 4294901760
  %148 = vmatmul.f32.gmra.mxu0 %v147
  %v149 = vpop.f32.mrf.mxu0
  %v150 = vadd.f32 %v120, %v149
  %v151 = vand.u32 %v24, 4294901760
  %v152 = vsub.f32 %v24, %v151
  %v153 = vand.u32 %v152, 4294901760
  %154 = vmatmul.f32.gmra.mxu0 %v153
  %v155 = vpop.f32.mrf.mxu0
  %v156 = vadd.f32 %v125, %v155
  %157 = vdwg.mxu0
  %158 = vmatpush.msra.mxu0 0.0
  %159 = vmatpush.msra.mxu0 0.0
  %160 = vmatpush.msra.mxu0 0.0
  %161 = vmatpush.msra.mxu0 0.0
  %162 = vmatpush.msra.mxu0 0.0
  %163 = vmatpush.msra.mxu0 0.0
  %164 = vmatpush.msra.mxu0 0.0
  %165 = vmatpush.msra.mxu0 0.0
  %166 = vmatpush.msra.mxu0 0.0
  %167 = vmatpush.msra.mxu0 0.0
  %168 = vmatpush.msra.mxu0 0.0
  %169 = vmatpush.msra.mxu0 0.0
  %170 = vmatpush.msra.mxu0 0.0
  %171 = vmatpush.msra.mxu0 0.0
  %v172 = vand.u32 %v15, 4294901760
  %v173 = vsub.f32 %v15, %v172
  %v174 = vand.u32 %v173, 4294901760
  %175 = vmatpush.msra.mxu0 %v174
  %v176 = vand.u32 %v14, 4294901760
  %v177 = vsub.f32 %v14, %v176
  %v178 = vand.u32 %v177, 4294901760
  %179 = vmatpush.msra.mxu0 %v178
  %v180 = vand.u32 %v21, 4294901760
  %181 = vmatmul.f32.gmra.mxu0 %v180
  %v182 = vpop.f32.mrf.mxu0
  %v183 = vadd.f32 %v150, %v182
  %v184 = vand.u32 %v24, 4294901760
  %185 = vmatmul.f32.gmra.mxu0 %v184
  %v186 = vpop.f32.mrf.mxu0
  %v187 = vadd.f32 %v156, %v186
  %188 = vdwg.mxu0
  %189 = vmatpush.msra.mxu0 0.0
  %190 = vmatpush.msra.mxu0 0.0
  %191 = vmatpush.msra.mxu0 0.0
  %192 = vmatpush.msra.mxu0 0.0
  %193 = vmatpush.msra.mxu0 0.0
  %194 = vmatpush.msra.mxu0 0.0
  %195 = vmatpush.msra.mxu0 0.0
  %196 = vmatpush.msra.mxu0 0.0
  %197 = vmatpush.msra.mxu0 0.0
  %198 = vmatpush.msra.mxu0 0.0
  %199 = vmatpush.msra.mxu0 0.0
  %200 = vmatpush.msra.mxu0 0.0
  %201 = vmatpush.msra.mxu0 0.0
  %202 = vmatpush.msra.mxu0 0.0
  %v203 = vand.u32 %v15, 4294901760
  %204 = vmatpush.msra.mxu0 %v203
  %v205 = vand.u32 %v14, 4294901760
  %206 = vmatpush.msra.mxu0 %v205
  %v207 = vand.u32 %v21, 4294901760
  %208 = vmatmul.f32.gmra.mxu0 %v207
  %v209 = vpop.f32.mrf.mxu0
  %v210 = vadd.f32 %v183, %v209
  %v211 = vand.u32 %v24, 4294901760
  %212 = vmatmul.f32.gmra.mxu0 %v211
  %v213 = vpop.f32.mrf.mxu0
  %v214 = vadd.f32 %v187, %v213
  %215 = vdwg.mxu0
  %v216 = vadd.f32 %v210, %v16
  %v217 = vadd.f32 %v214, %v16
  %v218 = vld [vmem:[%s1 + $0x40] sm:$0xff]
  %v219 = vld [vmem:[%s1 + $0x48] sm:$0xff]
  %v220 = vld [vmem:[%s1 + $0x50] sm:$0xff]
  %v221 = vld [vmem:[%s1 + $0x58] sm:$0xff]
  %v222 = vld [vmem:[%s1 + $0x60] sm:$0xff]
  %v223 = vld [vmem:[%s1 + $0x68] sm:$0xff]
  %v224 = vld [vmem:[%s1 + $0x70] sm:$0xff]
  %v225 = vld [vmem:[%s1 + $0x78] sm:$0xff]
  %v226 = vld [vmem:[%s1 + $0x80] sm:$0xff]
  %v227 = vld [vmem:[%s1 + $0x88] sm:$0xff]
  %v228 = vld [vmem:[%s1 + $0x90] sm:$0xff]
  %v229 = vld [vmem:[%s1 + $0x98] sm:$0xff]
  %v230 = vld [vmem:[%s1 + $0xa0] sm:$0xff]
  %v231 = vld [vmem:[%s1 + $0xa8] sm:$0xff]
  %v232 = vld [vmem:[%s1 + $0xb0] sm:$0xff]
  %v233 = vld [vmem:[%s1 + $0xb8] sm:$0xff]
  %v234 = vld [vmem:[%s1 + $0xc0] sm:$0xff]
  %v235 = vld [vmem:[%s1 + $0xc8] sm:$0xff]
  %v236 = vld [vmem:[%s1 + $0xd0] sm:$0xff]
  %v237 = vld [vmem:[%s1 + $0xd8] sm:$0xff]
  %v238 = vld [vmem:[%s1 + $0xe0] sm:$0xff]
  %v239 = vld [vmem:[%s2] sm:$0xff]
  %v240 = vld [vmem:[%s2 + $0x8] sm:$0xff]
  %v241 = vld [vmem:[%s2 + $0x10] sm:$0xff]
  %v242 = vld [vmem:[%s2 + $0x18] sm:$0xff]
  %v243 = vld [vmem:[%s2 + $0x20] sm:$0xff]
  %v244 = vld [vmem:[%s2 + $0x28] sm:$0xff]
  %v245 = vld [vmem:[%s2 + $0x30] sm:$0xff]
  %v246 = vld [vmem:[%s2 + $0x38] sm:$0xff]
  %v247 = vld [vmem:[%s2 + $0x40] sm:$0xff]
  %v248 = vperm.slane %v247, 0
  %vm249 = vcmask 261120
  %v251 = vsel %vm249, %v216, 0
  %v254 = vsel %vm249, %v217, 0
  %256 = vmatpush.msra.mxu0 0.0
  %257 = vmatpush.msra.mxu0 0.0
  %258 = vmatpush.msra.mxu0 0.0
  %259 = vmatpush.msra.mxu0 0.0
  %260 = vmatpush.msra.mxu0 0.0
  %261 = vmatpush.msra.mxu0 0.0
  %262 = vmatpush.msra.mxu0 0.0
  %263 = vmatpush.msra.mxu0 0.0
  %264 = vmatpush.msra.mxu0 0.0
  %265 = vmatpush.msra.mxu0 0.0
  %266 = vmatpush.msra.mxu0 0.0
  %267 = vmatpush.msra.mxu0 0.0
  %v268 = vand.u32 %v242, 4294901760
  %269 = vmatpush.msra.mxu0 %v268
  %v270 = vand.u32 %v241, 4294901760
  %271 = vmatpush.msra.mxu0 %v270
  %v272 = vand.u32 %v240, 4294901760
  %273 = vmatpush.msra.mxu0 %v272
  %v274 = vand.u32 %v239, 4294901760
  %275 = vmatpush.msra.mxu0 %v274
  %v276 = vand.u32 %v251, 4294901760
  %v277 = vsub.f32 %v251, %v276
  %v278 = vand.u32 %v277, 4294901760
  %v279 = vsub.f32 %v277, %v278
  %v280 = vand.u32 %v279, 4294901760
  %281 = vmatmul.f32.gmra.mxu0 %v280
  %v282 = vpop.f32.mrf.mxu0
  %v283 = vadd.f32 %v248, %v282
  %v284 = vand.u32 %v254, 4294901760
  %v285 = vsub.f32 %v254, %v284
  %v286 = vand.u32 %v285, 4294901760
  %v287 = vsub.f32 %v285, %v286
  %v288 = vand.u32 %v287, 4294901760
  %289 = vmatmul.f32.gmra.mxu0 %v288
  %v290 = vpop.f32.mrf.mxu0
  %v291 = vadd.f32 %v248, %v290
  %292 = vdwg.mxu0
  %293 = vmatpush.msra.mxu0 0.0
  %294 = vmatpush.msra.mxu0 0.0
  %295 = vmatpush.msra.mxu0 0.0
  %296 = vmatpush.msra.mxu0 0.0
  %297 = vmatpush.msra.mxu0 0.0
  %298 = vmatpush.msra.mxu0 0.0
  %299 = vmatpush.msra.mxu0 0.0
  %300 = vmatpush.msra.mxu0 0.0
  %301 = vmatpush.msra.mxu0 0.0
  %302 = vmatpush.msra.mxu0 0.0
  %303 = vmatpush.msra.mxu0 0.0
  %304 = vmatpush.msra.mxu0 0.0
  %v305 = vand.u32 %v242, 4294901760
  %v306 = vsub.f32 %v242, %v305
  %v307 = vand.u32 %v306, 4294901760
  %v308 = vsub.f32 %v306, %v307
  %v309 = vand.u32 %v308, 4294901760
  %310 = vmatpush.msra.mxu0 %v309
  %v311 = vand.u32 %v241, 4294901760
  %v312 = vsub.f32 %v241, %v311
  %v313 = vand.u32 %v312, 4294901760
  %v314 = vsub.f32 %v312, %v313
  %v315 = vand.u32 %v314, 4294901760
  %316 = vmatpush.msra.mxu0 %v315
  %v317 = vand.u32 %v240, 4294901760
  %v318 = vsub.f32 %v240, %v317
  %v319 = vand.u32 %v318, 4294901760
  %v320 = vsub.f32 %v318, %v319
  %v321 = vand.u32 %v320, 4294901760
  %322 = vmatpush.msra.mxu0 %v321
  %v323 = vand.u32 %v239, 4294901760
  %v324 = vsub.f32 %v239, %v323
  %v325 = vand.u32 %v324, 4294901760
  %v326 = vsub.f32 %v324, %v325
  %v327 = vand.u32 %v326, 4294901760
  %328 = vmatpush.msra.mxu0 %v327
  %v329 = vand.u32 %v251, 4294901760
  %330 = vmatmul.f32.gmra.mxu0 %v329
  %v331 = vpop.f32.mrf.mxu0
  %v332 = vadd.f32 %v283, %v331
  %v333 = vand.u32 %v254, 4294901760
  %334 = vmatmul.f32.gmra.mxu0 %v333
  %v335 = vpop.f32.mrf.mxu0
  %v336 = vadd.f32 %v291, %v335
  %337 = vdwg.mxu0
  %338 = vmatpush.msra.mxu0 0.0
  %339 = vmatpush.msra.mxu0 0.0
  %340 = vmatpush.msra.mxu0 0.0
  %341 = vmatpush.msra.mxu0 0.0
  %342 = vmatpush.msra.mxu0 0.0
  %343 = vmatpush.msra.mxu0 0.0
  %344 = vmatpush.msra.mxu0 0.0
  %345 = vmatpush.msra.mxu0 0.0
  %346 = vmatpush.msra.mxu0 0.0
  %347 = vmatpush.msra.mxu0 0.0
  %348 = vmatpush.msra.mxu0 0.0
  %349 = vmatpush.msra.mxu0 0.0
  %v350 = vand.u32 %v242, 4294901760
  %v351 = vsub.f32 %v242, %v350
  %352 = vmatpush.msra.mxu0 %v351
  %v353 = vand.u32 %v241, 4294901760
  %v354 = vsub.f32 %v241, %v353
  %355 = vmatpush.msra.mxu0 %v354
  %v356 = vand.u32 %v240, 4294901760
  %v357 = vsub.f32 %v240, %v356
  %358 = vmatpush.msra.mxu0 %v357
  %v359 = vand.u32 %v239, 4294901760
  %v360 = vsub.f32 %v239, %v359
  %361 = vmatpush.msra.mxu0 %v360
  %v362 = vand.u32 %v251, 4294901760
  %v363 = vsub.f32 %v251, %v362
  %364 = vmatmul.f32.gmra.mxu0 %v363
  %v365 = vpop.f32.mrf.mxu0
  %v366 = vadd.f32 %v332, %v365
  %v367 = vand.u32 %v254, 4294901760
  %v368 = vsub.f32 %v254, %v367
  %369 = vmatmul.f32.gmra.mxu0 %v368
  %v370 = vpop.f32.mrf.mxu0
  %v371 = vadd.f32 %v336, %v370
  %372 = vdwg.mxu0
  %373 = vmatpush.msra.mxu0 0.0
  %374 = vmatpush.msra.mxu0 0.0
  %375 = vmatpush.msra.mxu0 0.0
  %376 = vmatpush.msra.mxu0 0.0
  %377 = vmatpush.msra.mxu0 0.0
  %378 = vmatpush.msra.mxu0 0.0
  %379 = vmatpush.msra.mxu0 0.0
  %380 = vmatpush.msra.mxu0 0.0
  %381 = vmatpush.msra.mxu0 0.0
  %382 = vmatpush.msra.mxu0 0.0
  %383 = vmatpush.msra.mxu0 0.0
  %384 = vmatpush.msra.mxu0 0.0
  %v385 = vand.u32 %v242, 4294901760
  %386 = vmatpush.msra.mxu0 %v385
  %v387 = vand.u32 %v241, 4294901760
  %388 = vmatpush.msra.mxu0 %v387
  %v389 = vand.u32 %v240, 4294901760
  %390 = vmatpush.msra.mxu0 %v389
  %v391 = vand.u32 %v239, 4294901760
  %392 = vmatpush.msra.mxu0 %v391
  %v393 = vand.u32 %v251, 4294901760
  %v394 = vsub.f32 %v251, %v393
  %v395 = vand.u32 %v394, 4294901760
  %396 = vmatmul.f32.gmra.mxu0 %v395
  %v397 = vpop.f32.mrf.mxu0
  %v398 = vadd.f32 %v366, %v397
  %v399 = vand.u32 %v254, 4294901760
  %v400 = vsub.f32 %v254, %v399
  %v401 = vand.u32 %v400, 4294901760
  %402 = vmatmul.f32.gmra.mxu0 %v401
  %v403 = vpop.f32.mrf.mxu0
  %v404 = vadd.f32 %v371, %v403
  %405 = vdwg.mxu0
  %406 = vmatpush.msra.mxu0 0.0
  %407 = vmatpush.msra.mxu0 0.0
  %408 = vmatpush.msra.mxu0 0.0
  %409 = vmatpush.msra.mxu0 0.0
  %410 = vmatpush.msra.mxu0 0.0
  %411 = vmatpush.msra.mxu0 0.0
  %412 = vmatpush.msra.mxu0 0.0
  %413 = vmatpush.msra.mxu0 0.0
  %414 = vmatpush.msra.mxu0 0.0
  %415 = vmatpush.msra.mxu0 0.0
  %416 = vmatpush.msra.mxu0 0.0
  %417 = vmatpush.msra.mxu0 0.0
  %v418 = vand.u32 %v242, 4294901760
  %v419 = vsub.f32 %v242, %v418
  %v420 = vand.u32 %v419, 4294901760
  %421 = vmatpush.msra.mxu0 %v420
  %v422 = vand.u32 %v241, 4294901760
  %v423 = vsub.f32 %v241, %v422
  %v424 = vand.u32 %v423, 4294901760
  %425 = vmatpush.msra.mxu0 %v424
  %v426 = vand.u32 %v240, 4294901760
  %v427 = vsub.f32 %v240, %v426
  %v428 = vand.u32 %v427, 4294901760
  %429 = vmatpush.msra.mxu0 %v428
  %v430 = vand.u32 %v239, 4294901760
  %v431 = vsub.f32 %v239, %v430
  %v432 = vand.u32 %v431, 4294901760
  %433 = vmatpush.msra.mxu0 %v432
  %v434 = vand.u32 %v251, 4294901760
  %435 = vmatmul.f32.gmra.mxu0 %v434
  %v436 = vpop.f32.mrf.mxu0
  %v437 = vadd.f32 %v398, %v436
  %v438 = vand.u32 %v254, 4294901760
  %439 = vmatmul.f32.gmra.mxu0 %v438
  %v440 = vpop.f32.mrf.mxu0
  %v441 = vadd.f32 %v404, %v440
  %442 = vdwg.mxu0
  %443 = vmatpush.msra.mxu0 0.0
  %444 = vmatpush.msra.mxu0 0.0
  %445 = vmatpush.msra.mxu0 0.0
  %446 = vmatpush.msra.mxu0 0.0
  %447 = vmatpush.msra.mxu0 0.0
  %448 = vmatpush.msra.mxu0 0.0
  %449 = vmatpush.msra.mxu0 0.0
  %450 = vmatpush.msra.mxu0 0.0
  %451 = vmatpush.msra.mxu0 0.0
  %452 = vmatpush.msra.mxu0 0.0
  %453 = vmatpush.msra.mxu0 0.0
  %454 = vmatpush.msra.mxu0 0.0
  %v455 = vand.u32 %v242, 4294901760
  %456 = vmatpush.msra.mxu0 %v455
  %v457 = vand.u32 %v241, 4294901760
  %458 = vmatpush.msra.mxu0 %v457
  %v459 = vand.u32 %v240, 4294901760
  %460 = vmatpush.msra.mxu0 %v459
  %v461 = vand.u32 %v239, 4294901760
  %462 = vmatpush.msra.mxu0 %v461
  %v463 = vand.u32 %v251, 4294901760
  %464 = vmatmul.f32.gmra.mxu0 %v463
  %v465 = vpop.f32.mrf.mxu0
  %v466 = vadd.f32 %v437, %v465
  %v467 = vand.u32 %v254, 4294901760
  %468 = vmatmul.f32.gmra.mxu0 %v467
  %v469 = vpop.f32.mrf.mxu0
  %v470 = vadd.f32 %v441, %v469
  %471 = vdwg.mxu0
  %474 = vrot.lane.b32.xlu0 %v466, 120
  %v475 = vpop.permute.xlu0 %474
  %476 = vrot.lane.b32.xlu0 %v470, 120
  %v477 = vpop.permute.xlu0 %476
  %478 = vrot.lane.b32.xlu0 %v466, 112
  %v479 = vpop.permute.xlu0 %478
  %480 = vrot.lane.b32.xlu0 %v470, 112
  %v481 = vpop.permute.xlu0 %480
  %482 = vrot.lane.b32.xlu0 %v466, 104
  %v483 = vpop.permute.xlu0 %482
  %484 = vrot.lane.b32.xlu0 %v470, 104
  %v485 = vpop.permute.xlu0 %484
  %486 = vrot.lane.b32.xlu0 %v466, 96
  %v487 = vpop.permute.xlu0 %486
  %vm488 = vcmask 64512
  %v489 = vsel %vm488, %v466, 0
  %v491 = vsel %vm488, %v487, 0
  %493 = vmatpush.xpose.msra.mxu0 0.0
  %494 = vmatpush.xpose.msra.mxu0 0.0
  %495 = vmatpush.xpose.msra.mxu0 0.0
  %496 = vmatpush.xpose.msra.mxu0 0.0
  %497 = vmatpush.xpose.msra.mxu0 0.0
  %498 = vmatpush.xpose.msra.mxu0 0.0
  %499 = vmatpush.xpose.msra.mxu0 0.0
  %500 = vmatpush.xpose.msra.mxu0 0.0
  %501 = vmatpush.xpose.msra.mxu0 0.0
  %502 = vmatpush.xpose.msra.mxu0 0.0
  %503 = vmatpush.xpose.msra.mxu0 0.0
  %504 = vmatpush.xpose.msra.mxu0 0.0
  %505 = vmatpush.xpose.msra.mxu0 0.0
  %506 = vmatpush.xpose.msra.mxu0 0.0
  %507 = vmatpush.xpose.msra.mxu0 0.0
  %v508 = vand.u32 %v491, 4294901760
  %509 = vmatpush.xpose.msra.mxu0 %v508
  %v510 = vand.u32 %v489, 4294901760
  %v511 = vsub.f32 %v489, %v510
  %v512 = vand.u32 %v511, 4294901760
  %v513 = vsub.f32 %v511, %v512
  %v514 = vand.u32 %v513, 4294901760
  %515 = vmatmul.f32.gmra.mxu0 %v514
  %v516 = vpop.f32.mrf.mxu0
  %v517 = vadd.f32 0.0, %v516
  %518 = vdwg.mxu0
  %519 = vmatpush.xpose.msra.mxu0 0.0
  %520 = vmatpush.xpose.msra.mxu0 0.0
  %521 = vmatpush.xpose.msra.mxu0 0.0
  %522 = vmatpush.xpose.msra.mxu0 0.0
  %523 = vmatpush.xpose.msra.mxu0 0.0
  %524 = vmatpush.xpose.msra.mxu0 0.0
  %525 = vmatpush.xpose.msra.mxu0 0.0
  %526 = vmatpush.xpose.msra.mxu0 0.0
  %527 = vmatpush.xpose.msra.mxu0 0.0
  %528 = vmatpush.xpose.msra.mxu0 0.0
  %529 = vmatpush.xpose.msra.mxu0 0.0
  %530 = vmatpush.xpose.msra.mxu0 0.0
  %531 = vmatpush.xpose.msra.mxu0 0.0
  %532 = vmatpush.xpose.msra.mxu0 0.0
  %533 = vmatpush.xpose.msra.mxu0 0.0
  %v534 = vand.u32 %v491, 4294901760
  %v535 = vsub.f32 %v491, %v534
  %v536 = vand.u32 %v535, 4294901760
  %v537 = vsub.f32 %v535, %v536
  %v538 = vand.u32 %v537, 4294901760
  %539 = vmatpush.xpose.msra.mxu0 %v538
  %v540 = vand.u32 %v489, 4294901760
  %541 = vmatmul.f32.gmra.mxu0 %v540
  %v542 = vpop.f32.mrf.mxu0
  %v543 = vadd.f32 %v517, %v542
  %544 = vdwg.mxu0
  %545 = vmatpush.xpose.msra.mxu0 0.0
  %546 = vmatpush.xpose.msra.mxu0 0.0
  %547 = vmatpush.xpose.msra.mxu0 0.0
  %548 = vmatpush.xpose.msra.mxu0 0.0
  %549 = vmatpush.xpose.msra.mxu0 0.0
  %550 = vmatpush.xpose.msra.mxu0 0.0
  %551 = vmatpush.xpose.msra.mxu0 0.0
  %552 = vmatpush.xpose.msra.mxu0 0.0
  %553 = vmatpush.xpose.msra.mxu0 0.0
  %554 = vmatpush.xpose.msra.mxu0 0.0
  %555 = vmatpush.xpose.msra.mxu0 0.0
  %556 = vmatpush.xpose.msra.mxu0 0.0
  %557 = vmatpush.xpose.msra.mxu0 0.0
  %558 = vmatpush.xpose.msra.mxu0 0.0
  %559 = vmatpush.xpose.msra.mxu0 0.0
  %v560 = vand.u32 %v491, 4294901760
  %v561 = vsub.f32 %v491, %v560
  %562 = vmatpush.xpose.msra.mxu0 %v561
  %v563 = vand.u32 %v489, 4294901760
  %v564 = vsub.f32 %v489, %v563
  %565 = vmatmul.f32.gmra.mxu0 %v564
  %v566 = vpop.f32.mrf.mxu0
  %v567 = vadd.f32 %v543, %v566
  %568 = vdwg.mxu0
  %569 = vmatpush.xpose.msra.mxu0 0.0
  %570 = vmatpush.xpose.msra.mxu0 0.0
  %571 = vmatpush.xpose.msra.mxu0 0.0
  %572 = vmatpush.xpose.msra.mxu0 0.0
  %573 = vmatpush.xpose.msra.mxu0 0.0
  %574 = vmatpush.xpose.msra.mxu0 0.0
  %575 = vmatpush.xpose.msra.mxu0 0.0
  %576 = vmatpush.xpose.msra.mxu0 0.0
  %577 = vmatpush.xpose.msra.mxu0 0.0
  %578 = vmatpush.xpose.msra.mxu0 0.0
  %579 = vmatpush.xpose.msra.mxu0 0.0
  %580 = vmatpush.xpose.msra.mxu0 0.0
  %581 = vmatpush.xpose.msra.mxu0 0.0
  %582 = vmatpush.xpose.msra.mxu0 0.0
  %583 = vmatpush.xpose.msra.mxu0 0.0
  %v584 = vand.u32 %v491, 4294901760
  %585 = vmatpush.xpose.msra.mxu0 %v584
  %v586 = vand.u32 %v489, 4294901760
  %v587 = vsub.f32 %v489, %v586
  %v588 = vand.u32 %v587, 4294901760
  %589 = vmatmul.f32.gmra.mxu0 %v588
  %v590 = vpop.f32.mrf.mxu0
  %v591 = vadd.f32 %v567, %v590
  %592 = vdwg.mxu0
  %593 = vmatpush.xpose.msra.mxu0 0.0
  %594 = vmatpush.xpose.msra.mxu0 0.0
  %595 = vmatpush.xpose.msra.mxu0 0.0
  %596 = vmatpush.xpose.msra.mxu0 0.0
  %597 = vmatpush.xpose.msra.mxu0 0.0
  %598 = vmatpush.xpose.msra.mxu0 0.0
  %599 = vmatpush.xpose.msra.mxu0 0.0
  %600 = vmatpush.xpose.msra.mxu0 0.0
  %601 = vmatpush.xpose.msra.mxu0 0.0
  %602 = vmatpush.xpose.msra.mxu0 0.0
  %603 = vmatpush.xpose.msra.mxu0 0.0
  %604 = vmatpush.xpose.msra.mxu0 0.0
  %605 = vmatpush.xpose.msra.mxu0 0.0
  %606 = vmatpush.xpose.msra.mxu0 0.0
  %607 = vmatpush.xpose.msra.mxu0 0.0
  %v608 = vand.u32 %v491, 4294901760
  %v609 = vsub.f32 %v491, %v608
  %v610 = vand.u32 %v609, 4294901760
  %611 = vmatpush.xpose.msra.mxu0 %v610
  %v612 = vand.u32 %v489, 4294901760
  %613 = vmatmul.f32.gmra.mxu0 %v612
  %v614 = vpop.f32.mrf.mxu0
  %v615 = vadd.f32 %v591, %v614
  %616 = vdwg.mxu0
  %617 = vmatpush.xpose.msra.mxu0 0.0
  %618 = vmatpush.xpose.msra.mxu0 0.0
  %619 = vmatpush.xpose.msra.mxu0 0.0
  %620 = vmatpush.xpose.msra.mxu0 0.0
  %621 = vmatpush.xpose.msra.mxu0 0.0
  %622 = vmatpush.xpose.msra.mxu0 0.0
  %623 = vmatpush.xpose.msra.mxu0 0.0
  %624 = vmatpush.xpose.msra.mxu0 0.0
  %625 = vmatpush.xpose.msra.mxu0 0.0
  %626 = vmatpush.xpose.msra.mxu0 0.0
  %627 = vmatpush.xpose.msra.mxu0 0.0
  %628 = vmatpush.xpose.msra.mxu0 0.0
  %629 = vmatpush.xpose.msra.mxu0 0.0
  %630 = vmatpush.xpose.msra.mxu0 0.0
  %631 = vmatpush.xpose.msra.mxu0 0.0
  %v632 = vand.u32 %v491, 4294901760
  %633 = vmatpush.xpose.msra.mxu0 %v632
  %v634 = vand.u32 %v489, 4294901760
  %635 = vmatmul.f32.gmra.mxu0 %v634
  %v636 = vpop.f32.mrf.mxu0
  %v637 = vadd.f32 %v615, %v636
  %638 = vdwg.mxu0
  %639 = vrot.lane.b32.xlu0 %v470, 96
  %v640 = vpop.permute.xlu0 %639
  %v641 = vsel %vm488, %v470, 0
  %v643 = vsel %vm488, %v640, 0
  %645 = vmatpush.xpose.msra.mxu0 0.0
  %646 = vmatpush.xpose.msra.mxu0 0.0
  %647 = vmatpush.xpose.msra.mxu0 0.0
  %648 = vmatpush.xpose.msra.mxu0 0.0
  %649 = vmatpush.xpose.msra.mxu0 0.0
  %650 = vmatpush.xpose.msra.mxu0 0.0
  %651 = vmatpush.xpose.msra.mxu0 0.0
  %652 = vmatpush.xpose.msra.mxu0 0.0
  %653 = vmatpush.xpose.msra.mxu0 0.0
  %654 = vmatpush.xpose.msra.mxu0 0.0
  %655 = vmatpush.xpose.msra.mxu0 0.0
  %656 = vmatpush.xpose.msra.mxu0 0.0
  %657 = vmatpush.xpose.msra.mxu0 0.0
  %658 = vmatpush.xpose.msra.mxu0 0.0
  %659 = vmatpush.xpose.msra.mxu0 0.0
  %v660 = vand.u32 %v643, 4294901760
  %661 = vmatpush.xpose.msra.mxu0 %v660
  %v662 = vand.u32 %v641, 4294901760
  %v663 = vsub.f32 %v641, %v662
  %v664 = vand.u32 %v663, 4294901760
  %v665 = vsub.f32 %v663, %v664
  %v666 = vand.u32 %v665, 4294901760
  %667 = vmatmul.f32.gmra.mxu0 %v666
  %v668 = vpop.f32.mrf.mxu0
  %v669 = vadd.f32 0.0, %v668
  %670 = vdwg.mxu0
  %671 = vmatpush.xpose.msra.mxu0 0.0
  %672 = vmatpush.xpose.msra.mxu0 0.0
  %673 = vmatpush.xpose.msra.mxu0 0.0
  %674 = vmatpush.xpose.msra.mxu0 0.0
  %675 = vmatpush.xpose.msra.mxu0 0.0
  %676 = vmatpush.xpose.msra.mxu0 0.0
  %677 = vmatpush.xpose.msra.mxu0 0.0
  %678 = vmatpush.xpose.msra.mxu0 0.0
  %679 = vmatpush.xpose.msra.mxu0 0.0
  %680 = vmatpush.xpose.msra.mxu0 0.0
  %681 = vmatpush.xpose.msra.mxu0 0.0
  %682 = vmatpush.xpose.msra.mxu0 0.0
  %683 = vmatpush.xpose.msra.mxu0 0.0
  %684 = vmatpush.xpose.msra.mxu0 0.0
  %685 = vmatpush.xpose.msra.mxu0 0.0
  %v686 = vand.u32 %v643, 4294901760
  %v687 = vsub.f32 %v643, %v686
  %v688 = vand.u32 %v687, 4294901760
  %v689 = vsub.f32 %v687, %v688
  %v690 = vand.u32 %v689, 4294901760
  %691 = vmatpush.xpose.msra.mxu0 %v690
  %v692 = vand.u32 %v641, 4294901760
  %693 = vmatmul.f32.gmra.mxu0 %v692
  %v694 = vpop.f32.mrf.mxu0
  %v695 = vadd.f32 %v669, %v694
  %696 = vdwg.mxu0
  %697 = vmatpush.xpose.msra.mxu0 0.0
  %698 = vmatpush.xpose.msra.mxu0 0.0
  %699 = vmatpush.xpose.msra.mxu0 0.0
  %700 = vmatpush.xpose.msra.mxu0 0.0
  %701 = vmatpush.xpose.msra.mxu0 0.0
  %702 = vmatpush.xpose.msra.mxu0 0.0
  %703 = vmatpush.xpose.msra.mxu0 0.0
  %704 = vmatpush.xpose.msra.mxu0 0.0
  %705 = vmatpush.xpose.msra.mxu0 0.0
  %706 = vmatpush.xpose.msra.mxu0 0.0
  %707 = vmatpush.xpose.msra.mxu0 0.0
  %708 = vmatpush.xpose.msra.mxu0 0.0
  %709 = vmatpush.xpose.msra.mxu0 0.0
  %710 = vmatpush.xpose.msra.mxu0 0.0
  %711 = vmatpush.xpose.msra.mxu0 0.0
  %v712 = vand.u32 %v643, 4294901760
  %v713 = vsub.f32 %v643, %v712
  %714 = vmatpush.xpose.msra.mxu0 %v713
  %v715 = vand.u32 %v641, 4294901760
  %v716 = vsub.f32 %v641, %v715
  %717 = vmatmul.f32.gmra.mxu0 %v716
  %v718 = vpop.f32.mrf.mxu0
  %v719 = vadd.f32 %v695, %v718
  %720 = vdwg.mxu0
  %721 = vmatpush.xpose.msra.mxu0 0.0
  %722 = vmatpush.xpose.msra.mxu0 0.0
  %723 = vmatpush.xpose.msra.mxu0 0.0
  %724 = vmatpush.xpose.msra.mxu0 0.0
  %725 = vmatpush.xpose.msra.mxu0 0.0
  %726 = vmatpush.xpose.msra.mxu0 0.0
  %727 = vmatpush.xpose.msra.mxu0 0.0
  %728 = vmatpush.xpose.msra.mxu0 0.0
  %729 = vmatpush.xpose.msra.mxu0 0.0
  %730 = vmatpush.xpose.msra.mxu0 0.0
  %731 = vmatpush.xpose.msra.mxu0 0.0
  %732 = vmatpush.xpose.msra.mxu0 0.0
  %733 = vmatpush.xpose.msra.mxu0 0.0
  %734 = vmatpush.xpose.msra.mxu0 0.0
  %735 = vmatpush.xpose.msra.mxu0 0.0
  %v736 = vand.u32 %v643, 4294901760
  %737 = vmatpush.xpose.msra.mxu0 %v736
  %v738 = vand.u32 %v641, 4294901760
  %v739 = vsub.f32 %v641, %v738
  %v740 = vand.u32 %v739, 4294901760
  %741 = vmatmul.f32.gmra.mxu0 %v740
  %v742 = vpop.f32.mrf.mxu0
  %v743 = vadd.f32 %v719, %v742
  %744 = vdwg.mxu0
  %745 = vmatpush.xpose.msra.mxu0 0.0
  %746 = vmatpush.xpose.msra.mxu0 0.0
  %747 = vmatpush.xpose.msra.mxu0 0.0
  %748 = vmatpush.xpose.msra.mxu0 0.0
  %749 = vmatpush.xpose.msra.mxu0 0.0
  %750 = vmatpush.xpose.msra.mxu0 0.0
  %751 = vmatpush.xpose.msra.mxu0 0.0
  %752 = vmatpush.xpose.msra.mxu0 0.0
  %753 = vmatpush.xpose.msra.mxu0 0.0
  %754 = vmatpush.xpose.msra.mxu0 0.0
  %755 = vmatpush.xpose.msra.mxu0 0.0
  %756 = vmatpush.xpose.msra.mxu0 0.0
  %757 = vmatpush.xpose.msra.mxu0 0.0
  %758 = vmatpush.xpose.msra.mxu0 0.0
  %759 = vmatpush.xpose.msra.mxu0 0.0
  %v760 = vand.u32 %v643, 4294901760
  %v761 = vsub.f32 %v643, %v760
  %v762 = vand.u32 %v761, 4294901760
  %763 = vmatpush.xpose.msra.mxu0 %v762
  %v764 = vand.u32 %v641, 4294901760
  %765 = vmatmul.f32.gmra.mxu0 %v764
  %v766 = vpop.f32.mrf.mxu0
  %v767 = vadd.f32 %v743, %v766
  %768 = vdwg.mxu0
  %769 = vmatpush.xpose.msra.mxu0 0.0
  %770 = vmatpush.xpose.msra.mxu0 0.0
  %771 = vmatpush.xpose.msra.mxu0 0.0
  %772 = vmatpush.xpose.msra.mxu0 0.0
  %773 = vmatpush.xpose.msra.mxu0 0.0
  %774 = vmatpush.xpose.msra.mxu0 0.0
  %775 = vmatpush.xpose.msra.mxu0 0.0
  %776 = vmatpush.xpose.msra.mxu0 0.0
  %777 = vmatpush.xpose.msra.mxu0 0.0
  %778 = vmatpush.xpose.msra.mxu0 0.0
  %779 = vmatpush.xpose.msra.mxu0 0.0
  %780 = vmatpush.xpose.msra.mxu0 0.0
  %781 = vmatpush.xpose.msra.mxu0 0.0
  %782 = vmatpush.xpose.msra.mxu0 0.0
  %783 = vmatpush.xpose.msra.mxu0 0.0
  %v784 = vand.u32 %v643, 4294901760
  %785 = vmatpush.xpose.msra.mxu0 %v784
  %v786 = vand.u32 %v641, 4294901760
  %787 = vmatmul.f32.gmra.mxu0 %v786
  %v788 = vpop.f32.mrf.mxu0
  %v789 = vadd.f32 %v767, %v788
  %790 = vdwg.mxu0
  %791 = vrot.lane.b32.xlu0 %v475, 96
  %v792 = vpop.permute.xlu0 %791
  %v793 = vsel %vm488, %v475, 0
  %v795 = vsel %vm488, %v792, 0
  %797 = vmatpush.xpose.msra.mxu0 0.0
  %798 = vmatpush.xpose.msra.mxu0 0.0
  %799 = vmatpush.xpose.msra.mxu0 0.0
  %800 = vmatpush.xpose.msra.mxu0 0.0
  %801 = vmatpush.xpose.msra.mxu0 0.0
  %802 = vmatpush.xpose.msra.mxu0 0.0
  %803 = vmatpush.xpose.msra.mxu0 0.0
  %804 = vmatpush.xpose.msra.mxu0 0.0
  %805 = vmatpush.xpose.msra.mxu0 0.0
  %806 = vmatpush.xpose.msra.mxu0 0.0
  %807 = vmatpush.xpose.msra.mxu0 0.0
  %808 = vmatpush.xpose.msra.mxu0 0.0
  %809 = vmatpush.xpose.msra.mxu0 0.0
  %810 = vmatpush.xpose.msra.mxu0 0.0
  %811 = vmatpush.xpose.msra.mxu0 0.0
  %v812 = vand.u32 %v795, 4294901760
  %813 = vmatpush.xpose.msra.mxu0 %v812
  %v814 = vand.u32 %v793, 4294901760
  %v815 = vsub.f32 %v793, %v814
  %v816 = vand.u32 %v815, 4294901760
  %v817 = vsub.f32 %v815, %v816
  %v818 = vand.u32 %v817, 4294901760
  %819 = vmatmul.f32.gmra.mxu0 %v818
  %v820 = vpop.f32.mrf.mxu0
  %v821 = vadd.f32 0.0, %v820
  %822 = vdwg.mxu0
  %823 = vmatpush.xpose.msra.mxu0 0.0
  %824 = vmatpush.xpose.msra.mxu0 0.0
  %825 = vmatpush.xpose.msra.mxu0 0.0
  %826 = vmatpush.xpose.msra.mxu0 0.0
  %827 = vmatpush.xpose.msra.mxu0 0.0
  %828 = vmatpush.xpose.msra.mxu0 0.0
  %829 = vmatpush.xpose.msra.mxu0 0.0
  %830 = vmatpush.xpose.msra.mxu0 0.0
  %831 = vmatpush.xpose.msra.mxu0 0.0
  %832 = vmatpush.xpose.msra.mxu0 0.0
  %833 = vmatpush.xpose.msra.mxu0 0.0
  %834 = vmatpush.xpose.msra.mxu0 0.0
  %835 = vmatpush.xpose.msra.mxu0 0.0
  %836 = vmatpush.xpose.msra.mxu0 0.0
  %837 = vmatpush.xpose.msra.mxu0 0.0
  %v838 = vand.u32 %v795, 4294901760
  %v839 = vsub.f32 %v795, %v838
  %v840 = vand.u32 %v839, 4294901760
  %v841 = vsub.f32 %v839, %v840
  %v842 = vand.u32 %v841, 4294901760
  %843 = vmatpush.xpose.msra.mxu0 %v842
  %v844 = vand.u32 %v793, 4294901760
  %845 = vmatmul.f32.gmra.mxu0 %v844
  %v846 = vpop.f32.mrf.mxu0
  %v847 = vadd.f32 %v821, %v846
  %848 = vdwg.mxu0
  %849 = vmatpush.xpose.msra.mxu0 0.0
  %850 = vmatpush.xpose.msra.mxu0 0.0
  %851 = vmatpush.xpose.msra.mxu0 0.0
  %852 = vmatpush.xpose.msra.mxu0 0.0
  %853 = vmatpush.xpose.msra.mxu0 0.0
  %854 = vmatpush.xpose.msra.mxu0 0.0
  %855 = vmatpush.xpose.msra.mxu0 0.0
  %856 = vmatpush.xpose.msra.mxu0 0.0
  %857 = vmatpush.xpose.msra.mxu0 0.0
  %858 = vmatpush.xpose.msra.mxu0 0.0
  %859 = vmatpush.xpose.msra.mxu0 0.0
  %860 = vmatpush.xpose.msra.mxu0 0.0
  %861 = vmatpush.xpose.msra.mxu0 0.0
  %862 = vmatpush.xpose.msra.mxu0 0.0
  %863 = vmatpush.xpose.msra.mxu0 0.0
  %v864 = vand.u32 %v795, 4294901760
  %v865 = vsub.f32 %v795, %v864
  %866 = vmatpush.xpose.msra.mxu0 %v865
  %v867 = vand.u32 %v793, 4294901760
  %v868 = vsub.f32 %v793, %v867
  %869 = vmatmul.f32.gmra.mxu0 %v868
  %v870 = vpop.f32.mrf.mxu0
  %v871 = vadd.f32 %v847, %v870
  %872 = vdwg.mxu0
  %873 = vmatpush.xpose.msra.mxu0 0.0
  %874 = vmatpush.xpose.msra.mxu0 0.0
  %875 = vmatpush.xpose.msra.mxu0 0.0
  %876 = vmatpush.xpose.msra.mxu0 0.0
  %877 = vmatpush.xpose.msra.mxu0 0.0
  %878 = vmatpush.xpose.msra.mxu0 0.0
  %879 = vmatpush.xpose.msra.mxu0 0.0
  %880 = vmatpush.xpose.msra.mxu0 0.0
  %881 = vmatpush.xpose.msra.mxu0 0.0
  %882 = vmatpush.xpose.msra.mxu0 0.0
  %883 = vmatpush.xpose.msra.mxu0 0.0
  %884 = vmatpush.xpose.msra.mxu0 0.0
  %885 = vmatpush.xpose.msra.mxu0 0.0
  %886 = vmatpush.xpose.msra.mxu0 0.0
  %887 = vmatpush.xpose.msra.mxu0 0.0
  %v888 = vand.u32 %v795, 4294901760
  %889 = vmatpush.xpose.msra.mxu0 %v888
  %v890 = vand.u32 %v793, 4294901760
  %v891 = vsub.f32 %v793, %v890
  %v892 = vand.u32 %v891, 4294901760
  %893 = vmatmul.f32.gmra.mxu0 %v892
  %v894 = vpop.f32.mrf.mxu0
  %v895 = vadd.f32 %v871, %v894
  %896 = vdwg.mxu0
  %897 = vmatpush.xpose.msra.mxu0 0.0
  %898 = vmatpush.xpose.msra.mxu0 0.0
  %899 = vmatpush.xpose.msra.mxu0 0.0
  %900 = vmatpush.xpose.msra.mxu0 0.0
  %901 = vmatpush.xpose.msra.mxu0 0.0
  %902 = vmatpush.xpose.msra.mxu0 0.0
  %903 = vmatpush.xpose.msra.mxu0 0.0
  %904 = vmatpush.xpose.msra.mxu0 0.0
  %905 = vmatpush.xpose.msra.mxu0 0.0
  %906 = vmatpush.xpose.msra.mxu0 0.0
  %907 = vmatpush.xpose.msra.mxu0 0.0
  %908 = vmatpush.xpose.msra.mxu0 0.0
  %909 = vmatpush.xpose.msra.mxu0 0.0
  %910 = vmatpush.xpose.msra.mxu0 0.0
  %911 = vmatpush.xpose.msra.mxu0 0.0
  %v912 = vand.u32 %v795, 4294901760
  %v913 = vsub.f32 %v795, %v912
  %v914 = vand.u32 %v913, 4294901760
  %915 = vmatpush.xpose.msra.mxu0 %v914
  %v916 = vand.u32 %v793, 4294901760
  %917 = vmatmul.f32.gmra.mxu0 %v916
  %v918 = vpop.f32.mrf.mxu0
  %v919 = vadd.f32 %v895, %v918
  %920 = vdwg.mxu0
  %921 = vmatpush.xpose.msra.mxu0 0.0
  %922 = vmatpush.xpose.msra.mxu0 0.0
  %923 = vmatpush.xpose.msra.mxu0 0.0
  %924 = vmatpush.xpose.msra.mxu0 0.0
  %925 = vmatpush.xpose.msra.mxu0 0.0
  %926 = vmatpush.xpose.msra.mxu0 0.0
  %927 = vmatpush.xpose.msra.mxu0 0.0
  %928 = vmatpush.xpose.msra.mxu0 0.0
  %929 = vmatpush.xpose.msra.mxu0 0.0
  %930 = vmatpush.xpose.msra.mxu0 0.0
  %931 = vmatpush.xpose.msra.mxu0 0.0
  %932 = vmatpush.xpose.msra.mxu0 0.0
  %933 = vmatpush.xpose.msra.mxu0 0.0
  %934 = vmatpush.xpose.msra.mxu0 0.0
  %935 = vmatpush.xpose.msra.mxu0 0.0
  %v936 = vand.u32 %v795, 4294901760
  %937 = vmatpush.xpose.msra.mxu0 %v936
  %v938 = vand.u32 %v793, 4294901760
  %939 = vmatmul.f32.gmra.mxu0 %v938
  %v940 = vpop.f32.mrf.mxu0
  %v941 = vadd.f32 %v919, %v940
  %942 = vdwg.mxu0
  %943 = vrot.lane.b32.xlu0 %v477, 96
  %v944 = vpop.permute.xlu0 %943
  %v945 = vsel %vm488, %v477, 0
  %v947 = vsel %vm488, %v944, 0
  %949 = vmatpush.xpose.msra.mxu0 0.0
  %950 = vmatpush.xpose.msra.mxu0 0.0
  %951 = vmatpush.xpose.msra.mxu0 0.0
  %952 = vmatpush.xpose.msra.mxu0 0.0
  %953 = vmatpush.xpose.msra.mxu0 0.0
  %954 = vmatpush.xpose.msra.mxu0 0.0
  %955 = vmatpush.xpose.msra.mxu0 0.0
  %956 = vmatpush.xpose.msra.mxu0 0.0
  %957 = vmatpush.xpose.msra.mxu0 0.0
  %958 = vmatpush.xpose.msra.mxu0 0.0
  %959 = vmatpush.xpose.msra.mxu0 0.0
  %960 = vmatpush.xpose.msra.mxu0 0.0
  %961 = vmatpush.xpose.msra.mxu0 0.0
  %962 = vmatpush.xpose.msra.mxu0 0.0
  %963 = vmatpush.xpose.msra.mxu0 0.0
  %v964 = vand.u32 %v947, 4294901760
  %965 = vmatpush.xpose.msra.mxu0 %v964
  %v966 = vand.u32 %v945, 4294901760
  %v967 = vsub.f32 %v945, %v966
  %v968 = vand.u32 %v967, 4294901760
  %v969 = vsub.f32 %v967, %v968
  %v970 = vand.u32 %v969, 4294901760
  %971 = vmatmul.f32.gmra.mxu0 %v970
  %v972 = vpop.f32.mrf.mxu0
  %v973 = vadd.f32 0.0, %v972
  %974 = vdwg.mxu0
  %975 = vmatpush.xpose.msra.mxu0 0.0
  %976 = vmatpush.xpose.msra.mxu0 0.0
  %977 = vmatpush.xpose.msra.mxu0 0.0
  %978 = vmatpush.xpose.msra.mxu0 0.0
  %979 = vmatpush.xpose.msra.mxu0 0.0
  %980 = vmatpush.xpose.msra.mxu0 0.0
  %981 = vmatpush.xpose.msra.mxu0 0.0
  %982 = vmatpush.xpose.msra.mxu0 0.0
  %983 = vmatpush.xpose.msra.mxu0 0.0
  %984 = vmatpush.xpose.msra.mxu0 0.0
  %985 = vmatpush.xpose.msra.mxu0 0.0
  %986 = vmatpush.xpose.msra.mxu0 0.0
  %987 = vmatpush.xpose.msra.mxu0 0.0
  %988 = vmatpush.xpose.msra.mxu0 0.0
  %989 = vmatpush.xpose.msra.mxu0 0.0
  %v990 = vand.u32 %v947, 4294901760
  %v991 = vsub.f32 %v947, %v990
  %v992 = vand.u32 %v991, 4294901760
  %v993 = vsub.f32 %v991, %v992
  %v994 = vand.u32 %v993, 4294901760
  %995 = vmatpush.xpose.msra.mxu0 %v994
  %v996 = vand.u32 %v945, 4294901760
  %997 = vmatmul.f32.gmra.mxu0 %v996
  %v998 = vpop.f32.mrf.mxu0
  %v999 = vadd.f32 %v973, %v998
  %1000 = vdwg.mxu0
  %1001 = vmatpush.xpose.msra.mxu0 0.0
  %1002 = vmatpush.xpose.msra.mxu0 0.0
  %1003 = vmatpush.xpose.msra.mxu0 0.0
  %1004 = vmatpush.xpose.msra.mxu0 0.0
  %1005 = vmatpush.xpose.msra.mxu0 0.0
  %1006 = vmatpush.xpose.msra.mxu0 0.0
  %1007 = vmatpush.xpose.msra.mxu0 0.0
  %1008 = vmatpush.xpose.msra.mxu0 0.0
  %1009 = vmatpush.xpose.msra.mxu0 0.0
  %1010 = vmatpush.xpose.msra.mxu0 0.0
  %1011 = vmatpush.xpose.msra.mxu0 0.0
  %1012 = vmatpush.xpose.msra.mxu0 0.0
  %1013 = vmatpush.xpose.msra.mxu0 0.0
  %1014 = vmatpush.xpose.msra.mxu0 0.0
  %1015 = vmatpush.xpose.msra.mxu0 0.0
  %v1016 = vand.u32 %v947, 4294901760
  %v1017 = vsub.f32 %v947, %v1016
  %1018 = vmatpush.xpose.msra.mxu0 %v1017
  %v1019 = vand.u32 %v945, 4294901760
  %v1020 = vsub.f32 %v945, %v1019
  %1021 = vmatmul.f32.gmra.mxu0 %v1020
  %v1022 = vpop.f32.mrf.mxu0
  %v1023 = vadd.f32 %v999, %v1022
  %1024 = vdwg.mxu0
  %1025 = vmatpush.xpose.msra.mxu0 0.0
  %1026 = vmatpush.xpose.msra.mxu0 0.0
  %1027 = vmatpush.xpose.msra.mxu0 0.0
  %1028 = vmatpush.xpose.msra.mxu0 0.0
  %1029 = vmatpush.xpose.msra.mxu0 0.0
  %1030 = vmatpush.xpose.msra.mxu0 0.0
  %1031 = vmatpush.xpose.msra.mxu0 0.0
  %1032 = vmatpush.xpose.msra.mxu0 0.0
  %1033 = vmatpush.xpose.msra.mxu0 0.0
  %1034 = vmatpush.xpose.msra.mxu0 0.0
  %1035 = vmatpush.xpose.msra.mxu0 0.0
  %1036 = vmatpush.xpose.msra.mxu0 0.0
  %1037 = vmatpush.xpose.msra.mxu0 0.0
  %1038 = vmatpush.xpose.msra.mxu0 0.0
  %1039 = vmatpush.xpose.msra.mxu0 0.0
  %v1040 = vand.u32 %v947, 4294901760
  %1041 = vmatpush.xpose.msra.mxu0 %v1040
  %v1042 = vand.u32 %v945, 4294901760
  %v1043 = vsub.f32 %v945, %v1042
  %v1044 = vand.u32 %v1043, 4294901760
  %1045 = vmatmul.f32.gmra.mxu0 %v1044
  %v1046 = vpop.f32.mrf.mxu0
  %v1047 = vadd.f32 %v1023, %v1046
  %1048 = vdwg.mxu0
  %1049 = vmatpush.xpose.msra.mxu0 0.0
  %1050 = vmatpush.xpose.msra.mxu0 0.0
  %1051 = vmatpush.xpose.msra.mxu0 0.0
  %1052 = vmatpush.xpose.msra.mxu0 0.0
  %1053 = vmatpush.xpose.msra.mxu0 0.0
  %1054 = vmatpush.xpose.msra.mxu0 0.0
  %1055 = vmatpush.xpose.msra.mxu0 0.0
  %1056 = vmatpush.xpose.msra.mxu0 0.0
  %1057 = vmatpush.xpose.msra.mxu0 0.0
  %1058 = vmatpush.xpose.msra.mxu0 0.0
  %1059 = vmatpush.xpose.msra.mxu0 0.0
  %1060 = vmatpush.xpose.msra.mxu0 0.0
  %1061 = vmatpush.xpose.msra.mxu0 0.0
  %1062 = vmatpush.xpose.msra.mxu0 0.0
  %1063 = vmatpush.xpose.msra.mxu0 0.0
  %v1064 = vand.u32 %v947, 4294901760
  %v1065 = vsub.f32 %v947, %v1064
  %v1066 = vand.u32 %v1065, 4294901760
  %1067 = vmatpush.xpose.msra.mxu0 %v1066
  %v1068 = vand.u32 %v945, 4294901760
  %1069 = vmatmul.f32.gmra.mxu0 %v1068
  %v1070 = vpop.f32.mrf.mxu0
  %v1071 = vadd.f32 %v1047, %v1070
  %1072 = vdwg.mxu0
  %1073 = vmatpush.xpose.msra.mxu0 0.0
  %1074 = vmatpush.xpose.msra.mxu0 0.0
  %1075 = vmatpush.xpose.msra.mxu0 0.0
  %1076 = vmatpush.xpose.msra.mxu0 0.0
  %1077 = vmatpush.xpose.msra.mxu0 0.0
  %1078 = vmatpush.xpose.msra.mxu0 0.0
  %1079 = vmatpush.xpose.msra.mxu0 0.0
  %1080 = vmatpush.xpose.msra.mxu0 0.0
  %1081 = vmatpush.xpose.msra.mxu0 0.0
  %1082 = vmatpush.xpose.msra.mxu0 0.0
  %1083 = vmatpush.xpose.msra.mxu0 0.0
  %1084 = vmatpush.xpose.msra.mxu0 0.0
  %1085 = vmatpush.xpose.msra.mxu0 0.0
  %1086 = vmatpush.xpose.msra.mxu0 0.0
  %1087 = vmatpush.xpose.msra.mxu0 0.0
  %v1088 = vand.u32 %v947, 4294901760
  %1089 = vmatpush.xpose.msra.mxu0 %v1088
  %v1090 = vand.u32 %v945, 4294901760
  %1091 = vmatmul.f32.gmra.mxu0 %v1090
  %v1092 = vpop.f32.mrf.mxu0
  %v1093 = vadd.f32 %v1071, %v1092
  %1094 = vdwg.mxu0
  %1095 = vrot.lane.b32.xlu0 %v479, 96
  %v1096 = vpop.permute.xlu0 %1095
  %v1097 = vsel %vm488, %v479, 0
  %v1099 = vsel %vm488, %v1096, 0
  %1101 = vmatpush.xpose.msra.mxu0 0.0
  %1102 = vmatpush.xpose.msra.mxu0 0.0
  %1103 = vmatpush.xpose.msra.mxu0 0.0
  %1104 = vmatpush.xpose.msra.mxu0 0.0
  %1105 = vmatpush.xpose.msra.mxu0 0.0
  %1106 = vmatpush.xpose.msra.mxu0 0.0
  %1107 = vmatpush.xpose.msra.mxu0 0.0
  %1108 = vmatpush.xpose.msra.mxu0 0.0
  %1109 = vmatpush.xpose.msra.mxu0 0.0
  %1110 = vmatpush.xpose.msra.mxu0 0.0
  %1111 = vmatpush.xpose.msra.mxu0 0.0
  %1112 = vmatpush.xpose.msra.mxu0 0.0
  %1113 = vmatpush.xpose.msra.mxu0 0.0
  %1114 = vmatpush.xpose.msra.mxu0 0.0
  %1115 = vmatpush.xpose.msra.mxu0 0.0
  %v1116 = vand.u32 %v1099, 4294901760
  %1117 = vmatpush.xpose.msra.mxu0 %v1116
  %v1118 = vand.u32 %v1097, 4294901760
  %v1119 = vsub.f32 %v1097, %v1118
  %v1120 = vand.u32 %v1119, 4294901760
  %v1121 = vsub.f32 %v1119, %v1120
  %v1122 = vand.u32 %v1121, 4294901760
  %1123 = vmatmul.f32.gmra.mxu0 %v1122
  %v1124 = vpop.f32.mrf.mxu0
  %v1125 = vadd.f32 0.0, %v1124
  %1126 = vdwg.mxu0
  %1127 = vmatpush.xpose.msra.mxu0 0.0
  %1128 = vmatpush.xpose.msra.mxu0 0.0
  %1129 = vmatpush.xpose.msra.mxu0 0.0
  %1130 = vmatpush.xpose.msra.mxu0 0.0
  %1131 = vmatpush.xpose.msra.mxu0 0.0
  %1132 = vmatpush.xpose.msra.mxu0 0.0
  %1133 = vmatpush.xpose.msra.mxu0 0.0
  %1134 = vmatpush.xpose.msra.mxu0 0.0
  %1135 = vmatpush.xpose.msra.mxu0 0.0
  %1136 = vmatpush.xpose.msra.mxu0 0.0
  %1137 = vmatpush.xpose.msra.mxu0 0.0
  %1138 = vmatpush.xpose.msra.mxu0 0.0
  %1139 = vmatpush.xpose.msra.mxu0 0.0
  %1140 = vmatpush.xpose.msra.mxu0 0.0
  %1141 = vmatpush.xpose.msra.mxu0 0.0
  %v1142 = vand.u32 %v1099, 4294901760
  %v1143 = vsub.f32 %v1099, %v1142
  %v1144 = vand.u32 %v1143, 4294901760
  %v1145 = vsub.f32 %v1143, %v1144
  %v1146 = vand.u32 %v1145, 4294901760
  %1147 = vmatpush.xpose.msra.mxu0 %v1146
  %v1148 = vand.u32 %v1097, 4294901760
  %1149 = vmatmul.f32.gmra.mxu0 %v1148
  %v1150 = vpop.f32.mrf.mxu0
  %v1151 = vadd.f32 %v1125, %v1150
  %1152 = vdwg.mxu0
  %1153 = vmatpush.xpose.msra.mxu0 0.0
  %1154 = vmatpush.xpose.msra.mxu0 0.0
  %1155 = vmatpush.xpose.msra.mxu0 0.0
  %1156 = vmatpush.xpose.msra.mxu0 0.0
  %1157 = vmatpush.xpose.msra.mxu0 0.0
  %1158 = vmatpush.xpose.msra.mxu0 0.0
  %1159 = vmatpush.xpose.msra.mxu0 0.0
  %1160 = vmatpush.xpose.msra.mxu0 0.0
  %1161 = vmatpush.xpose.msra.mxu0 0.0
  %1162 = vmatpush.xpose.msra.mxu0 0.0
  %1163 = vmatpush.xpose.msra.mxu0 0.0
  %1164 = vmatpush.xpose.msra.mxu0 0.0
  %1165 = vmatpush.xpose.msra.mxu0 0.0
  %1166 = vmatpush.xpose.msra.mxu0 0.0
  %1167 = vmatpush.xpose.msra.mxu0 0.0
  %v1168 = vand.u32 %v1099, 4294901760
  %v1169 = vsub.f32 %v1099, %v1168
  %1170 = vmatpush.xpose.msra.mxu0 %v1169
  %v1171 = vand.u32 %v1097, 4294901760
  %v1172 = vsub.f32 %v1097, %v1171
  %1173 = vmatmul.f32.gmra.mxu0 %v1172
  %v1174 = vpop.f32.mrf.mxu0
  %v1175 = vadd.f32 %v1151, %v1174
  %1176 = vdwg.mxu0
  %1177 = vmatpush.xpose.msra.mxu0 0.0
  %1178 = vmatpush.xpose.msra.mxu0 0.0
  %1179 = vmatpush.xpose.msra.mxu0 0.0
  %1180 = vmatpush.xpose.msra.mxu0 0.0
  %1181 = vmatpush.xpose.msra.mxu0 0.0
  %1182 = vmatpush.xpose.msra.mxu0 0.0
  %1183 = vmatpush.xpose.msra.mxu0 0.0
  %1184 = vmatpush.xpose.msra.mxu0 0.0
  %1185 = vmatpush.xpose.msra.mxu0 0.0
  %1186 = vmatpush.xpose.msra.mxu0 0.0
  %1187 = vmatpush.xpose.msra.mxu0 0.0
  %1188 = vmatpush.xpose.msra.mxu0 0.0
  %1189 = vmatpush.xpose.msra.mxu0 0.0
  %1190 = vmatpush.xpose.msra.mxu0 0.0
  %1191 = vmatpush.xpose.msra.mxu0 0.0
  %v1192 = vand.u32 %v1099, 4294901760
  %1193 = vmatpush.xpose.msra.mxu0 %v1192
  %v1194 = vand.u32 %v1097, 4294901760
  %v1195 = vsub.f32 %v1097, %v1194
  %v1196 = vand.u32 %v1195, 4294901760
  %1197 = vmatmul.f32.gmra.mxu0 %v1196
  %v1198 = vpop.f32.mrf.mxu0
  %v1199 = vadd.f32 %v1175, %v1198
  %1200 = vdwg.mxu0
  %1201 = vmatpush.xpose.msra.mxu0 0.0
  %1202 = vmatpush.xpose.msra.mxu0 0.0
  %1203 = vmatpush.xpose.msra.mxu0 0.0
  %1204 = vmatpush.xpose.msra.mxu0 0.0
  %1205 = vmatpush.xpose.msra.mxu0 0.0
  %1206 = vmatpush.xpose.msra.mxu0 0.0
  %1207 = vmatpush.xpose.msra.mxu0 0.0
  %1208 = vmatpush.xpose.msra.mxu0 0.0
  %1209 = vmatpush.xpose.msra.mxu0 0.0
  %1210 = vmatpush.xpose.msra.mxu0 0.0
  %1211 = vmatpush.xpose.msra.mxu0 0.0
  %1212 = vmatpush.xpose.msra.mxu0 0.0
  %1213 = vmatpush.xpose.msra.mxu0 0.0
  %1214 = vmatpush.xpose.msra.mxu0 0.0
  %1215 = vmatpush.xpose.msra.mxu0 0.0
  %v1216 = vand.u32 %v1099, 4294901760
  %v1217 = vsub.f32 %v1099, %v1216
  %v1218 = vand.u32 %v1217, 4294901760
  %1219 = vmatpush.xpose.msra.mxu0 %v1218
  %v1220 = vand.u32 %v1097, 4294901760
  %1221 = vmatmul.f32.gmra.mxu0 %v1220
  %v1222 = vpop.f32.mrf.mxu0
  %v1223 = vadd.f32 %v1199, %v1222
  %1224 = vdwg.mxu0
  %1225 = vmatpush.xpose.msra.mxu0 0.0
  %1226 = vmatpush.xpose.msra.mxu0 0.0
  %1227 = vmatpush.xpose.msra.mxu0 0.0
  %1228 = vmatpush.xpose.msra.mxu0 0.0
  %1229 = vmatpush.xpose.msra.mxu0 0.0
  %1230 = vmatpush.xpose.msra.mxu0 0.0
  %1231 = vmatpush.xpose.msra.mxu0 0.0
  %1232 = vmatpush.xpose.msra.mxu0 0.0
  %1233 = vmatpush.xpose.msra.mxu0 0.0
  %1234 = vmatpush.xpose.msra.mxu0 0.0
  %1235 = vmatpush.xpose.msra.mxu0 0.0
  %1236 = vmatpush.xpose.msra.mxu0 0.0
  %1237 = vmatpush.xpose.msra.mxu0 0.0
  %1238 = vmatpush.xpose.msra.mxu0 0.0
  %1239 = vmatpush.xpose.msra.mxu0 0.0
  %v1240 = vand.u32 %v1099, 4294901760
  %1241 = vmatpush.xpose.msra.mxu0 %v1240
  %v1242 = vand.u32 %v1097, 4294901760
  %1243 = vmatmul.f32.gmra.mxu0 %v1242
  %v1244 = vpop.f32.mrf.mxu0
  %v1245 = vadd.f32 %v1223, %v1244
  %1246 = vdwg.mxu0
  %1247 = vrot.lane.b32.xlu0 %v481, 96
  %v1248 = vpop.permute.xlu0 %1247
  %v1249 = vsel %vm488, %v481, 0
  %v1251 = vsel %vm488, %v1248, 0
  %1253 = vmatpush.xpose.msra.mxu0 0.0
  %1254 = vmatpush.xpose.msra.mxu0 0.0
  %1255 = vmatpush.xpose.msra.mxu0 0.0
  %1256 = vmatpush.xpose.msra.mxu0 0.0
  %1257 = vmatpush.xpose.msra.mxu0 0.0
  %1258 = vmatpush.xpose.msra.mxu0 0.0
  %1259 = vmatpush.xpose.msra.mxu0 0.0
  %1260 = vmatpush.xpose.msra.mxu0 0.0
  %1261 = vmatpush.xpose.msra.mxu0 0.0
  %1262 = vmatpush.xpose.msra.mxu0 0.0
  %1263 = vmatpush.xpose.msra.mxu0 0.0
  %1264 = vmatpush.xpose.msra.mxu0 0.0
  %1265 = vmatpush.xpose.msra.mxu0 0.0
  %1266 = vmatpush.xpose.msra.mxu0 0.0
  %1267 = vmatpush.xpose.msra.mxu0 0.0
  %v1268 = vand.u32 %v1251, 4294901760
  %1269 = vmatpush.xpose.msra.mxu0 %v1268
  %v1270 = vand.u32 %v1249, 4294901760
  %v1271 = vsub.f32 %v1249, %v1270
  %v1272 = vand.u32 %v1271, 4294901760
  %v1273 = vsub.f32 %v1271, %v1272
  %v1274 = vand.u32 %v1273, 4294901760
  %1275 = vmatmul.f32.gmra.mxu0 %v1274
  %v1276 = vpop.f32.mrf.mxu0
  %v1277 = vadd.f32 0.0, %v1276
  %1278 = vdwg.mxu0
  %1279 = vmatpush.xpose.msra.mxu0 0.0
  %1280 = vmatpush.xpose.msra.mxu0 0.0
  %1281 = vmatpush.xpose.msra.mxu0 0.0
  %1282 = vmatpush.xpose.msra.mxu0 0.0
  %1283 = vmatpush.xpose.msra.mxu0 0.0
  %1284 = vmatpush.xpose.msra.mxu0 0.0
  %1285 = vmatpush.xpose.msra.mxu0 0.0
  %1286 = vmatpush.xpose.msra.mxu0 0.0
  %1287 = vmatpush.xpose.msra.mxu0 0.0
  %1288 = vmatpush.xpose.msra.mxu0 0.0
  %1289 = vmatpush.xpose.msra.mxu0 0.0
  %1290 = vmatpush.xpose.msra.mxu0 0.0
  %1291 = vmatpush.xpose.msra.mxu0 0.0
  %1292 = vmatpush.xpose.msra.mxu0 0.0
  %1293 = vmatpush.xpose.msra.mxu0 0.0
  %v1294 = vand.u32 %v1251, 4294901760
  %v1295 = vsub.f32 %v1251, %v1294
  %v1296 = vand.u32 %v1295, 4294901760
  %v1297 = vsub.f32 %v1295, %v1296
  %v1298 = vand.u32 %v1297, 4294901760
  %1299 = vmatpush.xpose.msra.mxu0 %v1298
  %v1300 = vand.u32 %v1249, 4294901760
  %1301 = vmatmul.f32.gmra.mxu0 %v1300
  %v1302 = vpop.f32.mrf.mxu0
  %v1303 = vadd.f32 %v1277, %v1302
  %1304 = vdwg.mxu0
  %1305 = vmatpush.xpose.msra.mxu0 0.0
  %1306 = vmatpush.xpose.msra.mxu0 0.0
  %1307 = vmatpush.xpose.msra.mxu0 0.0
  %1308 = vmatpush.xpose.msra.mxu0 0.0
  %1309 = vmatpush.xpose.msra.mxu0 0.0
  %1310 = vmatpush.xpose.msra.mxu0 0.0
  %1311 = vmatpush.xpose.msra.mxu0 0.0
  %1312 = vmatpush.xpose.msra.mxu0 0.0
  %1313 = vmatpush.xpose.msra.mxu0 0.0
  %1314 = vmatpush.xpose.msra.mxu0 0.0
  %1315 = vmatpush.xpose.msra.mxu0 0.0
  %1316 = vmatpush.xpose.msra.mxu0 0.0
  %1317 = vmatpush.xpose.msra.mxu0 0.0
  %1318 = vmatpush.xpose.msra.mxu0 0.0
  %1319 = vmatpush.xpose.msra.mxu0 0.0
  %v1320 = vand.u32 %v1251, 4294901760
  %v1321 = vsub.f32 %v1251, %v1320
  %1322 = vmatpush.xpose.msra.mxu0 %v1321
  %v1323 = vand.u32 %v1249, 4294901760
  %v1324 = vsub.f32 %v1249, %v1323
  %1325 = vmatmul.f32.gmra.mxu0 %v1324
  %v1326 = vpop.f32.mrf.mxu0
  %v1327 = vadd.f32 %v1303, %v1326
  %1328 = vdwg.mxu0
  %1329 = vmatpush.xpose.msra.mxu0 0.0
  %1330 = vmatpush.xpose.msra.mxu0 0.0
  %1331 = vmatpush.xpose.msra.mxu0 0.0
  %1332 = vmatpush.xpose.msra.mxu0 0.0
  %1333 = vmatpush.xpose.msra.mxu0 0.0
  %1334 = vmatpush.xpose.msra.mxu0 0.0
  %1335 = vmatpush.xpose.msra.mxu0 0.0
  %1336 = vmatpush.xpose.msra.mxu0 0.0
  %1337 = vmatpush.xpose.msra.mxu0 0.0
  %1338 = vmatpush.xpose.msra.mxu0 0.0
  %1339 = vmatpush.xpose.msra.mxu0 0.0
  %1340 = vmatpush.xpose.msra.mxu0 0.0
  %1341 = vmatpush.xpose.msra.mxu0 0.0
  %1342 = vmatpush.xpose.msra.mxu0 0.0
  %1343 = vmatpush.xpose.msra.mxu0 0.0
  %v1344 = vand.u32 %v1251, 4294901760
  %1345 = vmatpush.xpose.msra.mxu0 %v1344
  %v1346 = vand.u32 %v1249, 4294901760
  %v1347 = vsub.f32 %v1249, %v1346
  %v1348 = vand.u32 %v1347, 4294901760
  %1349 = vmatmul.f32.gmra.mxu0 %v1348
  %v1350 = vpop.f32.mrf.mxu0
  %v1351 = vadd.f32 %v1327, %v1350
  %1352 = vdwg.mxu0
  %1353 = vmatpush.xpose.msra.mxu0 0.0
  %1354 = vmatpush.xpose.msra.mxu0 0.0
  %1355 = vmatpush.xpose.msra.mxu0 0.0
  %1356 = vmatpush.xpose.msra.mxu0 0.0
  %1357 = vmatpush.xpose.msra.mxu0 0.0
  %1358 = vmatpush.xpose.msra.mxu0 0.0
  %1359 = vmatpush.xpose.msra.mxu0 0.0
  %1360 = vmatpush.xpose.msra.mxu0 0.0
  %1361 = vmatpush.xpose.msra.mxu0 0.0
  %1362 = vmatpush.xpose.msra.mxu0 0.0
  %1363 = vmatpush.xpose.msra.mxu0 0.0
  %1364 = vmatpush.xpose.msra.mxu0 0.0
  %1365 = vmatpush.xpose.msra.mxu0 0.0
  %1366 = vmatpush.xpose.msra.mxu0 0.0
  %1367 = vmatpush.xpose.msra.mxu0 0.0
  %v1368 = vand.u32 %v1251, 4294901760
  %v1369 = vsub.f32 %v1251, %v1368
  %v1370 = vand.u32 %v1369, 4294901760
  %1371 = vmatpush.xpose.msra.mxu0 %v1370
  %v1372 = vand.u32 %v1249, 4294901760
  %1373 = vmatmul.f32.gmra.mxu0 %v1372
  %v1374 = vpop.f32.mrf.mxu0
  %v1375 = vadd.f32 %v1351, %v1374
  %1376 = vdwg.mxu0
  %1377 = vmatpush.xpose.msra.mxu0 0.0
  %1378 = vmatpush.xpose.msra.mxu0 0.0
  %1379 = vmatpush.xpose.msra.mxu0 0.0
  %1380 = vmatpush.xpose.msra.mxu0 0.0
  %1381 = vmatpush.xpose.msra.mxu0 0.0
  %1382 = vmatpush.xpose.msra.mxu0 0.0
  %1383 = vmatpush.xpose.msra.mxu0 0.0
  %1384 = vmatpush.xpose.msra.mxu0 0.0
  %1385 = vmatpush.xpose.msra.mxu0 0.0
  %1386 = vmatpush.xpose.msra.mxu0 0.0
  %1387 = vmatpush.xpose.msra.mxu0 0.0
  %1388 = vmatpush.xpose.msra.mxu0 0.0
  %1389 = vmatpush.xpose.msra.mxu0 0.0
  %1390 = vmatpush.xpose.msra.mxu0 0.0
  %1391 = vmatpush.xpose.msra.mxu0 0.0
  %v1392 = vand.u32 %v1251, 4294901760
  %1393 = vmatpush.xpose.msra.mxu0 %v1392
  %v1394 = vand.u32 %v1249, 4294901760
  %1395 = vmatmul.f32.gmra.mxu0 %v1394
  %v1396 = vpop.f32.mrf.mxu0
  %v1397 = vadd.f32 %v1375, %v1396
  %1398 = vdwg.mxu0
  %1399 = vrot.lane.b32.xlu0 %v483, 96
  %v1400 = vpop.permute.xlu0 %1399
  %v1401 = vsel %vm488, %v483, 0
  %v1403 = vsel %vm488, %v1400, 0
  %1405 = vmatpush.xpose.msra.mxu0 0.0
  %1406 = vmatpush.xpose.msra.mxu0 0.0
  %1407 = vmatpush.xpose.msra.mxu0 0.0
  %1408 = vmatpush.xpose.msra.mxu0 0.0
  %1409 = vmatpush.xpose.msra.mxu0 0.0
  %1410 = vmatpush.xpose.msra.mxu0 0.0
  %1411 = vmatpush.xpose.msra.mxu0 0.0
  %1412 = vmatpush.xpose.msra.mxu0 0.0
  %1413 = vmatpush.xpose.msra.mxu0 0.0
  %1414 = vmatpush.xpose.msra.mxu0 0.0
  %1415 = vmatpush.xpose.msra.mxu0 0.0
  %1416 = vmatpush.xpose.msra.mxu0 0.0
  %1417 = vmatpush.xpose.msra.mxu0 0.0
  %1418 = vmatpush.xpose.msra.mxu0 0.0
  %1419 = vmatpush.xpose.msra.mxu0 0.0
  %v1420 = vand.u32 %v1403, 4294901760
  %1421 = vmatpush.xpose.msra.mxu0 %v1420
  %v1422 = vand.u32 %v1401, 4294901760
  %v1423 = vsub.f32 %v1401, %v1422
  %v1424 = vand.u32 %v1423, 4294901760
  %v1425 = vsub.f32 %v1423, %v1424
  %v1426 = vand.u32 %v1425, 4294901760
  %1427 = vmatmul.f32.gmra.mxu0 %v1426
  %v1428 = vpop.f32.mrf.mxu0
  %v1429 = vadd.f32 0.0, %v1428
  %1430 = vdwg.mxu0
  %1431 = vmatpush.xpose.msra.mxu0 0.0
  %1432 = vmatpush.xpose.msra.mxu0 0.0
  %1433 = vmatpush.xpose.msra.mxu0 0.0
  %1434 = vmatpush.xpose.msra.mxu0 0.0
  %1435 = vmatpush.xpose.msra.mxu0 0.0
  %1436 = vmatpush.xpose.msra.mxu0 0.0
  %1437 = vmatpush.xpose.msra.mxu0 0.0
  %1438 = vmatpush.xpose.msra.mxu0 0.0
  %1439 = vmatpush.xpose.msra.mxu0 0.0
  %1440 = vmatpush.xpose.msra.mxu0 0.0
  %1441 = vmatpush.xpose.msra.mxu0 0.0
  %1442 = vmatpush.xpose.msra.mxu0 0.0
  %1443 = vmatpush.xpose.msra.mxu0 0.0
  %1444 = vmatpush.xpose.msra.mxu0 0.0
  %1445 = vmatpush.xpose.msra.mxu0 0.0
  %v1446 = vand.u32 %v1403, 4294901760
  %v1447 = vsub.f32 %v1403, %v1446
  %v1448 = vand.u32 %v1447, 4294901760
  %v1449 = vsub.f32 %v1447, %v1448
  %v1450 = vand.u32 %v1449, 4294901760
  %1451 = vmatpush.xpose.msra.mxu0 %v1450
  %v1452 = vand.u32 %v1401, 4294901760
  %1453 = vmatmul.f32.gmra.mxu0 %v1452
  %v1454 = vpop.f32.mrf.mxu0
  %v1455 = vadd.f32 %v1429, %v1454
  %1456 = vdwg.mxu0
  %1457 = vmatpush.xpose.msra.mxu0 0.0
  %1458 = vmatpush.xpose.msra.mxu0 0.0
  %1459 = vmatpush.xpose.msra.mxu0 0.0
  %1460 = vmatpush.xpose.msra.mxu0 0.0
  %1461 = vmatpush.xpose.msra.mxu0 0.0
  %1462 = vmatpush.xpose.msra.mxu0 0.0
  %1463 = vmatpush.xpose.msra.mxu0 0.0
  %1464 = vmatpush.xpose.msra.mxu0 0.0
  %1465 = vmatpush.xpose.msra.mxu0 0.0
  %1466 = vmatpush.xpose.msra.mxu0 0.0
  %1467 = vmatpush.xpose.msra.mxu0 0.0
  %1468 = vmatpush.xpose.msra.mxu0 0.0
  %1469 = vmatpush.xpose.msra.mxu0 0.0
  %1470 = vmatpush.xpose.msra.mxu0 0.0
  %1471 = vmatpush.xpose.msra.mxu0 0.0
  %v1472 = vand.u32 %v1403, 4294901760
  %v1473 = vsub.f32 %v1403, %v1472
  %1474 = vmatpush.xpose.msra.mxu0 %v1473
  %v1475 = vand.u32 %v1401, 4294901760
  %v1476 = vsub.f32 %v1401, %v1475
  %1477 = vmatmul.f32.gmra.mxu0 %v1476
  %v1478 = vpop.f32.mrf.mxu0
  %v1479 = vadd.f32 %v1455, %v1478
  %1480 = vdwg.mxu0
  %1481 = vmatpush.xpose.msra.mxu0 0.0
  %1482 = vmatpush.xpose.msra.mxu0 0.0
  %1483 = vmatpush.xpose.msra.mxu0 0.0
  %1484 = vmatpush.xpose.msra.mxu0 0.0
  %1485 = vmatpush.xpose.msra.mxu0 0.0
  %1486 = vmatpush.xpose.msra.mxu0 0.0
  %1487 = vmatpush.xpose.msra.mxu0 0.0
  %1488 = vmatpush.xpose.msra.mxu0 0.0
  %1489 = vmatpush.xpose.msra.mxu0 0.0
  %1490 = vmatpush.xpose.msra.mxu0 0.0
  %1491 = vmatpush.xpose.msra.mxu0 0.0
  %1492 = vmatpush.xpose.msra.mxu0 0.0
  %1493 = vmatpush.xpose.msra.mxu0 0.0
  %1494 = vmatpush.xpose.msra.mxu0 0.0
  %1495 = vmatpush.xpose.msra.mxu0 0.0
  %v1496 = vand.u32 %v1403, 4294901760
  %1497 = vmatpush.xpose.msra.mxu0 %v1496
  %v1498 = vand.u32 %v1401, 4294901760
  %v1499 = vsub.f32 %v1401, %v1498
  %v1500 = vand.u32 %v1499, 4294901760
  %1501 = vmatmul.f32.gmra.mxu0 %v1500
  %v1502 = vpop.f32.mrf.mxu0
  %v1503 = vadd.f32 %v1479, %v1502
  %1504 = vdwg.mxu0
  %1505 = vmatpush.xpose.msra.mxu0 0.0
  %1506 = vmatpush.xpose.msra.mxu0 0.0
  %1507 = vmatpush.xpose.msra.mxu0 0.0
  %1508 = vmatpush.xpose.msra.mxu0 0.0
  %1509 = vmatpush.xpose.msra.mxu0 0.0
  %1510 = vmatpush.xpose.msra.mxu0 0.0
  %1511 = vmatpush.xpose.msra.mxu0 0.0
  %1512 = vmatpush.xpose.msra.mxu0 0.0
  %1513 = vmatpush.xpose.msra.mxu0 0.0
  %1514 = vmatpush.xpose.msra.mxu0 0.0
  %1515 = vmatpush.xpose.msra.mxu0 0.0
  %1516 = vmatpush.xpose.msra.mxu0 0.0
  %1517 = vmatpush.xpose.msra.mxu0 0.0
  %1518 = vmatpush.xpose.msra.mxu0 0.0
  %1519 = vmatpush.xpose.msra.mxu0 0.0
  %v1520 = vand.u32 %v1403, 4294901760
  %v1521 = vsub.f32 %v1403, %v1520
  %v1522 = vand.u32 %v1521, 4294901760
  %1523 = vmatpush.xpose.msra.mxu0 %v1522
  %v1524 = vand.u32 %v1401, 4294901760
  %1525 = vmatmul.f32.gmra.mxu0 %v1524
  %v1526 = vpop.f32.mrf.mxu0
  %v1527 = vadd.f32 %v1503, %v1526
  %1528 = vdwg.mxu0
  %1529 = vmatpush.xpose.msra.mxu0 0.0
  %1530 = vmatpush.xpose.msra.mxu0 0.0
  %1531 = vmatpush.xpose.msra.mxu0 0.0
  %1532 = vmatpush.xpose.msra.mxu0 0.0
  %1533 = vmatpush.xpose.msra.mxu0 0.0
  %1534 = vmatpush.xpose.msra.mxu0 0.0
  %1535 = vmatpush.xpose.msra.mxu0 0.0
  %1536 = vmatpush.xpose.msra.mxu0 0.0
  %1537 = vmatpush.xpose.msra.mxu0 0.0
  %1538 = vmatpush.xpose.msra.mxu0 0.0
  %1539 = vmatpush.xpose.msra.mxu0 0.0
  %1540 = vmatpush.xpose.msra.mxu0 0.0
  %1541 = vmatpush.xpose.msra.mxu0 0.0
  %1542 = vmatpush.xpose.msra.mxu0 0.0
  %1543 = vmatpush.xpose.msra.mxu0 0.0
  %v1544 = vand.u32 %v1403, 4294901760
  %1545 = vmatpush.xpose.msra.mxu0 %v1544
  %v1546 = vand.u32 %v1401, 4294901760
  %1547 = vmatmul.f32.gmra.mxu0 %v1546
  %v1548 = vpop.f32.mrf.mxu0
  %v1549 = vadd.f32 %v1527, %v1548
  %1550 = vdwg.mxu0
  %1551 = vrot.lane.b32.xlu0 %v485, 96
  %v1552 = vpop.permute.xlu0 %1551
  %v1553 = vsel %vm488, %v485, 0
  %v1555 = vsel %vm488, %v1552, 0
  %1557 = vmatpush.xpose.msra.mxu0 0.0
  %1558 = vmatpush.xpose.msra.mxu0 0.0
  %1559 = vmatpush.xpose.msra.mxu0 0.0
  %1560 = vmatpush.xpose.msra.mxu0 0.0
  %1561 = vmatpush.xpose.msra.mxu0 0.0
  %1562 = vmatpush.xpose.msra.mxu0 0.0
  %1563 = vmatpush.xpose.msra.mxu0 0.0
  %1564 = vmatpush.xpose.msra.mxu0 0.0
  %1565 = vmatpush.xpose.msra.mxu0 0.0
  %1566 = vmatpush.xpose.msra.mxu0 0.0
  %1567 = vmatpush.xpose.msra.mxu0 0.0
  %1568 = vmatpush.xpose.msra.mxu0 0.0
  %1569 = vmatpush.xpose.msra.mxu0 0.0
  %1570 = vmatpush.xpose.msra.mxu0 0.0
  %1571 = vmatpush.xpose.msra.mxu0 0.0
  %v1572 = vand.u32 %v1555, 4294901760
  %1573 = vmatpush.xpose.msra.mxu0 %v1572
  %v1574 = vand.u32 %v1553, 4294901760
  %v1575 = vsub.f32 %v1553, %v1574
  %v1576 = vand.u32 %v1575, 4294901760
  %v1577 = vsub.f32 %v1575, %v1576
  %v1578 = vand.u32 %v1577, 4294901760
  %1579 = vmatmul.f32.gmra.mxu0 %v1578
  %v1580 = vpop.f32.mrf.mxu0
  %v1581 = vadd.f32 0.0, %v1580
  %1582 = vdwg.mxu0
  %1583 = vmatpush.xpose.msra.mxu0 0.0
  %1584 = vmatpush.xpose.msra.mxu0 0.0
  %1585 = vmatpush.xpose.msra.mxu0 0.0
  %1586 = vmatpush.xpose.msra.mxu0 0.0
  %1587 = vmatpush.xpose.msra.mxu0 0.0
  %1588 = vmatpush.xpose.msra.mxu0 0.0
  %1589 = vmatpush.xpose.msra.mxu0 0.0
  %1590 = vmatpush.xpose.msra.mxu0 0.0
  %1591 = vmatpush.xpose.msra.mxu0 0.0
  %1592 = vmatpush.xpose.msra.mxu0 0.0
  %1593 = vmatpush.xpose.msra.mxu0 0.0
  %1594 = vmatpush.xpose.msra.mxu0 0.0
  %1595 = vmatpush.xpose.msra.mxu0 0.0
  %1596 = vmatpush.xpose.msra.mxu0 0.0
  %1597 = vmatpush.xpose.msra.mxu0 0.0
  %v1598 = vand.u32 %v1555, 4294901760
  %v1599 = vsub.f32 %v1555, %v1598
  %v1600 = vand.u32 %v1599, 4294901760
  %v1601 = vsub.f32 %v1599, %v1600
  %v1602 = vand.u32 %v1601, 4294901760
  %1603 = vmatpush.xpose.msra.mxu0 %v1602
  %v1604 = vand.u32 %v1553, 4294901760
  %1605 = vmatmul.f32.gmra.mxu0 %v1604
  %v1606 = vpop.f32.mrf.mxu0
  %v1607 = vadd.f32 %v1581, %v1606
  %1608 = vdwg.mxu0
  %1609 = vmatpush.xpose.msra.mxu0 0.0
  %1610 = vmatpush.xpose.msra.mxu0 0.0
  %1611 = vmatpush.xpose.msra.mxu0 0.0
  %1612 = vmatpush.xpose.msra.mxu0 0.0
  %1613 = vmatpush.xpose.msra.mxu0 0.0
  %1614 = vmatpush.xpose.msra.mxu0 0.0
  %1615 = vmatpush.xpose.msra.mxu0 0.0
  %1616 = vmatpush.xpose.msra.mxu0 0.0
  %1617 = vmatpush.xpose.msra.mxu0 0.0
  %1618 = vmatpush.xpose.msra.mxu0 0.0
  %1619 = vmatpush.xpose.msra.mxu0 0.0
  %1620 = vmatpush.xpose.msra.mxu0 0.0
  %1621 = vmatpush.xpose.msra.mxu0 0.0
  %1622 = vmatpush.xpose.msra.mxu0 0.0
  %1623 = vmatpush.xpose.msra.mxu0 0.0
  %v1624 = vand.u32 %v1555, 4294901760
  %v1625 = vsub.f32 %v1555, %v1624
  %1626 = vmatpush.xpose.msra.mxu0 %v1625
  %v1627 = vand.u32 %v1553, 4294901760
  %v1628 = vsub.f32 %v1553, %v1627
  %1629 = vmatmul.f32.gmra.mxu0 %v1628
  %v1630 = vpop.f32.mrf.mxu0
  %v1631 = vadd.f32 %v1607, %v1630
  %1632 = vdwg.mxu0
  %1633 = vmatpush.xpose.msra.mxu0 0.0
  %1634 = vmatpush.xpose.msra.mxu0 0.0
  %1635 = vmatpush.xpose.msra.mxu0 0.0
  %1636 = vmatpush.xpose.msra.mxu0 0.0
  %1637 = vmatpush.xpose.msra.mxu0 0.0
  %1638 = vmatpush.xpose.msra.mxu0 0.0
  %1639 = vmatpush.xpose.msra.mxu0 0.0
  %1640 = vmatpush.xpose.msra.mxu0 0.0
  %1641 = vmatpush.xpose.msra.mxu0 0.0
  %1642 = vmatpush.xpose.msra.mxu0 0.0
  %1643 = vmatpush.xpose.msra.mxu0 0.0
  %1644 = vmatpush.xpose.msra.mxu0 0.0
  %1645 = vmatpush.xpose.msra.mxu0 0.0
  %1646 = vmatpush.xpose.msra.mxu0 0.0
  %1647 = vmatpush.xpose.msra.mxu0 0.0
  %v1648 = vand.u32 %v1555, 4294901760
  %1649 = vmatpush.xpose.msra.mxu0 %v1648
  %v1650 = vand.u32 %v1553, 4294901760
  %v1651 = vsub.f32 %v1553, %v1650
  %v1652 = vand.u32 %v1651, 4294901760
  %1653 = vmatmul.f32.gmra.mxu0 %v1652
  %v1654 = vpop.f32.mrf.mxu0
  %v1655 = vadd.f32 %v1631, %v1654
  %1656 = vdwg.mxu0
  %1657 = vmatpush.xpose.msra.mxu0 0.0
  %1658 = vmatpush.xpose.msra.mxu0 0.0
  %1659 = vmatpush.xpose.msra.mxu0 0.0
  %1660 = vmatpush.xpose.msra.mxu0 0.0
  %1661 = vmatpush.xpose.msra.mxu0 0.0
  %1662 = vmatpush.xpose.msra.mxu0 0.0
  %1663 = vmatpush.xpose.msra.mxu0 0.0
  %1664 = vmatpush.xpose.msra.mxu0 0.0
  %1665 = vmatpush.xpose.msra.mxu0 0.0
  %1666 = vmatpush.xpose.msra.mxu0 0.0
  %1667 = vmatpush.xpose.msra.mxu0 0.0
  %1668 = vmatpush.xpose.msra.mxu0 0.0
  %1669 = vmatpush.xpose.msra.mxu0 0.0
  %1670 = vmatpush.xpose.msra.mxu0 0.0
  %1671 = vmatpush.xpose.msra.mxu0 0.0
  %v1672 = vand.u32 %v1555, 4294901760
  %v1673 = vsub.f32 %v1555, %v1672
  %v1674 = vand.u32 %v1673, 4294901760
  %1675 = vmatpush.xpose.msra.mxu0 %v1674
  %v1676 = vand.u32 %v1553, 4294901760
  %1677 = vmatmul.f32.gmra.mxu0 %v1676
  %v1678 = vpop.f32.mrf.mxu0
  %v1679 = vadd.f32 %v1655, %v1678
  %1680 = vdwg.mxu0
  %1681 = vmatpush.xpose.msra.mxu0 0.0
  %1682 = vmatpush.xpose.msra.mxu0 0.0
  %1683 = vmatpush.xpose.msra.mxu0 0.0
  %1684 = vmatpush.xpose.msra.mxu0 0.0
  %1685 = vmatpush.xpose.msra.mxu0 0.0
  %1686 = vmatpush.xpose.msra.mxu0 0.0
  %1687 = vmatpush.xpose.msra.mxu0 0.0
  %1688 = vmatpush.xpose.msra.mxu0 0.0
  %1689 = vmatpush.xpose.msra.mxu0 0.0
  %1690 = vmatpush.xpose.msra.mxu0 0.0
  %1691 = vmatpush.xpose.msra.mxu0 0.0
  %1692 = vmatpush.xpose.msra.mxu0 0.0
  %1693 = vmatpush.xpose.msra.mxu0 0.0
  %1694 = vmatpush.xpose.msra.mxu0 0.0
  %1695 = vmatpush.xpose.msra.mxu0 0.0
  %v1696 = vand.u32 %v1555, 4294901760
  %1697 = vmatpush.xpose.msra.mxu0 %v1696
  %v1698 = vand.u32 %v1553, 4294901760
  %1699 = vmatmul.f32.gmra.mxu0 %v1698
  %v1700 = vpop.f32.mrf.mxu0
  %v1701 = vadd.f32 %v1679, %v1700
  %1702 = vdwg.mxu0
  %v1703 = vsel %vm488, %v637, -inf
  %1704 = vmax.xlane.f32.xlu0 %v1703
  %v1705 = vpop.xlane.xlu0 %1704
  %v1706 = vsel %vm488, %v789, -inf
  %1707 = vmax.xlane.f32.xlu0 %v1706
  %v1708 = vpop.xlane.xlu0 %1707
  %v1709 = vsel %vm488, %v941, -inf
  %1710 = vmax.xlane.f32.xlu0 %v1709
  %v1711 = vpop.xlane.xlu0 %1710
  %v1712 = vsel %vm488, %v1093, -inf
  %1713 = vmax.xlane.f32.xlu0 %v1712
  %v1714 = vpop.xlane.xlu0 %1713
  %v1715 = vsel %vm488, %v1245, -inf
  %1716 = vmax.xlane.f32.xlu0 %v1715
  %v1717 = vpop.xlane.xlu0 %1716
  %v1718 = vsel %vm488, %v1397, -inf
  %1719 = vmax.xlane.f32.xlu0 %v1718
  %v1720 = vpop.xlane.xlu0 %1719
  %v1721 = vsel %vm488, %v1549, -inf
  %1722 = vmax.xlane.f32.xlu0 %v1721
  %v1723 = vpop.xlane.xlu0 %1722
  %v1724 = vsel %vm488, %v1701, -inf
  %1725 = vmax.xlane.f32.xlu0 %v1724
  %v1726 = vpop.xlane.xlu0 %1725
  %v1727 = vsub.f32 %v637, %v1705
  %v1728 = vsub.f32 %v789, %v1708
  %v1729 = vsub.f32 %v941, %v1711
  %v1730 = vsub.f32 %v1093, %v1714
  %v1731 = vsub.f32 %v1245, %v1717
  %v1732 = vsub.f32 %v1397, %v1720
  %v1733 = vsub.f32 %v1549, %v1723
  %v1734 = vsub.f32 %v1701, %v1726
  %v1735 = vmul.f32 %v1727, 1.442695
  %v1736 = vpow.pop %v1735
  %v1737 = vmul.f32 %v1728, 1.442695
  %v1738 = vpow.pop %v1737
  %v1739 = vmul.f32 %v1729, 1.442695
  %v1740 = vpow.pop %v1739
  %v1741 = vmul.f32 %v1730, 1.442695
  %v1742 = vpow.pop %v1741
  %v1743 = vmul.f32 %v1731, 1.442695
  %v1744 = vpow.pop %v1743
  %v1745 = vmul.f32 %v1732, 1.442695
  %v1746 = vpow.pop %v1745
  %v1747 = vmul.f32 %v1733, 1.442695
  %v1748 = vpow.pop %v1747
  %v1749 = vmul.f32 %v1734, 1.442695
  %v1750 = vpow.pop %v1749
  %v1751 = vsel %vm488, %v1736, 0.0
  %1752 = vadd.xlane.f32.xlu0 %v1751
  %v1753 = vpop.xlane.xlu0 %1752
  %v1754 = vsel %vm488, %v1738, 0.0
  %1755 = vadd.xlane.f32.xlu0 %v1754
  %v1756 = vpop.xlane.xlu0 %1755
  %v1757 = vsel %vm488, %v1740, 0.0
  %1758 = vadd.xlane.f32.xlu0 %v1757
  %v1759 = vpop.xlane.xlu0 %1758
  %v1760 = vsel %vm488, %v1742, 0.0
  %1761 = vadd.xlane.f32.xlu0 %v1760
  %v1762 = vpop.xlane.xlu0 %1761
  %v1763 = vsel %vm488, %v1744, 0.0
  %1764 = vadd.xlane.f32.xlu0 %v1763
  %v1765 = vpop.xlane.xlu0 %1764
  %v1766 = vsel %vm488, %v1746, 0.0
  %1767 = vadd.xlane.f32.xlu0 %v1766
  %v1768 = vpop.xlane.xlu0 %1767
  %v1769 = vsel %vm488, %v1748, 0.0
  %1770 = vadd.xlane.f32.xlu0 %v1769
  %v1771 = vpop.xlane.xlu0 %1770
  %v1772 = vsel %vm488, %v1750, 0.0
  %1773 = vadd.xlane.f32.xlu0 %v1772
  %v1774 = vpop.xlane.xlu0 %1773
  %v1775 = vrcp.pop %v1753
  %v1776 = vmul.f32 %v1753, %v1775
  %v1777 = vsub.f32 1.0, %v1776
  %v1778 = vmul.f32 %v1775, %v1777
  %v1779 = vadd.f32 %v1775, %v1778
  %vm1780 = vweird.f32 %v1753
  %vm1781 = vweird.f32 %v1775
  %vm1782 = vmor %vm1780, %vm1781
  %v1783 = vsel %vm1782, %v1775, %v1779
  %v1784 = vand.u32 2147483647, %v1753
  %vm1785 = vcmp.eq.f32.partialorder %v1784, 8.507059e+37
  %v1786 = vand.u32 %v1753, 2147483648
  %v1787 = vor.u32 1.1754944e-38, %v1786
  %v1788 = vsel %vm1785, %v1787, %v1783
  %v1789 = vmul.f32 %v1736, %v1788
  %v1790 = vrcp.pop %v1756
  %v1791 = vmul.f32 %v1756, %v1790
  %v1792 = vsub.f32 1.0, %v1791
  %v1793 = vmul.f32 %v1790, %v1792
  %v1794 = vadd.f32 %v1790, %v1793
  %vm1795 = vweird.f32 %v1756
  %vm1796 = vweird.f32 %v1790
  %vm1797 = vmor %vm1795, %vm1796
  %v1798 = vsel %vm1797, %v1790, %v1794
  %v1799 = vand.u32 2147483647, %v1756
  %vm1800 = vcmp.eq.f32.partialorder %v1799, 8.507059e+37
  %v1801 = vand.u32 %v1756, 2147483648
  %v1802 = vor.u32 1.1754944e-38, %v1801
  %v1803 = vsel %vm1800, %v1802, %v1798
  %v1804 = vmul.f32 %v1738, %v1803
  %v1805 = vrcp.pop %v1759
  %v1806 = vmul.f32 %v1759, %v1805
  %v1807 = vsub.f32 1.0, %v1806
  %v1808 = vmul.f32 %v1805, %v1807
  %v1809 = vadd.f32 %v1805, %v1808
  %vm1810 = vweird.f32 %v1759
  %vm1811 = vweird.f32 %v1805
  %vm1812 = vmor %vm1810, %vm1811
  %v1813 = vsel %vm1812, %v1805, %v1809
  %v1814 = vand.u32 2147483647, %v1759
  %vm1815 = vcmp.eq.f32.partialorder %v1814, 8.507059e+37
  %v1816 = vand.u32 %v1759, 2147483648
  %v1817 = vor.u32 1.1754944e-38, %v1816
  %v1818 = vsel %vm1815, %v1817, %v1813
  %v1819 = vmul.f32 %v1740, %v1818
  %v1820 = vrcp.pop %v1762
  %v1821 = vmul.f32 %v1762, %v1820
  %v1822 = vsub.f32 1.0, %v1821
  %v1823 = vmul.f32 %v1820, %v1822
  %v1824 = vadd.f32 %v1820, %v1823
  %vm1825 = vweird.f32 %v1762
  %vm1826 = vweird.f32 %v1820
  %vm1827 = vmor %vm1825, %vm1826
  %v1828 = vsel %vm1827, %v1820, %v1824
  %v1829 = vand.u32 2147483647, %v1762
  %vm1830 = vcmp.eq.f32.partialorder %v1829, 8.507059e+37
  %v1831 = vand.u32 %v1762, 2147483648
  %v1832 = vor.u32 1.1754944e-38, %v1831
  %v1833 = vsel %vm1830, %v1832, %v1828
  %v1834 = vmul.f32 %v1742, %v1833
  %v1835 = vrcp.pop %v1765
  %v1836 = vmul.f32 %v1765, %v1835
  %v1837 = vsub.f32 1.0, %v1836
  %v1838 = vmul.f32 %v1835, %v1837
  %v1839 = vadd.f32 %v1835, %v1838
  %vm1840 = vweird.f32 %v1765
  %vm1841 = vweird.f32 %v1835
  %vm1842 = vmor %vm1840, %vm1841
  %v1843 = vsel %vm1842, %v1835, %v1839
  %v1844 = vand.u32 2147483647, %v1765
  %vm1845 = vcmp.eq.f32.partialorder %v1844, 8.507059e+37
  %v1846 = vand.u32 %v1765, 2147483648
  %v1847 = vor.u32 1.1754944e-38, %v1846
  %v1848 = vsel %vm1845, %v1847, %v1843
  %v1849 = vmul.f32 %v1744, %v1848
  %v1850 = vrcp.pop %v1768
  %v1851 = vmul.f32 %v1768, %v1850
  %v1852 = vsub.f32 1.0, %v1851
  %v1853 = vmul.f32 %v1850, %v1852
  %v1854 = vadd.f32 %v1850, %v1853
  %vm1855 = vweird.f32 %v1768
  %vm1856 = vweird.f32 %v1850
  %vm1857 = vmor %vm1855, %vm1856
  %v1858 = vsel %vm1857, %v1850, %v1854
  %v1859 = vand.u32 2147483647, %v1768
  %vm1860 = vcmp.eq.f32.partialorder %v1859, 8.507059e+37
  %v1861 = vand.u32 %v1768, 2147483648
  %v1862 = vor.u32 1.1754944e-38, %v1861
  %v1863 = vsel %vm1860, %v1862, %v1858
  %v1864 = vmul.f32 %v1746, %v1863
  %v1865 = vrcp.pop %v1771
  %v1866 = vmul.f32 %v1771, %v1865
  %v1867 = vsub.f32 1.0, %v1866
  %v1868 = vmul.f32 %v1865, %v1867
  %v1869 = vadd.f32 %v1865, %v1868
  %vm1870 = vweird.f32 %v1771
  %vm1871 = vweird.f32 %v1865
  %vm1872 = vmor %vm1870, %vm1871
  %v1873 = vsel %vm1872, %v1865, %v1869
  %v1874 = vand.u32 2147483647, %v1771
  %vm1875 = vcmp.eq.f32.partialorder %v1874, 8.507059e+37
  %v1876 = vand.u32 %v1771, 2147483648
  %v1877 = vor.u32 1.1754944e-38, %v1876
  %v1878 = vsel %vm1875, %v1877, %v1873
  %v1879 = vmul.f32 %v1748, %v1878
  %v1880 = vrcp.pop %v1774
  %v1881 = vmul.f32 %v1774, %v1880
  %v1882 = vsub.f32 1.0, %v1881
  %v1883 = vmul.f32 %v1880, %v1882
  %v1884 = vadd.f32 %v1880, %v1883
  %vm1885 = vweird.f32 %v1774
  %vm1886 = vweird.f32 %v1880
  %vm1887 = vmor %vm1885, %vm1886
  %v1888 = vsel %vm1887, %v1880, %v1884
  %v1889 = vand.u32 2147483647, %v1774
  %vm1890 = vcmp.eq.f32.partialorder %v1889, 8.507059e+37
  %v1891 = vand.u32 %v1774, 2147483648
  %v1892 = vor.u32 1.1754944e-38, %v1891
  %v1893 = vsel %vm1890, %v1892, %v1888
  %v1894 = vmul.f32 %v1750, %v1893
  %1895 = vrot.lane.b32.xlu0 %v466, 64
  %v1896 = vpop.permute.xlu0 %1895
  %v1899 = vsel %vm488, %v1789, 0
  %1901 = vmatpush.msra.mxu0 0.0
  %1902 = vmatpush.msra.mxu0 0.0
  %1903 = vmatpush.msra.mxu0 0.0
  %1904 = vmatpush.msra.mxu0 0.0
  %1905 = vmatpush.msra.mxu0 0.0
  %1906 = vmatpush.msra.mxu0 0.0
  %1907 = vmatpush.msra.mxu0 0.0
  %1908 = vmatpush.msra.mxu0 0.0
  %1909 = vmatpush.msra.mxu0 0.0
  %1910 = vmatpush.msra.mxu0 0.0
  %1911 = vmatpush.msra.mxu0 0.0
  %1912 = vmatpush.msra.mxu0 0.0
  %1913 = vmatpush.msra.mxu0 0.0
  %1914 = vmatpush.msra.mxu0 0.0
  %1915 = vmatpush.msra.mxu0 0.0
  %v1916 = vand.u32 %v1896, 4294901760
  %1917 = vmatpush.msra.mxu0 %v1916
  %v1918 = vand.u32 %v1899, 4294901760
  %v1919 = vsub.f32 %v1899, %v1918
  %v1920 = vand.u32 %v1919, 4294901760
  %v1921 = vsub.f32 %v1919, %v1920
  %v1922 = vand.u32 %v1921, 4294901760
  %1923 = vmatmul.f32.gmra.mxu0 %v1922
  %v1924 = vpop.f32.mrf.mxu0
  %v1925 = vadd.f32 0.0, %v1924
  %1926 = vdwg.mxu0
  %1927 = vmatpush.msra.mxu0 0.0
  %1928 = vmatpush.msra.mxu0 0.0
  %1929 = vmatpush.msra.mxu0 0.0
  %1930 = vmatpush.msra.mxu0 0.0
  %1931 = vmatpush.msra.mxu0 0.0
  %1932 = vmatpush.msra.mxu0 0.0
  %1933 = vmatpush.msra.mxu0 0.0
  %1934 = vmatpush.msra.mxu0 0.0
  %1935 = vmatpush.msra.mxu0 0.0
  %1936 = vmatpush.msra.mxu0 0.0
  %1937 = vmatpush.msra.mxu0 0.0
  %1938 = vmatpush.msra.mxu0 0.0
  %1939 = vmatpush.msra.mxu0 0.0
  %1940 = vmatpush.msra.mxu0 0.0
  %1941 = vmatpush.msra.mxu0 0.0
  %v1942 = vand.u32 %v1896, 4294901760
  %v1943 = vsub.f32 %v1896, %v1942
  %v1944 = vand.u32 %v1943, 4294901760
  %v1945 = vsub.f32 %v1943, %v1944
  %v1946 = vand.u32 %v1945, 4294901760
  %1947 = vmatpush.msra.mxu0 %v1946
  %v1948 = vand.u32 %v1899, 4294901760
  %1949 = vmatmul.f32.gmra.mxu0 %v1948
  %v1950 = vpop.f32.mrf.mxu0
  %v1951 = vadd.f32 %v1925, %v1950
  %1952 = vdwg.mxu0
  %1953 = vmatpush.msra.mxu0 0.0
  %1954 = vmatpush.msra.mxu0 0.0
  %1955 = vmatpush.msra.mxu0 0.0
  %1956 = vmatpush.msra.mxu0 0.0
  %1957 = vmatpush.msra.mxu0 0.0
  %1958 = vmatpush.msra.mxu0 0.0
  %1959 = vmatpush.msra.mxu0 0.0
  %1960 = vmatpush.msra.mxu0 0.0
  %1961 = vmatpush.msra.mxu0 0.0
  %1962 = vmatpush.msra.mxu0 0.0
  %1963 = vmatpush.msra.mxu0 0.0
  %1964 = vmatpush.msra.mxu0 0.0
  %1965 = vmatpush.msra.mxu0 0.0
  %1966 = vmatpush.msra.mxu0 0.0
  %1967 = vmatpush.msra.mxu0 0.0
  %v1968 = vand.u32 %v1896, 4294901760
  %v1969 = vsub.f32 %v1896, %v1968
  %1970 = vmatpush.msra.mxu0 %v1969
  %v1971 = vand.u32 %v1899, 4294901760
  %v1972 = vsub.f32 %v1899, %v1971
  %1973 = vmatmul.f32.gmra.mxu0 %v1972
  %v1974 = vpop.f32.mrf.mxu0
  %v1975 = vadd.f32 %v1951, %v1974
  %1976 = vdwg.mxu0
  %1977 = vmatpush.msra.mxu0 0.0
  %1978 = vmatpush.msra.mxu0 0.0
  %1979 = vmatpush.msra.mxu0 0.0
  %1980 = vmatpush.msra.mxu0 0.0
  %1981 = vmatpush.msra.mxu0 0.0
  %1982 = vmatpush.msra.mxu0 0.0
  %1983 = vmatpush.msra.mxu0 0.0
  %1984 = vmatpush.msra.mxu0 0.0
  %1985 = vmatpush.msra.mxu0 0.0
  %1986 = vmatpush.msra.mxu0 0.0
  %1987 = vmatpush.msra.mxu0 0.0
  %1988 = vmatpush.msra.mxu0 0.0
  %1989 = vmatpush.msra.mxu0 0.0
  %1990 = vmatpush.msra.mxu0 0.0
  %1991 = vmatpush.msra.mxu0 0.0
  %v1992 = vand.u32 %v1896, 4294901760
  %1993 = vmatpush.msra.mxu0 %v1992
  %v1994 = vand.u32 %v1899, 4294901760
  %v1995 = vsub.f32 %v1899, %v1994
  %v1996 = vand.u32 %v1995, 4294901760
  %1997 = vmatmul.f32.gmra.mxu0 %v1996
  %v1998 = vpop.f32.mrf.mxu0
  %v1999 = vadd.f32 %v1975, %v1998
  %2000 = vdwg.mxu0
  %2001 = vmatpush.msra.mxu0 0.0
  %2002 = vmatpush.msra.mxu0 0.0
  %2003 = vmatpush.msra.mxu0 0.0
  %2004 = vmatpush.msra.mxu0 0.0
  %2005 = vmatpush.msra.mxu0 0.0
  %2006 = vmatpush.msra.mxu0 0.0
  %2007 = vmatpush.msra.mxu0 0.0
  %2008 = vmatpush.msra.mxu0 0.0
  %2009 = vmatpush.msra.mxu0 0.0
  %2010 = vmatpush.msra.mxu0 0.0
  %2011 = vmatpush.msra.mxu0 0.0
  %2012 = vmatpush.msra.mxu0 0.0
  %2013 = vmatpush.msra.mxu0 0.0
  %2014 = vmatpush.msra.mxu0 0.0
  %2015 = vmatpush.msra.mxu0 0.0
  %v2016 = vand.u32 %v1896, 4294901760
  %v2017 = vsub.f32 %v1896, %v2016
  %v2018 = vand.u32 %v2017, 4294901760
  %2019 = vmatpush.msra.mxu0 %v2018
  %v2020 = vand.u32 %v1899, 4294901760
  %2021 = vmatmul.f32.gmra.mxu0 %v2020
  %v2022 = vpop.f32.mrf.mxu0
  %v2023 = vadd.f32 %v1999, %v2022
  %2024 = vdwg.mxu0
  %2025 = vmatpush.msra.mxu0 0.0
  %2026 = vmatpush.msra.mxu0 0.0
  %2027 = vmatpush.msra.mxu0 0.0
  %2028 = vmatpush.msra.mxu0 0.0
  %2029 = vmatpush.msra.mxu0 0.0
  %2030 = vmatpush.msra.mxu0 0.0
  %2031 = vmatpush.msra.mxu0 0.0
  %2032 = vmatpush.msra.mxu0 0.0
  %2033 = vmatpush.msra.mxu0 0.0
  %2034 = vmatpush.msra.mxu0 0.0
  %2035 = vmatpush.msra.mxu0 0.0
  %2036 = vmatpush.msra.mxu0 0.0
  %2037 = vmatpush.msra.mxu0 0.0
  %2038 = vmatpush.msra.mxu0 0.0
  %2039 = vmatpush.msra.mxu0 0.0
  %v2040 = vand.u32 %v1896, 4294901760
  %2041 = vmatpush.msra.mxu0 %v2040
  %v2042 = vand.u32 %v1899, 4294901760
  %2043 = vmatmul.f32.gmra.mxu0 %v2042
  %v2044 = vpop.f32.mrf.mxu0
  %v2045 = vadd.f32 %v2023, %v2044
  %2046 = vdwg.mxu0
  %2047 = vrot.lane.b32.xlu0 %v470, 64
  %v2048 = vpop.permute.xlu0 %2047
  %v2051 = vsel %vm488, %v1804, 0
  %2053 = vmatpush.msra.mxu0 0.0
  %2054 = vmatpush.msra.mxu0 0.0
  %2055 = vmatpush.msra.mxu0 0.0
  %2056 = vmatpush.msra.mxu0 0.0
  %2057 = vmatpush.msra.mxu0 0.0
  %2058 = vmatpush.msra.mxu0 0.0
  %2059 = vmatpush.msra.mxu0 0.0
  %2060 = vmatpush.msra.mxu0 0.0
  %2061 = vmatpush.msra.mxu0 0.0
  %2062 = vmatpush.msra.mxu0 0.0
  %2063 = vmatpush.msra.mxu0 0.0
  %2064 = vmatpush.msra.mxu0 0.0
  %2065 = vmatpush.msra.mxu0 0.0
  %2066 = vmatpush.msra.mxu0 0.0
  %2067 = vmatpush.msra.mxu0 0.0
  %v2068 = vand.u32 %v2048, 4294901760
  %2069 = vmatpush.msra.mxu0 %v2068
  %v2070 = vand.u32 %v2051, 4294901760
  %v2071 = vsub.f32 %v2051, %v2070
  %v2072 = vand.u32 %v2071, 4294901760
  %v2073 = vsub.f32 %v2071, %v2072
  %v2074 = vand.u32 %v2073, 4294901760
  %2075 = vmatmul.f32.gmra.mxu0 %v2074
  %v2076 = vpop.f32.mrf.mxu0
  %v2077 = vadd.f32 0.0, %v2076
  %2078 = vdwg.mxu0
  %2079 = vmatpush.msra.mxu0 0.0
  %2080 = vmatpush.msra.mxu0 0.0
  %2081 = vmatpush.msra.mxu0 0.0
  %2082 = vmatpush.msra.mxu0 0.0
  %2083 = vmatpush.msra.mxu0 0.0
  %2084 = vmatpush.msra.mxu0 0.0
  %2085 = vmatpush.msra.mxu0 0.0
  %2086 = vmatpush.msra.mxu0 0.0
  %2087 = vmatpush.msra.mxu0 0.0
  %2088 = vmatpush.msra.mxu0 0.0
  %2089 = vmatpush.msra.mxu0 0.0
  %2090 = vmatpush.msra.mxu0 0.0
  %2091 = vmatpush.msra.mxu0 0.0
  %2092 = vmatpush.msra.mxu0 0.0
  %2093 = vmatpush.msra.mxu0 0.0
  %v2094 = vand.u32 %v2048, 4294901760
  %v2095 = vsub.f32 %v2048, %v2094
  %v2096 = vand.u32 %v2095, 4294901760
  %v2097 = vsub.f32 %v2095, %v2096
  %v2098 = vand.u32 %v2097, 4294901760
  %2099 = vmatpush.msra.mxu0 %v2098
  %v2100 = vand.u32 %v2051, 4294901760
  %2101 = vmatmul.f32.gmra.mxu0 %v2100
  %v2102 = vpop.f32.mrf.mxu0
  %v2103 = vadd.f32 %v2077, %v2102
  %2104 = vdwg.mxu0
  %2105 = vmatpush.msra.mxu0 0.0
  %2106 = vmatpush.msra.mxu0 0.0
  %2107 = vmatpush.msra.mxu0 0.0
  %2108 = vmatpush.msra.mxu0 0.0
  %2109 = vmatpush.msra.mxu0 0.0
  %2110 = vmatpush.msra.mxu0 0.0
  %2111 = vmatpush.msra.mxu0 0.0
  %2112 = vmatpush.msra.mxu0 0.0
  %2113 = vmatpush.msra.mxu0 0.0
  %2114 = vmatpush.msra.mxu0 0.0
  %2115 = vmatpush.msra.mxu0 0.0
  %2116 = vmatpush.msra.mxu0 0.0
  %2117 = vmatpush.msra.mxu0 0.0
  %2118 = vmatpush.msra.mxu0 0.0
  %2119 = vmatpush.msra.mxu0 0.0
  %v2120 = vand.u32 %v2048, 4294901760
  %v2121 = vsub.f32 %v2048, %v2120
  %2122 = vmatpush.msra.mxu0 %v2121
  %v2123 = vand.u32 %v2051, 4294901760
  %v2124 = vsub.f32 %v2051, %v2123
  %2125 = vmatmul.f32.gmra.mxu0 %v2124
  %v2126 = vpop.f32.mrf.mxu0
  %v2127 = vadd.f32 %v2103, %v2126
  %2128 = vdwg.mxu0
  %2129 = vmatpush.msra.mxu0 0.0
  %2130 = vmatpush.msra.mxu0 0.0
  %2131 = vmatpush.msra.mxu0 0.0
  %2132 = vmatpush.msra.mxu0 0.0
  %2133 = vmatpush.msra.mxu0 0.0
  %2134 = vmatpush.msra.mxu0 0.0
  %2135 = vmatpush.msra.mxu0 0.0
  %2136 = vmatpush.msra.mxu0 0.0
  %2137 = vmatpush.msra.mxu0 0.0
  %2138 = vmatpush.msra.mxu0 0.0
  %2139 = vmatpush.msra.mxu0 0.0
  %2140 = vmatpush.msra.mxu0 0.0
  %2141 = vmatpush.msra.mxu0 0.0
  %2142 = vmatpush.msra.mxu0 0.0
  %2143 = vmatpush.msra.mxu0 0.0
  %v2144 = vand.u32 %v2048, 4294901760
  %2145 = vmatpush.msra.mxu0 %v2144
  %v2146 = vand.u32 %v2051, 4294901760
  %v2147 = vsub.f32 %v2051, %v2146
  %v2148 = vand.u32 %v2147, 4294901760
  %2149 = vmatmul.f32.gmra.mxu0 %v2148
  %v2150 = vpop.f32.mrf.mxu0
  %v2151 = vadd.f32 %v2127, %v2150
  %2152 = vdwg.mxu0
  %2153 = vmatpush.msra.mxu0 0.0
  %2154 = vmatpush.msra.mxu0 0.0
  %2155 = vmatpush.msra.mxu0 0.0
  %2156 = vmatpush.msra.mxu0 0.0
  %2157 = vmatpush.msra.mxu0 0.0
  %2158 = vmatpush.msra.mxu0 0.0
  %2159 = vmatpush.msra.mxu0 0.0
  %2160 = vmatpush.msra.mxu0 0.0
  %2161 = vmatpush.msra.mxu0 0.0
  %2162 = vmatpush.msra.mxu0 0.0
  %2163 = vmatpush.msra.mxu0 0.0
  %2164 = vmatpush.msra.mxu0 0.0
  %2165 = vmatpush.msra.mxu0 0.0
  %2166 = vmatpush.msra.mxu0 0.0
  %2167 = vmatpush.msra.mxu0 0.0
  %v2168 = vand.u32 %v2048, 4294901760
  %v2169 = vsub.f32 %v2048, %v2168
  %v2170 = vand.u32 %v2169, 4294901760
  %2171 = vmatpush.msra.mxu0 %v2170
  %v2172 = vand.u32 %v2051, 4294901760
  %2173 = vmatmul.f32.gmra.mxu0 %v2172
  %v2174 = vpop.f32.mrf.mxu0
  %v2175 = vadd.f32 %v2151, %v2174
  %2176 = vdwg.mxu0
  %2177 = vmatpush.msra.mxu0 0.0
  %2178 = vmatpush.msra.mxu0 0.0
  %2179 = vmatpush.msra.mxu0 0.0
  %2180 = vmatpush.msra.mxu0 0.0
  %2181 = vmatpush.msra.mxu0 0.0
  %2182 = vmatpush.msra.mxu0 0.0
  %2183 = vmatpush.msra.mxu0 0.0
  %2184 = vmatpush.msra.mxu0 0.0
  %2185 = vmatpush.msra.mxu0 0.0
  %2186 = vmatpush.msra.mxu0 0.0
  %2187 = vmatpush.msra.mxu0 0.0
  %2188 = vmatpush.msra.mxu0 0.0
  %2189 = vmatpush.msra.mxu0 0.0
  %2190 = vmatpush.msra.mxu0 0.0
  %2191 = vmatpush.msra.mxu0 0.0
  %v2192 = vand.u32 %v2048, 4294901760
  %2193 = vmatpush.msra.mxu0 %v2192
  %v2194 = vand.u32 %v2051, 4294901760
  %2195 = vmatmul.f32.gmra.mxu0 %v2194
  %v2196 = vpop.f32.mrf.mxu0
  %v2197 = vadd.f32 %v2175, %v2196
  %2198 = vdwg.mxu0
  %2199 = vrot.lane.b32.xlu0 %v475, 64
  %v2200 = vpop.permute.xlu0 %2199
  %v2203 = vsel %vm488, %v1819, 0
  %2205 = vmatpush.msra.mxu0 0.0
  %2206 = vmatpush.msra.mxu0 0.0
  %2207 = vmatpush.msra.mxu0 0.0
  %2208 = vmatpush.msra.mxu0 0.0
  %2209 = vmatpush.msra.mxu0 0.0
  %2210 = vmatpush.msra.mxu0 0.0
  %2211 = vmatpush.msra.mxu0 0.0
  %2212 = vmatpush.msra.mxu0 0.0
  %2213 = vmatpush.msra.mxu0 0.0
  %2214 = vmatpush.msra.mxu0 0.0
  %2215 = vmatpush.msra.mxu0 0.0
  %2216 = vmatpush.msra.mxu0 0.0
  %2217 = vmatpush.msra.mxu0 0.0
  %2218 = vmatpush.msra.mxu0 0.0
  %2219 = vmatpush.msra.mxu0 0.0
  %v2220 = vand.u32 %v2200, 4294901760
  %2221 = vmatpush.msra.mxu0 %v2220
  %v2222 = vand.u32 %v2203, 4294901760
  %v2223 = vsub.f32 %v2203, %v2222
  %v2224 = vand.u32 %v2223, 4294901760
  %v2225 = vsub.f32 %v2223, %v2224
  %v2226 = vand.u32 %v2225, 4294901760
  %2227 = vmatmul.f32.gmra.mxu0 %v2226
  %v2228 = vpop.f32.mrf.mxu0
  %v2229 = vadd.f32 0.0, %v2228
  %2230 = vdwg.mxu0
  %2231 = vmatpush.msra.mxu0 0.0
  %2232 = vmatpush.msra.mxu0 0.0
  %2233 = vmatpush.msra.mxu0 0.0
  %2234 = vmatpush.msra.mxu0 0.0
  %2235 = vmatpush.msra.mxu0 0.0
  %2236 = vmatpush.msra.mxu0 0.0
  %2237 = vmatpush.msra.mxu0 0.0
  %2238 = vmatpush.msra.mxu0 0.0
  %2239 = vmatpush.msra.mxu0 0.0
  %2240 = vmatpush.msra.mxu0 0.0
  %2241 = vmatpush.msra.mxu0 0.0
  %2242 = vmatpush.msra.mxu0 0.0
  %2243 = vmatpush.msra.mxu0 0.0
  %2244 = vmatpush.msra.mxu0 0.0
  %2245 = vmatpush.msra.mxu0 0.0
  %v2246 = vand.u32 %v2200, 4294901760
  %v2247 = vsub.f32 %v2200, %v2246
  %v2248 = vand.u32 %v2247, 4294901760
  %v2249 = vsub.f32 %v2247, %v2248
  %v2250 = vand.u32 %v2249, 4294901760
  %2251 = vmatpush.msra.mxu0 %v2250
  %v2252 = vand.u32 %v2203, 4294901760
  %2253 = vmatmul.f32.gmra.mxu0 %v2252
  %v2254 = vpop.f32.mrf.mxu0
  %v2255 = vadd.f32 %v2229, %v2254
  %2256 = vdwg.mxu0
  %2257 = vmatpush.msra.mxu0 0.0
  %2258 = vmatpush.msra.mxu0 0.0
  %2259 = vmatpush.msra.mxu0 0.0
  %2260 = vmatpush.msra.mxu0 0.0
  %2261 = vmatpush.msra.mxu0 0.0
  %2262 = vmatpush.msra.mxu0 0.0
  %2263 = vmatpush.msra.mxu0 0.0
  %2264 = vmatpush.msra.mxu0 0.0
  %2265 = vmatpush.msra.mxu0 0.0
  %2266 = vmatpush.msra.mxu0 0.0
  %2267 = vmatpush.msra.mxu0 0.0
  %2268 = vmatpush.msra.mxu0 0.0
  %2269 = vmatpush.msra.mxu0 0.0
  %2270 = vmatpush.msra.mxu0 0.0
  %2271 = vmatpush.msra.mxu0 0.0
  %v2272 = vand.u32 %v2200, 4294901760
  %v2273 = vsub.f32 %v2200, %v2272
  %2274 = vmatpush.msra.mxu0 %v2273
  %v2275 = vand.u32 %v2203, 4294901760
  %v2276 = vsub.f32 %v2203, %v2275
  %2277 = vmatmul.f32.gmra.mxu0 %v2276
  %v2278 = vpop.f32.mrf.mxu0
  %v2279 = vadd.f32 %v2255, %v2278
  %2280 = vdwg.mxu0
  %2281 = vmatpush.msra.mxu0 0.0
  %2282 = vmatpush.msra.mxu0 0.0
  %2283 = vmatpush.msra.mxu0 0.0
  %2284 = vmatpush.msra.mxu0 0.0
  %2285 = vmatpush.msra.mxu0 0.0
  %2286 = vmatpush.msra.mxu0 0.0
  %2287 = vmatpush.msra.mxu0 0.0
  %2288 = vmatpush.msra.mxu0 0.0
  %2289 = vmatpush.msra.mxu0 0.0
  %2290 = vmatpush.msra.mxu0 0.0
  %2291 = vmatpush.msra.mxu0 0.0
  %2292 = vmatpush.msra.mxu0 0.0
  %2293 = vmatpush.msra.mxu0 0.0
  %2294 = vmatpush.msra.mxu0 0.0
  %2295 = vmatpush.msra.mxu0 0.0
  %v2296 = vand.u32 %v2200, 4294901760
  %2297 = vmatpush.msra.mxu0 %v2296
  %v2298 = vand.u32 %v2203, 4294901760
  %v2299 = vsub.f32 %v2203, %v2298
  %v2300 = vand.u32 %v2299, 4294901760
  %2301 = vmatmul.f32.gmra.mxu0 %v2300
  %v2302 = vpop.f32.mrf.mxu0
  %v2303 = vadd.f32 %v2279, %v2302
  %2304 = vdwg.mxu0
  %2305 = vmatpush.msra.mxu0 0.0
  %2306 = vmatpush.msra.mxu0 0.0
  %2307 = vmatpush.msra.mxu0 0.0
  %2308 = vmatpush.msra.mxu0 0.0
  %2309 = vmatpush.msra.mxu0 0.0
  %2310 = vmatpush.msra.mxu0 0.0
  %2311 = vmatpush.msra.mxu0 0.0
  %2312 = vmatpush.msra.mxu0 0.0
  %2313 = vmatpush.msra.mxu0 0.0
  %2314 = vmatpush.msra.mxu0 0.0
  %2315 = vmatpush.msra.mxu0 0.0
  %2316 = vmatpush.msra.mxu0 0.0
  %2317 = vmatpush.msra.mxu0 0.0
  %2318 = vmatpush.msra.mxu0 0.0
  %2319 = vmatpush.msra.mxu0 0.0
  %v2320 = vand.u32 %v2200, 4294901760
  %v2321 = vsub.f32 %v2200, %v2320
  %v2322 = vand.u32 %v2321, 4294901760
  %2323 = vmatpush.msra.mxu0 %v2322
  %v2324 = vand.u32 %v2203, 4294901760
  %2325 = vmatmul.f32.gmra.mxu0 %v2324
  %v2326 = vpop.f32.mrf.mxu0
  %v2327 = vadd.f32 %v2303, %v2326
  %2328 = vdwg.mxu0
  %2329 = vmatpush.msra.mxu0 0.0
  %2330 = vmatpush.msra.mxu0 0.0
  %2331 = vmatpush.msra.mxu0 0.0
  %2332 = vmatpush.msra.mxu0 0.0
  %2333 = vmatpush.msra.mxu0 0.0
  %2334 = vmatpush.msra.mxu0 0.0
  %2335 = vmatpush.msra.mxu0 0.0
  %2336 = vmatpush.msra.mxu0 0.0
  %2337 = vmatpush.msra.mxu0 0.0
  %2338 = vmatpush.msra.mxu0 0.0
  %2339 = vmatpush.msra.mxu0 0.0
  %2340 = vmatpush.msra.mxu0 0.0
  %2341 = vmatpush.msra.mxu0 0.0
  %2342 = vmatpush.msra.mxu0 0.0
  %2343 = vmatpush.msra.mxu0 0.0
  %v2344 = vand.u32 %v2200, 4294901760
  %2345 = vmatpush.msra.mxu0 %v2344
  %v2346 = vand.u32 %v2203, 4294901760
  %2347 = vmatmul.f32.gmra.mxu0 %v2346
  %v2348 = vpop.f32.mrf.mxu0
  %v2349 = vadd.f32 %v2327, %v2348
  %2350 = vdwg.mxu0
  %2351 = vrot.lane.b32.xlu0 %v477, 64
  %v2352 = vpop.permute.xlu0 %2351
  %v2355 = vsel %vm488, %v1834, 0
  %2357 = vmatpush.msra.mxu0 0.0
  %2358 = vmatpush.msra.mxu0 0.0
  %2359 = vmatpush.msra.mxu0 0.0
  %2360 = vmatpush.msra.mxu0 0.0
  %2361 = vmatpush.msra.mxu0 0.0
  %2362 = vmatpush.msra.mxu0 0.0
  %2363 = vmatpush.msra.mxu0 0.0
  %2364 = vmatpush.msra.mxu0 0.0
  %2365 = vmatpush.msra.mxu0 0.0
  %2366 = vmatpush.msra.mxu0 0.0
  %2367 = vmatpush.msra.mxu0 0.0
  %2368 = vmatpush.msra.mxu0 0.0
  %2369 = vmatpush.msra.mxu0 0.0
  %2370 = vmatpush.msra.mxu0 0.0
  %2371 = vmatpush.msra.mxu0 0.0
  %v2372 = vand.u32 %v2352, 4294901760
  %2373 = vmatpush.msra.mxu0 %v2372
  %v2374 = vand.u32 %v2355, 4294901760
  %v2375 = vsub.f32 %v2355, %v2374
  %v2376 = vand.u32 %v2375, 4294901760
  %v2377 = vsub.f32 %v2375, %v2376
  %v2378 = vand.u32 %v2377, 4294901760
  %2379 = vmatmul.f32.gmra.mxu0 %v2378
  %v2380 = vpop.f32.mrf.mxu0
  %v2381 = vadd.f32 0.0, %v2380
  %2382 = vdwg.mxu0
  %2383 = vmatpush.msra.mxu0 0.0
  %2384 = vmatpush.msra.mxu0 0.0
  %2385 = vmatpush.msra.mxu0 0.0
  %2386 = vmatpush.msra.mxu0 0.0
  %2387 = vmatpush.msra.mxu0 0.0
  %2388 = vmatpush.msra.mxu0 0.0
  %2389 = vmatpush.msra.mxu0 0.0
  %2390 = vmatpush.msra.mxu0 0.0
  %2391 = vmatpush.msra.mxu0 0.0
  %2392 = vmatpush.msra.mxu0 0.0
  %2393 = vmatpush.msra.mxu0 0.0
  %2394 = vmatpush.msra.mxu0 0.0
  %2395 = vmatpush.msra.mxu0 0.0
  %2396 = vmatpush.msra.mxu0 0.0
  %2397 = vmatpush.msra.mxu0 0.0
  %v2398 = vand.u32 %v2352, 4294901760
  %v2399 = vsub.f32 %v2352, %v2398
  %v2400 = vand.u32 %v2399, 4294901760
  %v2401 = vsub.f32 %v2399, %v2400
  %v2402 = vand.u32 %v2401, 4294901760
  %2403 = vmatpush.msra.mxu0 %v2402
  %v2404 = vand.u32 %v2355, 4294901760
  %2405 = vmatmul.f32.gmra.mxu0 %v2404
  %v2406 = vpop.f32.mrf.mxu0
  %v2407 = vadd.f32 %v2381, %v2406
  %2408 = vdwg.mxu0
  %2409 = vmatpush.msra.mxu0 0.0
  %2410 = vmatpush.msra.mxu0 0.0
  %2411 = vmatpush.msra.mxu0 0.0
  %2412 = vmatpush.msra.mxu0 0.0
  %2413 = vmatpush.msra.mxu0 0.0
  %2414 = vmatpush.msra.mxu0 0.0
  %2415 = vmatpush.msra.mxu0 0.0
  %2416 = vmatpush.msra.mxu0 0.0
  %2417 = vmatpush.msra.mxu0 0.0
  %2418 = vmatpush.msra.mxu0 0.0
  %2419 = vmatpush.msra.mxu0 0.0
  %2420 = vmatpush.msra.mxu0 0.0
  %2421 = vmatpush.msra.mxu0 0.0
  %2422 = vmatpush.msra.mxu0 0.0
  %2423 = vmatpush.msra.mxu0 0.0
  %v2424 = vand.u32 %v2352, 4294901760
  %v2425 = vsub.f32 %v2352, %v2424
  %2426 = vmatpush.msra.mxu0 %v2425
  %v2427 = vand.u32 %v2355, 4294901760
  %v2428 = vsub.f32 %v2355, %v2427
  %2429 = vmatmul.f32.gmra.mxu0 %v2428
  %v2430 = vpop.f32.mrf.mxu0
  %v2431 = vadd.f32 %v2407, %v2430
  %2432 = vdwg.mxu0
  %2433 = vmatpush.msra.mxu0 0.0
  %2434 = vmatpush.msra.mxu0 0.0
  %2435 = vmatpush.msra.mxu0 0.0
  %2436 = vmatpush.msra.mxu0 0.0
  %2437 = vmatpush.msra.mxu0 0.0
  %2438 = vmatpush.msra.mxu0 0.0
  %2439 = vmatpush.msra.mxu0 0.0
  %2440 = vmatpush.msra.mxu0 0.0
  %2441 = vmatpush.msra.mxu0 0.0
  %2442 = vmatpush.msra.mxu0 0.0
  %2443 = vmatpush.msra.mxu0 0.0
  %2444 = vmatpush.msra.mxu0 0.0
  %2445 = vmatpush.msra.mxu0 0.0
  %2446 = vmatpush.msra.mxu0 0.0
  %2447 = vmatpush.msra.mxu0 0.0
  %v2448 = vand.u32 %v2352, 4294901760
  %2449 = vmatpush.msra.mxu0 %v2448
  %v2450 = vand.u32 %v2355, 4294901760
  %v2451 = vsub.f32 %v2355, %v2450
  %v2452 = vand.u32 %v2451, 4294901760
  %2453 = vmatmul.f32.gmra.mxu0 %v2452
  %v2454 = vpop.f32.mrf.mxu0
  %v2455 = vadd.f32 %v2431, %v2454
  %2456 = vdwg.mxu0
  %2457 = vmatpush.msra.mxu0 0.0
  %2458 = vmatpush.msra.mxu0 0.0
  %2459 = vmatpush.msra.mxu0 0.0
  %2460 = vmatpush.msra.mxu0 0.0
  %2461 = vmatpush.msra.mxu0 0.0
  %2462 = vmatpush.msra.mxu0 0.0
  %2463 = vmatpush.msra.mxu0 0.0
  %2464 = vmatpush.msra.mxu0 0.0
  %2465 = vmatpush.msra.mxu0 0.0
  %2466 = vmatpush.msra.mxu0 0.0
  %2467 = vmatpush.msra.mxu0 0.0
  %2468 = vmatpush.msra.mxu0 0.0
  %2469 = vmatpush.msra.mxu0 0.0
  %2470 = vmatpush.msra.mxu0 0.0
  %2471 = vmatpush.msra.mxu0 0.0
  %v2472 = vand.u32 %v2352, 4294901760
  %v2473 = vsub.f32 %v2352, %v2472
  %v2474 = vand.u32 %v2473, 4294901760
  %2475 = vmatpush.msra.mxu0 %v2474
  %v2476 = vand.u32 %v2355, 4294901760
  %2477 = vmatmul.f32.gmra.mxu0 %v2476
  %v2478 = vpop.f32.mrf.mxu0
  %v2479 = vadd.f32 %v2455, %v2478
  %2480 = vdwg.mxu0
  %2481 = vmatpush.msra.mxu0 0.0
  %2482 = vmatpush.msra.mxu0 0.0
  %2483 = vmatpush.msra.mxu0 0.0
  %2484 = vmatpush.msra.mxu0 0.0
  %2485 = vmatpush.msra.mxu0 0.0
  %2486 = vmatpush.msra.mxu0 0.0
  %2487 = vmatpush.msra.mxu0 0.0
  %2488 = vmatpush.msra.mxu0 0.0
  %2489 = vmatpush.msra.mxu0 0.0
  %2490 = vmatpush.msra.mxu0 0.0
  %2491 = vmatpush.msra.mxu0 0.0
  %2492 = vmatpush.msra.mxu0 0.0
  %2493 = vmatpush.msra.mxu0 0.0
  %2494 = vmatpush.msra.mxu0 0.0
  %2495 = vmatpush.msra.mxu0 0.0
  %v2496 = vand.u32 %v2352, 4294901760
  %2497 = vmatpush.msra.mxu0 %v2496
  %v2498 = vand.u32 %v2355, 4294901760
  %2499 = vmatmul.f32.gmra.mxu0 %v2498
  %v2500 = vpop.f32.mrf.mxu0
  %v2501 = vadd.f32 %v2479, %v2500
  %2502 = vdwg.mxu0
  %2503 = vrot.lane.b32.xlu0 %v479, 64
  %v2504 = vpop.permute.xlu0 %2503
  %v2507 = vsel %vm488, %v1849, 0
  %2509 = vmatpush.msra.mxu0 0.0
  %2510 = vmatpush.msra.mxu0 0.0
  %2511 = vmatpush.msra.mxu0 0.0
  %2512 = vmatpush.msra.mxu0 0.0
  %2513 = vmatpush.msra.mxu0 0.0
  %2514 = vmatpush.msra.mxu0 0.0
  %2515 = vmatpush.msra.mxu0 0.0
  %2516 = vmatpush.msra.mxu0 0.0
  %2517 = vmatpush.msra.mxu0 0.0
  %2518 = vmatpush.msra.mxu0 0.0
  %2519 = vmatpush.msra.mxu0 0.0
  %2520 = vmatpush.msra.mxu0 0.0
  %2521 = vmatpush.msra.mxu0 0.0
  %2522 = vmatpush.msra.mxu0 0.0
  %2523 = vmatpush.msra.mxu0 0.0
  %v2524 = vand.u32 %v2504, 4294901760
  %2525 = vmatpush.msra.mxu0 %v2524
  %v2526 = vand.u32 %v2507, 4294901760
  %v2527 = vsub.f32 %v2507, %v2526
  %v2528 = vand.u32 %v2527, 4294901760
  %v2529 = vsub.f32 %v2527, %v2528
  %v2530 = vand.u32 %v2529, 4294901760
  %2531 = vmatmul.f32.gmra.mxu0 %v2530
  %v2532 = vpop.f32.mrf.mxu0
  %v2533 = vadd.f32 0.0, %v2532
  %2534 = vdwg.mxu0
  %2535 = vmatpush.msra.mxu0 0.0
  %2536 = vmatpush.msra.mxu0 0.0
  %2537 = vmatpush.msra.mxu0 0.0
  %2538 = vmatpush.msra.mxu0 0.0
  %2539 = vmatpush.msra.mxu0 0.0
  %2540 = vmatpush.msra.mxu0 0.0
  %2541 = vmatpush.msra.mxu0 0.0
  %2542 = vmatpush.msra.mxu0 0.0
  %2543 = vmatpush.msra.mxu0 0.0
  %2544 = vmatpush.msra.mxu0 0.0
  %2545 = vmatpush.msra.mxu0 0.0
  %2546 = vmatpush.msra.mxu0 0.0
  %2547 = vmatpush.msra.mxu0 0.0
  %2548 = vmatpush.msra.mxu0 0.0
  %2549 = vmatpush.msra.mxu0 0.0
  %v2550 = vand.u32 %v2504, 4294901760
  %v2551 = vsub.f32 %v2504, %v2550
  %v2552 = vand.u32 %v2551, 4294901760
  %v2553 = vsub.f32 %v2551, %v2552
  %v2554 = vand.u32 %v2553, 4294901760
  %2555 = vmatpush.msra.mxu0 %v2554
  %v2556 = vand.u32 %v2507, 4294901760
  %2557 = vmatmul.f32.gmra.mxu0 %v2556
  %v2558 = vpop.f32.mrf.mxu0
  %v2559 = vadd.f32 %v2533, %v2558
  %2560 = vdwg.mxu0
  %2561 = vmatpush.msra.mxu0 0.0
  %2562 = vmatpush.msra.mxu0 0.0
  %2563 = vmatpush.msra.mxu0 0.0
  %2564 = vmatpush.msra.mxu0 0.0
  %2565 = vmatpush.msra.mxu0 0.0
  %2566 = vmatpush.msra.mxu0 0.0
  %2567 = vmatpush.msra.mxu0 0.0
  %2568 = vmatpush.msra.mxu0 0.0
  %2569 = vmatpush.msra.mxu0 0.0
  %2570 = vmatpush.msra.mxu0 0.0
  %2571 = vmatpush.msra.mxu0 0.0
  %2572 = vmatpush.msra.mxu0 0.0
  %2573 = vmatpush.msra.mxu0 0.0
  %2574 = vmatpush.msra.mxu0 0.0
  %2575 = vmatpush.msra.mxu0 0.0
  %v2576 = vand.u32 %v2504, 4294901760
  %v2577 = vsub.f32 %v2504, %v2576
  %2578 = vmatpush.msra.mxu0 %v2577
  %v2579 = vand.u32 %v2507, 4294901760
  %v2580 = vsub.f32 %v2507, %v2579
  %2581 = vmatmul.f32.gmra.mxu0 %v2580
  %v2582 = vpop.f32.mrf.mxu0
  %v2583 = vadd.f32 %v2559, %v2582
  %2584 = vdwg.mxu0
  %2585 = vmatpush.msra.mxu0 0.0
  %2586 = vmatpush.msra.mxu0 0.0
  %2587 = vmatpush.msra.mxu0 0.0
  %2588 = vmatpush.msra.mxu0 0.0
  %2589 = vmatpush.msra.mxu0 0.0
  %2590 = vmatpush.msra.mxu0 0.0
  %2591 = vmatpush.msra.mxu0 0.0
  %2592 = vmatpush.msra.mxu0 0.0
  %2593 = vmatpush.msra.mxu0 0.0
  %2594 = vmatpush.msra.mxu0 0.0
  %2595 = vmatpush.msra.mxu0 0.0
  %2596 = vmatpush.msra.mxu0 0.0
  %2597 = vmatpush.msra.mxu0 0.0
  %2598 = vmatpush.msra.mxu0 0.0
  %2599 = vmatpush.msra.mxu0 0.0
  %v2600 = vand.u32 %v2504, 4294901760
  %2601 = vmatpush.msra.mxu0 %v2600
  %v2602 = vand.u32 %v2507, 4294901760
  %v2603 = vsub.f32 %v2507, %v2602
  %v2604 = vand.u32 %v2603, 4294901760
  %2605 = vmatmul.f32.gmra.mxu0 %v2604
  %v2606 = vpop.f32.mrf.mxu0
  %v2607 = vadd.f32 %v2583, %v2606
  %2608 = vdwg.mxu0
  %2609 = vmatpush.msra.mxu0 0.0
  %2610 = vmatpush.msra.mxu0 0.0
  %2611 = vmatpush.msra.mxu0 0.0
  %2612 = vmatpush.msra.mxu0 0.0
  %2613 = vmatpush.msra.mxu0 0.0
  %2614 = vmatpush.msra.mxu0 0.0
  %2615 = vmatpush.msra.mxu0 0.0
  %2616 = vmatpush.msra.mxu0 0.0
  %2617 = vmatpush.msra.mxu0 0.0
  %2618 = vmatpush.msra.mxu0 0.0
  %2619 = vmatpush.msra.mxu0 0.0
  %2620 = vmatpush.msra.mxu0 0.0
  %2621 = vmatpush.msra.mxu0 0.0
  %2622 = vmatpush.msra.mxu0 0.0
  %2623 = vmatpush.msra.mxu0 0.0
  %v2624 = vand.u32 %v2504, 4294901760
  %v2625 = vsub.f32 %v2504, %v2624
  %v2626 = vand.u32 %v2625, 4294901760
  %2627 = vmatpush.msra.mxu0 %v2626
  %v2628 = vand.u32 %v2507, 4294901760
  %2629 = vmatmul.f32.gmra.mxu0 %v2628
  %v2630 = vpop.f32.mrf.mxu0
  %v2631 = vadd.f32 %v2607, %v2630
  %2632 = vdwg.mxu0
  %2633 = vmatpush.msra.mxu0 0.0
  %2634 = vmatpush.msra.mxu0 0.0
  %2635 = vmatpush.msra.mxu0 0.0
  %2636 = vmatpush.msra.mxu0 0.0
  %2637 = vmatpush.msra.mxu0 0.0
  %2638 = vmatpush.msra.mxu0 0.0
  %2639 = vmatpush.msra.mxu0 0.0
  %2640 = vmatpush.msra.mxu0 0.0
  %2641 = vmatpush.msra.mxu0 0.0
  %2642 = vmatpush.msra.mxu0 0.0
  %2643 = vmatpush.msra.mxu0 0.0
  %2644 = vmatpush.msra.mxu0 0.0
  %2645 = vmatpush.msra.mxu0 0.0
  %2646 = vmatpush.msra.mxu0 0.0
  %2647 = vmatpush.msra.mxu0 0.0
  %v2648 = vand.u32 %v2504, 4294901760
  %2649 = vmatpush.msra.mxu0 %v2648
  %v2650 = vand.u32 %v2507, 4294901760
  %2651 = vmatmul.f32.gmra.mxu0 %v2650
  %v2652 = vpop.f32.mrf.mxu0
  %v2653 = vadd.f32 %v2631, %v2652
  %2654 = vdwg.mxu0
  %2655 = vrot.lane.b32.xlu0 %v481, 64
  %v2656 = vpop.permute.xlu0 %2655
  %v2659 = vsel %vm488, %v1864, 0
  %2661 = vmatpush.msra.mxu0 0.0
  %2662 = vmatpush.msra.mxu0 0.0
  %2663 = vmatpush.msra.mxu0 0.0
  %2664 = vmatpush.msra.mxu0 0.0
  %2665 = vmatpush.msra.mxu0 0.0
  %2666 = vmatpush.msra.mxu0 0.0
  %2667 = vmatpush.msra.mxu0 0.0
  %2668 = vmatpush.msra.mxu0 0.0
  %2669 = vmatpush.msra.mxu0 0.0
  %2670 = vmatpush.msra.mxu0 0.0
  %2671 = vmatpush.msra.mxu0 0.0
  %2672 = vmatpush.msra.mxu0 0.0
  %2673 = vmatpush.msra.mxu0 0.0
  %2674 = vmatpush.msra.mxu0 0.0
  %2675 = vmatpush.msra.mxu0 0.0
  %v2676 = vand.u32 %v2656, 4294901760
  %2677 = vmatpush.msra.mxu0 %v2676
  %v2678 = vand.u32 %v2659, 4294901760
  %v2679 = vsub.f32 %v2659, %v2678
  %v2680 = vand.u32 %v2679, 4294901760
  %v2681 = vsub.f32 %v2679, %v2680
  %v2682 = vand.u32 %v2681, 4294901760
  %2683 = vmatmul.f32.gmra.mxu0 %v2682
  %v2684 = vpop.f32.mrf.mxu0
  %v2685 = vadd.f32 0.0, %v2684
  %2686 = vdwg.mxu0
  %2687 = vmatpush.msra.mxu0 0.0
  %2688 = vmatpush.msra.mxu0 0.0
  %2689 = vmatpush.msra.mxu0 0.0
  %2690 = vmatpush.msra.mxu0 0.0
  %2691 = vmatpush.msra.mxu0 0.0
  %2692 = vmatpush.msra.mxu0 0.0
  %2693 = vmatpush.msra.mxu0 0.0
  %2694 = vmatpush.msra.mxu0 0.0
  %2695 = vmatpush.msra.mxu0 0.0
  %2696 = vmatpush.msra.mxu0 0.0
  %2697 = vmatpush.msra.mxu0 0.0
  %2698 = vmatpush.msra.mxu0 0.0
  %2699 = vmatpush.msra.mxu0 0.0
  %2700 = vmatpush.msra.mxu0 0.0
  %2701 = vmatpush.msra.mxu0 0.0
  %v2702 = vand.u32 %v2656, 4294901760
  %v2703 = vsub.f32 %v2656, %v2702
  %v2704 = vand.u32 %v2703, 4294901760
  %v2705 = vsub.f32 %v2703, %v2704
  %v2706 = vand.u32 %v2705, 4294901760
  %2707 = vmatpush.msra.mxu0 %v2706
  %v2708 = vand.u32 %v2659, 4294901760
  %2709 = vmatmul.f32.gmra.mxu0 %v2708
  %v2710 = vpop.f32.mrf.mxu0
  %v2711 = vadd.f32 %v2685, %v2710
  %2712 = vdwg.mxu0
  %2713 = vmatpush.msra.mxu0 0.0
  %2714 = vmatpush.msra.mxu0 0.0
  %2715 = vmatpush.msra.mxu0 0.0
  %2716 = vmatpush.msra.mxu0 0.0
  %2717 = vmatpush.msra.mxu0 0.0
  %2718 = vmatpush.msra.mxu0 0.0
  %2719 = vmatpush.msra.mxu0 0.0
  %2720 = vmatpush.msra.mxu0 0.0
  %2721 = vmatpush.msra.mxu0 0.0
  %2722 = vmatpush.msra.mxu0 0.0
  %2723 = vmatpush.msra.mxu0 0.0
  %2724 = vmatpush.msra.mxu0 0.0
  %2725 = vmatpush.msra.mxu0 0.0
  %2726 = vmatpush.msra.mxu0 0.0
  %2727 = vmatpush.msra.mxu0 0.0
  %v2728 = vand.u32 %v2656, 4294901760
  %v2729 = vsub.f32 %v2656, %v2728
  %2730 = vmatpush.msra.mxu0 %v2729
  %v2731 = vand.u32 %v2659, 4294901760
  %v2732 = vsub.f32 %v2659, %v2731
  %2733 = vmatmul.f32.gmra.mxu0 %v2732
  %v2734 = vpop.f32.mrf.mxu0
  %v2735 = vadd.f32 %v2711, %v2734
  %2736 = vdwg.mxu0
  %2737 = vmatpush.msra.mxu0 0.0
  %2738 = vmatpush.msra.mxu0 0.0
  %2739 = vmatpush.msra.mxu0 0.0
  %2740 = vmatpush.msra.mxu0 0.0
  %2741 = vmatpush.msra.mxu0 0.0
  %2742 = vmatpush.msra.mxu0 0.0
  %2743 = vmatpush.msra.mxu0 0.0
  %2744 = vmatpush.msra.mxu0 0.0
  %2745 = vmatpush.msra.mxu0 0.0
  %2746 = vmatpush.msra.mxu0 0.0
  %2747 = vmatpush.msra.mxu0 0.0
  %2748 = vmatpush.msra.mxu0 0.0
  %2749 = vmatpush.msra.mxu0 0.0
  %2750 = vmatpush.msra.mxu0 0.0
  %2751 = vmatpush.msra.mxu0 0.0
  %v2752 = vand.u32 %v2656, 4294901760
  %2753 = vmatpush.msra.mxu0 %v2752
  %v2754 = vand.u32 %v2659, 4294901760
  %v2755 = vsub.f32 %v2659, %v2754
  %v2756 = vand.u32 %v2755, 4294901760
  %2757 = vmatmul.f32.gmra.mxu0 %v2756
  %v2758 = vpop.f32.mrf.mxu0
  %v2759 = vadd.f32 %v2735, %v2758
  %2760 = vdwg.mxu0
  %2761 = vmatpush.msra.mxu0 0.0
  %2762 = vmatpush.msra.mxu0 0.0
  %2763 = vmatpush.msra.mxu0 0.0
  %2764 = vmatpush.msra.mxu0 0.0
  %2765 = vmatpush.msra.mxu0 0.0
  %2766 = vmatpush.msra.mxu0 0.0
  %2767 = vmatpush.msra.mxu0 0.0
  %2768 = vmatpush.msra.mxu0 0.0
  %2769 = vmatpush.msra.mxu0 0.0
  %2770 = vmatpush.msra.mxu0 0.0
  %2771 = vmatpush.msra.mxu0 0.0
  %2772 = vmatpush.msra.mxu0 0.0
  %2773 = vmatpush.msra.mxu0 0.0
  %2774 = vmatpush.msra.mxu0 0.0
  %2775 = vmatpush.msra.mxu0 0.0
  %v2776 = vand.u32 %v2656, 4294901760
  %v2777 = vsub.f32 %v2656, %v2776
  %v2778 = vand.u32 %v2777, 4294901760
  %2779 = vmatpush.msra.mxu0 %v2778
  %v2780 = vand.u32 %v2659, 4294901760
  %2781 = vmatmul.f32.gmra.mxu0 %v2780
  %v2782 = vpop.f32.mrf.mxu0
  %v2783 = vadd.f32 %v2759, %v2782
  %2784 = vdwg.mxu0
  %2785 = vmatpush.msra.mxu0 0.0
  %2786 = vmatpush.msra.mxu0 0.0
  %2787 = vmatpush.msra.mxu0 0.0
  %2788 = vmatpush.msra.mxu0 0.0
  %2789 = vmatpush.msra.mxu0 0.0
  %2790 = vmatpush.msra.mxu0 0.0
  %2791 = vmatpush.msra.mxu0 0.0
  %2792 = vmatpush.msra.mxu0 0.0
  %2793 = vmatpush.msra.mxu0 0.0
  %2794 = vmatpush.msra.mxu0 0.0
  %2795 = vmatpush.msra.mxu0 0.0
  %2796 = vmatpush.msra.mxu0 0.0
  %2797 = vmatpush.msra.mxu0 0.0
  %2798 = vmatpush.msra.mxu0 0.0
  %2799 = vmatpush.msra.mxu0 0.0
  %v2800 = vand.u32 %v2656, 4294901760
  %2801 = vmatpush.msra.mxu0 %v2800
  %v2802 = vand.u32 %v2659, 4294901760
  %2803 = vmatmul.f32.gmra.mxu0 %v2802
  %v2804 = vpop.f32.mrf.mxu0
  %v2805 = vadd.f32 %v2783, %v2804
  %2806 = vdwg.mxu0
  %2807 = vrot.lane.b32.xlu0 %v483, 64
  %v2808 = vpop.permute.xlu0 %2807
  %v2811 = vsel %vm488, %v1879, 0
  %2813 = vmatpush.msra.mxu0 0.0
  %2814 = vmatpush.msra.mxu0 0.0
  %2815 = vmatpush.msra.mxu0 0.0
  %2816 = vmatpush.msra.mxu0 0.0
  %2817 = vmatpush.msra.mxu0 0.0
  %2818 = vmatpush.msra.mxu0 0.0
  %2819 = vmatpush.msra.mxu0 0.0
  %2820 = vmatpush.msra.mxu0 0.0
  %2821 = vmatpush.msra.mxu0 0.0
  %2822 = vmatpush.msra.mxu0 0.0
  %2823 = vmatpush.msra.mxu0 0.0
  %2824 = vmatpush.msra.mxu0 0.0
  %2825 = vmatpush.msra.mxu0 0.0
  %2826 = vmatpush.msra.mxu0 0.0
  %2827 = vmatpush.msra.mxu0 0.0
  %v2828 = vand.u32 %v2808, 4294901760
  %2829 = vmatpush.msra.mxu0 %v2828
  %v2830 = vand.u32 %v2811, 4294901760
  %v2831 = vsub.f32 %v2811, %v2830
  %v2832 = vand.u32 %v2831, 4294901760
  %v2833 = vsub.f32 %v2831, %v2832
  %v2834 = vand.u32 %v2833, 4294901760
  %2835 = vmatmul.f32.gmra.mxu0 %v2834
  %v2836 = vpop.f32.mrf.mxu0
  %v2837 = vadd.f32 0.0, %v2836
  %2838 = vdwg.mxu0
  %2839 = vmatpush.msra.mxu0 0.0
  %2840 = vmatpush.msra.mxu0 0.0
  %2841 = vmatpush.msra.mxu0 0.0
  %2842 = vmatpush.msra.mxu0 0.0
  %2843 = vmatpush.msra.mxu0 0.0
  %2844 = vmatpush.msra.mxu0 0.0
  %2845 = vmatpush.msra.mxu0 0.0
  %2846 = vmatpush.msra.mxu0 0.0
  %2847 = vmatpush.msra.mxu0 0.0
  %2848 = vmatpush.msra.mxu0 0.0
  %2849 = vmatpush.msra.mxu0 0.0
  %2850 = vmatpush.msra.mxu0 0.0
  %2851 = vmatpush.msra.mxu0 0.0
  %2852 = vmatpush.msra.mxu0 0.0
  %2853 = vmatpush.msra.mxu0 0.0
  %v2854 = vand.u32 %v2808, 4294901760
  %v2855 = vsub.f32 %v2808, %v2854
  %v2856 = vand.u32 %v2855, 4294901760
  %v2857 = vsub.f32 %v2855, %v2856
  %v2858 = vand.u32 %v2857, 4294901760
  %2859 = vmatpush.msra.mxu0 %v2858
  %v2860 = vand.u32 %v2811, 4294901760
  %2861 = vmatmul.f32.gmra.mxu0 %v2860
  %v2862 = vpop.f32.mrf.mxu0
  %v2863 = vadd.f32 %v2837, %v2862
  %2864 = vdwg.mxu0
  %2865 = vmatpush.msra.mxu0 0.0
  %2866 = vmatpush.msra.mxu0 0.0
  %2867 = vmatpush.msra.mxu0 0.0
  %2868 = vmatpush.msra.mxu0 0.0
  %2869 = vmatpush.msra.mxu0 0.0
  %2870 = vmatpush.msra.mxu0 0.0
  %2871 = vmatpush.msra.mxu0 0.0
  %2872 = vmatpush.msra.mxu0 0.0
  %2873 = vmatpush.msra.mxu0 0.0
  %2874 = vmatpush.msra.mxu0 0.0
  %2875 = vmatpush.msra.mxu0 0.0
  %2876 = vmatpush.msra.mxu0 0.0
  %2877 = vmatpush.msra.mxu0 0.0
  %2878 = vmatpush.msra.mxu0 0.0
  %2879 = vmatpush.msra.mxu0 0.0
  %v2880 = vand.u32 %v2808, 4294901760
  %v2881 = vsub.f32 %v2808, %v2880
  %2882 = vmatpush.msra.mxu0 %v2881
  %v2883 = vand.u32 %v2811, 4294901760
  %v2884 = vsub.f32 %v2811, %v2883
  %2885 = vmatmul.f32.gmra.mxu0 %v2884
  %v2886 = vpop.f32.mrf.mxu0
  %v2887 = vadd.f32 %v2863, %v2886
  %2888 = vdwg.mxu0
  %2889 = vmatpush.msra.mxu0 0.0
  %2890 = vmatpush.msra.mxu0 0.0
  %2891 = vmatpush.msra.mxu0 0.0
  %2892 = vmatpush.msra.mxu0 0.0
  %2893 = vmatpush.msra.mxu0 0.0
  %2894 = vmatpush.msra.mxu0 0.0
  %2895 = vmatpush.msra.mxu0 0.0
  %2896 = vmatpush.msra.mxu0 0.0
  %2897 = vmatpush.msra.mxu0 0.0
  %2898 = vmatpush.msra.mxu0 0.0
  %2899 = vmatpush.msra.mxu0 0.0
  %2900 = vmatpush.msra.mxu0 0.0
  %2901 = vmatpush.msra.mxu0 0.0
  %2902 = vmatpush.msra.mxu0 0.0
  %2903 = vmatpush.msra.mxu0 0.0
  %v2904 = vand.u32 %v2808, 4294901760
  %2905 = vmatpush.msra.mxu0 %v2904
  %v2906 = vand.u32 %v2811, 4294901760
  %v2907 = vsub.f32 %v2811, %v2906
  %v2908 = vand.u32 %v2907, 4294901760
  %2909 = vmatmul.f32.gmra.mxu0 %v2908
  %v2910 = vpop.f32.mrf.mxu0
  %v2911 = vadd.f32 %v2887, %v2910
  %2912 = vdwg.mxu0
  %2913 = vmatpush.msra.mxu0 0.0
  %2914 = vmatpush.msra.mxu0 0.0
  %2915 = vmatpush.msra.mxu0 0.0
  %2916 = vmatpush.msra.mxu0 0.0
  %2917 = vmatpush.msra.mxu0 0.0
  %2918 = vmatpush.msra.mxu0 0.0
  %2919 = vmatpush.msra.mxu0 0.0
  %2920 = vmatpush.msra.mxu0 0.0
  %2921 = vmatpush.msra.mxu0 0.0
  %2922 = vmatpush.msra.mxu0 0.0
  %2923 = vmatpush.msra.mxu0 0.0
  %2924 = vmatpush.msra.mxu0 0.0
  %2925 = vmatpush.msra.mxu0 0.0
  %2926 = vmatpush.msra.mxu0 0.0
  %2927 = vmatpush.msra.mxu0 0.0
  %v2928 = vand.u32 %v2808, 4294901760
  %v2929 = vsub.f32 %v2808, %v2928
  %v2930 = vand.u32 %v2929, 4294901760
  %2931 = vmatpush.msra.mxu0 %v2930
  %v2932 = vand.u32 %v2811, 4294901760
  %2933 = vmatmul.f32.gmra.mxu0 %v2932
  %v2934 = vpop.f32.mrf.mxu0
  %v2935 = vadd.f32 %v2911, %v2934
  %2936 = vdwg.mxu0
  %2937 = vmatpush.msra.mxu0 0.0
  %2938 = vmatpush.msra.mxu0 0.0
  %2939 = vmatpush.msra.mxu0 0.0
  %2940 = vmatpush.msra.mxu0 0.0
  %2941 = vmatpush.msra.mxu0 0.0
  %2942 = vmatpush.msra.mxu0 0.0
  %2943 = vmatpush.msra.mxu0 0.0
  %2944 = vmatpush.msra.mxu0 0.0
  %2945 = vmatpush.msra.mxu0 0.0
  %2946 = vmatpush.msra.mxu0 0.0
  %2947 = vmatpush.msra.mxu0 0.0
  %2948 = vmatpush.msra.mxu0 0.0
  %2949 = vmatpush.msra.mxu0 0.0
  %2950 = vmatpush.msra.mxu0 0.0
  %2951 = vmatpush.msra.mxu0 0.0
  %v2952 = vand.u32 %v2808, 4294901760
  %2953 = vmatpush.msra.mxu0 %v2952
  %v2954 = vand.u32 %v2811, 4294901760
  %2955 = vmatmul.f32.gmra.mxu0 %v2954
  %v2956 = vpop.f32.mrf.mxu0
  %v2957 = vadd.f32 %v2935, %v2956
  %2958 = vdwg.mxu0
  %2959 = vrot.lane.b32.xlu0 %v485, 64
  %v2960 = vpop.permute.xlu0 %2959
  %v2963 = vsel %vm488, %v1894, 0
  %2965 = vmatpush.msra.mxu0 0.0
  %2966 = vmatpush.msra.mxu0 0.0
  %2967 = vmatpush.msra.mxu0 0.0
  %2968 = vmatpush.msra.mxu0 0.0
  %2969 = vmatpush.msra.mxu0 0.0
  %2970 = vmatpush.msra.mxu0 0.0
  %2971 = vmatpush.msra.mxu0 0.0
  %2972 = vmatpush.msra.mxu0 0.0
  %2973 = vmatpush.msra.mxu0 0.0
  %2974 = vmatpush.msra.mxu0 0.0
  %2975 = vmatpush.msra.mxu0 0.0
  %2976 = vmatpush.msra.mxu0 0.0
  %2977 = vmatpush.msra.mxu0 0.0
  %2978 = vmatpush.msra.mxu0 0.0
  %2979 = vmatpush.msra.mxu0 0.0
  %v2980 = vand.u32 %v2960, 4294901760
  %2981 = vmatpush.msra.mxu0 %v2980
  %v2982 = vand.u32 %v2963, 4294901760
  %v2983 = vsub.f32 %v2963, %v2982
  %v2984 = vand.u32 %v2983, 4294901760
  %v2985 = vsub.f32 %v2983, %v2984
  %v2986 = vand.u32 %v2985, 4294901760
  %2987 = vmatmul.f32.gmra.mxu0 %v2986
  %v2988 = vpop.f32.mrf.mxu0
  %v2989 = vadd.f32 0.0, %v2988
  %2990 = vdwg.mxu0
  %2991 = vmatpush.msra.mxu0 0.0
  %2992 = vmatpush.msra.mxu0 0.0
  %2993 = vmatpush.msra.mxu0 0.0
  %2994 = vmatpush.msra.mxu0 0.0
  %2995 = vmatpush.msra.mxu0 0.0
  %2996 = vmatpush.msra.mxu0 0.0
  %2997 = vmatpush.msra.mxu0 0.0
  %2998 = vmatpush.msra.mxu0 0.0
  %2999 = vmatpush.msra.mxu0 0.0
  %3000 = vmatpush.msra.mxu0 0.0
  %3001 = vmatpush.msra.mxu0 0.0
  %3002 = vmatpush.msra.mxu0 0.0
  %3003 = vmatpush.msra.mxu0 0.0
  %3004 = vmatpush.msra.mxu0 0.0
  %3005 = vmatpush.msra.mxu0 0.0
  %v3006 = vand.u32 %v2960, 4294901760
  %v3007 = vsub.f32 %v2960, %v3006
  %v3008 = vand.u32 %v3007, 4294901760
  %v3009 = vsub.f32 %v3007, %v3008
  %v3010 = vand.u32 %v3009, 4294901760
  %3011 = vmatpush.msra.mxu0 %v3010
  %v3012 = vand.u32 %v2963, 4294901760
  %3013 = vmatmul.f32.gmra.mxu0 %v3012
  %v3014 = vpop.f32.mrf.mxu0
  %v3015 = vadd.f32 %v2989, %v3014
  %3016 = vdwg.mxu0
  %3017 = vmatpush.msra.mxu0 0.0
  %3018 = vmatpush.msra.mxu0 0.0
  %3019 = vmatpush.msra.mxu0 0.0
  %3020 = vmatpush.msra.mxu0 0.0
  %3021 = vmatpush.msra.mxu0 0.0
  %3022 = vmatpush.msra.mxu0 0.0
  %3023 = vmatpush.msra.mxu0 0.0
  %3024 = vmatpush.msra.mxu0 0.0
  %3025 = vmatpush.msra.mxu0 0.0
  %3026 = vmatpush.msra.mxu0 0.0
  %3027 = vmatpush.msra.mxu0 0.0
  %3028 = vmatpush.msra.mxu0 0.0
  %3029 = vmatpush.msra.mxu0 0.0
  %3030 = vmatpush.msra.mxu0 0.0
  %3031 = vmatpush.msra.mxu0 0.0
  %v3032 = vand.u32 %v2960, 4294901760
  %v3033 = vsub.f32 %v2960, %v3032
  %3034 = vmatpush.msra.mxu0 %v3033
  %v3035 = vand.u32 %v2963, 4294901760
  %v3036 = vsub.f32 %v2963, %v3035
  %3037 = vmatmul.f32.gmra.mxu0 %v3036
  %v3038 = vpop.f32.mrf.mxu0
  %v3039 = vadd.f32 %v3015, %v3038
  %3040 = vdwg.mxu0
  %3041 = vmatpush.msra.mxu0 0.0
  %3042 = vmatpush.msra.mxu0 0.0
  %3043 = vmatpush.msra.mxu0 0.0
  %3044 = vmatpush.msra.mxu0 0.0
  %3045 = vmatpush.msra.mxu0 0.0
  %3046 = vmatpush.msra.mxu0 0.0
  %3047 = vmatpush.msra.mxu0 0.0
  %3048 = vmatpush.msra.mxu0 0.0
  %3049 = vmatpush.msra.mxu0 0.0
  %3050 = vmatpush.msra.mxu0 0.0
  %3051 = vmatpush.msra.mxu0 0.0
  %3052 = vmatpush.msra.mxu0 0.0
  %3053 = vmatpush.msra.mxu0 0.0
  %3054 = vmatpush.msra.mxu0 0.0
  %3055 = vmatpush.msra.mxu0 0.0
  %v3056 = vand.u32 %v2960, 4294901760
  %3057 = vmatpush.msra.mxu0 %v3056
  %v3058 = vand.u32 %v2963, 4294901760
  %v3059 = vsub.f32 %v2963, %v3058
  %v3060 = vand.u32 %v3059, 4294901760
  %3061 = vmatmul.f32.gmra.mxu0 %v3060
  %v3062 = vpop.f32.mrf.mxu0
  %v3063 = vadd.f32 %v3039, %v3062
  %3064 = vdwg.mxu0
  %3065 = vmatpush.msra.mxu0 0.0
  %3066 = vmatpush.msra.mxu0 0.0
  %3067 = vmatpush.msra.mxu0 0.0
  %3068 = vmatpush.msra.mxu0 0.0
  %3069 = vmatpush.msra.mxu0 0.0
  %3070 = vmatpush.msra.mxu0 0.0
  %3071 = vmatpush.msra.mxu0 0.0
  %3072 = vmatpush.msra.mxu0 0.0
  %3073 = vmatpush.msra.mxu0 0.0
  %3074 = vmatpush.msra.mxu0 0.0
  %3075 = vmatpush.msra.mxu0 0.0
  %3076 = vmatpush.msra.mxu0 0.0
  %3077 = vmatpush.msra.mxu0 0.0
  %3078 = vmatpush.msra.mxu0 0.0
  %3079 = vmatpush.msra.mxu0 0.0
  %v3080 = vand.u32 %v2960, 4294901760
  %v3081 = vsub.f32 %v2960, %v3080
  %v3082 = vand.u32 %v3081, 4294901760
  %3083 = vmatpush.msra.mxu0 %v3082
  %v3084 = vand.u32 %v2963, 4294901760
  %3085 = vmatmul.f32.gmra.mxu0 %v3084
  %v3086 = vpop.f32.mrf.mxu0
  %v3087 = vadd.f32 %v3063, %v3086
  %3088 = vdwg.mxu0
  %3089 = vmatpush.msra.mxu0 0.0
  %3090 = vmatpush.msra.mxu0 0.0
  %3091 = vmatpush.msra.mxu0 0.0
  %3092 = vmatpush.msra.mxu0 0.0
  %3093 = vmatpush.msra.mxu0 0.0
  %3094 = vmatpush.msra.mxu0 0.0
  %3095 = vmatpush.msra.mxu0 0.0
  %3096 = vmatpush.msra.mxu0 0.0
  %3097 = vmatpush.msra.mxu0 0.0
  %3098 = vmatpush.msra.mxu0 0.0
  %3099 = vmatpush.msra.mxu0 0.0
  %3100 = vmatpush.msra.mxu0 0.0
  %3101 = vmatpush.msra.mxu0 0.0
  %3102 = vmatpush.msra.mxu0 0.0
  %3103 = vmatpush.msra.mxu0 0.0
  %v3104 = vand.u32 %v2960, 4294901760
  %3105 = vmatpush.msra.mxu0 %v3104
  %v3106 = vand.u32 %v2963, 4294901760
  %3107 = vmatmul.f32.gmra.mxu0 %v3106
  %v3108 = vpop.f32.mrf.mxu0
  %v3109 = vadd.f32 %v3087, %v3108
  %3110 = vdwg.mxu0
  %3113 = vrot.lane.b32.xlu0 %v2349, 8
  %v3114 = vpop.permute.xlu0 %3113
  %3115 = vrot.lane.b32.xlu0 %v2501, 8
  %v3116 = vpop.permute.xlu0 %3115
  %3121 = vrot.lane.b32.xlu0 %v2653, 16
  %v3122 = vpop.permute.xlu0 %3121
  %3123 = vrot.lane.b32.xlu0 %v2805, 16
  %v3124 = vpop.permute.xlu0 %3123
  %3129 = vrot.lane.b32.xlu0 %v2957, 24
  %v3130 = vpop.permute.xlu0 %3129
  %3131 = vrot.lane.b32.xlu0 %v3109, 24
  %v3132 = vpop.permute.xlu0 %3131
  %v3135 = vsel %vm488, %v2045, %v3114
  %v3136 = vsel %vm488, %v2197, %v3116
  %v3137 = vsel %vm19, %v3135, %v3122
  %v3138 = vsel %vm19, %v3136, %v3124
  %vm3139 = vcmask 195584
  %v3140 = vsel %vm3139, %v3137, %v3130
  %v3141 = vsel %vm3139, %v3138, %v3132
  %v3142 = vperm.slane %v238, 0
  %v3144 = vsel %vm249, %v3140, 0
  %v3147 = vsel %vm249, %v3141, 0
  %3149 = vmatpush.msra.mxu0 0.0
  %3150 = vmatpush.msra.mxu0 0.0
  %3151 = vmatpush.msra.mxu0 0.0
  %3152 = vmatpush.msra.mxu0 0.0
  %3153 = vmatpush.msra.mxu0 0.0
  %3154 = vmatpush.msra.mxu0 0.0
  %3155 = vmatpush.msra.mxu0 0.0
  %3156 = vmatpush.msra.mxu0 0.0
  %3157 = vmatpush.msra.mxu0 0.0
  %3158 = vmatpush.msra.mxu0 0.0
  %3159 = vmatpush.msra.mxu0 0.0
  %3160 = vmatpush.msra.mxu0 0.0
  %v3161 = vand.u32 %v221, 4294901760
  %3162 = vmatpush.msra.mxu0 %v3161
  %v3163 = vand.u32 %v220, 4294901760
  %3164 = vmatpush.msra.mxu0 %v3163
  %v3165 = vand.u32 %v219, 4294901760
  %3166 = vmatpush.msra.mxu0 %v3165
  %v3167 = vand.u32 %v218, 4294901760
  %3168 = vmatpush.msra.mxu0 %v3167
  %v3169 = vand.u32 %v3144, 4294901760
  %v3170 = vsub.f32 %v3144, %v3169
  %v3171 = vand.u32 %v3170, 4294901760
  %v3172 = vsub.f32 %v3170, %v3171
  %v3173 = vand.u32 %v3172, 4294901760
  %3174 = vmatmul.f32.gmra.mxu0 %v3173
  %v3175 = vpop.f32.mrf.mxu0
  %v3176 = vadd.f32 %v3142, %v3175
  %v3177 = vand.u32 %v3147, 4294901760
  %v3178 = vsub.f32 %v3147, %v3177
  %v3179 = vand.u32 %v3178, 4294901760
  %v3180 = vsub.f32 %v3178, %v3179
  %v3181 = vand.u32 %v3180, 4294901760
  %3182 = vmatmul.f32.gmra.mxu0 %v3181
  %v3183 = vpop.f32.mrf.mxu0
  %v3184 = vadd.f32 %v3142, %v3183
  %3185 = vdwg.mxu0
  %3186 = vmatpush.msra.mxu0 0.0
  %3187 = vmatpush.msra.mxu0 0.0
  %3188 = vmatpush.msra.mxu0 0.0
  %3189 = vmatpush.msra.mxu0 0.0
  %3190 = vmatpush.msra.mxu0 0.0
  %3191 = vmatpush.msra.mxu0 0.0
  %3192 = vmatpush.msra.mxu0 0.0
  %3193 = vmatpush.msra.mxu0 0.0
  %3194 = vmatpush.msra.mxu0 0.0
  %3195 = vmatpush.msra.mxu0 0.0
  %3196 = vmatpush.msra.mxu0 0.0
  %3197 = vmatpush.msra.mxu0 0.0
  %v3198 = vand.u32 %v221, 4294901760
  %v3199 = vsub.f32 %v221, %v3198
  %v3200 = vand.u32 %v3199, 4294901760
  %v3201 = vsub.f32 %v3199, %v3200
  %v3202 = vand.u32 %v3201, 4294901760
  %3203 = vmatpush.msra.mxu0 %v3202
  %v3204 = vand.u32 %v220, 4294901760
  %v3205 = vsub.f32 %v220, %v3204
  %v3206 = vand.u32 %v3205, 4294901760
  %v3207 = vsub.f32 %v3205, %v3206
  %v3208 = vand.u32 %v3207, 4294901760
  %3209 = vmatpush.msra.mxu0 %v3208
  %v3210 = vand.u32 %v219, 4294901760
  %v3211 = vsub.f32 %v219, %v3210
  %v3212 = vand.u32 %v3211, 4294901760
  %v3213 = vsub.f32 %v3211, %v3212
  %v3214 = vand.u32 %v3213, 4294901760
  %3215 = vmatpush.msra.mxu0 %v3214
  %v3216 = vand.u32 %v218, 4294901760
  %v3217 = vsub.f32 %v218, %v3216
  %v3218 = vand.u32 %v3217, 4294901760
  %v3219 = vsub.f32 %v3217, %v3218
  %v3220 = vand.u32 %v3219, 4294901760
  %3221 = vmatpush.msra.mxu0 %v3220
  %v3222 = vand.u32 %v3144, 4294901760
  %3223 = vmatmul.f32.gmra.mxu0 %v3222
  %v3224 = vpop.f32.mrf.mxu0
  %v3225 = vadd.f32 %v3176, %v3224
  %v3226 = vand.u32 %v3147, 4294901760
  %3227 = vmatmul.f32.gmra.mxu0 %v3226
  %v3228 = vpop.f32.mrf.mxu0
  %v3229 = vadd.f32 %v3184, %v3228
  %3230 = vdwg.mxu0
  %3231 = vmatpush.msra.mxu0 0.0
  %3232 = vmatpush.msra.mxu0 0.0
  %3233 = vmatpush.msra.mxu0 0.0
  %3234 = vmatpush.msra.mxu0 0.0
  %3235 = vmatpush.msra.mxu0 0.0
  %3236 = vmatpush.msra.mxu0 0.0
  %3237 = vmatpush.msra.mxu0 0.0
  %3238 = vmatpush.msra.mxu0 0.0
  %3239 = vmatpush.msra.mxu0 0.0
  %3240 = vmatpush.msra.mxu0 0.0
  %3241 = vmatpush.msra.mxu0 0.0
  %3242 = vmatpush.msra.mxu0 0.0
  %v3243 = vand.u32 %v221, 4294901760
  %v3244 = vsub.f32 %v221, %v3243
  %3245 = vmatpush.msra.mxu0 %v3244
  %v3246 = vand.u32 %v220, 4294901760
  %v3247 = vsub.f32 %v220, %v3246
  %3248 = vmatpush.msra.mxu0 %v3247
  %v3249 = vand.u32 %v219, 4294901760
  %v3250 = vsub.f32 %v219, %v3249
  %3251 = vmatpush.msra.mxu0 %v3250
  %v3252 = vand.u32 %v218, 4294901760
  %v3253 = vsub.f32 %v218, %v3252
  %3254 = vmatpush.msra.mxu0 %v3253
  %v3255 = vand.u32 %v3144, 4294901760
  %v3256 = vsub.f32 %v3144, %v3255
  %3257 = vmatmul.f32.gmra.mxu0 %v3256
  %v3258 = vpop.f32.mrf.mxu0
  %v3259 = vadd.f32 %v3225, %v3258
  %v3260 = vand.u32 %v3147, 4294901760
  %v3261 = vsub.f32 %v3147, %v3260
  %3262 = vmatmul.f32.gmra.mxu0 %v3261
  %v3263 = vpop.f32.mrf.mxu0
  %v3264 = vadd.f32 %v3229, %v3263
  %3265 = vdwg.mxu0
  %3266 = vmatpush.msra.mxu0 0.0
  %3267 = vmatpush.msra.mxu0 0.0
  %3268 = vmatpush.msra.mxu0 0.0
  %3269 = vmatpush.msra.mxu0 0.0
  %3270 = vmatpush.msra.mxu0 0.0
  %3271 = vmatpush.msra.mxu0 0.0
  %3272 = vmatpush.msra.mxu0 0.0
  %3273 = vmatpush.msra.mxu0 0.0
  %3274 = vmatpush.msra.mxu0 0.0
  %3275 = vmatpush.msra.mxu0 0.0
  %3276 = vmatpush.msra.mxu0 0.0
  %3277 = vmatpush.msra.mxu0 0.0
  %v3278 = vand.u32 %v221, 4294901760
  %3279 = vmatpush.msra.mxu0 %v3278
  %v3280 = vand.u32 %v220, 4294901760
  %3281 = vmatpush.msra.mxu0 %v3280
  %v3282 = vand.u32 %v219, 4294901760
  %3283 = vmatpush.msra.mxu0 %v3282
  %v3284 = vand.u32 %v218, 4294901760
  %3285 = vmatpush.msra.mxu0 %v3284
  %v3286 = vand.u32 %v3144, 4294901760
  %v3287 = vsub.f32 %v3144, %v3286
  %v3288 = vand.u32 %v3287, 4294901760
  %3289 = vmatmul.f32.gmra.mxu0 %v3288
  %v3290 = vpop.f32.mrf.mxu0
  %v3291 = vadd.f32 %v3259, %v3290
  %v3292 = vand.u32 %v3147, 4294901760
  %v3293 = vsub.f32 %v3147, %v3292
  %v3294 = vand.u32 %v3293, 4294901760
  %3295 = vmatmul.f32.gmra.mxu0 %v3294
  %v3296 = vpop.f32.mrf.mxu0
  %v3297 = vadd.f32 %v3264, %v3296
  %3298 = vdwg.mxu0
  %3299 = vmatpush.msra.mxu0 0.0
  %3300 = vmatpush.msra.mxu0 0.0
  %3301 = vmatpush.msra.mxu0 0.0
  %3302 = vmatpush.msra.mxu0 0.0
  %3303 = vmatpush.msra.mxu0 0.0
  %3304 = vmatpush.msra.mxu0 0.0
  %3305 = vmatpush.msra.mxu0 0.0
  %3306 = vmatpush.msra.mxu0 0.0
  %3307 = vmatpush.msra.mxu0 0.0
  %3308 = vmatpush.msra.mxu0 0.0
  %3309 = vmatpush.msra.mxu0 0.0
  %3310 = vmatpush.msra.mxu0 0.0
  %v3311 = vand.u32 %v221, 4294901760
  %v3312 = vsub.f32 %v221, %v3311
  %v3313 = vand.u32 %v3312, 4294901760
  %3314 = vmatpush.msra.mxu0 %v3313
  %v3315 = vand.u32 %v220, 4294901760
  %v3316 = vsub.f32 %v220, %v3315
  %v3317 = vand.u32 %v3316, 4294901760
  %3318 = vmatpush.msra.mxu0 %v3317
  %v3319 = vand.u32 %v219, 4294901760
  %v3320 = vsub.f32 %v219, %v3319
  %v3321 = vand.u32 %v3320, 4294901760
  %3322 = vmatpush.msra.mxu0 %v3321
  %v3323 = vand.u32 %v218, 4294901760
  %v3324 = vsub.f32 %v218, %v3323
  %v3325 = vand.u32 %v3324, 4294901760
  %3326 = vmatpush.msra.mxu0 %v3325
  %v3327 = vand.u32 %v3144, 4294901760
  %3328 = vmatmul.f32.gmra.mxu0 %v3327
  %v3329 = vpop.f32.mrf.mxu0
  %v3330 = vadd.f32 %v3291, %v3329
  %v3331 = vand.u32 %v3147, 4294901760
  %3332 = vmatmul.f32.gmra.mxu0 %v3331
  %v3333 = vpop.f32.mrf.mxu0
  %v3334 = vadd.f32 %v3297, %v3333
  %3335 = vdwg.mxu0
  %3336 = vmatpush.msra.mxu0 0.0
  %3337 = vmatpush.msra.mxu0 0.0
  %3338 = vmatpush.msra.mxu0 0.0
  %3339 = vmatpush.msra.mxu0 0.0
  %3340 = vmatpush.msra.mxu0 0.0
  %3341 = vmatpush.msra.mxu0 0.0
  %3342 = vmatpush.msra.mxu0 0.0
  %3343 = vmatpush.msra.mxu0 0.0
  %3344 = vmatpush.msra.mxu0 0.0
  %3345 = vmatpush.msra.mxu0 0.0
  %3346 = vmatpush.msra.mxu0 0.0
  %3347 = vmatpush.msra.mxu0 0.0
  %v3348 = vand.u32 %v221, 4294901760
  %3349 = vmatpush.msra.mxu0 %v3348
  %v3350 = vand.u32 %v220, 4294901760
  %3351 = vmatpush.msra.mxu0 %v3350
  %v3352 = vand.u32 %v219, 4294901760
  %3353 = vmatpush.msra.mxu0 %v3352
  %v3354 = vand.u32 %v218, 4294901760
  %3355 = vmatpush.msra.mxu0 %v3354
  %v3356 = vand.u32 %v3144, 4294901760
  %3357 = vmatmul.f32.gmra.mxu0 %v3356
  %v3358 = vpop.f32.mrf.mxu0
  %v3359 = vadd.f32 %v3330, %v3358
  %v3360 = vand.u32 %v3147, 4294901760
  %3361 = vmatmul.f32.gmra.mxu0 %v3360
  %v3362 = vpop.f32.mrf.mxu0
  %v3363 = vadd.f32 %v3334, %v3362
  %3364 = vdwg.mxu0
  %v3365 = vadd.f32 %v216, %v3359
  %v3366 = vadd.f32 %v217, %v3363
  %v3367 = vsel %vm249, %v3365, 0.0
  %3368 = vadd.xlane.f32.xlu0 %v3367
  %v3369 = vpop.xlane.xlu0 %3368
  %v3370 = vsel %vm249, %v3366, 0.0
  %3371 = vadd.xlane.f32.xlu0 %v3370
  %v3372 = vpop.xlane.xlu0 %3371
  %v3373 = vrcp.pop 32.0
  %v3374 = vmul.f32 32.0, %v3373
  %v3375 = vsub.f32 1.0, %v3374
  %v3376 = vmul.f32 %v3373, %v3375
  %v3377 = vadd.f32 %v3373, %v3376
  %vm3378 = vweird.f32 %v3373
  %v3379 = vsel %vm3378, %v3373, %v3377
  %v3380 = vmul.f32 %v3369, %v3379
  %v3381 = vmul.f32 %v3372, %v3379
  %v3382 = vsub.f32 %v3365, %v3380
  %v3383 = vsub.f32 %v3366, %v3381
  %v3384 = vmul.f32 %v3382, %v3382
  %v3385 = vmul.f32 %v3383, %v3383
  %v3386 = vsel %vm249, %v3384, 0.0
  %3387 = vadd.xlane.f32.xlu0 %v3386
  %v3388 = vpop.xlane.xlu0 %3387
  %v3389 = vsel %vm249, %v3385, 0.0
  %3390 = vadd.xlane.f32.xlu0 %v3389
  %v3391 = vpop.xlane.xlu0 %3390
  %v3392 = vmul.f32 %v3388, %v3379
  %v3393 = vmul.f32 %v3391, %v3379
  %v3394 = vadd.f32 %v3392, 1e-05
  %v3395 = vadd.f32 %v3393, 1e-05
  %v3396 = vrsqrt.pop %v3394
  %v3397 = vmul.f32 %v3396, %v3394
  %v3398 = vmul.f32 %v3397, %v3396
  %v3399 = vmul.f32 0.5, %v3398
  %v3400 = vsub.f32 1.5, %v3399
  %v3401 = vmul.f32 %v3396, %v3400
  %vm3402 = vweird.f32 %v3394
  %vm3403 = vweird.f32 %v3396
  %vm3404 = vmor %vm3402, %vm3403
  %v3405 = vsel %vm3404, %v3396, %v3401
  %v3406 = vrsqrt.pop %v3395
  %v3407 = vmul.f32 %v3406, %v3395
  %v3408 = vmul.f32 %v3407, %v3406
  %v3409 = vmul.f32 0.5, %v3408
  %v3410 = vsub.f32 1.5, %v3409
  %v3411 = vmul.f32 %v3406, %v3410
  %vm3412 = vweird.f32 %v3395
  %vm3413 = vweird.f32 %v3406
  %vm3414 = vmor %vm3412, %vm3413
  %v3415 = vsel %vm3414, %v3406, %v3411
  %v3416 = vmul.f32 %v3382, %v3405
  %v3417 = vmul.f32 %v3383, %v3415
  %v3418 = vperm.slane %v238, 1
  %v3419 = vmul.f32 %v3416, %v3418
  %v3420 = vmul.f32 %v3417, %v3418
  %v3421 = vperm.slane %v238, 2
  %v3422 = vadd.f32 %v3419, %v3421
  %v3423 = vadd.f32 %v3420, %v3421
  %v3424 = vperm.slane %v247, 1
  %v3426 = vsel %vm249, %v3422, 0
  %v3429 = vsel %vm249, %v3423, 0
  %3431 = vmatpush.msra.mxu0 0.0
  %3432 = vmatpush.msra.mxu0 0.0
  %3433 = vmatpush.msra.mxu0 0.0
  %3434 = vmatpush.msra.mxu0 0.0
  %3435 = vmatpush.msra.mxu0 0.0
  %3436 = vmatpush.msra.mxu0 0.0
  %3437 = vmatpush.msra.mxu0 0.0
  %3438 = vmatpush.msra.mxu0 0.0
  %3439 = vmatpush.msra.mxu0 0.0
  %3440 = vmatpush.msra.mxu0 0.0
  %3441 = vmatpush.msra.mxu0 0.0
  %3442 = vmatpush.msra.mxu0 0.0
  %v3443 = vand.u32 %v246, 4294901760
  %3444 = vmatpush.msra.mxu0 %v3443
  %v3445 = vand.u32 %v245, 4294901760
  %3446 = vmatpush.msra.mxu0 %v3445
  %v3447 = vand.u32 %v244, 4294901760
  %3448 = vmatpush.msra.mxu0 %v3447
  %v3449 = vand.u32 %v243, 4294901760
  %3450 = vmatpush.msra.mxu0 %v3449
  %v3451 = vand.u32 %v3426, 4294901760
  %v3452 = vsub.f32 %v3426, %v3451
  %v3453 = vand.u32 %v3452, 4294901760
  %v3454 = vsub.f32 %v3452, %v3453
  %v3455 = vand.u32 %v3454, 4294901760
  %3456 = vmatmul.f32.gmra.mxu0 %v3455
  %v3457 = vpop.f32.mrf.mxu0
  %v3458 = vadd.f32 %v3424, %v3457
  %v3459 = vand.u32 %v3429, 4294901760
  %v3460 = vsub.f32 %v3429, %v3459
  %v3461 = vand.u32 %v3460, 4294901760
  %v3462 = vsub.f32 %v3460, %v3461
  %v3463 = vand.u32 %v3462, 4294901760
  %3464 = vmatmul.f32.gmra.mxu0 %v3463
  %v3465 = vpop.f32.mrf.mxu0
  %v3466 = vadd.f32 %v3424, %v3465
  %3467 = vdwg.mxu0
  %3468 = vmatpush.msra.mxu0 0.0
  %3469 = vmatpush.msra.mxu0 0.0
  %3470 = vmatpush.msra.mxu0 0.0
  %3471 = vmatpush.msra.mxu0 0.0
  %3472 = vmatpush.msra.mxu0 0.0
  %3473 = vmatpush.msra.mxu0 0.0
  %3474 = vmatpush.msra.mxu0 0.0
  %3475 = vmatpush.msra.mxu0 0.0
  %3476 = vmatpush.msra.mxu0 0.0
  %3477 = vmatpush.msra.mxu0 0.0
  %3478 = vmatpush.msra.mxu0 0.0
  %3479 = vmatpush.msra.mxu0 0.0
  %v3480 = vand.u32 %v246, 4294901760
  %v3481 = vsub.f32 %v246, %v3480
  %v3482 = vand.u32 %v3481, 4294901760
  %v3483 = vsub.f32 %v3481, %v3482
  %v3484 = vand.u32 %v3483, 4294901760
  %3485 = vmatpush.msra.mxu0 %v3484
  %v3486 = vand.u32 %v245, 4294901760
  %v3487 = vsub.f32 %v245, %v3486
  %v3488 = vand.u32 %v3487, 4294901760
  %v3489 = vsub.f32 %v3487, %v3488
  %v3490 = vand.u32 %v3489, 4294901760
  %3491 = vmatpush.msra.mxu0 %v3490
  %v3492 = vand.u32 %v244, 4294901760
  %v3493 = vsub.f32 %v244, %v3492
  %v3494 = vand.u32 %v3493, 4294901760
  %v3495 = vsub.f32 %v3493, %v3494
  %v3496 = vand.u32 %v3495, 4294901760
  %3497 = vmatpush.msra.mxu0 %v3496
  %v3498 = vand.u32 %v243, 4294901760
  %v3499 = vsub.f32 %v243, %v3498
  %v3500 = vand.u32 %v3499, 4294901760
  %v3501 = vsub.f32 %v3499, %v3500
  %v3502 = vand.u32 %v3501, 4294901760
  %3503 = vmatpush.msra.mxu0 %v3502
  %v3504 = vand.u32 %v3426, 4294901760
  %3505 = vmatmul.f32.gmra.mxu0 %v3504
  %v3506 = vpop.f32.mrf.mxu0
  %v3507 = vadd.f32 %v3458, %v3506
  %v3508 = vand.u32 %v3429, 4294901760
  %3509 = vmatmul.f32.gmra.mxu0 %v3508
  %v3510 = vpop.f32.mrf.mxu0
  %v3511 = vadd.f32 %v3466, %v3510
  %3512 = vdwg.mxu0
  %3513 = vmatpush.msra.mxu0 0.0
  %3514 = vmatpush.msra.mxu0 0.0
  %3515 = vmatpush.msra.mxu0 0.0
  %3516 = vmatpush.msra.mxu0 0.0
  %3517 = vmatpush.msra.mxu0 0.0
  %3518 = vmatpush.msra.mxu0 0.0
  %3519 = vmatpush.msra.mxu0 0.0
  %3520 = vmatpush.msra.mxu0 0.0
  %3521 = vmatpush.msra.mxu0 0.0
  %3522 = vmatpush.msra.mxu0 0.0
  %3523 = vmatpush.msra.mxu0 0.0
  %3524 = vmatpush.msra.mxu0 0.0
  %v3525 = vand.u32 %v246, 4294901760
  %v3526 = vsub.f32 %v246, %v3525
  %3527 = vmatpush.msra.mxu0 %v3526
  %v3528 = vand.u32 %v245, 4294901760
  %v3529 = vsub.f32 %v245, %v3528
  %3530 = vmatpush.msra.mxu0 %v3529
  %v3531 = vand.u32 %v244, 4294901760
  %v3532 = vsub.f32 %v244, %v3531
  %3533 = vmatpush.msra.mxu0 %v3532
  %v3534 = vand.u32 %v243, 4294901760
  %v3535 = vsub.f32 %v243, %v3534
  %3536 = vmatpush.msra.mxu0 %v3535
  %v3537 = vand.u32 %v3426, 4294901760
  %v3538 = vsub.f32 %v3426, %v3537
  %3539 = vmatmul.f32.gmra.mxu0 %v3538
  %v3540 = vpop.f32.mrf.mxu0
  %v3541 = vadd.f32 %v3507, %v3540
  %v3542 = vand.u32 %v3429, 4294901760
  %v3543 = vsub.f32 %v3429, %v3542
  %3544 = vmatmul.f32.gmra.mxu0 %v3543
  %v3545 = vpop.f32.mrf.mxu0
  %v3546 = vadd.f32 %v3511, %v3545
  %3547 = vdwg.mxu0
  %3548 = vmatpush.msra.mxu0 0.0
  %3549 = vmatpush.msra.mxu0 0.0
  %3550 = vmatpush.msra.mxu0 0.0
  %3551 = vmatpush.msra.mxu0 0.0
  %3552 = vmatpush.msra.mxu0 0.0
  %3553 = vmatpush.msra.mxu0 0.0
  %3554 = vmatpush.msra.mxu0 0.0
  %3555 = vmatpush.msra.mxu0 0.0
  %3556 = vmatpush.msra.mxu0 0.0
  %3557 = vmatpush.msra.mxu0 0.0
  %3558 = vmatpush.msra.mxu0 0.0
  %3559 = vmatpush.msra.mxu0 0.0
  %v3560 = vand.u32 %v246, 4294901760
  %3561 = vmatpush.msra.mxu0 %v3560
  %v3562 = vand.u32 %v245, 4294901760
  %3563 = vmatpush.msra.mxu0 %v3562
  %v3564 = vand.u32 %v244, 4294901760
  %3565 = vmatpush.msra.mxu0 %v3564
  %v3566 = vand.u32 %v243, 4294901760
  %3567 = vmatpush.msra.mxu0 %v3566
  %v3568 = vand.u32 %v3426, 4294901760
  %v3569 = vsub.f32 %v3426, %v3568
  %v3570 = vand.u32 %v3569, 4294901760
  %3571 = vmatmul.f32.gmra.mxu0 %v3570
  %v3572 = vpop.f32.mrf.mxu0
  %v3573 = vadd.f32 %v3541, %v3572
  %v3574 = vand.u32 %v3429, 4294901760
  %v3575 = vsub.f32 %v3429, %v3574
  %v3576 = vand.u32 %v3575, 4294901760
  %3577 = vmatmul.f32.gmra.mxu0 %v3576
  %v3578 = vpop.f32.mrf.mxu0
  %v3579 = vadd.f32 %v3546, %v3578
  %3580 = vdwg.mxu0
  %3581 = vmatpush.msra.mxu0 0.0
  %3582 = vmatpush.msra.mxu0 0.0
  %3583 = vmatpush.msra.mxu0 0.0
  %3584 = vmatpush.msra.mxu0 0.0
  %3585 = vmatpush.msra.mxu0 0.0
  %3586 = vmatpush.msra.mxu0 0.0
  %3587 = vmatpush.msra.mxu0 0.0
  %3588 = vmatpush.msra.mxu0 0.0
  %3589 = vmatpush.msra.mxu0 0.0
  %3590 = vmatpush.msra.mxu0 0.0
  %3591 = vmatpush.msra.mxu0 0.0
  %3592 = vmatpush.msra.mxu0 0.0
  %v3593 = vand.u32 %v246, 4294901760
  %v3594 = vsub.f32 %v246, %v3593
  %v3595 = vand.u32 %v3594, 4294901760
  %3596 = vmatpush.msra.mxu0 %v3595
  %v3597 = vand.u32 %v245, 4294901760
  %v3598 = vsub.f32 %v245, %v3597
  %v3599 = vand.u32 %v3598, 4294901760
  %3600 = vmatpush.msra.mxu0 %v3599
  %v3601 = vand.u32 %v244, 4294901760
  %v3602 = vsub.f32 %v244, %v3601
  %v3603 = vand.u32 %v3602, 4294901760
  %3604 = vmatpush.msra.mxu0 %v3603
  %v3605 = vand.u32 %v243, 4294901760
  %v3606 = vsub.f32 %v243, %v3605
  %v3607 = vand.u32 %v3606, 4294901760
  %3608 = vmatpush.msra.mxu0 %v3607
  %v3609 = vand.u32 %v3426, 4294901760
  %3610 = vmatmul.f32.gmra.mxu0 %v3609
  %v3611 = vpop.f32.mrf.mxu0
  %v3612 = vadd.f32 %v3573, %v3611
  %v3613 = vand.u32 %v3429, 4294901760
  %3614 = vmatmul.f32.gmra.mxu0 %v3613
  %v3615 = vpop.f32.mrf.mxu0
  %v3616 = vadd.f32 %v3579, %v3615
  %3617 = vdwg.mxu0
  %3618 = vmatpush.msra.mxu0 0.0
  %3619 = vmatpush.msra.mxu0 0.0
  %3620 = vmatpush.msra.mxu0 0.0
  %3621 = vmatpush.msra.mxu0 0.0
  %3622 = vmatpush.msra.mxu0 0.0
  %3623 = vmatpush.msra.mxu0 0.0
  %3624 = vmatpush.msra.mxu0 0.0
  %3625 = vmatpush.msra.mxu0 0.0
  %3626 = vmatpush.msra.mxu0 0.0
  %3627 = vmatpush.msra.mxu0 0.0
  %3628 = vmatpush.msra.mxu0 0.0
  %3629 = vmatpush.msra.mxu0 0.0
  %v3630 = vand.u32 %v246, 4294901760
  %3631 = vmatpush.msra.mxu0 %v3630
  %v3632 = vand.u32 %v245, 4294901760
  %3633 = vmatpush.msra.mxu0 %v3632
  %v3634 = vand.u32 %v244, 4294901760
  %3635 = vmatpush.msra.mxu0 %v3634
  %v3636 = vand.u32 %v243, 4294901760
  %3637 = vmatpush.msra.mxu0 %v3636
  %v3638 = vand.u32 %v3426, 4294901760
  %3639 = vmatmul.f32.gmra.mxu0 %v3638
  %v3640 = vpop.f32.mrf.mxu0
  %v3641 = vadd.f32 %v3612, %v3640
  %v3642 = vand.u32 %v3429, 4294901760
  %3643 = vmatmul.f32.gmra.mxu0 %v3642
  %v3644 = vpop.f32.mrf.mxu0
  %v3645 = vadd.f32 %v3616, %v3644
  %3646 = vdwg.mxu0
  %v3647 = vmul.f32 %v3641, 0.5
  %v3648 = vmul.f32 %v3645, 0.5
  %v3649 = vmul.f32 %v3641, 0.70710677
  %v3650 = vmul.f32 %v3645, 0.70710677
  %v3651 = vand.u32 2147483647, %v3649
  %v3652 = vand.u32 2147483647, %v3650
  %v3653 = vmul.f32 %v3651, 0.3275911
  %v3654 = vmul.f32 %v3652, 0.3275911
  %v3655 = vadd.f32 %v3653, 1.0
  %v3656 = vadd.f32 %v3654, 1.0
  %v3657 = vrcp.pop %v3655
  %v3658 = vmul.f32 %v3655, %v3657
  %v3659 = vsub.f32 1.0, %v3658
  %v3660 = vmul.f32 %v3657, %v3659
  %v3661 = vadd.f32 %v3657, %v3660
  %vm3662 = vweird.f32 %v3655
  %vm3663 = vweird.f32 %v3657
  %vm3664 = vmor %vm3662, %vm3663
  %v3665 = vsel %vm3664, %v3657, %v3661
  %v3666 = vand.u32 2147483647, %v3655
  %vm3667 = vcmp.eq.f32.partialorder %v3666, 8.507059e+37
  %v3668 = vand.u32 %v3655, 2147483648
  %v3669 = vor.u32 1.1754944e-38, %v3668
  %v3670 = vsel %vm3667, %v3669, %v3665
  %v3671 = vmul.f32 1.0, %v3670
  %v3672 = vrcp.pop %v3656
  %v3673 = vmul.f32 %v3656, %v3672
  %v3674 = vsub.f32 1.0, %v3673
  %v3675 = vmul.f32 %v3672, %v3674
  %v3676 = vadd.f32 %v3672, %v3675
  %vm3677 = vweird.f32 %v3656
  %vm3678 = vweird.f32 %v3672
  %vm3679 = vmor %vm3677, %vm3678
  %v3680 = vsel %vm3679, %v3672, %v3676
  %v3681 = vand.u32 2147483647, %v3656
  %vm3682 = vcmp.eq.f32.partialorder %v3681, 8.507059e+37
  %v3683 = vand.u32 %v3656, 2147483648
  %v3684 = vor.u32 1.1754944e-38, %v3683
  %v3685 = vsel %vm3682, %v3684, %v3680
  %v3686 = vmul.f32 1.0, %v3685
  %v3687 = vmul.f32 %v3671, 1.0614054
  %v3688 = vmul.f32 %v3686, 1.0614054
  %v3689 = vadd.f32 %v3687, -1.4531521
  %v3690 = vadd.f32 %v3688, -1.4531521
  %v3691 = vmul.f32 %v3689, %v3671
  %v3692 = vmul.f32 %v3690, %v3686
  %v3693 = vadd.f32 %v3691, 1.4214138
  %v3694 = vadd.f32 %v3692, 1.4214138
  %v3695 = vmul.f32 %v3693, %v3671
  %v3696 = vmul.f32 %v3694, %v3686
  %v3697 = vadd.f32 %v3695, -0.28449672
  %v3698 = vadd.f32 %v3696, -0.28449672
  %v3699 = vmul.f32 %v3697, %v3671
  %v3700 = vmul.f32 %v3698, %v3686
  %v3701 = vadd.f32 %v3699, 0.2548296
  %v3702 = vadd.f32 %v3700, 0.2548296
  %v3703 = vmul.f32 %v3701, %v3671
  %v3704 = vmul.f32 %v3702, %v3686
  %v3705 = vsub.f32 0.0, %v3651
  %v3706 = vsub.f32 0.0, %v3652
  %v3707 = vmul.f32 %v3705, %v3651
  %v3708 = vmul.f32 %v3706, %v3652
  %v3709 = vmul.f32 %v3707, 1.442695
  %v3710 = vpow.pop %v3709
  %v3711 = vmul.f32 %v3708, 1.442695
  %v3712 = vpow.pop %v3711
  %v3713 = vmul.f32 %v3703, %v3710
  %v3714 = vmul.f32 %v3704, %v3712
  %v3715 = vsub.f32 1.0, %v3713
  %v3716 = vsub.f32 1.0, %v3714
  %vm3717 = vcmp.ge.f32.partialorder %v3649, 0.0
  %vm3718 = vcmp.ge.f32.partialorder %v3650, 0.0
  %v3719 = vsub.f32 0.0, %v3715
  %v3720 = vsub.f32 0.0, %v3716
  %v3721 = vsel %vm3717, %v3715, %v3719
  %v3722 = vsel %vm3718, %v3716, %v3720
  %v3723 = vadd.f32 %v3721, 1.0
  %v3724 = vadd.f32 %v3722, 1.0
  %v3725 = vmul.f32 %v3647, %v3723
  %v3726 = vmul.f32 %v3648, %v3724
  %v3727 = vperm.slane %v238, 5
  %v3728 = vand.u32 %v237, 4294901760
  %3729 = vmatpush.msra.mxu0 %v3728
  %v3730 = vand.u32 %v236, 4294901760
  %3731 = vmatpush.msra.mxu0 %v3730
  %v3732 = vand.u32 %v235, 4294901760
  %3733 = vmatpush.msra.mxu0 %v3732
  %v3734 = vand.u32 %v234, 4294901760
  %3735 = vmatpush.msra.mxu0 %v3734
  %v3736 = vand.u32 %v233, 4294901760
  %3737 = vmatpush.msra.mxu0 %v3736
  %v3738 = vand.u32 %v232, 4294901760
  %3739 = vmatpush.msra.mxu0 %v3738
  %v3740 = vand.u32 %v231, 4294901760
  %3741 = vmatpush.msra.mxu0 %v3740
  %v3742 = vand.u32 %v230, 4294901760
  %3743 = vmatpush.msra.mxu0 %v3742
  %v3744 = vand.u32 %v229, 4294901760
  %3745 = vmatpush.msra.mxu0 %v3744
  %v3746 = vand.u32 %v228, 4294901760
  %3747 = vmatpush.msra.mxu0 %v3746
  %v3748 = vand.u32 %v227, 4294901760
  %3749 = vmatpush.msra.mxu0 %v3748
  %v3750 = vand.u32 %v226, 4294901760
  %3751 = vmatpush.msra.mxu0 %v3750
  %v3752 = vand.u32 %v225, 4294901760
  %3753 = vmatpush.msra.mxu0 %v3752
  %v3754 = vand.u32 %v224, 4294901760
  %3755 = vmatpush.msra.mxu0 %v3754
  %v3756 = vand.u32 %v223, 4294901760
  %3757 = vmatpush.msra.mxu0 %v3756
  %v3758 = vand.u32 %v222, 4294901760
  %3759 = vmatpush.msra.mxu0 %v3758
  %v3760 = vand.u32 %v3725, 4294901760
  %v3761 = vsub.f32 %v3725, %v3760
  %v3762 = vand.u32 %v3761, 4294901760
  %v3763 = vsub.f32 %v3761, %v3762
  %v3764 = vand.u32 %v3763, 4294901760
  %3765 = vmatmul.f32.gmra.mxu0 %v3764
  %v3766 = vpop.f32.mrf.mxu0
  %v3767 = vadd.f32 %v3727, %v3766
  %v3768 = vand.u32 %v3726, 4294901760
  %v3769 = vsub.f32 %v3726, %v3768
  %v3770 = vand.u32 %v3769, 4294901760
  %v3771 = vsub.f32 %v3769, %v3770
  %v3772 = vand.u32 %v3771, 4294901760
  %3773 = vmatmul.f32.gmra.mxu0 %v3772
  %v3774 = vpop.f32.mrf.mxu0
  %v3775 = vadd.f32 %v3727, %v3774
  %3776 = vdwg.mxu0
  %v3777 = vand.u32 %v237, 4294901760
  %v3778 = vsub.f32 %v237, %v3777
  %v3779 = vand.u32 %v3778, 4294901760
  %v3780 = vsub.f32 %v3778, %v3779
  %v3781 = vand.u32 %v3780, 4294901760
  %3782 = vmatpush.msra.mxu0 %v3781
  %v3783 = vand.u32 %v236, 4294901760
  %v3784 = vsub.f32 %v236, %v3783
  %v3785 = vand.u32 %v3784, 4294901760
  %v3786 = vsub.f32 %v3784, %v3785
  %v3787 = vand.u32 %v3786, 4294901760
  %3788 = vmatpush.msra.mxu0 %v3787
  %v3789 = vand.u32 %v235, 4294901760
  %v3790 = vsub.f32 %v235, %v3789
  %v3791 = vand.u32 %v3790, 4294901760
  %v3792 = vsub.f32 %v3790, %v3791
  %v3793 = vand.u32 %v3792, 4294901760
  %3794 = vmatpush.msra.mxu0 %v3793
  %v3795 = vand.u32 %v234, 4294901760
  %v3796 = vsub.f32 %v234, %v3795
  %v3797 = vand.u32 %v3796, 4294901760
  %v3798 = vsub.f32 %v3796, %v3797
  %v3799 = vand.u32 %v3798, 4294901760
  %3800 = vmatpush.msra.mxu0 %v3799
  %v3801 = vand.u32 %v233, 4294901760
  %v3802 = vsub.f32 %v233, %v3801
  %v3803 = vand.u32 %v3802, 4294901760
  %v3804 = vsub.f32 %v3802, %v3803
  %v3805 = vand.u32 %v3804, 4294901760
  %3806 = vmatpush.msra.mxu0 %v3805
  %v3807 = vand.u32 %v232, 4294901760
  %v3808 = vsub.f32 %v232, %v3807
  %v3809 = vand.u32 %v3808, 4294901760
  %v3810 = vsub.f32 %v3808, %v3809
  %v3811 = vand.u32 %v3810, 4294901760
  %3812 = vmatpush.msra.mxu0 %v3811
  %v3813 = vand.u32 %v231, 4294901760
  %v3814 = vsub.f32 %v231, %v3813
  %v3815 = vand.u32 %v3814, 4294901760
  %v3816 = vsub.f32 %v3814, %v3815
  %v3817 = vand.u32 %v3816, 4294901760
  %3818 = vmatpush.msra.mxu0 %v3817
  %v3819 = vand.u32 %v230, 4294901760
  %v3820 = vsub.f32 %v230, %v3819
  %v3821 = vand.u32 %v3820, 4294901760
  %v3822 = vsub.f32 %v3820, %v3821
  %v3823 = vand.u32 %v3822, 4294901760
  %3824 = vmatpush.msra.mxu0 %v3823
  %v3825 = vand.u32 %v229, 4294901760
  %v3826 = vsub.f32 %v229, %v3825
  %v3827 = vand.u32 %v3826, 4294901760
  %v3828 = vsub.f32 %v3826, %v3827
  %v3829 = vand.u32 %v3828, 4294901760
  %3830 = vmatpush.msra.mxu0 %v3829
  %v3831 = vand.u32 %v228, 4294901760
  %v3832 = vsub.f32 %v228, %v3831
  %v3833 = vand.u32 %v3832, 4294901760
  %v3834 = vsub.f32 %v3832, %v3833
  %v3835 = vand.u32 %v3834, 4294901760
  %3836 = vmatpush.msra.mxu0 %v3835
  %v3837 = vand.u32 %v227, 4294901760
  %v3838 = vsub.f32 %v227, %v3837
  %v3839 = vand.u32 %v3838, 4294901760
  %v3840 = vsub.f32 %v3838, %v3839
  %v3841 = vand.u32 %v3840, 4294901760
  %3842 = vmatpush.msra.mxu0 %v3841
  %v3843 = vand.u32 %v226, 4294901760
  %v3844 = vsub.f32 %v226, %v3843
  %v3845 = vand.u32 %v3844, 4294901760
  %v3846 = vsub.f32 %v3844, %v3845
  %v3847 = vand.u32 %v3846, 4294901760
  %3848 = vmatpush.msra.mxu0 %v3847
  %v3849 = vand.u32 %v225, 4294901760
  %v3850 = vsub.f32 %v225, %v3849
  %v3851 = vand.u32 %v3850, 4294901760
  %v3852 = vsub.f32 %v3850, %v3851
  %v3853 = vand.u32 %v3852, 4294901760
  %3854 = vmatpush.msra.mxu0 %v3853
  %v3855 = vand.u32 %v224, 4294901760
  %v3856 = vsub.f32 %v224, %v3855
  %v3857 = vand.u32 %v3856, 4294901760
  %v3858 = vsub.f32 %v3856, %v3857
  %v3859 = vand.u32 %v3858, 4294901760
  %3860 = vmatpush.msra.mxu0 %v3859
  %v3861 = vand.u32 %v223, 4294901760
  %v3862 = vsub.f32 %v223, %v3861
  %v3863 = vand.u32 %v3862, 4294901760
  %v3864 = vsub.f32 %v3862, %v3863
  %v3865 = vand.u32 %v3864, 4294901760
  %3866 = vmatpush.msra.mxu0 %v3865
  %v3867 = vand.u32 %v222, 4294901760
  %v3868 = vsub.f32 %v222, %v3867
  %v3869 = vand.u32 %v3868, 4294901760
  %v3870 = vsub.f32 %v3868, %v3869
  %v3871 = vand.u32 %v3870, 4294901760
  %3872 = vmatpush.msra.mxu0 %v3871
  %v3873 = vand.u32 %v3725, 4294901760
  %3874 = vmatmul.f32.gmra.mxu0 %v3873
  %v3875 = vpop.f32.mrf.mxu0
  %v3876 = vadd.f32 %v3767, %v3875
  %v3877 = vand.u32 %v3726, 4294901760
  %3878 = vmatmul.f32.gmra.mxu0 %v3877
  %v3879 = vpop.f32.mrf.mxu0
  %v3880 = vadd.f32 %v3775, %v3879
  %3881 = vdwg.mxu0
  %v3882 = vand.u32 %v237, 4294901760
  %v3883 = vsub.f32 %v237, %v3882
  %3884 = vmatpush.msra.mxu0 %v3883
  %v3885 = vand.u32 %v236, 4294901760
  %v3886 = vsub.f32 %v236, %v3885
  %3887 = vmatpush.msra.mxu0 %v3886
  %v3888 = vand.u32 %v235, 4294901760
  %v3889 = vsub.f32 %v235, %v3888
  %3890 = vmatpush.msra.mxu0 %v3889
  %v3891 = vand.u32 %v234, 4294901760
  %v3892 = vsub.f32 %v234, %v3891
  %3893 = vmatpush.msra.mxu0 %v3892
  %v3894 = vand.u32 %v233, 4294901760
  %v3895 = vsub.f32 %v233, %v3894
  %3896 = vmatpush.msra.mxu0 %v3895
  %v3897 = vand.u32 %v232, 4294901760
  %v3898 = vsub.f32 %v232, %v3897
  %3899 = vmatpush.msra.mxu0 %v3898
  %v3900 = vand.u32 %v231, 4294901760
  %v3901 = vsub.f32 %v231, %v3900
  %3902 = vmatpush.msra.mxu0 %v3901
  %v3903 = vand.u32 %v230, 4294901760
  %v3904 = vsub.f32 %v230, %v3903
  %3905 = vmatpush.msra.mxu0 %v3904
  %v3906 = vand.u32 %v229, 4294901760
  %v3907 = vsub.f32 %v229, %v3906
  %3908 = vmatpush.msra.mxu0 %v3907
  %v3909 = vand.u32 %v228, 4294901760
  %v3910 = vsub.f32 %v228, %v3909
  %3911 = vmatpush.msra.mxu0 %v3910
  %v3912 = vand.u32 %v227, 4294901760
  %v3913 = vsub.f32 %v227, %v3912
  %3914 = vmatpush.msra.mxu0 %v3913
  %v3915 = vand.u32 %v226, 4294901760
  %v3916 = vsub.f32 %v226, %v3915
  %3917 = vmatpush.msra.mxu0 %v3916
  %v3918 = vand.u32 %v225, 4294901760
  %v3919 = vsub.f32 %v225, %v3918
  %3920 = vmatpush.msra.mxu0 %v3919
  %v3921 = vand.u32 %v224, 4294901760
  %v3922 = vsub.f32 %v224, %v3921
  %3923 = vmatpush.msra.mxu0 %v3922
  %v3924 = vand.u32 %v223, 4294901760
  %v3925 = vsub.f32 %v223, %v3924
  %3926 = vmatpush.msra.mxu0 %v3925
  %v3927 = vand.u32 %v222, 4294901760
  %v3928 = vsub.f32 %v222, %v3927
  %3929 = vmatpush.msra.mxu0 %v3928
  %v3930 = vand.u32 %v3725, 4294901760
  %v3931 = vsub.f32 %v3725, %v3930
  %3932 = vmatmul.f32.gmra.mxu0 %v3931
  %v3933 = vpop.f32.mrf.mxu0
  %v3934 = vadd.f32 %v3876, %v3933
  %v3935 = vand.u32 %v3726, 4294901760
  %v3936 = vsub.f32 %v3726, %v3935
  %3937 = vmatmul.f32.gmra.mxu0 %v3936
  %v3938 = vpop.f32.mrf.mxu0
  %v3939 = vadd.f32 %v3880, %v3938
  %3940 = vdwg.mxu0
  %v3941 = vand.u32 %v237, 4294901760
  %3942 = vmatpush.msra.mxu0 %v3941
  %v3943 = vand.u32 %v236, 4294901760
  %3944 = vmatpush.msra.mxu0 %v3943
  %v3945 = vand.u32 %v235, 4294901760
  %3946 = vmatpush.msra.mxu0 %v3945
  %v3947 = vand.u32 %v234, 4294901760
  %3948 = vmatpush.msra.mxu0 %v3947
  %v3949 = vand.u32 %v233, 4294901760
  %3950 = vmatpush.msra.mxu0 %v3949
  %v3951 = vand.u32 %v232, 4294901760
  %3952 = vmatpush.msra.mxu0 %v3951
  %v3953 = vand.u32 %v231, 4294901760
  %3954 = vmatpush.msra.mxu0 %v3953
  %v3955 = vand.u32 %v230, 4294901760
  %3956 = vmatpush.msra.mxu0 %v3955
  %v3957 = vand.u32 %v229, 4294901760
  %3958 = vmatpush.msra.mxu0 %v3957
  %v3959 = vand.u32 %v228, 4294901760
  %3960 = vmatpush.msra.mxu0 %v3959
  %v3961 = vand.u32 %v227, 4294901760
  %3962 = vmatpush.msra.mxu0 %v3961
  %v3963 = vand.u32 %v226, 4294901760
  %3964 = vmatpush.msra.mxu0 %v3963
  %v3965 = vand.u32 %v225, 4294901760
  %3966 = vmatpush.msra.mxu0 %v3965
  %v3967 = vand.u32 %v224, 4294901760
  %3968 = vmatpush.msra.mxu0 %v3967
  %v3969 = vand.u32 %v223, 4294901760
  %3970 = vmatpush.msra.mxu0 %v3969
  %v3971 = vand.u32 %v222, 4294901760
  %3972 = vmatpush.msra.mxu0 %v3971
  %v3973 = vand.u32 %v3725, 4294901760
  %v3974 = vsub.f32 %v3725, %v3973
  %v3975 = vand.u32 %v3974, 4294901760
  %3976 = vmatmul.f32.gmra.mxu0 %v3975
  %v3977 = vpop.f32.mrf.mxu0
  %v3978 = vadd.f32 %v3934, %v3977
  %v3979 = vand.u32 %v3726, 4294901760
  %v3980 = vsub.f32 %v3726, %v3979
  %v3981 = vand.u32 %v3980, 4294901760
  %3982 = vmatmul.f32.gmra.mxu0 %v3981
  %v3983 = vpop.f32.mrf.mxu0
  %v3984 = vadd.f32 %v3939, %v3983
  %3985 = vdwg.mxu0
  %v3986 = vand.u32 %v237, 4294901760
  %v3987 = vsub.f32 %v237, %v3986
  %v3988 = vand.u32 %v3987, 4294901760
  %3989 = vmatpush.msra.mxu0 %v3988
  %v3990 = vand.u32 %v236, 4294901760
  %v3991 = vsub.f32 %v236, %v3990
  %v3992 = vand.u32 %v3991, 4294901760
  %3993 = vmatpush.msra.mxu0 %v3992
  %v3994 = vand.u32 %v235, 4294901760
  %v3995 = vsub.f32 %v235, %v3994
  %v3996 = vand.u32 %v3995, 4294901760
  %3997 = vmatpush.msra.mxu0 %v3996
  %v3998 = vand.u32 %v234, 4294901760
  %v3999 = vsub.f32 %v234, %v3998
  %v4000 = vand.u32 %v3999, 4294901760
  %4001 = vmatpush.msra.mxu0 %v4000
  %v4002 = vand.u32 %v233, 4294901760
  %v4003 = vsub.f32 %v233, %v4002
  %v4004 = vand.u32 %v4003, 4294901760
  %4005 = vmatpush.msra.mxu0 %v4004
  %v4006 = vand.u32 %v232, 4294901760
  %v4007 = vsub.f32 %v232, %v4006
  %v4008 = vand.u32 %v4007, 4294901760
  %4009 = vmatpush.msra.mxu0 %v4008
  %v4010 = vand.u32 %v231, 4294901760
  %v4011 = vsub.f32 %v231, %v4010
  %v4012 = vand.u32 %v4011, 4294901760
  %4013 = vmatpush.msra.mxu0 %v4012
  %v4014 = vand.u32 %v230, 4294901760
  %v4015 = vsub.f32 %v230, %v4014
  %v4016 = vand.u32 %v4015, 4294901760
  %4017 = vmatpush.msra.mxu0 %v4016
  %v4018 = vand.u32 %v229, 4294901760
  %v4019 = vsub.f32 %v229, %v4018
  %v4020 = vand.u32 %v4019, 4294901760
  %4021 = vmatpush.msra.mxu0 %v4020
  %v4022 = vand.u32 %v228, 4294901760
  %v4023 = vsub.f32 %v228, %v4022
  %v4024 = vand.u32 %v4023, 4294901760
  %4025 = vmatpush.msra.mxu0 %v4024
  %v4026 = vand.u32 %v227, 4294901760
  %v4027 = vsub.f32 %v227, %v4026
  %v4028 = vand.u32 %v4027, 4294901760
  %4029 = vmatpush.msra.mxu0 %v4028
  %v4030 = vand.u32 %v226, 4294901760
  %v4031 = vsub.f32 %v226, %v4030
  %v4032 = vand.u32 %v4031, 4294901760
  %4033 = vmatpush.msra.mxu0 %v4032
  %v4034 = vand.u32 %v225, 4294901760
  %v4035 = vsub.f32 %v225, %v4034
  %v4036 = vand.u32 %v4035, 4294901760
  %4037 = vmatpush.msra.mxu0 %v4036
  %v4038 = vand.u32 %v224, 4294901760
  %v4039 = vsub.f32 %v224, %v4038
  %v4040 = vand.u32 %v4039, 4294901760
  %4041 = vmatpush.msra.mxu0 %v4040
  %v4042 = vand.u32 %v223, 4294901760
  %v4043 = vsub.f32 %v223, %v4042
  %v4044 = vand.u32 %v4043, 4294901760
  %4045 = vmatpush.msra.mxu0 %v4044
  %v4046 = vand.u32 %v222, 4294901760
  %v4047 = vsub.f32 %v222, %v4046
  %v4048 = vand.u32 %v4047, 4294901760
  %4049 = vmatpush.msra.mxu0 %v4048
  %v4050 = vand.u32 %v3725, 4294901760
  %4051 = vmatmul.f32.gmra.mxu0 %v4050
  %v4052 = vpop.f32.mrf.mxu0
  %v4053 = vadd.f32 %v3978, %v4052
  %v4054 = vand.u32 %v3726, 4294901760
  %4055 = vmatmul.f32.gmra.mxu0 %v4054
  %v4056 = vpop.f32.mrf.mxu0
  %v4057 = vadd.f32 %v3984, %v4056
  %4058 = vdwg.mxu0
  %v4059 = vand.u32 %v237, 4294901760
  %4060 = vmatpush.msra.mxu0 %v4059
  %v4061 = vand.u32 %v236, 4294901760
  %4062 = vmatpush.msra.mxu0 %v4061
  %v4063 = vand.u32 %v235, 4294901760
  %4064 = vmatpush.msra.mxu0 %v4063
  %v4065 = vand.u32 %v234, 4294901760
  %4066 = vmatpush.msra.mxu0 %v4065
  %v4067 = vand.u32 %v233, 4294901760
  %4068 = vmatpush.msra.mxu0 %v4067
  %v4069 = vand.u32 %v232, 4294901760
  %4070 = vmatpush.msra.mxu0 %v4069
  %v4071 = vand.u32 %v231, 4294901760
  %4072 = vmatpush.msra.mxu0 %v4071
  %v4073 = vand.u32 %v230, 4294901760
  %4074 = vmatpush.msra.mxu0 %v4073
  %v4075 = vand.u32 %v229, 4294901760
  %4076 = vmatpush.msra.mxu0 %v4075
  %v4077 = vand.u32 %v228, 4294901760
  %4078 = vmatpush.msra.mxu0 %v4077
  %v4079 = vand.u32 %v227, 4294901760
  %4080 = vmatpush.msra.mxu0 %v4079
  %v4081 = vand.u32 %v226, 4294901760
  %4082 = vmatpush.msra.mxu0 %v4081
  %v4083 = vand.u32 %v225, 4294901760
  %4084 = vmatpush.msra.mxu0 %v4083
  %v4085 = vand.u32 %v224, 4294901760
  %4086 = vmatpush.msra.mxu0 %v4085
  %v4087 = vand.u32 %v223, 4294901760
  %4088 = vmatpush.msra.mxu0 %v4087
  %v4089 = vand.u32 %v222, 4294901760
  %4090 = vmatpush.msra.mxu0 %v4089
  %v4091 = vand.u32 %v3725, 4294901760
  %4092 = vmatmul.f32.gmra.mxu0 %v4091
  %v4093 = vpop.f32.mrf.mxu0
  %v4094 = vadd.f32 %v4053, %v4093
  %v4095 = vand.u32 %v3726, 4294901760
  %4096 = vmatmul.f32.gmra.mxu0 %v4095
  %v4097 = vpop.f32.mrf.mxu0
  %v4098 = vadd.f32 %v4057, %v4097
  %4099 = vdwg.mxu0
  %v4100 = vadd.f32 %v3422, %v4094
  %v4101 = vadd.f32 %v3423, %v4098
  %v4102 = vsel %vm249, %v4100, 0.0
  %4103 = vadd.xlane.f32.xlu0 %v4102
  %v4104 = vpop.xlane.xlu0 %4103
  %v4105 = vsel %vm249, %v4101, 0.0
  %4106 = vadd.xlane.f32.xlu0 %v4105
  %v4107 = vpop.xlane.xlu0 %4106
  %v4108 = vmul.f32 %v4104, %v3379
  %v4109 = vmul.f32 %v4107, %v3379
  %v4110 = vsub.f32 %v4100, %v4108
  %v4111 = vsub.f32 %v4101, %v4109
  %v4112 = vmul.f32 %v4110, %v4110
  %v4113 = vmul.f32 %v4111, %v4111
  %v4114 = vsel %vm249, %v4112, 0.0
  %4115 = vadd.xlane.f32.xlu0 %v4114
  %v4116 = vpop.xlane.xlu0 %4115
  %v4117 = vsel %vm249, %v4113, 0.0
  %4118 = vadd.xlane.f32.xlu0 %v4117
  %v4119 = vpop.xlane.xlu0 %4118
  %v4120 = vmul.f32 %v4116, %v3379
  %v4121 = vmul.f32 %v4119, %v3379
  %v4122 = vadd.f32 %v4120, 1e-05
  %v4123 = vadd.f32 %v4121, 1e-05
  %v4124 = vrsqrt.pop %v4122
  %v4125 = vmul.f32 %v4124, %v4122
  %v4126 = vmul.f32 %v4125, %v4124
  %v4127 = vmul.f32 0.5, %v4126
  %v4128 = vsub.f32 1.5, %v4127
  %v4129 = vmul.f32 %v4124, %v4128
  %vm4130 = vweird.f32 %v4122
  %vm4131 = vweird.f32 %v4124
  %vm4132 = vmor %vm4130, %vm4131
  %v4133 = vsel %vm4132, %v4124, %v4129
  %v4134 = vrsqrt.pop %v4123
  %v4135 = vmul.f32 %v4134, %v4123
  %v4136 = vmul.f32 %v4135, %v4134
  %v4137 = vmul.f32 0.5, %v4136
  %v4138 = vsub.f32 1.5, %v4137
  %v4139 = vmul.f32 %v4134, %v4138
  %vm4140 = vweird.f32 %v4123
  %vm4141 = vweird.f32 %v4134
  %vm4142 = vmor %vm4140, %vm4141
  %v4143 = vsel %vm4142, %v4134, %v4139
  %v4144 = vmul.f32 %v4110, %v4133
  %v4145 = vmul.f32 %v4111, %v4143
  %v4146 = vperm.slane %v238, 3
  %v4147 = vmul.f32 %v4144, %v4146
  %v4148 = vmul.f32 %v4145, %v4146
  %v4149 = vperm.slane %v238, 4
  %v4150 = vadd.f32 %v4147, %v4149
  %v4151 = vadd.f32 %v4148, %v4149
  %v4152 = vld [vmem:[%s1 + $0xe8] sm:$0xff]
  %v4153 = vld [vmem:[%s1 + $0xf0] sm:$0xff]
  %v4154 = vld [vmem:[%s1 + $0xf8] sm:$0xff]
  %v4155 = vld [vmem:[%s1 + $0x100] sm:$0xff]
  %v4156 = vld [vmem:[%s1 + $0x108] sm:$0xff]
  %v4157 = vld [vmem:[%s1 + $0x110] sm:$0xff]
  %v4158 = vld [vmem:[%s1 + $0x118] sm:$0xff]
  %v4159 = vld [vmem:[%s1 + $0x120] sm:$0xff]
  %v4160 = vld [vmem:[%s1 + $0x128] sm:$0xff]
  %v4161 = vld [vmem:[%s1 + $0x130] sm:$0xff]
  %v4162 = vld [vmem:[%s1 + $0x138] sm:$0xff]
  %v4163 = vld [vmem:[%s1 + $0x140] sm:$0xff]
  %v4164 = vld [vmem:[%s1 + $0x148] sm:$0xff]
  %v4165 = vld [vmem:[%s1 + $0x150] sm:$0xff]
  %v4166 = vld [vmem:[%s1 + $0x158] sm:$0xff]
  %v4167 = vld [vmem:[%s1 + $0x160] sm:$0xff]
  %v4168 = vld [vmem:[%s1 + $0x168] sm:$0xff]
  %v4169 = vld [vmem:[%s1 + $0x170] sm:$0xff]
  %v4170 = vld [vmem:[%s1 + $0x178] sm:$0xff]
  %v4171 = vld [vmem:[%s1 + $0x180] sm:$0xff]
  %v4172 = vld [vmem:[%s1 + $0x188] sm:$0xff]
  %v4173 = vld [vmem:[%s2 + $0x48] sm:$0xff]
  %v4174 = vld [vmem:[%s2 + $0x50] sm:$0xff]
  %v4175 = vld [vmem:[%s2 + $0x58] sm:$0xff]
  %v4176 = vld [vmem:[%s2 + $0x60] sm:$0xff]
  %v4177 = vld [vmem:[%s2 + $0x68] sm:$0xff]
  %v4178 = vld [vmem:[%s2 + $0x70] sm:$0xff]
  %v4179 = vld [vmem:[%s2 + $0x78] sm:$0xff]
  %v4180 = vld [vmem:[%s2 + $0x80] sm:$0xff]
  %v4181 = vld [vmem:[%s2 + $0x88] sm:$0xff]
  %v4182 = vperm.slane %v4181, 0
  %v4184 = vsel %vm249, %v4150, 0
  %v4187 = vsel %vm249, %v4151, 0
  %4189 = vmatpush.msra.mxu0 0.0
  %4190 = vmatpush.msra.mxu0 0.0
  %4191 = vmatpush.msra.mxu0 0.0
  %4192 = vmatpush.msra.mxu0 0.0
  %4193 = vmatpush.msra.mxu0 0.0
  %4194 = vmatpush.msra.mxu0 0.0
  %4195 = vmatpush.msra.mxu0 0.0
  %4196 = vmatpush.msra.mxu0 0.0
  %4197 = vmatpush.msra.mxu0 0.0
  %4198 = vmatpush.msra.mxu0 0.0
  %4199 = vmatpush.msra.mxu0 0.0
  %4200 = vmatpush.msra.mxu0 0.0
  %v4201 = vand.u32 %v4176, 4294901760
  %4202 = vmatpush.msra.mxu0 %v4201
  %v4203 = vand.u32 %v4175, 4294901760
  %4204 = vmatpush.msra.mxu0 %v4203
  %v4205 = vand.u32 %v4174, 4294901760
  %4206 = vmatpush.msra.mxu0 %v4205
  %v4207 = vand.u32 %v4173, 4294901760
  %4208 = vmatpush.msra.mxu0 %v4207
  %v4209 = vand.u32 %v4184, 4294901760
  %v4210 = vsub.f32 %v4184, %v4209
  %v4211 = vand.u32 %v4210, 4294901760
  %v4212 = vsub.f32 %v4210, %v4211
  %v4213 = vand.u32 %v4212, 4294901760
  %4214 = vmatmul.f32.gmra.mxu0 %v4213
  %v4215 = vpop.f32.mrf.mxu0
  %v4216 = vadd.f32 %v4182, %v4215
  %v4217 = vand.u32 %v4187, 4294901760
  %v4218 = vsub.f32 %v4187, %v4217
  %v4219 = vand.u32 %v4218, 4294901760
  %v4220 = vsub.f32 %v4218, %v4219
  %v4221 = vand.u32 %v4220, 4294901760
  %4222 = vmatmul.f32.gmra.mxu0 %v4221
  %v4223 = vpop.f32.mrf.mxu0
  %v4224 = vadd.f32 %v4182, %v4223
  %4225 = vdwg.mxu0
  %4226 = vmatpush.msra.mxu0 0.0
  %4227 = vmatpush.msra.mxu0 0.0
  %4228 = vmatpush.msra.mxu0 0.0
  %4229 = vmatpush.msra.mxu0 0.0
  %4230 = vmatpush.msra.mxu0 0.0
  %4231 = vmatpush.msra.mxu0 0.0
  %4232 = vmatpush.msra.mxu0 0.0
  %4233 = vmatpush.msra.mxu0 0.0
  %4234 = vmatpush.msra.mxu0 0.0
  %4235 = vmatpush.msra.mxu0 0.0
  %4236 = vmatpush.msra.mxu0 0.0
  %4237 = vmatpush.msra.mxu0 0.0
  %v4238 = vand.u32 %v4176, 4294901760
  %v4239 = vsub.f32 %v4176, %v4238
  %v4240 = vand.u32 %v4239, 4294901760
  %v4241 = vsub.f32 %v4239, %v4240
  %v4242 = vand.u32 %v4241, 4294901760
  %4243 = vmatpush.msra.mxu0 %v4242
  %v4244 = vand.u32 %v4175, 4294901760
  %v4245 = vsub.f32 %v4175, %v4244
  %v4246 = vand.u32 %v4245, 4294901760
  %v4247 = vsub.f32 %v4245, %v4246
  %v4248 = vand.u32 %v4247, 4294901760
  %4249 = vmatpush.msra.mxu0 %v4248
  %v4250 = vand.u32 %v4174, 4294901760
  %v4251 = vsub.f32 %v4174, %v4250
  %v4252 = vand.u32 %v4251, 4294901760
  %v4253 = vsub.f32 %v4251, %v4252
  %v4254 = vand.u32 %v4253, 4294901760
  %4255 = vmatpush.msra.mxu0 %v4254
  %v4256 = vand.u32 %v4173, 4294901760
  %v4257 = vsub.f32 %v4173, %v4256
  %v4258 = vand.u32 %v4257, 4294901760
  %v4259 = vsub.f32 %v4257, %v4258
  %v4260 = vand.u32 %v4259, 4294901760
  %4261 = vmatpush.msra.mxu0 %v4260
  %v4262 = vand.u32 %v4184, 4294901760
  %4263 = vmatmul.f32.gmra.mxu0 %v4262
  %v4264 = vpop.f32.mrf.mxu0
  %v4265 = vadd.f32 %v4216, %v4264
  %v4266 = vand.u32 %v4187, 4294901760
  %4267 = vmatmul.f32.gmra.mxu0 %v4266
  %v4268 = vpop.f32.mrf.mxu0
  %v4269 = vadd.f32 %v4224, %v4268
  %4270 = vdwg.mxu0
  %4271 = vmatpush.msra.mxu0 0.0
  %4272 = vmatpush.msra.mxu0 0.0
  %4273 = vmatpush.msra.mxu0 0.0
  %4274 = vmatpush.msra.mxu0 0.0
  %4275 = vmatpush.msra.mxu0 0.0
  %4276 = vmatpush.msra.mxu0 0.0
  %4277 = vmatpush.msra.mxu0 0.0
  %4278 = vmatpush.msra.mxu0 0.0
  %4279 = vmatpush.msra.mxu0 0.0
  %4280 = vmatpush.msra.mxu0 0.0
  %4281 = vmatpush.msra.mxu0 0.0
  %4282 = vmatpush.msra.mxu0 0.0
  %v4283 = vand.u32 %v4176, 4294901760
  %v4284 = vsub.f32 %v4176, %v4283
  %4285 = vmatpush.msra.mxu0 %v4284
  %v4286 = vand.u32 %v4175, 4294901760
  %v4287 = vsub.f32 %v4175, %v4286
  %4288 = vmatpush.msra.mxu0 %v4287
  %v4289 = vand.u32 %v4174, 4294901760
  %v4290 = vsub.f32 %v4174, %v4289
  %4291 = vmatpush.msra.mxu0 %v4290
  %v4292 = vand.u32 %v4173, 4294901760
  %v4293 = vsub.f32 %v4173, %v4292
  %4294 = vmatpush.msra.mxu0 %v4293
  %v4295 = vand.u32 %v4184, 4294901760
  %v4296 = vsub.f32 %v4184, %v4295
  %4297 = vmatmul.f32.gmra.mxu0 %v4296
  %v4298 = vpop.f32.mrf.mxu0
  %v4299 = vadd.f32 %v4265, %v4298
  %v4300 = vand.u32 %v4187, 4294901760
  %v4301 = vsub.f32 %v4187, %v4300
  %4302 = vmatmul.f32.gmra.mxu0 %v4301
  %v4303 = vpop.f32.mrf.mxu0
  %v4304 = vadd.f32 %v4269, %v4303
  %4305 = vdwg.mxu0
  %4306 = vmatpush.msra.mxu0 0.0
  %4307 = vmatpush.msra.mxu0 0.0
  %4308 = vmatpush.msra.mxu0 0.0
  %4309 = vmatpush.msra.mxu0 0.0
  %4310 = vmatpush.msra.mxu0 0.0
  %4311 = vmatpush.msra.mxu0 0.0
  %4312 = vmatpush.msra.mxu0 0.0
  %4313 = vmatpush.msra.mxu0 0.0
  %4314 = vmatpush.msra.mxu0 0.0
  %4315 = vmatpush.msra.mxu0 0.0
  %4316 = vmatpush.msra.mxu0 0.0
  %4317 = vmatpush.msra.mxu0 0.0
  %v4318 = vand.u32 %v4176, 4294901760
  %4319 = vmatpush.msra.mxu0 %v4318
  %v4320 = vand.u32 %v4175, 4294901760
  %4321 = vmatpush.msra.mxu0 %v4320
  %v4322 = vand.u32 %v4174, 4294901760
  %4323 = vmatpush.msra.mxu0 %v4322
  %v4324 = vand.u32 %v4173, 4294901760
  %4325 = vmatpush.msra.mxu0 %v4324
  %v4326 = vand.u32 %v4184, 4294901760
  %v4327 = vsub.f32 %v4184, %v4326
  %v4328 = vand.u32 %v4327, 4294901760
  %4329 = vmatmul.f32.gmra.mxu0 %v4328
  %v4330 = vpop.f32.mrf.mxu0
  %v4331 = vadd.f32 %v4299, %v4330
  %v4332 = vand.u32 %v4187, 4294901760
  %v4333 = vsub.f32 %v4187, %v4332
  %v4334 = vand.u32 %v4333, 4294901760
  %4335 = vmatmul.f32.gmra.mxu0 %v4334
  %v4336 = vpop.f32.mrf.mxu0
  %v4337 = vadd.f32 %v4304, %v4336
  %4338 = vdwg.mxu0
  %4339 = vmatpush.msra.mxu0 0.0
  %4340 = vmatpush.msra.mxu0 0.0
  %4341 = vmatpush.msra.mxu0 0.0
  %4342 = vmatpush.msra.mxu0 0.0
  %4343 = vmatpush.msra.mxu0 0.0
  %4344 = vmatpush.msra.mxu0 0.0
  %4345 = vmatpush.msra.mxu0 0.0
  %4346 = vmatpush.msra.mxu0 0.0
  %4347 = vmatpush.msra.mxu0 0.0
  %4348 = vmatpush.msra.mxu0 0.0
  %4349 = vmatpush.msra.mxu0 0.0
  %4350 = vmatpush.msra.mxu0 0.0
  %v4351 = vand.u32 %v4176, 4294901760
  %v4352 = vsub.f32 %v4176, %v4351
  %v4353 = vand.u32 %v4352, 4294901760
  %4354 = vmatpush.msra.mxu0 %v4353
  %v4355 = vand.u32 %v4175, 4294901760
  %v4356 = vsub.f32 %v4175, %v4355
  %v4357 = vand.u32 %v4356, 4294901760
  %4358 = vmatpush.msra.mxu0 %v4357
  %v4359 = vand.u32 %v4174, 4294901760
  %v4360 = vsub.f32 %v4174, %v4359
  %v4361 = vand.u32 %v4360, 4294901760
  %4362 = vmatpush.msra.mxu0 %v4361
  %v4363 = vand.u32 %v4173, 4294901760
  %v4364 = vsub.f32 %v4173, %v4363
  %v4365 = vand.u32 %v4364, 4294901760
  %4366 = vmatpush.msra.mxu0 %v4365
  %v4367 = vand.u32 %v4184, 4294901760
  %4368 = vmatmul.f32.gmra.mxu0 %v4367
  %v4369 = vpop.f32.mrf.mxu0
  %v4370 = vadd.f32 %v4331, %v4369
  %v4371 = vand.u32 %v4187, 4294901760
  %4372 = vmatmul.f32.gmra.mxu0 %v4371
  %v4373 = vpop.f32.mrf.mxu0
  %v4374 = vadd.f32 %v4337, %v4373
  %4375 = vdwg.mxu0
  %4376 = vmatpush.msra.mxu0 0.0
  %4377 = vmatpush.msra.mxu0 0.0
  %4378 = vmatpush.msra.mxu0 0.0
  %4379 = vmatpush.msra.mxu0 0.0
  %4380 = vmatpush.msra.mxu0 0.0
  %4381 = vmatpush.msra.mxu0 0.0
  %4382 = vmatpush.msra.mxu0 0.0
  %4383 = vmatpush.msra.mxu0 0.0
  %4384 = vmatpush.msra.mxu0 0.0
  %4385 = vmatpush.msra.mxu0 0.0
  %4386 = vmatpush.msra.mxu0 0.0
  %4387 = vmatpush.msra.mxu0 0.0
  %v4388 = vand.u32 %v4176, 4294901760
  %4389 = vmatpush.msra.mxu0 %v4388
  %v4390 = vand.u32 %v4175, 4294901760
  %4391 = vmatpush.msra.mxu0 %v4390
  %v4392 = vand.u32 %v4174, 4294901760
  %4393 = vmatpush.msra.mxu0 %v4392
  %v4394 = vand.u32 %v4173, 4294901760
  %4395 = vmatpush.msra.mxu0 %v4394
  %v4396 = vand.u32 %v4184, 4294901760
  %4397 = vmatmul.f32.gmra.mxu0 %v4396
  %v4398 = vpop.f32.mrf.mxu0
  %v4399 = vadd.f32 %v4370, %v4398
  %v4400 = vand.u32 %v4187, 4294901760
  %4401 = vmatmul.f32.gmra.mxu0 %v4400
  %v4402 = vpop.f32.mrf.mxu0
  %v4403 = vadd.f32 %v4374, %v4402
  %4404 = vdwg.mxu0
  %4407 = vrot.lane.b32.xlu0 %v4399, 120
  %v4408 = vpop.permute.xlu0 %4407
  %4409 = vrot.lane.b32.xlu0 %v4403, 120
  %v4410 = vpop.permute.xlu0 %4409
  %4411 = vrot.lane.b32.xlu0 %v4399, 112
  %v4412 = vpop.permute.xlu0 %4411
  %4413 = vrot.lane.b32.xlu0 %v4403, 112
  %v4414 = vpop.permute.xlu0 %4413
  %4415 = vrot.lane.b32.xlu0 %v4399, 104
  %v4416 = vpop.permute.xlu0 %4415
  %4417 = vrot.lane.b32.xlu0 %v4403, 104
  %v4418 = vpop.permute.xlu0 %4417
  %4419 = vrot.lane.b32.xlu0 %v4399, 96
  %v4420 = vpop.permute.xlu0 %4419
  %v4421 = vsel %vm488, %v4399, 0
  %v4423 = vsel %vm488, %v4420, 0
  %4425 = vmatpush.xpose.msra.mxu0 0.0
  %4426 = vmatpush.xpose.msra.mxu0 0.0
  %4427 = vmatpush.xpose.msra.mxu0 0.0
  %4428 = vmatpush.xpose.msra.mxu0 0.0
  %4429 = vmatpush.xpose.msra.mxu0 0.0
  %4430 = vmatpush.xpose.msra.mxu0 0.0
  %4431 = vmatpush.xpose.msra.mxu0 0.0
  %4432 = vmatpush.xpose.msra.mxu0 0.0
  %4433 = vmatpush.xpose.msra.mxu0 0.0
  %4434 = vmatpush.xpose.msra.mxu0 0.0
  %4435 = vmatpush.xpose.msra.mxu0 0.0
  %4436 = vmatpush.xpose.msra.mxu0 0.0
  %4437 = vmatpush.xpose.msra.mxu0 0.0
  %4438 = vmatpush.xpose.msra.mxu0 0.0
  %4439 = vmatpush.xpose.msra.mxu0 0.0
  %v4440 = vand.u32 %v4423, 4294901760
  %4441 = vmatpush.xpose.msra.mxu0 %v4440
  %v4442 = vand.u32 %v4421, 4294901760
  %v4443 = vsub.f32 %v4421, %v4442
  %v4444 = vand.u32 %v4443, 4294901760
  %v4445 = vsub.f32 %v4443, %v4444
  %v4446 = vand.u32 %v4445, 4294901760
  %4447 = vmatmul.f32.gmra.mxu0 %v4446
  %v4448 = vpop.f32.mrf.mxu0
  %v4449 = vadd.f32 0.0, %v4448
  %4450 = vdwg.mxu0
  %4451 = vmatpush.xpose.msra.mxu0 0.0
  %4452 = vmatpush.xpose.msra.mxu0 0.0
  %4453 = vmatpush.xpose.msra.mxu0 0.0
  %4454 = vmatpush.xpose.msra.mxu0 0.0
  %4455 = vmatpush.xpose.msra.mxu0 0.0
  %4456 = vmatpush.xpose.msra.mxu0 0.0
  %4457 = vmatpush.xpose.msra.mxu0 0.0
  %4458 = vmatpush.xpose.msra.mxu0 0.0
  %4459 = vmatpush.xpose.msra.mxu0 0.0
  %4460 = vmatpush.xpose.msra.mxu0 0.0
  %4461 = vmatpush.xpose.msra.mxu0 0.0
  %4462 = vmatpush.xpose.msra.mxu0 0.0
  %4463 = vmatpush.xpose.msra.mxu0 0.0
  %4464 = vmatpush.xpose.msra.mxu0 0.0
  %4465 = vmatpush.xpose.msra.mxu0 0.0
  %v4466 = vand.u32 %v4423, 4294901760
  %v4467 = vsub.f32 %v4423, %v4466
  %v4468 = vand.u32 %v4467, 4294901760
  %v4469 = vsub.f32 %v4467, %v4468
  %v4470 = vand.u32 %v4469, 4294901760
  %4471 = vmatpush.xpose.msra.mxu0 %v4470
  %v4472 = vand.u32 %v4421, 4294901760
  %4473 = vmatmul.f32.gmra.mxu0 %v4472
  %v4474 = vpop.f32.mrf.mxu0
  %v4475 = vadd.f32 %v4449, %v4474
  %4476 = vdwg.mxu0
  %4477 = vmatpush.xpose.msra.mxu0 0.0
  %4478 = vmatpush.xpose.msra.mxu0 0.0
  %4479 = vmatpush.xpose.msra.mxu0 0.0
  %4480 = vmatpush.xpose.msra.mxu0 0.0
  %4481 = vmatpush.xpose.msra.mxu0 0.0
  %4482 = vmatpush.xpose.msra.mxu0 0.0
  %4483 = vmatpush.xpose.msra.mxu0 0.0
  %4484 = vmatpush.xpose.msra.mxu0 0.0
  %4485 = vmatpush.xpose.msra.mxu0 0.0
  %4486 = vmatpush.xpose.msra.mxu0 0.0
  %4487 = vmatpush.xpose.msra.mxu0 0.0
  %4488 = vmatpush.xpose.msra.mxu0 0.0
  %4489 = vmatpush.xpose.msra.mxu0 0.0
  %4490 = vmatpush.xpose.msra.mxu0 0.0
  %4491 = vmatpush.xpose.msra.mxu0 0.0
  %v4492 = vand.u32 %v4423, 4294901760
  %v4493 = vsub.f32 %v4423, %v4492
  %4494 = vmatpush.xpose.msra.mxu0 %v4493
  %v4495 = vand.u32 %v4421, 4294901760
  %v4496 = vsub.f32 %v4421, %v4495
  %4497 = vmatmul.f32.gmra.mxu0 %v4496
  %v4498 = vpop.f32.mrf.mxu0
  %v4499 = vadd.f32 %v4475, %v4498
  %4500 = vdwg.mxu0
  %4501 = vmatpush.xpose.msra.mxu0 0.0
  %4502 = vmatpush.xpose.msra.mxu0 0.0
  %4503 = vmatpush.xpose.msra.mxu0 0.0
  %4504 = vmatpush.xpose.msra.mxu0 0.0
  %4505 = vmatpush.xpose.msra.mxu0 0.0
  %4506 = vmatpush.xpose.msra.mxu0 0.0
  %4507 = vmatpush.xpose.msra.mxu0 0.0
  %4508 = vmatpush.xpose.msra.mxu0 0.0
  %4509 = vmatpush.xpose.msra.mxu0 0.0
  %4510 = vmatpush.xpose.msra.mxu0 0.0
  %4511 = vmatpush.xpose.msra.mxu0 0.0
  %4512 = vmatpush.xpose.msra.mxu0 0.0
  %4513 = vmatpush.xpose.msra.mxu0 0.0
  %4514 = vmatpush.xpose.msra.mxu0 0.0
  %4515 = vmatpush.xpose.msra.mxu0 0.0
  %v4516 = vand.u32 %v4423, 4294901760
  %4517 = vmatpush.xpose.msra.mxu0 %v4516
  %v4518 = vand.u32 %v4421, 4294901760
  %v4519 = vsub.f32 %v4421, %v4518
  %v4520 = vand.u32 %v4519, 4294901760
  %4521 = vmatmul.f32.gmra.mxu0 %v4520
  %v4522 = vpop.f32.mrf.mxu0
  %v4523 = vadd.f32 %v4499, %v4522
  %4524 = vdwg.mxu0
  %4525 = vmatpush.xpose.msra.mxu0 0.0
  %4526 = vmatpush.xpose.msra.mxu0 0.0
  %4527 = vmatpush.xpose.msra.mxu0 0.0
  %4528 = vmatpush.xpose.msra.mxu0 0.0
  %4529 = vmatpush.xpose.msra.mxu0 0.0
  %4530 = vmatpush.xpose.msra.mxu0 0.0
  %4531 = vmatpush.xpose.msra.mxu0 0.0
  %4532 = vmatpush.xpose.msra.mxu0 0.0
  %4533 = vmatpush.xpose.msra.mxu0 0.0
  %4534 = vmatpush.xpose.msra.mxu0 0.0
  %4535 = vmatpush.xpose.msra.mxu0 0.0
  %4536 = vmatpush.xpose.msra.mxu0 0.0
  %4537 = vmatpush.xpose.msra.mxu0 0.0
  %4538 = vmatpush.xpose.msra.mxu0 0.0
  %4539 = vmatpush.xpose.msra.mxu0 0.0
  %v4540 = vand.u32 %v4423, 4294901760
  %v4541 = vsub.f32 %v4423, %v4540
  %v4542 = vand.u32 %v4541, 4294901760
  %4543 = vmatpush.xpose.msra.mxu0 %v4542
  %v4544 = vand.u32 %v4421, 4294901760
  %4545 = vmatmul.f32.gmra.mxu0 %v4544
  %v4546 = vpop.f32.mrf.mxu0
  %v4547 = vadd.f32 %v4523, %v4546
  %4548 = vdwg.mxu0
  %4549 = vmatpush.xpose.msra.mxu0 0.0
  %4550 = vmatpush.xpose.msra.mxu0 0.0
  %4551 = vmatpush.xpose.msra.mxu0 0.0
  %4552 = vmatpush.xpose.msra.mxu0 0.0
  %4553 = vmatpush.xpose.msra.mxu0 0.0
  %4554 = vmatpush.xpose.msra.mxu0 0.0
  %4555 = vmatpush.xpose.msra.mxu0 0.0
  %4556 = vmatpush.xpose.msra.mxu0 0.0
  %4557 = vmatpush.xpose.msra.mxu0 0.0
  %4558 = vmatpush.xpose.msra.mxu0 0.0
  %4559 = vmatpush.xpose.msra.mxu0 0.0
  %4560 = vmatpush.xpose.msra.mxu0 0.0
  %4561 = vmatpush.xpose.msra.mxu0 0.0
  %4562 = vmatpush.xpose.msra.mxu0 0.0
  %4563 = vmatpush.xpose.msra.mxu0 0.0
  %v4564 = vand.u32 %v4423, 4294901760
  %4565 = vmatpush.xpose.msra.mxu0 %v4564
  %v4566 = vand.u32 %v4421, 4294901760
  %4567 = vmatmul.f32.gmra.mxu0 %v4566
  %v4568 = vpop.f32.mrf.mxu0
  %v4569 = vadd.f32 %v4547, %v4568
  %4570 = vdwg.mxu0
  %4571 = vrot.lane.b32.xlu0 %v4403, 96
  %v4572 = vpop.permute.xlu0 %4571
  %v4573 = vsel %vm488, %v4403, 0
  %v4575 = vsel %vm488, %v4572, 0
  %4577 = vmatpush.xpose.msra.mxu0 0.0
  %4578 = vmatpush.xpose.msra.mxu0 0.0
  %4579 = vmatpush.xpose.msra.mxu0 0.0
  %4580 = vmatpush.xpose.msra.mxu0 0.0
  %4581 = vmatpush.xpose.msra.mxu0 0.0
  %4582 = vmatpush.xpose.msra.mxu0 0.0
  %4583 = vmatpush.xpose.msra.mxu0 0.0
  %4584 = vmatpush.xpose.msra.mxu0 0.0
  %4585 = vmatpush.xpose.msra.mxu0 0.0
  %4586 = vmatpush.xpose.msra.mxu0 0.0
  %4587 = vmatpush.xpose.msra.mxu0 0.0
  %4588 = vmatpush.xpose.msra.mxu0 0.0
  %4589 = vmatpush.xpose.msra.mxu0 0.0
  %4590 = vmatpush.xpose.msra.mxu0 0.0
  %4591 = vmatpush.xpose.msra.mxu0 0.0
  %v4592 = vand.u32 %v4575, 4294901760
  %4593 = vmatpush.xpose.msra.mxu0 %v4592
  %v4594 = vand.u32 %v4573, 4294901760
  %v4595 = vsub.f32 %v4573, %v4594
  %v4596 = vand.u32 %v4595, 4294901760
  %v4597 = vsub.f32 %v4595, %v4596
  %v4598 = vand.u32 %v4597, 4294901760
  %4599 = vmatmul.f32.gmra.mxu0 %v4598
  %v4600 = vpop.f32.mrf.mxu0
  %v4601 = vadd.f32 0.0, %v4600
  %4602 = vdwg.mxu0
  %4603 = vmatpush.xpose.msra.mxu0 0.0
  %4604 = vmatpush.xpose.msra.mxu0 0.0
  %4605 = vmatpush.xpose.msra.mxu0 0.0
  %4606 = vmatpush.xpose.msra.mxu0 0.0
  %4607 = vmatpush.xpose.msra.mxu0 0.0
  %4608 = vmatpush.xpose.msra.mxu0 0.0
  %4609 = vmatpush.xpose.msra.mxu0 0.0
  %4610 = vmatpush.xpose.msra.mxu0 0.0
  %4611 = vmatpush.xpose.msra.mxu0 0.0
  %4612 = vmatpush.xpose.msra.mxu0 0.0
  %4613 = vmatpush.xpose.msra.mxu0 0.0
  %4614 = vmatpush.xpose.msra.mxu0 0.0
  %4615 = vmatpush.xpose.msra.mxu0 0.0
  %4616 = vmatpush.xpose.msra.mxu0 0.0
  %4617 = vmatpush.xpose.msra.mxu0 0.0
  %v4618 = vand.u32 %v4575, 4294901760
  %v4619 = vsub.f32 %v4575, %v4618
  %v4620 = vand.u32 %v4619, 4294901760
  %v4621 = vsub.f32 %v4619, %v4620
  %v4622 = vand.u32 %v4621, 4294901760
  %4623 = vmatpush.xpose.msra.mxu0 %v4622
  %v4624 = vand.u32 %v4573, 4294901760
  %4625 = vmatmul.f32.gmra.mxu0 %v4624
  %v4626 = vpop.f32.mrf.mxu0
  %v4627 = vadd.f32 %v4601, %v4626
  %4628 = vdwg.mxu0
  %4629 = vmatpush.xpose.msra.mxu0 0.0
  %4630 = vmatpush.xpose.msra.mxu0 0.0
  %4631 = vmatpush.xpose.msra.mxu0 0.0
  %4632 = vmatpush.xpose.msra.mxu0 0.0
  %4633 = vmatpush.xpose.msra.mxu0 0.0
  %4634 = vmatpush.xpose.msra.mxu0 0.0
  %4635 = vmatpush.xpose.msra.mxu0 0.0
  %4636 = vmatpush.xpose.msra.mxu0 0.0
  %4637 = vmatpush.xpose.msra.mxu0 0.0
  %4638 = vmatpush.xpose.msra.mxu0 0.0
  %4639 = vmatpush.xpose.msra.mxu0 0.0
  %4640 = vmatpush.xpose.msra.mxu0 0.0
  %4641 = vmatpush.xpose.msra.mxu0 0.0
  %4642 = vmatpush.xpose.msra.mxu0 0.0
  %4643 = vmatpush.xpose.msra.mxu0 0.0
  %v4644 = vand.u32 %v4575, 4294901760
  %v4645 = vsub.f32 %v4575, %v4644
  %4646 = vmatpush.xpose.msra.mxu0 %v4645
  %v4647 = vand.u32 %v4573, 4294901760
  %v4648 = vsub.f32 %v4573, %v4647
  %4649 = vmatmul.f32.gmra.mxu0 %v4648
  %v4650 = vpop.f32.mrf.mxu0
  %v4651 = vadd.f32 %v4627, %v4650
  %4652 = vdwg.mxu0
  %4653 = vmatpush.xpose.msra.mxu0 0.0
  %4654 = vmatpush.xpose.msra.mxu0 0.0
  %4655 = vmatpush.xpose.msra.mxu0 0.0
  %4656 = vmatpush.xpose.msra.mxu0 0.0
  %4657 = vmatpush.xpose.msra.mxu0 0.0
  %4658 = vmatpush.xpose.msra.mxu0 0.0
  %4659 = vmatpush.xpose.msra.mxu0 0.0
  %4660 = vmatpush.xpose.msra.mxu0 0.0
  %4661 = vmatpush.xpose.msra.mxu0 0.0
  %4662 = vmatpush.xpose.msra.mxu0 0.0
  %4663 = vmatpush.xpose.msra.mxu0 0.0
  %4664 = vmatpush.xpose.msra.mxu0 0.0
  %4665 = vmatpush.xpose.msra.mxu0 0.0
  %4666 = vmatpush.xpose.msra.mxu0 0.0
  %4667 = vmatpush.xpose.msra.mxu0 0.0
  %v4668 = vand.u32 %v4575, 4294901760
  %4669 = vmatpush.xpose.msra.mxu0 %v4668
  %v4670 = vand.u32 %v4573, 4294901760
  %v4671 = vsub.f32 %v4573, %v4670
  %v4672 = vand.u32 %v4671, 4294901760
  %4673 = vmatmul.f32.gmra.mxu0 %v4672
  %v4674 = vpop.f32.mrf.mxu0
  %v4675 = vadd.f32 %v4651, %v4674
  %4676 = vdwg.mxu0
  %4677 = vmatpush.xpose.msra.mxu0 0.0
  %4678 = vmatpush.xpose.msra.mxu0 0.0
  %4679 = vmatpush.xpose.msra.mxu0 0.0
  %4680 = vmatpush.xpose.msra.mxu0 0.0
  %4681 = vmatpush.xpose.msra.mxu0 0.0
  %4682 = vmatpush.xpose.msra.mxu0 0.0
  %4683 = vmatpush.xpose.msra.mxu0 0.0
  %4684 = vmatpush.xpose.msra.mxu0 0.0
  %4685 = vmatpush.xpose.msra.mxu0 0.0
  %4686 = vmatpush.xpose.msra.mxu0 0.0
  %4687 = vmatpush.xpose.msra.mxu0 0.0
  %4688 = vmatpush.xpose.msra.mxu0 0.0
  %4689 = vmatpush.xpose.msra.mxu0 0.0
  %4690 = vmatpush.xpose.msra.mxu0 0.0
  %4691 = vmatpush.xpose.msra.mxu0 0.0
  %v4692 = vand.u32 %v4575, 4294901760
  %v4693 = vsub.f32 %v4575, %v4692
  %v4694 = vand.u32 %v4693, 4294901760
  %4695 = vmatpush.xpose.msra.mxu0 %v4694
  %v4696 = vand.u32 %v4573, 4294901760
  %4697 = vmatmul.f32.gmra.mxu0 %v4696
  %v4698 = vpop.f32.mrf.mxu0
  %v4699 = vadd.f32 %v4675, %v4698
  %4700 = vdwg.mxu0
  %4701 = vmatpush.xpose.msra.mxu0 0.0
  %4702 = vmatpush.xpose.msra.mxu0 0.0
  %4703 = vmatpush.xpose.msra.mxu0 0.0
  %4704 = vmatpush.xpose.msra.mxu0 0.0
  %4705 = vmatpush.xpose.msra.mxu0 0.0
  %4706 = vmatpush.xpose.msra.mxu0 0.0
  %4707 = vmatpush.xpose.msra.mxu0 0.0
  %4708 = vmatpush.xpose.msra.mxu0 0.0
  %4709 = vmatpush.xpose.msra.mxu0 0.0
  %4710 = vmatpush.xpose.msra.mxu0 0.0
  %4711 = vmatpush.xpose.msra.mxu0 0.0
  %4712 = vmatpush.xpose.msra.mxu0 0.0
  %4713 = vmatpush.xpose.msra.mxu0 0.0
  %4714 = vmatpush.xpose.msra.mxu0 0.0
  %4715 = vmatpush.xpose.msra.mxu0 0.0
  %v4716 = vand.u32 %v4575, 4294901760
  %4717 = vmatpush.xpose.msra.mxu0 %v4716
  %v4718 = vand.u32 %v4573, 4294901760
  %4719 = vmatmul.f32.gmra.mxu0 %v4718
  %v4720 = vpop.f32.mrf.mxu0
  %v4721 = vadd.f32 %v4699, %v4720
  %4722 = vdwg.mxu0
  %4723 = vrot.lane.b32.xlu0 %v4408, 96
  %v4724 = vpop.permute.xlu0 %4723
  %v4725 = vsel %vm488, %v4408, 0
  %v4727 = vsel %vm488, %v4724, 0
  %4729 = vmatpush.xpose.msra.mxu0 0.0
  %4730 = vmatpush.xpose.msra.mxu0 0.0
  %4731 = vmatpush.xpose.msra.mxu0 0.0
  %4732 = vmatpush.xpose.msra.mxu0 0.0
  %4733 = vmatpush.xpose.msra.mxu0 0.0
  %4734 = vmatpush.xpose.msra.mxu0 0.0
  %4735 = vmatpush.xpose.msra.mxu0 0.0
  %4736 = vmatpush.xpose.msra.mxu0 0.0
  %4737 = vmatpush.xpose.msra.mxu0 0.0
  %4738 = vmatpush.xpose.msra.mxu0 0.0
  %4739 = vmatpush.xpose.msra.mxu0 0.0
  %4740 = vmatpush.xpose.msra.mxu0 0.0
  %4741 = vmatpush.xpose.msra.mxu0 0.0
  %4742 = vmatpush.xpose.msra.mxu0 0.0
  %4743 = vmatpush.xpose.msra.mxu0 0.0
  %v4744 = vand.u32 %v4727, 4294901760
  %4745 = vmatpush.xpose.msra.mxu0 %v4744
  %v4746 = vand.u32 %v4725, 4294901760
  %v4747 = vsub.f32 %v4725, %v4746
  %v4748 = vand.u32 %v4747, 4294901760
  %v4749 = vsub.f32 %v4747, %v4748
  %v4750 = vand.u32 %v4749, 4294901760
  %4751 = vmatmul.f32.gmra.mxu0 %v4750
  %v4752 = vpop.f32.mrf.mxu0
  %v4753 = vadd.f32 0.0, %v4752
  %4754 = vdwg.mxu0
  %4755 = vmatpush.xpose.msra.mxu0 0.0
  %4756 = vmatpush.xpose.msra.mxu0 0.0
  %4757 = vmatpush.xpose.msra.mxu0 0.0
  %4758 = vmatpush.xpose.msra.mxu0 0.0
  %4759 = vmatpush.xpose.msra.mxu0 0.0
  %4760 = vmatpush.xpose.msra.mxu0 0.0
  %4761 = vmatpush.xpose.msra.mxu0 0.0
  %4762 = vmatpush.xpose.msra.mxu0 0.0
  %4763 = vmatpush.xpose.msra.mxu0 0.0
  %4764 = vmatpush.xpose.msra.mxu0 0.0
  %4765 = vmatpush.xpose.msra.mxu0 0.0
  %4766 = vmatpush.xpose.msra.mxu0 0.0
  %4767 = vmatpush.xpose.msra.mxu0 0.0
  %4768 = vmatpush.xpose.msra.mxu0 0.0
  %4769 = vmatpush.xpose.msra.mxu0 0.0
  %v4770 = vand.u32 %v4727, 4294901760
  %v4771 = vsub.f32 %v4727, %v4770
  %v4772 = vand.u32 %v4771, 4294901760
  %v4773 = vsub.f32 %v4771, %v4772
  %v4774 = vand.u32 %v4773, 4294901760
  %4775 = vmatpush.xpose.msra.mxu0 %v4774
  %v4776 = vand.u32 %v4725, 4294901760
  %4777 = vmatmul.f32.gmra.mxu0 %v4776
  %v4778 = vpop.f32.mrf.mxu0
  %v4779 = vadd.f32 %v4753, %v4778
  %4780 = vdwg.mxu0
  %4781 = vmatpush.xpose.msra.mxu0 0.0
  %4782 = vmatpush.xpose.msra.mxu0 0.0
  %4783 = vmatpush.xpose.msra.mxu0 0.0
  %4784 = vmatpush.xpose.msra.mxu0 0.0
  %4785 = vmatpush.xpose.msra.mxu0 0.0
  %4786 = vmatpush.xpose.msra.mxu0 0.0
  %4787 = vmatpush.xpose.msra.mxu0 0.0
  %4788 = vmatpush.xpose.msra.mxu0 0.0
  %4789 = vmatpush.xpose.msra.mxu0 0.0
  %4790 = vmatpush.xpose.msra.mxu0 0.0
  %4791 = vmatpush.xpose.msra.mxu0 0.0
  %4792 = vmatpush.xpose.msra.mxu0 0.0
  %4793 = vmatpush.xpose.msra.mxu0 0.0
  %4794 = vmatpush.xpose.msra.mxu0 0.0
  %4795 = vmatpush.xpose.msra.mxu0 0.0
  %v4796 = vand.u32 %v4727, 4294901760
  %v4797 = vsub.f32 %v4727, %v4796
  %4798 = vmatpush.xpose.msra.mxu0 %v4797
  %v4799 = vand.u32 %v4725, 4294901760
  %v4800 = vsub.f32 %v4725, %v4799
  %4801 = vmatmul.f32.gmra.mxu0 %v4800
  %v4802 = vpop.f32.mrf.mxu0
  %v4803 = vadd.f32 %v4779, %v4802
  %4804 = vdwg.mxu0
  %4805 = vmatpush.xpose.msra.mxu0 0.0
  %4806 = vmatpush.xpose.msra.mxu0 0.0
  %4807 = vmatpush.xpose.msra.mxu0 0.0
  %4808 = vmatpush.xpose.msra.mxu0 0.0
  %4809 = vmatpush.xpose.msra.mxu0 0.0
  %4810 = vmatpush.xpose.msra.mxu0 0.0
  %4811 = vmatpush.xpose.msra.mxu0 0.0
  %4812 = vmatpush.xpose.msra.mxu0 0.0
  %4813 = vmatpush.xpose.msra.mxu0 0.0
  %4814 = vmatpush.xpose.msra.mxu0 0.0
  %4815 = vmatpush.xpose.msra.mxu0 0.0
  %4816 = vmatpush.xpose.msra.mxu0 0.0
  %4817 = vmatpush.xpose.msra.mxu0 0.0
  %4818 = vmatpush.xpose.msra.mxu0 0.0
  %4819 = vmatpush.xpose.msra.mxu0 0.0
  %v4820 = vand.u32 %v4727, 4294901760
  %4821 = vmatpush.xpose.msra.mxu0 %v4820
  %v4822 = vand.u32 %v4725, 4294901760
  %v4823 = vsub.f32 %v4725, %v4822
  %v4824 = vand.u32 %v4823, 4294901760
  %4825 = vmatmul.f32.gmra.mxu0 %v4824
  %v4826 = vpop.f32.mrf.mxu0
  %v4827 = vadd.f32 %v4803, %v4826
  %4828 = vdwg.mxu0
  %4829 = vmatpush.xpose.msra.mxu0 0.0
  %4830 = vmatpush.xpose.msra.mxu0 0.0
  %4831 = vmatpush.xpose.msra.mxu0 0.0
  %4832 = vmatpush.xpose.msra.mxu0 0.0
  %4833 = vmatpush.xpose.msra.mxu0 0.0
  %4834 = vmatpush.xpose.msra.mxu0 0.0
  %4835 = vmatpush.xpose.msra.mxu0 0.0
  %4836 = vmatpush.xpose.msra.mxu0 0.0
  %4837 = vmatpush.xpose.msra.mxu0 0.0
  %4838 = vmatpush.xpose.msra.mxu0 0.0
  %4839 = vmatpush.xpose.msra.mxu0 0.0
  %4840 = vmatpush.xpose.msra.mxu0 0.0
  %4841 = vmatpush.xpose.msra.mxu0 0.0
  %4842 = vmatpush.xpose.msra.mxu0 0.0
  %4843 = vmatpush.xpose.msra.mxu0 0.0
  %v4844 = vand.u32 %v4727, 4294901760
  %v4845 = vsub.f32 %v4727, %v4844
  %v4846 = vand.u32 %v4845, 4294901760
  %4847 = vmatpush.xpose.msra.mxu0 %v4846
  %v4848 = vand.u32 %v4725, 4294901760
  %4849 = vmatmul.f32.gmra.mxu0 %v4848
  %v4850 = vpop.f32.mrf.mxu0
  %v4851 = vadd.f32 %v4827, %v4850
  %4852 = vdwg.mxu0
  %4853 = vmatpush.xpose.msra.mxu0 0.0
  %4854 = vmatpush.xpose.msra.mxu0 0.0
  %4855 = vmatpush.xpose.msra.mxu0 0.0
  %4856 = vmatpush.xpose.msra.mxu0 0.0
  %4857 = vmatpush.xpose.msra.mxu0 0.0
  %4858 = vmatpush.xpose.msra.mxu0 0.0
  %4859 = vmatpush.xpose.msra.mxu0 0.0
  %4860 = vmatpush.xpose.msra.mxu0 0.0
  %4861 = vmatpush.xpose.msra.mxu0 0.0
  %4862 = vmatpush.xpose.msra.mxu0 0.0
  %4863 = vmatpush.xpose.msra.mxu0 0.0
  %4864 = vmatpush.xpose.msra.mxu0 0.0
  %4865 = vmatpush.xpose.msra.mxu0 0.0
  %4866 = vmatpush.xpose.msra.mxu0 0.0
  %4867 = vmatpush.xpose.msra.mxu0 0.0
  %v4868 = vand.u32 %v4727, 4294901760
  %4869 = vmatpush.xpose.msra.mxu0 %v4868
  %v4870 = vand.u32 %v4725, 4294901760
  %4871 = vmatmul.f32.gmra.mxu0 %v4870
  %v4872 = vpop.f32.mrf.mxu0
  %v4873 = vadd.f32 %v4851, %v4872
  %4874 = vdwg.mxu0
  %4875 = vrot.lane.b32.xlu0 %v4410, 96
  %v4876 = vpop.permute.xlu0 %4875
  %v4877 = vsel %vm488, %v4410, 0
  %v4879 = vsel %vm488, %v4876, 0
  %4881 = vmatpush.xpose.msra.mxu0 0.0
  %4882 = vmatpush.xpose.msra.mxu0 0.0
  %4883 = vmatpush.xpose.msra.mxu0 0.0
  %4884 = vmatpush.xpose.msra.mxu0 0.0
  %4885 = vmatpush.xpose.msra.mxu0 0.0
  %4886 = vmatpush.xpose.msra.mxu0 0.0
  %4887 = vmatpush.xpose.msra.mxu0 0.0
  %4888 = vmatpush.xpose.msra.mxu0 0.0
  %4889 = vmatpush.xpose.msra.mxu0 0.0
  %4890 = vmatpush.xpose.msra.mxu0 0.0
  %4891 = vmatpush.xpose.msra.mxu0 0.0
  %4892 = vmatpush.xpose.msra.mxu0 0.0
  %4893 = vmatpush.xpose.msra.mxu0 0.0
  %4894 = vmatpush.xpose.msra.mxu0 0.0
  %4895 = vmatpush.xpose.msra.mxu0 0.0
  %v4896 = vand.u32 %v4879, 4294901760
  %4897 = vmatpush.xpose.msra.mxu0 %v4896
  %v4898 = vand.u32 %v4877, 4294901760
  %v4899 = vsub.f32 %v4877, %v4898
  %v4900 = vand.u32 %v4899, 4294901760
  %v4901 = vsub.f32 %v4899, %v4900
  %v4902 = vand.u32 %v4901, 4294901760
  %4903 = vmatmul.f32.gmra.mxu0 %v4902
  %v4904 = vpop.f32.mrf.mxu0
  %v4905 = vadd.f32 0.0, %v4904
  %4906 = vdwg.mxu0
  %4907 = vmatpush.xpose.msra.mxu0 0.0
  %4908 = vmatpush.xpose.msra.mxu0 0.0
  %4909 = vmatpush.xpose.msra.mxu0 0.0
  %4910 = vmatpush.xpose.msra.mxu0 0.0
  %4911 = vmatpush.xpose.msra.mxu0 0.0
  %4912 = vmatpush.xpose.msra.mxu0 0.0
  %4913 = vmatpush.xpose.msra.mxu0 0.0
  %4914 = vmatpush.xpose.msra.mxu0 0.0
  %4915 = vmatpush.xpose.msra.mxu0 0.0
  %4916 = vmatpush.xpose.msra.mxu0 0.0
  %4917 = vmatpush.xpose.msra.mxu0 0.0
  %4918 = vmatpush.xpose.msra.mxu0 0.0
  %4919 = vmatpush.xpose.msra.mxu0 0.0
  %4920 = vmatpush.xpose.msra.mxu0 0.0
  %4921 = vmatpush.xpose.msra.mxu0 0.0
  %v4922 = vand.u32 %v4879, 4294901760
  %v4923 = vsub.f32 %v4879, %v4922
  %v4924 = vand.u32 %v4923, 4294901760
  %v4925 = vsub.f32 %v4923, %v4924
  %v4926 = vand.u32 %v4925, 4294901760
  %4927 = vmatpush.xpose.msra.mxu0 %v4926
  %v4928 = vand.u32 %v4877, 4294901760
  %4929 = vmatmul.f32.gmra.mxu0 %v4928
  %v4930 = vpop.f32.mrf.mxu0
  %v4931 = vadd.f32 %v4905, %v4930
  %4932 = vdwg.mxu0
  %4933 = vmatpush.xpose.msra.mxu0 0.0
  %4934 = vmatpush.xpose.msra.mxu0 0.0
  %4935 = vmatpush.xpose.msra.mxu0 0.0
  %4936 = vmatpush.xpose.msra.mxu0 0.0
  %4937 = vmatpush.xpose.msra.mxu0 0.0
  %4938 = vmatpush.xpose.msra.mxu0 0.0
  %4939 = vmatpush.xpose.msra.mxu0 0.0
  %4940 = vmatpush.xpose.msra.mxu0 0.0
  %4941 = vmatpush.xpose.msra.mxu0 0.0
  %4942 = vmatpush.xpose.msra.mxu0 0.0
  %4943 = vmatpush.xpose.msra.mxu0 0.0
  %4944 = vmatpush.xpose.msra.mxu0 0.0
  %4945 = vmatpush.xpose.msra.mxu0 0.0
  %4946 = vmatpush.xpose.msra.mxu0 0.0
  %4947 = vmatpush.xpose.msra.mxu0 0.0
  %v4948 = vand.u32 %v4879, 4294901760
  %v4949 = vsub.f32 %v4879, %v4948
  %4950 = vmatpush.xpose.msra.mxu0 %v4949
  %v4951 = vand.u32 %v4877, 4294901760
  %v4952 = vsub.f32 %v4877, %v4951
  %4953 = vmatmul.f32.gmra.mxu0 %v4952
  %v4954 = vpop.f32.mrf.mxu0
  %v4955 = vadd.f32 %v4931, %v4954
  %4956 = vdwg.mxu0
  %4957 = vmatpush.xpose.msra.mxu0 0.0
  %4958 = vmatpush.xpose.msra.mxu0 0.0
  %4959 = vmatpush.xpose.msra.mxu0 0.0
  %4960 = vmatpush.xpose.msra.mxu0 0.0
  %4961 = vmatpush.xpose.msra.mxu0 0.0
  %4962 = vmatpush.xpose.msra.mxu0 0.0
  %4963 = vmatpush.xpose.msra.mxu0 0.0
  %4964 = vmatpush.xpose.msra.mxu0 0.0
  %4965 = vmatpush.xpose.msra.mxu0 0.0
  %4966 = vmatpush.xpose.msra.mxu0 0.0
  %4967 = vmatpush.xpose.msra.mxu0 0.0
  %4968 = vmatpush.xpose.msra.mxu0 0.0
  %4969 = vmatpush.xpose.msra.mxu0 0.0
  %4970 = vmatpush.xpose.msra.mxu0 0.0
  %4971 = vmatpush.xpose.msra.mxu0 0.0
  %v4972 = vand.u32 %v4879, 4294901760
  %4973 = vmatpush.xpose.msra.mxu0 %v4972
  %v4974 = vand.u32 %v4877, 4294901760
  %v4975 = vsub.f32 %v4877, %v4974
  %v4976 = vand.u32 %v4975, 4294901760
  %4977 = vmatmul.f32.gmra.mxu0 %v4976
  %v4978 = vpop.f32.mrf.mxu0
  %v4979 = vadd.f32 %v4955, %v4978
  %4980 = vdwg.mxu0
  %4981 = vmatpush.xpose.msra.mxu0 0.0
  %4982 = vmatpush.xpose.msra.mxu0 0.0
  %4983 = vmatpush.xpose.msra.mxu0 0.0
  %4984 = vmatpush.xpose.msra.mxu0 0.0
  %4985 = vmatpush.xpose.msra.mxu0 0.0
  %4986 = vmatpush.xpose.msra.mxu0 0.0
  %4987 = vmatpush.xpose.msra.mxu0 0.0
  %4988 = vmatpush.xpose.msra.mxu0 0.0
  %4989 = vmatpush.xpose.msra.mxu0 0.0
  %4990 = vmatpush.xpose.msra.mxu0 0.0
  %4991 = vmatpush.xpose.msra.mxu0 0.0
  %4992 = vmatpush.xpose.msra.mxu0 0.0
  %4993 = vmatpush.xpose.msra.mxu0 0.0
  %4994 = vmatpush.xpose.msra.mxu0 0.0
  %4995 = vmatpush.xpose.msra.mxu0 0.0
  %v4996 = vand.u32 %v4879, 4294901760
  %v4997 = vsub.f32 %v4879, %v4996
  %v4998 = vand.u32 %v4997, 4294901760
  %4999 = vmatpush.xpose.msra.mxu0 %v4998
  %v5000 = vand.u32 %v4877, 4294901760
  %5001 = vmatmul.f32.gmra.mxu0 %v5000
  %v5002 = vpop.f32.mrf.mxu0
  %v5003 = vadd.f32 %v4979, %v5002
  %5004 = vdwg.mxu0
  %5005 = vmatpush.xpose.msra.mxu0 0.0
  %5006 = vmatpush.xpose.msra.mxu0 0.0
  %5007 = vmatpush.xpose.msra.mxu0 0.0
  %5008 = vmatpush.xpose.msra.mxu0 0.0
  %5009 = vmatpush.xpose.msra.mxu0 0.0
  %5010 = vmatpush.xpose.msra.mxu0 0.0
  %5011 = vmatpush.xpose.msra.mxu0 0.0
  %5012 = vmatpush.xpose.msra.mxu0 0.0
  %5013 = vmatpush.xpose.msra.mxu0 0.0
  %5014 = vmatpush.xpose.msra.mxu0 0.0
  %5015 = vmatpush.xpose.msra.mxu0 0.0
  %5016 = vmatpush.xpose.msra.mxu0 0.0
  %5017 = vmatpush.xpose.msra.mxu0 0.0
  %5018 = vmatpush.xpose.msra.mxu0 0.0
  %5019 = vmatpush.xpose.msra.mxu0 0.0
  %v5020 = vand.u32 %v4879, 4294901760
  %5021 = vmatpush.xpose.msra.mxu0 %v5020
  %v5022 = vand.u32 %v4877, 4294901760
  %5023 = vmatmul.f32.gmra.mxu0 %v5022
  %v5024 = vpop.f32.mrf.mxu0
  %v5025 = vadd.f32 %v5003, %v5024
  %5026 = vdwg.mxu0
  %5027 = vrot.lane.b32.xlu0 %v4412, 96
  %v5028 = vpop.permute.xlu0 %5027
  %v5029 = vsel %vm488, %v4412, 0
  %v5031 = vsel %vm488, %v5028, 0
  %5033 = vmatpush.xpose.msra.mxu0 0.0
  %5034 = vmatpush.xpose.msra.mxu0 0.0
  %5035 = vmatpush.xpose.msra.mxu0 0.0
  %5036 = vmatpush.xpose.msra.mxu0 0.0
  %5037 = vmatpush.xpose.msra.mxu0 0.0
  %5038 = vmatpush.xpose.msra.mxu0 0.0
  %5039 = vmatpush.xpose.msra.mxu0 0.0
  %5040 = vmatpush.xpose.msra.mxu0 0.0
  %5041 = vmatpush.xpose.msra.mxu0 0.0
  %5042 = vmatpush.xpose.msra.mxu0 0.0
  %5043 = vmatpush.xpose.msra.mxu0 0.0
  %5044 = vmatpush.xpose.msra.mxu0 0.0
  %5045 = vmatpush.xpose.msra.mxu0 0.0
  %5046 = vmatpush.xpose.msra.mxu0 0.0
  %5047 = vmatpush.xpose.msra.mxu0 0.0
  %v5048 = vand.u32 %v5031, 4294901760
  %5049 = vmatpush.xpose.msra.mxu0 %v5048
  %v5050 = vand.u32 %v5029, 4294901760
  %v5051 = vsub.f32 %v5029, %v5050
  %v5052 = vand.u32 %v5051, 4294901760
  %v5053 = vsub.f32 %v5051, %v5052
  %v5054 = vand.u32 %v5053, 4294901760
  %5055 = vmatmul.f32.gmra.mxu0 %v5054
  %v5056 = vpop.f32.mrf.mxu0
  %v5057 = vadd.f32 0.0, %v5056
  %5058 = vdwg.mxu0
  %5059 = vmatpush.xpose.msra.mxu0 0.0
  %5060 = vmatpush.xpose.msra.mxu0 0.0
  %5061 = vmatpush.xpose.msra.mxu0 0.0
  %5062 = vmatpush.xpose.msra.mxu0 0.0
  %5063 = vmatpush.xpose.msra.mxu0 0.0
  %5064 = vmatpush.xpose.msra.mxu0 0.0
  %5065 = vmatpush.xpose.msra.mxu0 0.0
  %5066 = vmatpush.xpose.msra.mxu0 0.0
  %5067 = vmatpush.xpose.msra.mxu0 0.0
  %5068 = vmatpush.xpose.msra.mxu0 0.0
  %5069 = vmatpush.xpose.msra.mxu0 0.0
  %5070 = vmatpush.xpose.msra.mxu0 0.0
  %5071 = vmatpush.xpose.msra.mxu0 0.0
  %5072 = vmatpush.xpose.msra.mxu0 0.0
  %5073 = vmatpush.xpose.msra.mxu0 0.0
  %v5074 = vand.u32 %v5031, 4294901760
  %v5075 = vsub.f32 %v5031, %v5074
  %v5076 = vand.u32 %v5075, 4294901760
  %v5077 = vsub.f32 %v5075, %v5076
  %v5078 = vand.u32 %v5077, 4294901760
  %5079 = vmatpush.xpose.msra.mxu0 %v5078
  %v5080 = vand.u32 %v5029, 4294901760
  %5081 = vmatmul.f32.gmra.mxu0 %v5080
  %v5082 = vpop.f32.mrf.mxu0
  %v5083 = vadd.f32 %v5057, %v5082
  %5084 = vdwg.mxu0
  %5085 = vmatpush.xpose.msra.mxu0 0.0
  %5086 = vmatpush.xpose.msra.mxu0 0.0
  %5087 = vmatpush.xpose.msra.mxu0 0.0
  %5088 = vmatpush.xpose.msra.mxu0 0.0
  %5089 = vmatpush.xpose.msra.mxu0 0.0
  %5090 = vmatpush.xpose.msra.mxu0 0.0
  %5091 = vmatpush.xpose.msra.mxu0 0.0
  %5092 = vmatpush.xpose.msra.mxu0 0.0
  %5093 = vmatpush.xpose.msra.mxu0 0.0
  %5094 = vmatpush.xpose.msra.mxu0 0.0
  %5095 = vmatpush.xpose.msra.mxu0 0.0
  %5096 = vmatpush.xpose.msra.mxu0 0.0
  %5097 = vmatpush.xpose.msra.mxu0 0.0
  %5098 = vmatpush.xpose.msra.mxu0 0.0
  %5099 = vmatpush.xpose.msra.mxu0 0.0
  %v5100 = vand.u32 %v5031, 4294901760
  %v5101 = vsub.f32 %v5031, %v5100
  %5102 = vmatpush.xpose.msra.mxu0 %v5101
  %v5103 = vand.u32 %v5029, 4294901760
  %v5104 = vsub.f32 %v5029, %v5103
  %5105 = vmatmul.f32.gmra.mxu0 %v5104
  %v5106 = vpop.f32.mrf.mxu0
  %v5107 = vadd.f32 %v5083, %v5106
  %5108 = vdwg.mxu0
  %5109 = vmatpush.xpose.msra.mxu0 0.0
  %5110 = vmatpush.xpose.msra.mxu0 0.0
  %5111 = vmatpush.xpose.msra.mxu0 0.0
  %5112 = vmatpush.xpose.msra.mxu0 0.0
  %5113 = vmatpush.xpose.msra.mxu0 0.0
  %5114 = vmatpush.xpose.msra.mxu0 0.0
  %5115 = vmatpush.xpose.msra.mxu0 0.0
  %5116 = vmatpush.xpose.msra.mxu0 0.0
  %5117 = vmatpush.xpose.msra.mxu0 0.0
  %5118 = vmatpush.xpose.msra.mxu0 0.0
  %5119 = vmatpush.xpose.msra.mxu0 0.0
  %5120 = vmatpush.xpose.msra.mxu0 0.0
  %5121 = vmatpush.xpose.msra.mxu0 0.0
  %5122 = vmatpush.xpose.msra.mxu0 0.0
  %5123 = vmatpush.xpose.msra.mxu0 0.0
  %v5124 = vand.u32 %v5031, 4294901760
  %5125 = vmatpush.xpose.msra.mxu0 %v5124
  %v5126 = vand.u32 %v5029, 4294901760
  %v5127 = vsub.f32 %v5029, %v5126
  %v5128 = vand.u32 %v5127, 4294901760
  %5129 = vmatmul.f32.gmra.mxu0 %v5128
  %v5130 = vpop.f32.mrf.mxu0
  %v5131 = vadd.f32 %v5107, %v5130
  %5132 = vdwg.mxu0
  %5133 = vmatpush.xpose.msra.mxu0 0.0
  %5134 = vmatpush.xpose.msra.mxu0 0.0
  %5135 = vmatpush.xpose.msra.mxu0 0.0
  %5136 = vmatpush.xpose.msra.mxu0 0.0
  %5137 = vmatpush.xpose.msra.mxu0 0.0
  %5138 = vmatpush.xpose.msra.mxu0 0.0
  %5139 = vmatpush.xpose.msra.mxu0 0.0
  %5140 = vmatpush.xpose.msra.mxu0 0.0
  %5141 = vmatpush.xpose.msra.mxu0 0.0
  %5142 = vmatpush.xpose.msra.mxu0 0.0
  %5143 = vmatpush.xpose.msra.mxu0 0.0
  %5144 = vmatpush.xpose.msra.mxu0 0.0
  %5145 = vmatpush.xpose.msra.mxu0 0.0
  %5146 = vmatpush.xpose.msra.mxu0 0.0
  %5147 = vmatpush.xpose.msra.mxu0 0.0
  %v5148 = vand.u32 %v5031, 4294901760
  %v5149 = vsub.f32 %v5031, %v5148
  %v5150 = vand.u32 %v5149, 4294901760
  %5151 = vmatpush.xpose.msra.mxu0 %v5150
  %v5152 = vand.u32 %v5029, 4294901760
  %5153 = vmatmul.f32.gmra.mxu0 %v5152
  %v5154 = vpop.f32.mrf.mxu0
  %v5155 = vadd.f32 %v5131, %v5154
  %5156 = vdwg.mxu0
  %5157 = vmatpush.xpose.msra.mxu0 0.0
  %5158 = vmatpush.xpose.msra.mxu0 0.0
  %5159 = vmatpush.xpose.msra.mxu0 0.0
  %5160 = vmatpush.xpose.msra.mxu0 0.0
  %5161 = vmatpush.xpose.msra.mxu0 0.0
  %5162 = vmatpush.xpose.msra.mxu0 0.0
  %5163 = vmatpush.xpose.msra.mxu0 0.0
  %5164 = vmatpush.xpose.msra.mxu0 0.0
  %5165 = vmatpush.xpose.msra.mxu0 0.0
  %5166 = vmatpush.xpose.msra.mxu0 0.0
  %5167 = vmatpush.xpose.msra.mxu0 0.0
  %5168 = vmatpush.xpose.msra.mxu0 0.0
  %5169 = vmatpush.xpose.msra.mxu0 0.0
  %5170 = vmatpush.xpose.msra.mxu0 0.0
  %5171 = vmatpush.xpose.msra.mxu0 0.0
  %v5172 = vand.u32 %v5031, 4294901760
  %5173 = vmatpush.xpose.msra.mxu0 %v5172
  %v5174 = vand.u32 %v5029, 4294901760
  %5175 = vmatmul.f32.gmra.mxu0 %v5174
  %v5176 = vpop.f32.mrf.mxu0
  %v5177 = vadd.f32 %v5155, %v5176
  %5178 = vdwg.mxu0
  %5179 = vrot.lane.b32.xlu0 %v4414, 96
  %v5180 = vpop.permute.xlu0 %5179
  %v5181 = vsel %vm488, %v4414, 0
  %v5183 = vsel %vm488, %v5180, 0
  %5185 = vmatpush.xpose.msra.mxu0 0.0
  %5186 = vmatpush.xpose.msra.mxu0 0.0
  %5187 = vmatpush.xpose.msra.mxu0 0.0
  %5188 = vmatpush.xpose.msra.mxu0 0.0
  %5189 = vmatpush.xpose.msra.mxu0 0.0
  %5190 = vmatpush.xpose.msra.mxu0 0.0
  %5191 = vmatpush.xpose.msra.mxu0 0.0
  %5192 = vmatpush.xpose.msra.mxu0 0.0
  %5193 = vmatpush.xpose.msra.mxu0 0.0
  %5194 = vmatpush.xpose.msra.mxu0 0.0
  %5195 = vmatpush.xpose.msra.mxu0 0.0
  %5196 = vmatpush.xpose.msra.mxu0 0.0
  %5197 = vmatpush.xpose.msra.mxu0 0.0
  %5198 = vmatpush.xpose.msra.mxu0 0.0
  %5199 = vmatpush.xpose.msra.mxu0 0.0
  %v5200 = vand.u32 %v5183, 4294901760
  %5201 = vmatpush.xpose.msra.mxu0 %v5200
  %v5202 = vand.u32 %v5181, 4294901760
  %v5203 = vsub.f32 %v5181, %v5202
  %v5204 = vand.u32 %v5203, 4294901760
  %v5205 = vsub.f32 %v5203, %v5204
  %v5206 = vand.u32 %v5205, 4294901760
  %5207 = vmatmul.f32.gmra.mxu0 %v5206
  %v5208 = vpop.f32.mrf.mxu0
  %v5209 = vadd.f32 0.0, %v5208
  %5210 = vdwg.mxu0
  %5211 = vmatpush.xpose.msra.mxu0 0.0
  %5212 = vmatpush.xpose.msra.mxu0 0.0
  %5213 = vmatpush.xpose.msra.mxu0 0.0
  %5214 = vmatpush.xpose.msra.mxu0 0.0
  %5215 = vmatpush.xpose.msra.mxu0 0.0
  %5216 = vmatpush.xpose.msra.mxu0 0.0
  %5217 = vmatpush.xpose.msra.mxu0 0.0
  %5218 = vmatpush.xpose.msra.mxu0 0.0
  %5219 = vmatpush.xpose.msra.mxu0 0.0
  %5220 = vmatpush.xpose.msra.mxu0 0.0
  %5221 = vmatpush.xpose.msra.mxu0 0.0
  %5222 = vmatpush.xpose.msra.mxu0 0.0
  %5223 = vmatpush.xpose.msra.mxu0 0.0
  %5224 = vmatpush.xpose.msra.mxu0 0.0
  %5225 = vmatpush.xpose.msra.mxu0 0.0
  %v5226 = vand.u32 %v5183, 4294901760
  %v5227 = vsub.f32 %v5183, %v5226
  %v5228 = vand.u32 %v5227, 4294901760
  %v5229 = vsub.f32 %v5227, %v5228
  %v5230 = vand.u32 %v5229, 4294901760
  %5231 = vmatpush.xpose.msra.mxu0 %v5230
  %v5232 = vand.u32 %v5181, 4294901760
  %5233 = vmatmul.f32.gmra.mxu0 %v5232
  %v5234 = vpop.f32.mrf.mxu0
  %v5235 = vadd.f32 %v5209, %v5234
  %5236 = vdwg.mxu0
  %5237 = vmatpush.xpose.msra.mxu0 0.0
  %5238 = vmatpush.xpose.msra.mxu0 0.0
  %5239 = vmatpush.xpose.msra.mxu0 0.0
  %5240 = vmatpush.xpose.msra.mxu0 0.0
  %5241 = vmatpush.xpose.msra.mxu0 0.0
  %5242 = vmatpush.xpose.msra.mxu0 0.0
  %5243 = vmatpush.xpose.msra.mxu0 0.0
  %5244 = vmatpush.xpose.msra.mxu0 0.0
  %5245 = vmatpush.xpose.msra.mxu0 0.0
  %5246 = vmatpush.xpose.msra.mxu0 0.0
  %5247 = vmatpush.xpose.msra.mxu0 0.0
  %5248 = vmatpush.xpose.msra.mxu0 0.0
  %5249 = vmatpush.xpose.msra.mxu0 0.0
  %5250 = vmatpush.xpose.msra.mxu0 0.0
  %5251 = vmatpush.xpose.msra.mxu0 0.0
  %v5252 = vand.u32 %v5183, 4294901760
  %v5253 = vsub.f32 %v5183, %v5252
  %5254 = vmatpush.xpose.msra.mxu0 %v5253
  %v5255 = vand.u32 %v5181, 4294901760
  %v5256 = vsub.f32 %v5181, %v5255
  %5257 = vmatmul.f32.gmra.mxu0 %v5256
  %v5258 = vpop.f32.mrf.mxu0
  %v5259 = vadd.f32 %v5235, %v5258
  %5260 = vdwg.mxu0
  %5261 = vmatpush.xpose.msra.mxu0 0.0
  %5262 = vmatpush.xpose.msra.mxu0 0.0
  %5263 = vmatpush.xpose.msra.mxu0 0.0
  %5264 = vmatpush.xpose.msra.mxu0 0.0
  %5265 = vmatpush.xpose.msra.mxu0 0.0
  %5266 = vmatpush.xpose.msra.mxu0 0.0
  %5267 = vmatpush.xpose.msra.mxu0 0.0
  %5268 = vmatpush.xpose.msra.mxu0 0.0
  %5269 = vmatpush.xpose.msra.mxu0 0.0
  %5270 = vmatpush.xpose.msra.mxu0 0.0
  %5271 = vmatpush.xpose.msra.mxu0 0.0
  %5272 = vmatpush.xpose.msra.mxu0 0.0
  %5273 = vmatpush.xpose.msra.mxu0 0.0
  %5274 = vmatpush.xpose.msra.mxu0 0.0
  %5275 = vmatpush.xpose.msra.mxu0 0.0
  %v5276 = vand.u32 %v5183, 4294901760
  %5277 = vmatpush.xpose.msra.mxu0 %v5276
  %v5278 = vand.u32 %v5181, 4294901760
  %v5279 = vsub.f32 %v5181, %v5278
  %v5280 = vand.u32 %v5279, 4294901760
  %5281 = vmatmul.f32.gmra.mxu0 %v5280
  %v5282 = vpop.f32.mrf.mxu0
  %v5283 = vadd.f32 %v5259, %v5282
  %5284 = vdwg.mxu0
  %5285 = vmatpush.xpose.msra.mxu0 0.0
  %5286 = vmatpush.xpose.msra.mxu0 0.0
  %5287 = vmatpush.xpose.msra.mxu0 0.0
  %5288 = vmatpush.xpose.msra.mxu0 0.0
  %5289 = vmatpush.xpose.msra.mxu0 0.0
  %5290 = vmatpush.xpose.msra.mxu0 0.0
  %5291 = vmatpush.xpose.msra.mxu0 0.0
  %5292 = vmatpush.xpose.msra.mxu0 0.0
  %5293 = vmatpush.xpose.msra.mxu0 0.0
  %5294 = vmatpush.xpose.msra.mxu0 0.0
  %5295 = vmatpush.xpose.msra.mxu0 0.0
  %5296 = vmatpush.xpose.msra.mxu0 0.0
  %5297 = vmatpush.xpose.msra.mxu0 0.0
  %5298 = vmatpush.xpose.msra.mxu0 0.0
  %5299 = vmatpush.xpose.msra.mxu0 0.0
  %v5300 = vand.u32 %v5183, 4294901760
  %v5301 = vsub.f32 %v5183, %v5300
  %v5302 = vand.u32 %v5301, 4294901760
  %5303 = vmatpush.xpose.msra.mxu0 %v5302
  %v5304 = vand.u32 %v5181, 4294901760
  %5305 = vmatmul.f32.gmra.mxu0 %v5304
  %v5306 = vpop.f32.mrf.mxu0
  %v5307 = vadd.f32 %v5283, %v5306
  %5308 = vdwg.mxu0
  %5309 = vmatpush.xpose.msra.mxu0 0.0
  %5310 = vmatpush.xpose.msra.mxu0 0.0
  %5311 = vmatpush.xpose.msra.mxu0 0.0
  %5312 = vmatpush.xpose.msra.mxu0 0.0
  %5313 = vmatpush.xpose.msra.mxu0 0.0
  %5314 = vmatpush.xpose.msra.mxu0 0.0
  %5315 = vmatpush.xpose.msra.mxu0 0.0
  %5316 = vmatpush.xpose.msra.mxu0 0.0
  %5317 = vmatpush.xpose.msra.mxu0 0.0
  %5318 = vmatpush.xpose.msra.mxu0 0.0
  %5319 = vmatpush.xpose.msra.mxu0 0.0
  %5320 = vmatpush.xpose.msra.mxu0 0.0
  %5321 = vmatpush.xpose.msra.mxu0 0.0
  %5322 = vmatpush.xpose.msra.mxu0 0.0
  %5323 = vmatpush.xpose.msra.mxu0 0.0
  %v5324 = vand.u32 %v5183, 4294901760
  %5325 = vmatpush.xpose.msra.mxu0 %v5324
  %v5326 = vand.u32 %v5181, 4294901760
  %5327 = vmatmul.f32.gmra.mxu0 %v5326
  %v5328 = vpop.f32.mrf.mxu0
  %v5329 = vadd.f32 %v5307, %v5328
  %5330 = vdwg.mxu0
  %5331 = vrot.lane.b32.xlu0 %v4416, 96
  %v5332 = vpop.permute.xlu0 %5331
  %v5333 = vsel %vm488, %v4416, 0
  %v5335 = vsel %vm488, %v5332, 0
  %5337 = vmatpush.xpose.msra.mxu0 0.0
  %5338 = vmatpush.xpose.msra.mxu0 0.0
  %5339 = vmatpush.xpose.msra.mxu0 0.0
  %5340 = vmatpush.xpose.msra.mxu0 0.0
  %5341 = vmatpush.xpose.msra.mxu0 0.0
  %5342 = vmatpush.xpose.msra.mxu0 0.0
  %5343 = vmatpush.xpose.msra.mxu0 0.0
  %5344 = vmatpush.xpose.msra.mxu0 0.0
  %5345 = vmatpush.xpose.msra.mxu0 0.0
  %5346 = vmatpush.xpose.msra.mxu0 0.0
  %5347 = vmatpush.xpose.msra.mxu0 0.0
  %5348 = vmatpush.xpose.msra.mxu0 0.0
  %5349 = vmatpush.xpose.msra.mxu0 0.0
  %5350 = vmatpush.xpose.msra.mxu0 0.0
  %5351 = vmatpush.xpose.msra.mxu0 0.0
  %v5352 = vand.u32 %v5335, 4294901760
  %5353 = vmatpush.xpose.msra.mxu0 %v5352
  %v5354 = vand.u32 %v5333, 4294901760
  %v5355 = vsub.f32 %v5333, %v5354
  %v5356 = vand.u32 %v5355, 4294901760
  %v5357 = vsub.f32 %v5355, %v5356
  %v5358 = vand.u32 %v5357, 4294901760
  %5359 = vmatmul.f32.gmra.mxu0 %v5358
  %v5360 = vpop.f32.mrf.mxu0
  %v5361 = vadd.f32 0.0, %v5360
  %5362 = vdwg.mxu0
  %5363 = vmatpush.xpose.msra.mxu0 0.0
  %5364 = vmatpush.xpose.msra.mxu0 0.0
  %5365 = vmatpush.xpose.msra.mxu0 0.0
  %5366 = vmatpush.xpose.msra.mxu0 0.0
  %5367 = vmatpush.xpose.msra.mxu0 0.0
  %5368 = vmatpush.xpose.msra.mxu0 0.0
  %5369 = vmatpush.xpose.msra.mxu0 0.0
  %5370 = vmatpush.xpose.msra.mxu0 0.0
  %5371 = vmatpush.xpose.msra.mxu0 0.0
  %5372 = vmatpush.xpose.msra.mxu0 0.0
  %5373 = vmatpush.xpose.msra.mxu0 0.0
  %5374 = vmatpush.xpose.msra.mxu0 0.0
  %5375 = vmatpush.xpose.msra.mxu0 0.0
  %5376 = vmatpush.xpose.msra.mxu0 0.0
  %5377 = vmatpush.xpose.msra.mxu0 0.0
  %v5378 = vand.u32 %v5335, 4294901760
  %v5379 = vsub.f32 %v5335, %v5378
  %v5380 = vand.u32 %v5379, 4294901760
  %v5381 = vsub.f32 %v5379, %v5380
  %v5382 = vand.u32 %v5381, 4294901760
  %5383 = vmatpush.xpose.msra.mxu0 %v5382
  %v5384 = vand.u32 %v5333, 4294901760
  %5385 = vmatmul.f32.gmra.mxu0 %v5384
  %v5386 = vpop.f32.mrf.mxu0
  %v5387 = vadd.f32 %v5361, %v5386
  %5388 = vdwg.mxu0
  %5389 = vmatpush.xpose.msra.mxu0 0.0
  %5390 = vmatpush.xpose.msra.mxu0 0.0
  %5391 = vmatpush.xpose.msra.mxu0 0.0
  %5392 = vmatpush.xpose.msra.mxu0 0.0
  %5393 = vmatpush.xpose.msra.mxu0 0.0
  %5394 = vmatpush.xpose.msra.mxu0 0.0
  %5395 = vmatpush.xpose.msra.mxu0 0.0
  %5396 = vmatpush.xpose.msra.mxu0 0.0
  %5397 = vmatpush.xpose.msra.mxu0 0.0
  %5398 = vmatpush.xpose.msra.mxu0 0.0
  %5399 = vmatpush.xpose.msra.mxu0 0.0
  %5400 = vmatpush.xpose.msra.mxu0 0.0
  %5401 = vmatpush.xpose.msra.mxu0 0.0
  %5402 = vmatpush.xpose.msra.mxu0 0.0
  %5403 = vmatpush.xpose.msra.mxu0 0.0
  %v5404 = vand.u32 %v5335, 4294901760
  %v5405 = vsub.f32 %v5335, %v5404
  %5406 = vmatpush.xpose.msra.mxu0 %v5405
  %v5407 = vand.u32 %v5333, 4294901760
  %v5408 = vsub.f32 %v5333, %v5407
  %5409 = vmatmul.f32.gmra.mxu0 %v5408
  %v5410 = vpop.f32.mrf.mxu0
  %v5411 = vadd.f32 %v5387, %v5410
  %5412 = vdwg.mxu0
  %5413 = vmatpush.xpose.msra.mxu0 0.0
  %5414 = vmatpush.xpose.msra.mxu0 0.0
  %5415 = vmatpush.xpose.msra.mxu0 0.0
  %5416 = vmatpush.xpose.msra.mxu0 0.0
  %5417 = vmatpush.xpose.msra.mxu0 0.0
  %5418 = vmatpush.xpose.msra.mxu0 0.0
  %5419 = vmatpush.xpose.msra.mxu0 0.0
  %5420 = vmatpush.xpose.msra.mxu0 0.0
  %5421 = vmatpush.xpose.msra.mxu0 0.0
  %5422 = vmatpush.xpose.msra.mxu0 0.0
  %5423 = vmatpush.xpose.msra.mxu0 0.0
  %5424 = vmatpush.xpose.msra.mxu0 0.0
  %5425 = vmatpush.xpose.msra.mxu0 0.0
  %5426 = vmatpush.xpose.msra.mxu0 0.0
  %5427 = vmatpush.xpose.msra.mxu0 0.0
  %v5428 = vand.u32 %v5335, 4294901760
  %5429 = vmatpush.xpose.msra.mxu0 %v5428
  %v5430 = vand.u32 %v5333, 4294901760
  %v5431 = vsub.f32 %v5333, %v5430
  %v5432 = vand.u32 %v5431, 4294901760
  %5433 = vmatmul.f32.gmra.mxu0 %v5432
  %v5434 = vpop.f32.mrf.mxu0
  %v5435 = vadd.f32 %v5411, %v5434
  %5436 = vdwg.mxu0
  %5437 = vmatpush.xpose.msra.mxu0 0.0
  %5438 = vmatpush.xpose.msra.mxu0 0.0
  %5439 = vmatpush.xpose.msra.mxu0 0.0
  %5440 = vmatpush.xpose.msra.mxu0 0.0
  %5441 = vmatpush.xpose.msra.mxu0 0.0
  %5442 = vmatpush.xpose.msra.mxu0 0.0
  %5443 = vmatpush.xpose.msra.mxu0 0.0
  %5444 = vmatpush.xpose.msra.mxu0 0.0
  %5445 = vmatpush.xpose.msra.mxu0 0.0
  %5446 = vmatpush.xpose.msra.mxu0 0.0
  %5447 = vmatpush.xpose.msra.mxu0 0.0
  %5448 = vmatpush.xpose.msra.mxu0 0.0
  %5449 = vmatpush.xpose.msra.mxu0 0.0
  %5450 = vmatpush.xpose.msra.mxu0 0.0
  %5451 = vmatpush.xpose.msra.mxu0 0.0
  %v5452 = vand.u32 %v5335, 4294901760
  %v5453 = vsub.f32 %v5335, %v5452
  %v5454 = vand.u32 %v5453, 4294901760
  %5455 = vmatpush.xpose.msra.mxu0 %v5454
  %v5456 = vand.u32 %v5333, 4294901760
  %5457 = vmatmul.f32.gmra.mxu0 %v5456
  %v5458 = vpop.f32.mrf.mxu0
  %v5459 = vadd.f32 %v5435, %v5458
  %5460 = vdwg.mxu0
  %5461 = vmatpush.xpose.msra.mxu0 0.0
  %5462 = vmatpush.xpose.msra.mxu0 0.0
  %5463 = vmatpush.xpose.msra.mxu0 0.0
  %5464 = vmatpush.xpose.msra.mxu0 0.0
  %5465 = vmatpush.xpose.msra.mxu0 0.0
  %5466 = vmatpush.xpose.msra.mxu0 0.0
  %5467 = vmatpush.xpose.msra.mxu0 0.0
  %5468 = vmatpush.xpose.msra.mxu0 0.0
  %5469 = vmatpush.xpose.msra.mxu0 0.0
  %5470 = vmatpush.xpose.msra.mxu0 0.0
  %5471 = vmatpush.xpose.msra.mxu0 0.0
  %5472 = vmatpush.xpose.msra.mxu0 0.0
  %5473 = vmatpush.xpose.msra.mxu0 0.0
  %5474 = vmatpush.xpose.msra.mxu0 0.0
  %5475 = vmatpush.xpose.msra.mxu0 0.0
  %v5476 = vand.u32 %v5335, 4294901760
  %5477 = vmatpush.xpose.msra.mxu0 %v5476
  %v5478 = vand.u32 %v5333, 4294901760
  %5479 = vmatmul.f32.gmra.mxu0 %v5478
  %v5480 = vpop.f32.mrf.mxu0
  %v5481 = vadd.f32 %v5459, %v5480
  %5482 = vdwg.mxu0
  %5483 = vrot.lane.b32.xlu0 %v4418, 96
  %v5484 = vpop.permute.xlu0 %5483
  %v5485 = vsel %vm488, %v4418, 0
  %v5487 = vsel %vm488, %v5484, 0
  %5489 = vmatpush.xpose.msra.mxu0 0.0
  %5490 = vmatpush.xpose.msra.mxu0 0.0
  %5491 = vmatpush.xpose.msra.mxu0 0.0
  %5492 = vmatpush.xpose.msra.mxu0 0.0
  %5493 = vmatpush.xpose.msra.mxu0 0.0
  %5494 = vmatpush.xpose.msra.mxu0 0.0
  %5495 = vmatpush.xpose.msra.mxu0 0.0
  %5496 = vmatpush.xpose.msra.mxu0 0.0
  %5497 = vmatpush.xpose.msra.mxu0 0.0
  %5498 = vmatpush.xpose.msra.mxu0 0.0
  %5499 = vmatpush.xpose.msra.mxu0 0.0
  %5500 = vmatpush.xpose.msra.mxu0 0.0
  %5501 = vmatpush.xpose.msra.mxu0 0.0
  %5502 = vmatpush.xpose.msra.mxu0 0.0
  %5503 = vmatpush.xpose.msra.mxu0 0.0
  %v5504 = vand.u32 %v5487, 4294901760
  %5505 = vmatpush.xpose.msra.mxu0 %v5504
  %v5506 = vand.u32 %v5485, 4294901760
  %v5507 = vsub.f32 %v5485, %v5506
  %v5508 = vand.u32 %v5507, 4294901760
  %v5509 = vsub.f32 %v5507, %v5508
  %v5510 = vand.u32 %v5509, 4294901760
  %5511 = vmatmul.f32.gmra.mxu0 %v5510
  %v5512 = vpop.f32.mrf.mxu0
  %v5513 = vadd.f32 0.0, %v5512
  %5514 = vdwg.mxu0
  %5515 = vmatpush.xpose.msra.mxu0 0.0
  %5516 = vmatpush.xpose.msra.mxu0 0.0
  %5517 = vmatpush.xpose.msra.mxu0 0.0
  %5518 = vmatpush.xpose.msra.mxu0 0.0
  %5519 = vmatpush.xpose.msra.mxu0 0.0
  %5520 = vmatpush.xpose.msra.mxu0 0.0
  %5521 = vmatpush.xpose.msra.mxu0 0.0
  %5522 = vmatpush.xpose.msra.mxu0 0.0
  %5523 = vmatpush.xpose.msra.mxu0 0.0
  %5524 = vmatpush.xpose.msra.mxu0 0.0
  %5525 = vmatpush.xpose.msra.mxu0 0.0
  %5526 = vmatpush.xpose.msra.mxu0 0.0
  %5527 = vmatpush.xpose.msra.mxu0 0.0
  %5528 = vmatpush.xpose.msra.mxu0 0.0
  %5529 = vmatpush.xpose.msra.mxu0 0.0
  %v5530 = vand.u32 %v5487, 4294901760
  %v5531 = vsub.f32 %v5487, %v5530
  %v5532 = vand.u32 %v5531, 4294901760
  %v5533 = vsub.f32 %v5531, %v5532
  %v5534 = vand.u32 %v5533, 4294901760
  %5535 = vmatpush.xpose.msra.mxu0 %v5534
  %v5536 = vand.u32 %v5485, 4294901760
  %5537 = vmatmul.f32.gmra.mxu0 %v5536
  %v5538 = vpop.f32.mrf.mxu0
  %v5539 = vadd.f32 %v5513, %v5538
  %5540 = vdwg.mxu0
  %5541 = vmatpush.xpose.msra.mxu0 0.0
  %5542 = vmatpush.xpose.msra.mxu0 0.0
  %5543 = vmatpush.xpose.msra.mxu0 0.0
  %5544 = vmatpush.xpose.msra.mxu0 0.0
  %5545 = vmatpush.xpose.msra.mxu0 0.0
  %5546 = vmatpush.xpose.msra.mxu0 0.0
  %5547 = vmatpush.xpose.msra.mxu0 0.0
  %5548 = vmatpush.xpose.msra.mxu0 0.0
  %5549 = vmatpush.xpose.msra.mxu0 0.0
  %5550 = vmatpush.xpose.msra.mxu0 0.0
  %5551 = vmatpush.xpose.msra.mxu0 0.0
  %5552 = vmatpush.xpose.msra.mxu0 0.0
  %5553 = vmatpush.xpose.msra.mxu0 0.0
  %5554 = vmatpush.xpose.msra.mxu0 0.0
  %5555 = vmatpush.xpose.msra.mxu0 0.0
  %v5556 = vand.u32 %v5487, 4294901760
  %v5557 = vsub.f32 %v5487, %v5556
  %5558 = vmatpush.xpose.msra.mxu0 %v5557
  %v5559 = vand.u32 %v5485, 4294901760
  %v5560 = vsub.f32 %v5485, %v5559
  %5561 = vmatmul.f32.gmra.mxu0 %v5560
  %v5562 = vpop.f32.mrf.mxu0
  %v5563 = vadd.f32 %v5539, %v5562
  %5564 = vdwg.mxu0
  %5565 = vmatpush.xpose.msra.mxu0 0.0
  %5566 = vmatpush.xpose.msra.mxu0 0.0
  %5567 = vmatpush.xpose.msra.mxu0 0.0
  %5568 = vmatpush.xpose.msra.mxu0 0.0
  %5569 = vmatpush.xpose.msra.mxu0 0.0
  %5570 = vmatpush.xpose.msra.mxu0 0.0
  %5571 = vmatpush.xpose.msra.mxu0 0.0
  %5572 = vmatpush.xpose.msra.mxu0 0.0
  %5573 = vmatpush.xpose.msra.mxu0 0.0
  %5574 = vmatpush.xpose.msra.mxu0 0.0
  %5575 = vmatpush.xpose.msra.mxu0 0.0
  %5576 = vmatpush.xpose.msra.mxu0 0.0
  %5577 = vmatpush.xpose.msra.mxu0 0.0
  %5578 = vmatpush.xpose.msra.mxu0 0.0
  %5579 = vmatpush.xpose.msra.mxu0 0.0
  %v5580 = vand.u32 %v5487, 4294901760
  %5581 = vmatpush.xpose.msra.mxu0 %v5580
  %v5582 = vand.u32 %v5485, 4294901760
  %v5583 = vsub.f32 %v5485, %v5582
  %v5584 = vand.u32 %v5583, 4294901760
  %5585 = vmatmul.f32.gmra.mxu0 %v5584
  %v5586 = vpop.f32.mrf.mxu0
  %v5587 = vadd.f32 %v5563, %v5586
  %5588 = vdwg.mxu0
  %5589 = vmatpush.xpose.msra.mxu0 0.0
  %5590 = vmatpush.xpose.msra.mxu0 0.0
  %5591 = vmatpush.xpose.msra.mxu0 0.0
  %5592 = vmatpush.xpose.msra.mxu0 0.0
  %5593 = vmatpush.xpose.msra.mxu0 0.0
  %5594 = vmatpush.xpose.msra.mxu0 0.0
  %5595 = vmatpush.xpose.msra.mxu0 0.0
  %5596 = vmatpush.xpose.msra.mxu0 0.0
  %5597 = vmatpush.xpose.msra.mxu0 0.0
  %5598 = vmatpush.xpose.msra.mxu0 0.0
  %5599 = vmatpush.xpose.msra.mxu0 0.0
  %5600 = vmatpush.xpose.msra.mxu0 0.0
  %5601 = vmatpush.xpose.msra.mxu0 0.0
  %5602 = vmatpush.xpose.msra.mxu0 0.0
  %5603 = vmatpush.xpose.msra.mxu0 0.0
  %v5604 = vand.u32 %v5487, 4294901760
  %v5605 = vsub.f32 %v5487, %v5604
  %v5606 = vand.u32 %v5605, 4294901760
  %5607 = vmatpush.xpose.msra.mxu0 %v5606
  %v5608 = vand.u32 %v5485, 4294901760
  %5609 = vmatmul.f32.gmra.mxu0 %v5608
  %v5610 = vpop.f32.mrf.mxu0
  %v5611 = vadd.f32 %v5587, %v5610
  %5612 = vdwg.mxu0
  %5613 = vmatpush.xpose.msra.mxu0 0.0
  %5614 = vmatpush.xpose.msra.mxu0 0.0
  %5615 = vmatpush.xpose.msra.mxu0 0.0
  %5616 = vmatpush.xpose.msra.mxu0 0.0
  %5617 = vmatpush.xpose.msra.mxu0 0.0
  %5618 = vmatpush.xpose.msra.mxu0 0.0
  %5619 = vmatpush.xpose.msra.mxu0 0.0
  %5620 = vmatpush.xpose.msra.mxu0 0.0
  %5621 = vmatpush.xpose.msra.mxu0 0.0
  %5622 = vmatpush.xpose.msra.mxu0 0.0
  %5623 = vmatpush.xpose.msra.mxu0 0.0
  %5624 = vmatpush.xpose.msra.mxu0 0.0
  %5625 = vmatpush.xpose.msra.mxu0 0.0
  %5626 = vmatpush.xpose.msra.mxu0 0.0
  %5627 = vmatpush.xpose.msra.mxu0 0.0
  %v5628 = vand.u32 %v5487, 4294901760
  %5629 = vmatpush.xpose.msra.mxu0 %v5628
  %v5630 = vand.u32 %v5485, 4294901760
  %5631 = vmatmul.f32.gmra.mxu0 %v5630
  %v5632 = vpop.f32.mrf.mxu0
  %v5633 = vadd.f32 %v5611, %v5632
  %5634 = vdwg.mxu0
  %v5635 = vsel %vm488, %v4569, -inf
  %5636 = vmax.xlane.f32.xlu0 %v5635
  %v5637 = vpop.xlane.xlu0 %5636
  %v5638 = vsel %vm488, %v4721, -inf
  %5639 = vmax.xlane.f32.xlu0 %v5638
  %v5640 = vpop.xlane.xlu0 %5639
  %v5641 = vsel %vm488, %v4873, -inf
  %5642 = vmax.xlane.f32.xlu0 %v5641
  %v5643 = vpop.xlane.xlu0 %5642
  %v5644 = vsel %vm488, %v5025, -inf
  %5645 = vmax.xlane.f32.xlu0 %v5644
  %v5646 = vpop.xlane.xlu0 %5645
  %v5647 = vsel %vm488, %v5177, -inf
  %5648 = vmax.xlane.f32.xlu0 %v5647
  %v5649 = vpop.xlane.xlu0 %5648
  %v5650 = vsel %vm488, %v5329, -inf
  %5651 = vmax.xlane.f32.xlu0 %v5650
  %v5652 = vpop.xlane.xlu0 %5651
  %v5653 = vsel %vm488, %v5481, -inf
  %5654 = vmax.xlane.f32.xlu0 %v5653
  %v5655 = vpop.xlane.xlu0 %5654
  %v5656 = vsel %vm488, %v5633, -inf
  %5657 = vmax.xlane.f32.xlu0 %v5656
  %v5658 = vpop.xlane.xlu0 %5657
  %v5659 = vsub.f32 %v4569, %v5637
  %v5660 = vsub.f32 %v4721, %v5640
  %v5661 = vsub.f32 %v4873, %v5643
  %v5662 = vsub.f32 %v5025, %v5646
  %v5663 = vsub.f32 %v5177, %v5649
  %v5664 = vsub.f32 %v5329, %v5652
  %v5665 = vsub.f32 %v5481, %v5655
  %v5666 = vsub.f32 %v5633, %v5658
  %v5667 = vmul.f32 %v5659, 1.442695
  %v5668 = vpow.pop %v5667
  %v5669 = vmul.f32 %v5660, 1.442695
  %v5670 = vpow.pop %v5669
  %v5671 = vmul.f32 %v5661, 1.442695
  %v5672 = vpow.pop %v5671
  %v5673 = vmul.f32 %v5662, 1.442695
  %v5674 = vpow.pop %v5673
  %v5675 = vmul.f32 %v5663, 1.442695
  %v5676 = vpow.pop %v5675
  %v5677 = vmul.f32 %v5664, 1.442695
  %v5678 = vpow.pop %v5677
  %v5679 = vmul.f32 %v5665, 1.442695
  %v5680 = vpow.pop %v5679
  %v5681 = vmul.f32 %v5666, 1.442695
  %v5682 = vpow.pop %v5681
  %v5683 = vsel %vm488, %v5668, 0.0
  %5684 = vadd.xlane.f32.xlu0 %v5683
  %v5685 = vpop.xlane.xlu0 %5684
  %v5686 = vsel %vm488, %v5670, 0.0
  %5687 = vadd.xlane.f32.xlu0 %v5686
  %v5688 = vpop.xlane.xlu0 %5687
  %v5689 = vsel %vm488, %v5672, 0.0
  %5690 = vadd.xlane.f32.xlu0 %v5689
  %v5691 = vpop.xlane.xlu0 %5690
  %v5692 = vsel %vm488, %v5674, 0.0
  %5693 = vadd.xlane.f32.xlu0 %v5692
  %v5694 = vpop.xlane.xlu0 %5693
  %v5695 = vsel %vm488, %v5676, 0.0
  %5696 = vadd.xlane.f32.xlu0 %v5695
  %v5697 = vpop.xlane.xlu0 %5696
  %v5698 = vsel %vm488, %v5678, 0.0
  %5699 = vadd.xlane.f32.xlu0 %v5698
  %v5700 = vpop.xlane.xlu0 %5699
  %v5701 = vsel %vm488, %v5680, 0.0
  %5702 = vadd.xlane.f32.xlu0 %v5701
  %v5703 = vpop.xlane.xlu0 %5702
  %v5704 = vsel %vm488, %v5682, 0.0
  %5705 = vadd.xlane.f32.xlu0 %v5704
  %v5706 = vpop.xlane.xlu0 %5705
  %v5707 = vrcp.pop %v5685
  %v5708 = vmul.f32 %v5685, %v5707
  %v5709 = vsub.f32 1.0, %v5708
  %v5710 = vmul.f32 %v5707, %v5709
  %v5711 = vadd.f32 %v5707, %v5710
  %vm5712 = vweird.f32 %v5685
  %vm5713 = vweird.f32 %v5707
  %vm5714 = vmor %vm5712, %vm5713
  %v5715 = vsel %vm5714, %v5707, %v5711
  %v5716 = vand.u32 2147483647, %v5685
  %vm5717 = vcmp.eq.f32.partialorder %v5716, 8.507059e+37
  %v5718 = vand.u32 %v5685, 2147483648
  %v5719 = vor.u32 1.1754944e-38, %v5718
  %v5720 = vsel %vm5717, %v5719, %v5715
  %v5721 = vmul.f32 %v5668, %v5720
  %v5722 = vrcp.pop %v5688
  %v5723 = vmul.f32 %v5688, %v5722
  %v5724 = vsub.f32 1.0, %v5723
  %v5725 = vmul.f32 %v5722, %v5724
  %v5726 = vadd.f32 %v5722, %v5725
  %vm5727 = vweird.f32 %v5688
  %vm5728 = vweird.f32 %v5722
  %vm5729 = vmor %vm5727, %vm5728
  %v5730 = vsel %vm5729, %v5722, %v5726
  %v5731 = vand.u32 2147483647, %v5688
  %vm5732 = vcmp.eq.f32.partialorder %v5731, 8.507059e+37
  %v5733 = vand.u32 %v5688, 2147483648
  %v5734 = vor.u32 1.1754944e-38, %v5733
  %v5735 = vsel %vm5732, %v5734, %v5730
  %v5736 = vmul.f32 %v5670, %v5735
  %v5737 = vrcp.pop %v5691
  %v5738 = vmul.f32 %v5691, %v5737
  %v5739 = vsub.f32 1.0, %v5738
  %v5740 = vmul.f32 %v5737, %v5739
  %v5741 = vadd.f32 %v5737, %v5740
  %vm5742 = vweird.f32 %v5691
  %vm5743 = vweird.f32 %v5737
  %vm5744 = vmor %vm5742, %vm5743
  %v5745 = vsel %vm5744, %v5737, %v5741
  %v5746 = vand.u32 2147483647, %v5691
  %vm5747 = vcmp.eq.f32.partialorder %v5746, 8.507059e+37
  %v5748 = vand.u32 %v5691, 2147483648
  %v5749 = vor.u32 1.1754944e-38, %v5748
  %v5750 = vsel %vm5747, %v5749, %v5745
  %v5751 = vmul.f32 %v5672, %v5750
  %v5752 = vrcp.pop %v5694
  %v5753 = vmul.f32 %v5694, %v5752
  %v5754 = vsub.f32 1.0, %v5753
  %v5755 = vmul.f32 %v5752, %v5754
  %v5756 = vadd.f32 %v5752, %v5755
  %vm5757 = vweird.f32 %v5694
  %vm5758 = vweird.f32 %v5752
  %vm5759 = vmor %vm5757, %vm5758
  %v5760 = vsel %vm5759, %v5752, %v5756
  %v5761 = vand.u32 2147483647, %v5694
  %vm5762 = vcmp.eq.f32.partialorder %v5761, 8.507059e+37
  %v5763 = vand.u32 %v5694, 2147483648
  %v5764 = vor.u32 1.1754944e-38, %v5763
  %v5765 = vsel %vm5762, %v5764, %v5760
  %v5766 = vmul.f32 %v5674, %v5765
  %v5767 = vrcp.pop %v5697
  %v5768 = vmul.f32 %v5697, %v5767
  %v5769 = vsub.f32 1.0, %v5768
  %v5770 = vmul.f32 %v5767, %v5769
  %v5771 = vadd.f32 %v5767, %v5770
  %vm5772 = vweird.f32 %v5697
  %vm5773 = vweird.f32 %v5767
  %vm5774 = vmor %vm5772, %vm5773
  %v5775 = vsel %vm5774, %v5767, %v5771
  %v5776 = vand.u32 2147483647, %v5697
  %vm5777 = vcmp.eq.f32.partialorder %v5776, 8.507059e+37
  %v5778 = vand.u32 %v5697, 2147483648
  %v5779 = vor.u32 1.1754944e-38, %v5778
  %v5780 = vsel %vm5777, %v5779, %v5775
  %v5781 = vmul.f32 %v5676, %v5780
  %v5782 = vrcp.pop %v5700
  %v5783 = vmul.f32 %v5700, %v5782
  %v5784 = vsub.f32 1.0, %v5783
  %v5785 = vmul.f32 %v5782, %v5784
  %v5786 = vadd.f32 %v5782, %v5785
  %vm5787 = vweird.f32 %v5700
  %vm5788 = vweird.f32 %v5782
  %vm5789 = vmor %vm5787, %vm5788
  %v5790 = vsel %vm5789, %v5782, %v5786
  %v5791 = vand.u32 2147483647, %v5700
  %vm5792 = vcmp.eq.f32.partialorder %v5791, 8.507059e+37
  %v5793 = vand.u32 %v5700, 2147483648
  %v5794 = vor.u32 1.1754944e-38, %v5793
  %v5795 = vsel %vm5792, %v5794, %v5790
  %v5796 = vmul.f32 %v5678, %v5795
  %v5797 = vrcp.pop %v5703
  %v5798 = vmul.f32 %v5703, %v5797
  %v5799 = vsub.f32 1.0, %v5798
  %v5800 = vmul.f32 %v5797, %v5799
  %v5801 = vadd.f32 %v5797, %v5800
  %vm5802 = vweird.f32 %v5703
  %vm5803 = vweird.f32 %v5797
  %vm5804 = vmor %vm5802, %vm5803
  %v5805 = vsel %vm5804, %v5797, %v5801
  %v5806 = vand.u32 2147483647, %v5703
  %vm5807 = vcmp.eq.f32.partialorder %v5806, 8.507059e+37
  %v5808 = vand.u32 %v5703, 2147483648
  %v5809 = vor.u32 1.1754944e-38, %v5808
  %v5810 = vsel %vm5807, %v5809, %v5805
  %v5811 = vmul.f32 %v5680, %v5810
  %v5812 = vrcp.pop %v5706
  %v5813 = vmul.f32 %v5706, %v5812
  %v5814 = vsub.f32 1.0, %v5813
  %v5815 = vmul.f32 %v5812, %v5814
  %v5816 = vadd.f32 %v5812, %v5815
  %vm5817 = vweird.f32 %v5706
  %vm5818 = vweird.f32 %v5812
  %vm5819 = vmor %vm5817, %vm5818
  %v5820 = vsel %vm5819, %v5812, %v5816
  %v5821 = vand.u32 2147483647, %v5706
  %vm5822 = vcmp.eq.f32.partialorder %v5821, 8.507059e+37
  %v5823 = vand.u32 %v5706, 2147483648
  %v5824 = vor.u32 1.1754944e-38, %v5823
  %v5825 = vsel %vm5822, %v5824, %v5820
  %v5826 = vmul.f32 %v5682, %v5825
  %5827 = vrot.lane.b32.xlu0 %v4399, 64
  %v5828 = vpop.permute.xlu0 %5827
  %v5831 = vsel %vm488, %v5721, 0
  %5833 = vmatpush.msra.mxu0 0.0
  %5834 = vmatpush.msra.mxu0 0.0
  %5835 = vmatpush.msra.mxu0 0.0
  %5836 = vmatpush.msra.mxu0 0.0
  %5837 = vmatpush.msra.mxu0 0.0
  %5838 = vmatpush.msra.mxu0 0.0
  %5839 = vmatpush.msra.mxu0 0.0
  %5840 = vmatpush.msra.mxu0 0.0
  %5841 = vmatpush.msra.mxu0 0.0
  %5842 = vmatpush.msra.mxu0 0.0
  %5843 = vmatpush.msra.mxu0 0.0
  %5844 = vmatpush.msra.mxu0 0.0
  %5845 = vmatpush.msra.mxu0 0.0
  %5846 = vmatpush.msra.mxu0 0.0
  %5847 = vmatpush.msra.mxu0 0.0
  %v5848 = vand.u32 %v5828, 4294901760
  %5849 = vmatpush.msra.mxu0 %v5848
  %v5850 = vand.u32 %v5831, 4294901760
  %v5851 = vsub.f32 %v5831, %v5850
  %v5852 = vand.u32 %v5851, 4294901760
  %v5853 = vsub.f32 %v5851, %v5852
  %v5854 = vand.u32 %v5853, 4294901760
  %5855 = vmatmul.f32.gmra.mxu0 %v5854
  %v5856 = vpop.f32.mrf.mxu0
  %v5857 = vadd.f32 0.0, %v5856
  %5858 = vdwg.mxu0
  %5859 = vmatpush.msra.mxu0 0.0
  %5860 = vmatpush.msra.mxu0 0.0
  %5861 = vmatpush.msra.mxu0 0.0
  %5862 = vmatpush.msra.mxu0 0.0
  %5863 = vmatpush.msra.mxu0 0.0
  %5864 = vmatpush.msra.mxu0 0.0
  %5865 = vmatpush.msra.mxu0 0.0
  %5866 = vmatpush.msra.mxu0 0.0
  %5867 = vmatpush.msra.mxu0 0.0
  %5868 = vmatpush.msra.mxu0 0.0
  %5869 = vmatpush.msra.mxu0 0.0
  %5870 = vmatpush.msra.mxu0 0.0
  %5871 = vmatpush.msra.mxu0 0.0
  %5872 = vmatpush.msra.mxu0 0.0
  %5873 = vmatpush.msra.mxu0 0.0
  %v5874 = vand.u32 %v5828, 4294901760
  %v5875 = vsub.f32 %v5828, %v5874
  %v5876 = vand.u32 %v5875, 4294901760
  %v5877 = vsub.f32 %v5875, %v5876
  %v5878 = vand.u32 %v5877, 4294901760
  %5879 = vmatpush.msra.mxu0 %v5878
  %v5880 = vand.u32 %v5831, 4294901760
  %5881 = vmatmul.f32.gmra.mxu0 %v5880
  %v5882 = vpop.f32.mrf.mxu0
  %v5883 = vadd.f32 %v5857, %v5882
  %5884 = vdwg.mxu0
  %5885 = vmatpush.msra.mxu0 0.0
  %5886 = vmatpush.msra.mxu0 0.0
  %5887 = vmatpush.msra.mxu0 0.0
  %5888 = vmatpush.msra.mxu0 0.0
  %5889 = vmatpush.msra.mxu0 0.0
  %5890 = vmatpush.msra.mxu0 0.0
  %5891 = vmatpush.msra.mxu0 0.0
  %5892 = vmatpush.msra.mxu0 0.0
  %5893 = vmatpush.msra.mxu0 0.0
  %5894 = vmatpush.msra.mxu0 0.0
  %5895 = vmatpush.msra.mxu0 0.0
  %5896 = vmatpush.msra.mxu0 0.0
  %5897 = vmatpush.msra.mxu0 0.0
  %5898 = vmatpush.msra.mxu0 0.0
  %5899 = vmatpush.msra.mxu0 0.0
  %v5900 = vand.u32 %v5828, 4294901760
  %v5901 = vsub.f32 %v5828, %v5900
  %5902 = vmatpush.msra.mxu0 %v5901
  %v5903 = vand.u32 %v5831, 4294901760
  %v5904 = vsub.f32 %v5831, %v5903
  %5905 = vmatmul.f32.gmra.mxu0 %v5904
  %v5906 = vpop.f32.mrf.mxu0
  %v5907 = vadd.f32 %v5883, %v5906
  %5908 = vdwg.mxu0
  %5909 = vmatpush.msra.mxu0 0.0
  %5910 = vmatpush.msra.mxu0 0.0
  %5911 = vmatpush.msra.mxu0 0.0
  %5912 = vmatpush.msra.mxu0 0.0
  %5913 = vmatpush.msra.mxu0 0.0
  %5914 = vmatpush.msra.mxu0 0.0
  %5915 = vmatpush.msra.mxu0 0.0
  %5916 = vmatpush.msra.mxu0 0.0
  %5917 = vmatpush.msra.mxu0 0.0
  %5918 = vmatpush.msra.mxu0 0.0
  %5919 = vmatpush.msra.mxu0 0.0
  %5920 = vmatpush.msra.mxu0 0.0
  %5921 = vmatpush.msra.mxu0 0.0
  %5922 = vmatpush.msra.mxu0 0.0
  %5923 = vmatpush.msra.mxu0 0.0
  %v5924 = vand.u32 %v5828, 4294901760
  %5925 = vmatpush.msra.mxu0 %v5924
  %v5926 = vand.u32 %v5831, 4294901760
  %v5927 = vsub.f32 %v5831, %v5926
  %v5928 = vand.u32 %v5927, 4294901760
  %5929 = vmatmul.f32.gmra.mxu0 %v5928
  %v5930 = vpop.f32.mrf.mxu0
  %v5931 = vadd.f32 %v5907, %v5930
  %5932 = vdwg.mxu0
  %5933 = vmatpush.msra.mxu0 0.0
  %5934 = vmatpush.msra.mxu0 0.0
  %5935 = vmatpush.msra.mxu0 0.0
  %5936 = vmatpush.msra.mxu0 0.0
  %5937 = vmatpush.msra.mxu0 0.0
  %5938 = vmatpush.msra.mxu0 0.0
  %5939 = vmatpush.msra.mxu0 0.0
  %5940 = vmatpush.msra.mxu0 0.0
  %5941 = vmatpush.msra.mxu0 0.0
  %5942 = vmatpush.msra.mxu0 0.0
  %5943 = vmatpush.msra.mxu0 0.0
  %5944 = vmatpush.msra.mxu0 0.0
  %5945 = vmatpush.msra.mxu0 0.0
  %5946 = vmatpush.msra.mxu0 0.0
  %5947 = vmatpush.msra.mxu0 0.0
  %v5948 = vand.u32 %v5828, 4294901760
  %v5949 = vsub.f32 %v5828, %v5948
  %v5950 = vand.u32 %v5949, 4294901760
  %5951 = vmatpush.msra.mxu0 %v5950
  %v5952 = vand.u32 %v5831, 4294901760
  %5953 = vmatmul.f32.gmra.mxu0 %v5952
  %v5954 = vpop.f32.mrf.mxu0
  %v5955 = vadd.f32 %v5931, %v5954
  %5956 = vdwg.mxu0
  %5957 = vmatpush.msra.mxu0 0.0
  %5958 = vmatpush.msra.mxu0 0.0
  %5959 = vmatpush.msra.mxu0 0.0
  %5960 = vmatpush.msra.mxu0 0.0
  %5961 = vmatpush.msra.mxu0 0.0
  %5962 = vmatpush.msra.mxu0 0.0
  %5963 = vmatpush.msra.mxu0 0.0
  %5964 = vmatpush.msra.mxu0 0.0
  %5965 = vmatpush.msra.mxu0 0.0
  %5966 = vmatpush.msra.mxu0 0.0
  %5967 = vmatpush.msra.mxu0 0.0
  %5968 = vmatpush.msra.mxu0 0.0
  %5969 = vmatpush.msra.mxu0 0.0
  %5970 = vmatpush.msra.mxu0 0.0
  %5971 = vmatpush.msra.mxu0 0.0
  %v5972 = vand.u32 %v5828, 4294901760
  %5973 = vmatpush.msra.mxu0 %v5972
  %v5974 = vand.u32 %v5831, 4294901760
  %5975 = vmatmul.f32.gmra.mxu0 %v5974
  %v5976 = vpop.f32.mrf.mxu0
  %v5977 = vadd.f32 %v5955, %v5976
  %5978 = vdwg.mxu0
  %5979 = vrot.lane.b32.xlu0 %v4403, 64
  %v5980 = vpop.permute.xlu0 %5979
  %v5983 = vsel %vm488, %v5736, 0
  %5985 = vmatpush.msra.mxu0 0.0
  %5986 = vmatpush.msra.mxu0 0.0
  %5987 = vmatpush.msra.mxu0 0.0
  %5988 = vmatpush.msra.mxu0 0.0
  %5989 = vmatpush.msra.mxu0 0.0
  %5990 = vmatpush.msra.mxu0 0.0
  %5991 = vmatpush.msra.mxu0 0.0
  %5992 = vmatpush.msra.mxu0 0.0
  %5993 = vmatpush.msra.mxu0 0.0
  %5994 = vmatpush.msra.mxu0 0.0
  %5995 = vmatpush.msra.mxu0 0.0
  %5996 = vmatpush.msra.mxu0 0.0
  %5997 = vmatpush.msra.mxu0 0.0
  %5998 = vmatpush.msra.mxu0 0.0
  %5999 = vmatpush.msra.mxu0 0.0
  %v6000 = vand.u32 %v5980, 4294901760
  %6001 = vmatpush.msra.mxu0 %v6000
  %v6002 = vand.u32 %v5983, 4294901760
  %v6003 = vsub.f32 %v5983, %v6002
  %v6004 = vand.u32 %v6003, 4294901760
  %v6005 = vsub.f32 %v6003, %v6004
  %v6006 = vand.u32 %v6005, 4294901760
  %6007 = vmatmul.f32.gmra.mxu0 %v6006
  %v6008 = vpop.f32.mrf.mxu0
  %v6009 = vadd.f32 0.0, %v6008
  %6010 = vdwg.mxu0
  %6011 = vmatpush.msra.mxu0 0.0
  %6012 = vmatpush.msra.mxu0 0.0
  %6013 = vmatpush.msra.mxu0 0.0
  %6014 = vmatpush.msra.mxu0 0.0
  %6015 = vmatpush.msra.mxu0 0.0
  %6016 = vmatpush.msra.mxu0 0.0
  %6017 = vmatpush.msra.mxu0 0.0
  %6018 = vmatpush.msra.mxu0 0.0
  %6019 = vmatpush.msra.mxu0 0.0
  %6020 = vmatpush.msra.mxu0 0.0
  %6021 = vmatpush.msra.mxu0 0.0
  %6022 = vmatpush.msra.mxu0 0.0
  %6023 = vmatpush.msra.mxu0 0.0
  %6024 = vmatpush.msra.mxu0 0.0
  %6025 = vmatpush.msra.mxu0 0.0
  %v6026 = vand.u32 %v5980, 4294901760
  %v6027 = vsub.f32 %v5980, %v6026
  %v6028 = vand.u32 %v6027, 4294901760
  %v6029 = vsub.f32 %v6027, %v6028
  %v6030 = vand.u32 %v6029, 4294901760
  %6031 = vmatpush.msra.mxu0 %v6030
  %v6032 = vand.u32 %v5983, 4294901760
  %6033 = vmatmul.f32.gmra.mxu0 %v6032
  %v6034 = vpop.f32.mrf.mxu0
  %v6035 = vadd.f32 %v6009, %v6034
  %6036 = vdwg.mxu0
  %6037 = vmatpush.msra.mxu0 0.0
  %6038 = vmatpush.msra.mxu0 0.0
  %6039 = vmatpush.msra.mxu0 0.0
  %6040 = vmatpush.msra.mxu0 0.0
  %6041 = vmatpush.msra.mxu0 0.0
  %6042 = vmatpush.msra.mxu0 0.0
  %6043 = vmatpush.msra.mxu0 0.0
  %6044 = vmatpush.msra.mxu0 0.0
  %6045 = vmatpush.msra.mxu0 0.0
  %6046 = vmatpush.msra.mxu0 0.0
  %6047 = vmatpush.msra.mxu0 0.0
  %6048 = vmatpush.msra.mxu0 0.0
  %6049 = vmatpush.msra.mxu0 0.0
  %6050 = vmatpush.msra.mxu0 0.0
  %6051 = vmatpush.msra.mxu0 0.0
  %v6052 = vand.u32 %v5980, 4294901760
  %v6053 = vsub.f32 %v5980, %v6052
  %6054 = vmatpush.msra.mxu0 %v6053
  %v6055 = vand.u32 %v5983, 4294901760
  %v6056 = vsub.f32 %v5983, %v6055
  %6057 = vmatmul.f32.gmra.mxu0 %v6056
  %v6058 = vpop.f32.mrf.mxu0
  %v6059 = vadd.f32 %v6035, %v6058
  %6060 = vdwg.mxu0
  %6061 = vmatpush.msra.mxu0 0.0
  %6062 = vmatpush.msra.mxu0 0.0
  %6063 = vmatpush.msra.mxu0 0.0
  %6064 = vmatpush.msra.mxu0 0.0
  %6065 = vmatpush.msra.mxu0 0.0
  %6066 = vmatpush.msra.mxu0 0.0
  %6067 = vmatpush.msra.mxu0 0.0
  %6068 = vmatpush.msra.mxu0 0.0
  %6069 = vmatpush.msra.mxu0 0.0
  %6070 = vmatpush.msra.mxu0 0.0
  %6071 = vmatpush.msra.mxu0 0.0
  %6072 = vmatpush.msra.mxu0 0.0
  %6073 = vmatpush.msra.mxu0 0.0
  %6074 = vmatpush.msra.mxu0 0.0
  %6075 = vmatpush.msra.mxu0 0.0
  %v6076 = vand.u32 %v5980, 4294901760
  %6077 = vmatpush.msra.mxu0 %v6076
  %v6078 = vand.u32 %v5983, 4294901760
  %v6079 = vsub.f32 %v5983, %v6078
  %v6080 = vand.u32 %v6079, 4294901760
  %6081 = vmatmul.f32.gmra.mxu0 %v6080
  %v6082 = vpop.f32.mrf.mxu0
  %v6083 = vadd.f32 %v6059, %v6082
  %6084 = vdwg.mxu0
  %6085 = vmatpush.msra.mxu0 0.0
  %6086 = vmatpush.msra.mxu0 0.0
  %6087 = vmatpush.msra.mxu0 0.0
  %6088 = vmatpush.msra.mxu0 0.0
  %6089 = vmatpush.msra.mxu0 0.0
  %6090 = vmatpush.msra.mxu0 0.0
  %6091 = vmatpush.msra.mxu0 0.0
  %6092 = vmatpush.msra.mxu0 0.0
  %6093 = vmatpush.msra.mxu0 0.0
  %6094 = vmatpush.msra.mxu0 0.0
  %6095 = vmatpush.msra.mxu0 0.0
  %6096 = vmatpush.msra.mxu0 0.0
  %6097 = vmatpush.msra.mxu0 0.0
  %6098 = vmatpush.msra.mxu0 0.0
  %6099 = vmatpush.msra.mxu0 0.0
  %v6100 = vand.u32 %v5980, 4294901760
  %v6101 = vsub.f32 %v5980, %v6100
  %v6102 = vand.u32 %v6101, 4294901760
  %6103 = vmatpush.msra.mxu0 %v6102
  %v6104 = vand.u32 %v5983, 4294901760
  %6105 = vmatmul.f32.gmra.mxu0 %v6104
  %v6106 = vpop.f32.mrf.mxu0
  %v6107 = vadd.f32 %v6083, %v6106
  %6108 = vdwg.mxu0
  %6109 = vmatpush.msra.mxu0 0.0
  %6110 = vmatpush.msra.mxu0 0.0
  %6111 = vmatpush.msra.mxu0 0.0
  %6112 = vmatpush.msra.mxu0 0.0
  %6113 = vmatpush.msra.mxu0 0.0
  %6114 = vmatpush.msra.mxu0 0.0
  %6115 = vmatpush.msra.mxu0 0.0
  %6116 = vmatpush.msra.mxu0 0.0
  %6117 = vmatpush.msra.mxu0 0.0
  %6118 = vmatpush.msra.mxu0 0.0
  %6119 = vmatpush.msra.mxu0 0.0
  %6120 = vmatpush.msra.mxu0 0.0
  %6121 = vmatpush.msra.mxu0 0.0
  %6122 = vmatpush.msra.mxu0 0.0
  %6123 = vmatpush.msra.mxu0 0.0
  %v6124 = vand.u32 %v5980, 4294901760
  %6125 = vmatpush.msra.mxu0 %v6124
  %v6126 = vand.u32 %v5983, 4294901760
  %6127 = vmatmul.f32.gmra.mxu0 %v6126
  %v6128 = vpop.f32.mrf.mxu0
  %v6129 = vadd.f32 %v6107, %v6128
  %6130 = vdwg.mxu0
  %6131 = vrot.lane.b32.xlu0 %v4408, 64
  %v6132 = vpop.permute.xlu0 %6131
  %v6135 = vsel %vm488, %v5751, 0
  %6137 = vmatpush.msra.mxu0 0.0
  %6138 = vmatpush.msra.mxu0 0.0
  %6139 = vmatpush.msra.mxu0 0.0
  %6140 = vmatpush.msra.mxu0 0.0
  %6141 = vmatpush.msra.mxu0 0.0
  %6142 = vmatpush.msra.mxu0 0.0
  %6143 = vmatpush.msra.mxu0 0.0
  %6144 = vmatpush.msra.mxu0 0.0
  %6145 = vmatpush.msra.mxu0 0.0
  %6146 = vmatpush.msra.mxu0 0.0
  %6147 = vmatpush.msra.mxu0 0.0
  %6148 = vmatpush.msra.mxu0 0.0
  %6149 = vmatpush.msra.mxu0 0.0
  %6150 = vmatpush.msra.mxu0 0.0
  %6151 = vmatpush.msra.mxu0 0.0
  %v6152 = vand.u32 %v6132, 4294901760
  %6153 = vmatpush.msra.mxu0 %v6152
  %v6154 = vand.u32 %v6135, 4294901760
  %v6155 = vsub.f32 %v6135, %v6154
  %v6156 = vand.u32 %v6155, 4294901760
  %v6157 = vsub.f32 %v6155, %v6156
  %v6158 = vand.u32 %v6157, 4294901760
  %6159 = vmatmul.f32.gmra.mxu0 %v6158
  %v6160 = vpop.f32.mrf.mxu0
  %v6161 = vadd.f32 0.0, %v6160
  %6162 = vdwg.mxu0
  %6163 = vmatpush.msra.mxu0 0.0
  %6164 = vmatpush.msra.mxu0 0.0
  %6165 = vmatpush.msra.mxu0 0.0
  %6166 = vmatpush.msra.mxu0 0.0
  %6167 = vmatpush.msra.mxu0 0.0
  %6168 = vmatpush.msra.mxu0 0.0
  %6169 = vmatpush.msra.mxu0 0.0
  %6170 = vmatpush.msra.mxu0 0.0
  %6171 = vmatpush.msra.mxu0 0.0
  %6172 = vmatpush.msra.mxu0 0.0
  %6173 = vmatpush.msra.mxu0 0.0
  %6174 = vmatpush.msra.mxu0 0.0
  %6175 = vmatpush.msra.mxu0 0.0
  %6176 = vmatpush.msra.mxu0 0.0
  %6177 = vmatpush.msra.mxu0 0.0
  %v6178 = vand.u32 %v6132, 4294901760
  %v6179 = vsub.f32 %v6132, %v6178
  %v6180 = vand.u32 %v6179, 4294901760
  %v6181 = vsub.f32 %v6179, %v6180
  %v6182 = vand.u32 %v6181, 4294901760
  %6183 = vmatpush.msra.mxu0 %v6182
  %v6184 = vand.u32 %v6135, 4294901760
  %6185 = vmatmul.f32.gmra.mxu0 %v6184
  %v6186 = vpop.f32.mrf.mxu0
  %v6187 = vadd.f32 %v6161, %v6186
  %6188 = vdwg.mxu0
  %6189 = vmatpush.msra.mxu0 0.0
  %6190 = vmatpush.msra.mxu0 0.0
  %6191 = vmatpush.msra.mxu0 0.0
  %6192 = vmatpush.msra.mxu0 0.0
  %6193 = vmatpush.msra.mxu0 0.0
  %6194 = vmatpush.msra.mxu0 0.0
  %6195 = vmatpush.msra.mxu0 0.0
  %6196 = vmatpush.msra.mxu0 0.0
  %6197 = vmatpush.msra.mxu0 0.0
  %6198 = vmatpush.msra.mxu0 0.0
  %6199 = vmatpush.msra.mxu0 0.0
  %6200 = vmatpush.msra.mxu0 0.0
  %6201 = vmatpush.msra.mxu0 0.0
  %6202 = vmatpush.msra.mxu0 0.0
  %6203 = vmatpush.msra.mxu0 0.0
  %v6204 = vand.u32 %v6132, 4294901760
  %v6205 = vsub.f32 %v6132, %v6204
  %6206 = vmatpush.msra.mxu0 %v6205
  %v6207 = vand.u32 %v6135, 4294901760
  %v6208 = vsub.f32 %v6135, %v6207
  %6209 = vmatmul.f32.gmra.mxu0 %v6208
  %v6210 = vpop.f32.mrf.mxu0
  %v6211 = vadd.f32 %v6187, %v6210
  %6212 = vdwg.mxu0
  %6213 = vmatpush.msra.mxu0 0.0
  %6214 = vmatpush.msra.mxu0 0.0
  %6215 = vmatpush.msra.mxu0 0.0
  %6216 = vmatpush.msra.mxu0 0.0
  %6217 = vmatpush.msra.mxu0 0.0
  %6218 = vmatpush.msra.mxu0 0.0
  %6219 = vmatpush.msra.mxu0 0.0
  %6220 = vmatpush.msra.mxu0 0.0
  %6221 = vmatpush.msra.mxu0 0.0
  %6222 = vmatpush.msra.mxu0 0.0
  %6223 = vmatpush.msra.mxu0 0.0
  %6224 = vmatpush.msra.mxu0 0.0
  %6225 = vmatpush.msra.mxu0 0.0
  %6226 = vmatpush.msra.mxu0 0.0
  %6227 = vmatpush.msra.mxu0 0.0
  %v6228 = vand.u32 %v6132, 4294901760
  %6229 = vmatpush.msra.mxu0 %v6228
  %v6230 = vand.u32 %v6135, 4294901760
  %v6231 = vsub.f32 %v6135, %v6230
  %v6232 = vand.u32 %v6231, 4294901760
  %6233 = vmatmul.f32.gmra.mxu0 %v6232
  %v6234 = vpop.f32.mrf.mxu0
  %v6235 = vadd.f32 %v6211, %v6234
  %6236 = vdwg.mxu0
  %6237 = vmatpush.msra.mxu0 0.0
  %6238 = vmatpush.msra.mxu0 0.0
  %6239 = vmatpush.msra.mxu0 0.0
  %6240 = vmatpush.msra.mxu0 0.0
  %6241 = vmatpush.msra.mxu0 0.0
  %6242 = vmatpush.msra.mxu0 0.0
  %6243 = vmatpush.msra.mxu0 0.0
  %6244 = vmatpush.msra.mxu0 0.0
  %6245 = vmatpush.msra.mxu0 0.0
  %6246 = vmatpush.msra.mxu0 0.0
  %6247 = vmatpush.msra.mxu0 0.0
  %6248 = vmatpush.msra.mxu0 0.0
  %6249 = vmatpush.msra.mxu0 0.0
  %6250 = vmatpush.msra.mxu0 0.0
  %6251 = vmatpush.msra.mxu0 0.0
  %v6252 = vand.u32 %v6132, 4294901760
  %v6253 = vsub.f32 %v6132, %v6252
  %v6254 = vand.u32 %v6253, 4294901760
  %6255 = vmatpush.msra.mxu0 %v6254
  %v6256 = vand.u32 %v6135, 4294901760
  %6257 = vmatmul.f32.gmra.mxu0 %v6256
  %v6258 = vpop.f32.mrf.mxu0
  %v6259 = vadd.f32 %v6235, %v6258
  %6260 = vdwg.mxu0
  %6261 = vmatpush.msra.mxu0 0.0
  %6262 = vmatpush.msra.mxu0 0.0
  %6263 = vmatpush.msra.mxu0 0.0
  %6264 = vmatpush.msra.mxu0 0.0
  %6265 = vmatpush.msra.mxu0 0.0
  %6266 = vmatpush.msra.mxu0 0.0
  %6267 = vmatpush.msra.mxu0 0.0
  %6268 = vmatpush.msra.mxu0 0.0
  %6269 = vmatpush.msra.mxu0 0.0
  %6270 = vmatpush.msra.mxu0 0.0
  %6271 = vmatpush.msra.mxu0 0.0
  %6272 = vmatpush.msra.mxu0 0.0
  %6273 = vmatpush.msra.mxu0 0.0
  %6274 = vmatpush.msra.mxu0 0.0
  %6275 = vmatpush.msra.mxu0 0.0
  %v6276 = vand.u32 %v6132, 4294901760
  %6277 = vmatpush.msra.mxu0 %v6276
  %v6278 = vand.u32 %v6135, 4294901760
  %6279 = vmatmul.f32.gmra.mxu0 %v6278
  %v6280 = vpop.f32.mrf.mxu0
  %v6281 = vadd.f32 %v6259, %v6280
  %6282 = vdwg.mxu0
  %6283 = vrot.lane.b32.xlu0 %v4410, 64
  %v6284 = vpop.permute.xlu0 %6283
  %v6287 = vsel %vm488, %v5766, 0
  %6289 = vmatpush.msra.mxu0 0.0
  %6290 = vmatpush.msra.mxu0 0.0
  %6291 = vmatpush.msra.mxu0 0.0
  %6292 = vmatpush.msra.mxu0 0.0
  %6293 = vmatpush.msra.mxu0 0.0
  %6294 = vmatpush.msra.mxu0 0.0
  %6295 = vmatpush.msra.mxu0 0.0
  %6296 = vmatpush.msra.mxu0 0.0
  %6297 = vmatpush.msra.mxu0 0.0
  %6298 = vmatpush.msra.mxu0 0.0
  %6299 = vmatpush.msra.mxu0 0.0
  %6300 = vmatpush.msra.mxu0 0.0
  %6301 = vmatpush.msra.mxu0 0.0
  %6302 = vmatpush.msra.mxu0 0.0
  %6303 = vmatpush.msra.mxu0 0.0
  %v6304 = vand.u32 %v6284, 4294901760
  %6305 = vmatpush.msra.mxu0 %v6304
  %v6306 = vand.u32 %v6287, 4294901760
  %v6307 = vsub.f32 %v6287, %v6306
  %v6308 = vand.u32 %v6307, 4294901760
  %v6309 = vsub.f32 %v6307, %v6308
  %v6310 = vand.u32 %v6309, 4294901760
  %6311 = vmatmul.f32.gmra.mxu0 %v6310
  %v6312 = vpop.f32.mrf.mxu0
  %v6313 = vadd.f32 0.0, %v6312
  %6314 = vdwg.mxu0
  %6315 = vmatpush.msra.mxu0 0.0
  %6316 = vmatpush.msra.mxu0 0.0
  %6317 = vmatpush.msra.mxu0 0.0
  %6318 = vmatpush.msra.mxu0 0.0
  %6319 = vmatpush.msra.mxu0 0.0
  %6320 = vmatpush.msra.mxu0 0.0
  %6321 = vmatpush.msra.mxu0 0.0
  %6322 = vmatpush.msra.mxu0 0.0
  %6323 = vmatpush.msra.mxu0 0.0
  %6324 = vmatpush.msra.mxu0 0.0
  %6325 = vmatpush.msra.mxu0 0.0
  %6326 = vmatpush.msra.mxu0 0.0
  %6327 = vmatpush.msra.mxu0 0.0
  %6328 = vmatpush.msra.mxu0 0.0
  %6329 = vmatpush.msra.mxu0 0.0
  %v6330 = vand.u32 %v6284, 4294901760
  %v6331 = vsub.f32 %v6284, %v6330
  %v6332 = vand.u32 %v6331, 4294901760
  %v6333 = vsub.f32 %v6331, %v6332
  %v6334 = vand.u32 %v6333, 4294901760
  %6335 = vmatpush.msra.mxu0 %v6334
  %v6336 = vand.u32 %v6287, 4294901760
  %6337 = vmatmul.f32.gmra.mxu0 %v6336
  %v6338 = vpop.f32.mrf.mxu0
  %v6339 = vadd.f32 %v6313, %v6338
  %6340 = vdwg.mxu0
  %6341 = vmatpush.msra.mxu0 0.0
  %6342 = vmatpush.msra.mxu0 0.0
  %6343 = vmatpush.msra.mxu0 0.0
  %6344 = vmatpush.msra.mxu0 0.0
  %6345 = vmatpush.msra.mxu0 0.0
  %6346 = vmatpush.msra.mxu0 0.0
  %6347 = vmatpush.msra.mxu0 0.0
  %6348 = vmatpush.msra.mxu0 0.0
  %6349 = vmatpush.msra.mxu0 0.0
  %6350 = vmatpush.msra.mxu0 0.0
  %6351 = vmatpush.msra.mxu0 0.0
  %6352 = vmatpush.msra.mxu0 0.0
  %6353 = vmatpush.msra.mxu0 0.0
  %6354 = vmatpush.msra.mxu0 0.0
  %6355 = vmatpush.msra.mxu0 0.0
  %v6356 = vand.u32 %v6284, 4294901760
  %v6357 = vsub.f32 %v6284, %v6356
  %6358 = vmatpush.msra.mxu0 %v6357
  %v6359 = vand.u32 %v6287, 4294901760
  %v6360 = vsub.f32 %v6287, %v6359
  %6361 = vmatmul.f32.gmra.mxu0 %v6360
  %v6362 = vpop.f32.mrf.mxu0
  %v6363 = vadd.f32 %v6339, %v6362
  %6364 = vdwg.mxu0
  %6365 = vmatpush.msra.mxu0 0.0
  %6366 = vmatpush.msra.mxu0 0.0
  %6367 = vmatpush.msra.mxu0 0.0
  %6368 = vmatpush.msra.mxu0 0.0
  %6369 = vmatpush.msra.mxu0 0.0
  %6370 = vmatpush.msra.mxu0 0.0
  %6371 = vmatpush.msra.mxu0 0.0
  %6372 = vmatpush.msra.mxu0 0.0
  %6373 = vmatpush.msra.mxu0 0.0
  %6374 = vmatpush.msra.mxu0 0.0
  %6375 = vmatpush.msra.mxu0 0.0
  %6376 = vmatpush.msra.mxu0 0.0
  %6377 = vmatpush.msra.mxu0 0.0
  %6378 = vmatpush.msra.mxu0 0.0
  %6379 = vmatpush.msra.mxu0 0.0
  %v6380 = vand.u32 %v6284, 4294901760
  %6381 = vmatpush.msra.mxu0 %v6380
  %v6382 = vand.u32 %v6287, 4294901760
  %v6383 = vsub.f32 %v6287, %v6382
  %v6384 = vand.u32 %v6383, 4294901760
  %6385 = vmatmul.f32.gmra.mxu0 %v6384
  %v6386 = vpop.f32.mrf.mxu0
  %v6387 = vadd.f32 %v6363, %v6386
  %6388 = vdwg.mxu0
  %6389 = vmatpush.msra.mxu0 0.0
  %6390 = vmatpush.msra.mxu0 0.0
  %6391 = vmatpush.msra.mxu0 0.0
  %6392 = vmatpush.msra.mxu0 0.0
  %6393 = vmatpush.msra.mxu0 0.0
  %6394 = vmatpush.msra.mxu0 0.0
  %6395 = vmatpush.msra.mxu0 0.0
  %6396 = vmatpush.msra.mxu0 0.0
  %6397 = vmatpush.msra.mxu0 0.0
  %6398 = vmatpush.msra.mxu0 0.0
  %6399 = vmatpush.msra.mxu0 0.0
  %6400 = vmatpush.msra.mxu0 0.0
  %6401 = vmatpush.msra.mxu0 0.0
  %6402 = vmatpush.msra.mxu0 0.0
  %6403 = vmatpush.msra.mxu0 0.0
  %v6404 = vand.u32 %v6284, 4294901760
  %v6405 = vsub.f32 %v6284, %v6404
  %v6406 = vand.u32 %v6405, 4294901760
  %6407 = vmatpush.msra.mxu0 %v6406
  %v6408 = vand.u32 %v6287, 4294901760
  %6409 = vmatmul.f32.gmra.mxu0 %v6408
  %v6410 = vpop.f32.mrf.mxu0
  %v6411 = vadd.f32 %v6387, %v6410
  %6412 = vdwg.mxu0
  %6413 = vmatpush.msra.mxu0 0.0
  %6414 = vmatpush.msra.mxu0 0.0
  %6415 = vmatpush.msra.mxu0 0.0
  %6416 = vmatpush.msra.mxu0 0.0
  %6417 = vmatpush.msra.mxu0 0.0
  %6418 = vmatpush.msra.mxu0 0.0
  %6419 = vmatpush.msra.mxu0 0.0
  %6420 = vmatpush.msra.mxu0 0.0
  %6421 = vmatpush.msra.mxu0 0.0
  %6422 = vmatpush.msra.mxu0 0.0
  %6423 = vmatpush.msra.mxu0 0.0
  %6424 = vmatpush.msra.mxu0 0.0
  %6425 = vmatpush.msra.mxu0 0.0
  %6426 = vmatpush.msra.mxu0 0.0
  %6427 = vmatpush.msra.mxu0 0.0
  %v6428 = vand.u32 %v6284, 4294901760
  %6429 = vmatpush.msra.mxu0 %v6428
  %v6430 = vand.u32 %v6287, 4294901760
  %6431 = vmatmul.f32.gmra.mxu0 %v6430
  %v6432 = vpop.f32.mrf.mxu0
  %v6433 = vadd.f32 %v6411, %v6432
  %6434 = vdwg.mxu0
  %6435 = vrot.lane.b32.xlu0 %v4412, 64
  %v6436 = vpop.permute.xlu0 %6435
  %v6439 = vsel %vm488, %v5781, 0
  %6441 = vmatpush.msra.mxu0 0.0
  %6442 = vmatpush.msra.mxu0 0.0
  %6443 = vmatpush.msra.mxu0 0.0
  %6444 = vmatpush.msra.mxu0 0.0
  %6445 = vmatpush.msra.mxu0 0.0
  %6446 = vmatpush.msra.mxu0 0.0
  %6447 = vmatpush.msra.mxu0 0.0
  %6448 = vmatpush.msra.mxu0 0.0
  %6449 = vmatpush.msra.mxu0 0.0
  %6450 = vmatpush.msra.mxu0 0.0
  %6451 = vmatpush.msra.mxu0 0.0
  %6452 = vmatpush.msra.mxu0 0.0
  %6453 = vmatpush.msra.mxu0 0.0
  %6454 = vmatpush.msra.mxu0 0.0
  %6455 = vmatpush.msra.mxu0 0.0
  %v6456 = vand.u32 %v6436, 4294901760
  %6457 = vmatpush.msra.mxu0 %v6456
  %v6458 = vand.u32 %v6439, 4294901760
  %v6459 = vsub.f32 %v6439, %v6458
  %v6460 = vand.u32 %v6459, 4294901760
  %v6461 = vsub.f32 %v6459, %v6460
  %v6462 = vand.u32 %v6461, 4294901760
  %6463 = vmatmul.f32.gmra.mxu0 %v6462
  %v6464 = vpop.f32.mrf.mxu0
  %v6465 = vadd.f32 0.0, %v6464
  %6466 = vdwg.mxu0
  %6467 = vmatpush.msra.mxu0 0.0
  %6468 = vmatpush.msra.mxu0 0.0
  %6469 = vmatpush.msra.mxu0 0.0
  %6470 = vmatpush.msra.mxu0 0.0
  %6471 = vmatpush.msra.mxu0 0.0
  %6472 = vmatpush.msra.mxu0 0.0
  %6473 = vmatpush.msra.mxu0 0.0
  %6474 = vmatpush.msra.mxu0 0.0
  %6475 = vmatpush.msra.mxu0 0.0
  %6476 = vmatpush.msra.mxu0 0.0
  %6477 = vmatpush.msra.mxu0 0.0
  %6478 = vmatpush.msra.mxu0 0.0
  %6479 = vmatpush.msra.mxu0 0.0
  %6480 = vmatpush.msra.mxu0 0.0
  %6481 = vmatpush.msra.mxu0 0.0
  %v6482 = vand.u32 %v6436, 4294901760
  %v6483 = vsub.f32 %v6436, %v6482
  %v6484 = vand.u32 %v6483, 4294901760
  %v6485 = vsub.f32 %v6483, %v6484
  %v6486 = vand.u32 %v6485, 4294901760
  %6487 = vmatpush.msra.mxu0 %v6486
  %v6488 = vand.u32 %v6439, 4294901760
  %6489 = vmatmul.f32.gmra.mxu0 %v6488
  %v6490 = vpop.f32.mrf.mxu0
  %v6491 = vadd.f32 %v6465, %v6490
  %6492 = vdwg.mxu0
  %6493 = vmatpush.msra.mxu0 0.0
  %6494 = vmatpush.msra.mxu0 0.0
  %6495 = vmatpush.msra.mxu0 0.0
  %6496 = vmatpush.msra.mxu0 0.0
  %6497 = vmatpush.msra.mxu0 0.0
  %6498 = vmatpush.msra.mxu0 0.0
  %6499 = vmatpush.msra.mxu0 0.0
  %6500 = vmatpush.msra.mxu0 0.0
  %6501 = vmatpush.msra.mxu0 0.0
  %6502 = vmatpush.msra.mxu0 0.0
  %6503 = vmatpush.msra.mxu0 0.0
  %6504 = vmatpush.msra.mxu0 0.0
  %6505 = vmatpush.msra.mxu0 0.0
  %6506 = vmatpush.msra.mxu0 0.0
  %6507 = vmatpush.msra.mxu0 0.0
  %v6508 = vand.u32 %v6436, 4294901760
  %v6509 = vsub.f32 %v6436, %v6508
  %6510 = vmatpush.msra.mxu0 %v6509
  %v6511 = vand.u32 %v6439, 4294901760
  %v6512 = vsub.f32 %v6439, %v6511
  %6513 = vmatmul.f32.gmra.mxu0 %v6512
  %v6514 = vpop.f32.mrf.mxu0
  %v6515 = vadd.f32 %v6491, %v6514
  %6516 = vdwg.mxu0
  %6517 = vmatpush.msra.mxu0 0.0
  %6518 = vmatpush.msra.mxu0 0.0
  %6519 = vmatpush.msra.mxu0 0.0
  %6520 = vmatpush.msra.mxu0 0.0
  %6521 = vmatpush.msra.mxu0 0.0
  %6522 = vmatpush.msra.mxu0 0.0
  %6523 = vmatpush.msra.mxu0 0.0
  %6524 = vmatpush.msra.mxu0 0.0
  %6525 = vmatpush.msra.mxu0 0.0
  %6526 = vmatpush.msra.mxu0 0.0
  %6527 = vmatpush.msra.mxu0 0.0
  %6528 = vmatpush.msra.mxu0 0.0
  %6529 = vmatpush.msra.mxu0 0.0
  %6530 = vmatpush.msra.mxu0 0.0
  %6531 = vmatpush.msra.mxu0 0.0
  %v6532 = vand.u32 %v6436, 4294901760
  %6533 = vmatpush.msra.mxu0 %v6532
  %v6534 = vand.u32 %v6439, 4294901760
  %v6535 = vsub.f32 %v6439, %v6534
  %v6536 = vand.u32 %v6535, 4294901760
  %6537 = vmatmul.f32.gmra.mxu0 %v6536
  %v6538 = vpop.f32.mrf.mxu0
  %v6539 = vadd.f32 %v6515, %v6538
  %6540 = vdwg.mxu0
  %6541 = vmatpush.msra.mxu0 0.0
  %6542 = vmatpush.msra.mxu0 0.0
  %6543 = vmatpush.msra.mxu0 0.0
  %6544 = vmatpush.msra.mxu0 0.0
  %6545 = vmatpush.msra.mxu0 0.0
  %6546 = vmatpush.msra.mxu0 0.0
  %6547 = vmatpush.msra.mxu0 0.0
  %6548 = vmatpush.msra.mxu0 0.0
  %6549 = vmatpush.msra.mxu0 0.0
  %6550 = vmatpush.msra.mxu0 0.0
  %6551 = vmatpush.msra.mxu0 0.0
  %6552 = vmatpush.msra.mxu0 0.0
  %6553 = vmatpush.msra.mxu0 0.0
  %6554 = vmatpush.msra.mxu0 0.0
  %6555 = vmatpush.msra.mxu0 0.0
  %v6556 = vand.u32 %v6436, 4294901760
  %v6557 = vsub.f32 %v6436, %v6556
  %v6558 = vand.u32 %v6557, 4294901760
  %6559 = vmatpush.msra.mxu0 %v6558
  %v6560 = vand.u32 %v6439, 4294901760
  %6561 = vmatmul.f32.gmra.mxu0 %v6560
  %v6562 = vpop.f32.mrf.mxu0
  %v6563 = vadd.f32 %v6539, %v6562
  %6564 = vdwg.mxu0
  %6565 = vmatpush.msra.mxu0 0.0
  %6566 = vmatpush.msra.mxu0 0.0
  %6567 = vmatpush.msra.mxu0 0.0
  %6568 = vmatpush.msra.mxu0 0.0
  %6569 = vmatpush.msra.mxu0 0.0
  %6570 = vmatpush.msra.mxu0 0.0
  %6571 = vmatpush.msra.mxu0 0.0
  %6572 = vmatpush.msra.mxu0 0.0
  %6573 = vmatpush.msra.mxu0 0.0
  %6574 = vmatpush.msra.mxu0 0.0
  %6575 = vmatpush.msra.mxu0 0.0
  %6576 = vmatpush.msra.mxu0 0.0
  %6577 = vmatpush.msra.mxu0 0.0
  %6578 = vmatpush.msra.mxu0 0.0
  %6579 = vmatpush.msra.mxu0 0.0
  %v6580 = vand.u32 %v6436, 4294901760
  %6581 = vmatpush.msra.mxu0 %v6580
  %v6582 = vand.u32 %v6439, 4294901760
  %6583 = vmatmul.f32.gmra.mxu0 %v6582
  %v6584 = vpop.f32.mrf.mxu0
  %v6585 = vadd.f32 %v6563, %v6584
  %6586 = vdwg.mxu0
  %6587 = vrot.lane.b32.xlu0 %v4414, 64
  %v6588 = vpop.permute.xlu0 %6587
  %v6591 = vsel %vm488, %v5796, 0
  %6593 = vmatpush.msra.mxu0 0.0
  %6594 = vmatpush.msra.mxu0 0.0
  %6595 = vmatpush.msra.mxu0 0.0
  %6596 = vmatpush.msra.mxu0 0.0
  %6597 = vmatpush.msra.mxu0 0.0
  %6598 = vmatpush.msra.mxu0 0.0
  %6599 = vmatpush.msra.mxu0 0.0
  %6600 = vmatpush.msra.mxu0 0.0
  %6601 = vmatpush.msra.mxu0 0.0
  %6602 = vmatpush.msra.mxu0 0.0
  %6603 = vmatpush.msra.mxu0 0.0
  %6604 = vmatpush.msra.mxu0 0.0
  %6605 = vmatpush.msra.mxu0 0.0
  %6606 = vmatpush.msra.mxu0 0.0
  %6607 = vmatpush.msra.mxu0 0.0
  %v6608 = vand.u32 %v6588, 4294901760
  %6609 = vmatpush.msra.mxu0 %v6608
  %v6610 = vand.u32 %v6591, 4294901760
  %v6611 = vsub.f32 %v6591, %v6610
  %v6612 = vand.u32 %v6611, 4294901760
  %v6613 = vsub.f32 %v6611, %v6612
  %v6614 = vand.u32 %v6613, 4294901760
  %6615 = vmatmul.f32.gmra.mxu0 %v6614
  %v6616 = vpop.f32.mrf.mxu0
  %v6617 = vadd.f32 0.0, %v6616
  %6618 = vdwg.mxu0
  %6619 = vmatpush.msra.mxu0 0.0
  %6620 = vmatpush.msra.mxu0 0.0
  %6621 = vmatpush.msra.mxu0 0.0
  %6622 = vmatpush.msra.mxu0 0.0
  %6623 = vmatpush.msra.mxu0 0.0
  %6624 = vmatpush.msra.mxu0 0.0
  %6625 = vmatpush.msra.mxu0 0.0
  %6626 = vmatpush.msra.mxu0 0.0
  %6627 = vmatpush.msra.mxu0 0.0
  %6628 = vmatpush.msra.mxu0 0.0
  %6629 = vmatpush.msra.mxu0 0.0
  %6630 = vmatpush.msra.mxu0 0.0
  %6631 = vmatpush.msra.mxu0 0.0
  %6632 = vmatpush.msra.mxu0 0.0
  %6633 = vmatpush.msra.mxu0 0.0
  %v6634 = vand.u32 %v6588, 4294901760
  %v6635 = vsub.f32 %v6588, %v6634
  %v6636 = vand.u32 %v6635, 4294901760
  %v6637 = vsub.f32 %v6635, %v6636
  %v6638 = vand.u32 %v6637, 4294901760
  %6639 = vmatpush.msra.mxu0 %v6638
  %v6640 = vand.u32 %v6591, 4294901760
  %6641 = vmatmul.f32.gmra.mxu0 %v6640
  %v6642 = vpop.f32.mrf.mxu0
  %v6643 = vadd.f32 %v6617, %v6642
  %6644 = vdwg.mxu0
  %6645 = vmatpush.msra.mxu0 0.0
  %6646 = vmatpush.msra.mxu0 0.0
  %6647 = vmatpush.msra.mxu0 0.0
  %6648 = vmatpush.msra.mxu0 0.0
  %6649 = vmatpush.msra.mxu0 0.0
  %6650 = vmatpush.msra.mxu0 0.0
  %6651 = vmatpush.msra.mxu0 0.0
  %6652 = vmatpush.msra.mxu0 0.0
  %6653 = vmatpush.msra.mxu0 0.0
  %6654 = vmatpush.msra.mxu0 0.0
  %6655 = vmatpush.msra.mxu0 0.0
  %6656 = vmatpush.msra.mxu0 0.0
  %6657 = vmatpush.msra.mxu0 0.0
  %6658 = vmatpush.msra.mxu0 0.0
  %6659 = vmatpush.msra.mxu0 0.0
  %v6660 = vand.u32 %v6588, 4294901760
  %v6661 = vsub.f32 %v6588, %v6660
  %6662 = vmatpush.msra.mxu0 %v6661
  %v6663 = vand.u32 %v6591, 4294901760
  %v6664 = vsub.f32 %v6591, %v6663
  %6665 = vmatmul.f32.gmra.mxu0 %v6664
  %v6666 = vpop.f32.mrf.mxu0
  %v6667 = vadd.f32 %v6643, %v6666
  %6668 = vdwg.mxu0
  %6669 = vmatpush.msra.mxu0 0.0
  %6670 = vmatpush.msra.mxu0 0.0
  %6671 = vmatpush.msra.mxu0 0.0
  %6672 = vmatpush.msra.mxu0 0.0
  %6673 = vmatpush.msra.mxu0 0.0
  %6674 = vmatpush.msra.mxu0 0.0
  %6675 = vmatpush.msra.mxu0 0.0
  %6676 = vmatpush.msra.mxu0 0.0
  %6677 = vmatpush.msra.mxu0 0.0
  %6678 = vmatpush.msra.mxu0 0.0
  %6679 = vmatpush.msra.mxu0 0.0
  %6680 = vmatpush.msra.mxu0 0.0
  %6681 = vmatpush.msra.mxu0 0.0
  %6682 = vmatpush.msra.mxu0 0.0
  %6683 = vmatpush.msra.mxu0 0.0
  %v6684 = vand.u32 %v6588, 4294901760
  %6685 = vmatpush.msra.mxu0 %v6684
  %v6686 = vand.u32 %v6591, 4294901760
  %v6687 = vsub.f32 %v6591, %v6686
  %v6688 = vand.u32 %v6687, 4294901760
  %6689 = vmatmul.f32.gmra.mxu0 %v6688
  %v6690 = vpop.f32.mrf.mxu0
  %v6691 = vadd.f32 %v6667, %v6690
  %6692 = vdwg.mxu0
  %6693 = vmatpush.msra.mxu0 0.0
  %6694 = vmatpush.msra.mxu0 0.0
  %6695 = vmatpush.msra.mxu0 0.0
  %6696 = vmatpush.msra.mxu0 0.0
  %6697 = vmatpush.msra.mxu0 0.0
  %6698 = vmatpush.msra.mxu0 0.0
  %6699 = vmatpush.msra.mxu0 0.0
  %6700 = vmatpush.msra.mxu0 0.0
  %6701 = vmatpush.msra.mxu0 0.0
  %6702 = vmatpush.msra.mxu0 0.0
  %6703 = vmatpush.msra.mxu0 0.0
  %6704 = vmatpush.msra.mxu0 0.0
  %6705 = vmatpush.msra.mxu0 0.0
  %6706 = vmatpush.msra.mxu0 0.0
  %6707 = vmatpush.msra.mxu0 0.0
  %v6708 = vand.u32 %v6588, 4294901760
  %v6709 = vsub.f32 %v6588, %v6708
  %v6710 = vand.u32 %v6709, 4294901760
  %6711 = vmatpush.msra.mxu0 %v6710
  %v6712 = vand.u32 %v6591, 4294901760
  %6713 = vmatmul.f32.gmra.mxu0 %v6712
  %v6714 = vpop.f32.mrf.mxu0
  %v6715 = vadd.f32 %v6691, %v6714
  %6716 = vdwg.mxu0
  %6717 = vmatpush.msra.mxu0 0.0
  %6718 = vmatpush.msra.mxu0 0.0
  %6719 = vmatpush.msra.mxu0 0.0
  %6720 = vmatpush.msra.mxu0 0.0
  %6721 = vmatpush.msra.mxu0 0.0
  %6722 = vmatpush.msra.mxu0 0.0
  %6723 = vmatpush.msra.mxu0 0.0
  %6724 = vmatpush.msra.mxu0 0.0
  %6725 = vmatpush.msra.mxu0 0.0
  %6726 = vmatpush.msra.mxu0 0.0
  %6727 = vmatpush.msra.mxu0 0.0
  %6728 = vmatpush.msra.mxu0 0.0
  %6729 = vmatpush.msra.mxu0 0.0
  %6730 = vmatpush.msra.mxu0 0.0
  %6731 = vmatpush.msra.mxu0 0.0
  %v6732 = vand.u32 %v6588, 4294901760
  %6733 = vmatpush.msra.mxu0 %v6732
  %v6734 = vand.u32 %v6591, 4294901760
  %6735 = vmatmul.f32.gmra.mxu0 %v6734
  %v6736 = vpop.f32.mrf.mxu0
  %v6737 = vadd.f32 %v6715, %v6736
  %6738 = vdwg.mxu0
  %6739 = vrot.lane.b32.xlu0 %v4416, 64
  %v6740 = vpop.permute.xlu0 %6739
  %v6743 = vsel %vm488, %v5811, 0
  %6745 = vmatpush.msra.mxu0 0.0
  %6746 = vmatpush.msra.mxu0 0.0
  %6747 = vmatpush.msra.mxu0 0.0
  %6748 = vmatpush.msra.mxu0 0.0
  %6749 = vmatpush.msra.mxu0 0.0
  %6750 = vmatpush.msra.mxu0 0.0
  %6751 = vmatpush.msra.mxu0 0.0
  %6752 = vmatpush.msra.mxu0 0.0
  %6753 = vmatpush.msra.mxu0 0.0
  %6754 = vmatpush.msra.mxu0 0.0
  %6755 = vmatpush.msra.mxu0 0.0
  %6756 = vmatpush.msra.mxu0 0.0
  %6757 = vmatpush.msra.mxu0 0.0
  %6758 = vmatpush.msra.mxu0 0.0
  %6759 = vmatpush.msra.mxu0 0.0
  %v6760 = vand.u32 %v6740, 4294901760
  %6761 = vmatpush.msra.mxu0 %v6760
  %v6762 = vand.u32 %v6743, 4294901760
  %v6763 = vsub.f32 %v6743, %v6762
  %v6764 = vand.u32 %v6763, 4294901760
  %v6765 = vsub.f32 %v6763, %v6764
  %v6766 = vand.u32 %v6765, 4294901760
  %6767 = vmatmul.f32.gmra.mxu0 %v6766
  %v6768 = vpop.f32.mrf.mxu0
  %v6769 = vadd.f32 0.0, %v6768
  %6770 = vdwg.mxu0
  %6771 = vmatpush.msra.mxu0 0.0
  %6772 = vmatpush.msra.mxu0 0.0
  %6773 = vmatpush.msra.mxu0 0.0
  %6774 = vmatpush.msra.mxu0 0.0
  %6775 = vmatpush.msra.mxu0 0.0
  %6776 = vmatpush.msra.mxu0 0.0
  %6777 = vmatpush.msra.mxu0 0.0
  %6778 = vmatpush.msra.mxu0 0.0
  %6779 = vmatpush.msra.mxu0 0.0
  %6780 = vmatpush.msra.mxu0 0.0
  %6781 = vmatpush.msra.mxu0 0.0
  %6782 = vmatpush.msra.mxu0 0.0
  %6783 = vmatpush.msra.mxu0 0.0
  %6784 = vmatpush.msra.mxu0 0.0
  %6785 = vmatpush.msra.mxu0 0.0
  %v6786 = vand.u32 %v6740, 4294901760
  %v6787 = vsub.f32 %v6740, %v6786
  %v6788 = vand.u32 %v6787, 4294901760
  %v6789 = vsub.f32 %v6787, %v6788
  %v6790 = vand.u32 %v6789, 4294901760
  %6791 = vmatpush.msra.mxu0 %v6790
  %v6792 = vand.u32 %v6743, 4294901760
  %6793 = vmatmul.f32.gmra.mxu0 %v6792
  %v6794 = vpop.f32.mrf.mxu0
  %v6795 = vadd.f32 %v6769, %v6794
  %6796 = vdwg.mxu0
  %6797 = vmatpush.msra.mxu0 0.0
  %6798 = vmatpush.msra.mxu0 0.0
  %6799 = vmatpush.msra.mxu0 0.0
  %6800 = vmatpush.msra.mxu0 0.0
  %6801 = vmatpush.msra.mxu0 0.0
  %6802 = vmatpush.msra.mxu0 0.0
  %6803 = vmatpush.msra.mxu0 0.0
  %6804 = vmatpush.msra.mxu0 0.0
  %6805 = vmatpush.msra.mxu0 0.0
  %6806 = vmatpush.msra.mxu0 0.0
  %6807 = vmatpush.msra.mxu0 0.0
  %6808 = vmatpush.msra.mxu0 0.0
  %6809 = vmatpush.msra.mxu0 0.0
  %6810 = vmatpush.msra.mxu0 0.0
  %6811 = vmatpush.msra.mxu0 0.0
  %v6812 = vand.u32 %v6740, 4294901760
  %v6813 = vsub.f32 %v6740, %v6812
  %6814 = vmatpush.msra.mxu0 %v6813
  %v6815 = vand.u32 %v6743, 4294901760
  %v6816 = vsub.f32 %v6743, %v6815
  %6817 = vmatmul.f32.gmra.mxu0 %v6816
  %v6818 = vpop.f32.mrf.mxu0
  %v6819 = vadd.f32 %v6795, %v6818
  %6820 = vdwg.mxu0
  %6821 = vmatpush.msra.mxu0 0.0
  %6822 = vmatpush.msra.mxu0 0.0
  %6823 = vmatpush.msra.mxu0 0.0
  %6824 = vmatpush.msra.mxu0 0.0
  %6825 = vmatpush.msra.mxu0 0.0
  %6826 = vmatpush.msra.mxu0 0.0
  %6827 = vmatpush.msra.mxu0 0.0
  %6828 = vmatpush.msra.mxu0 0.0
  %6829 = vmatpush.msra.mxu0 0.0
  %6830 = vmatpush.msra.mxu0 0.0
  %6831 = vmatpush.msra.mxu0 0.0
  %6832 = vmatpush.msra.mxu0 0.0
  %6833 = vmatpush.msra.mxu0 0.0
  %6834 = vmatpush.msra.mxu0 0.0
  %6835 = vmatpush.msra.mxu0 0.0
  %v6836 = vand.u32 %v6740, 4294901760
  %6837 = vmatpush.msra.mxu0 %v6836
  %v6838 = vand.u32 %v6743, 4294901760
  %v6839 = vsub.f32 %v6743, %v6838
  %v6840 = vand.u32 %v6839, 4294901760
  %6841 = vmatmul.f32.gmra.mxu0 %v6840
  %v6842 = vpop.f32.mrf.mxu0
  %v6843 = vadd.f32 %v6819, %v6842
  %6844 = vdwg.mxu0
  %6845 = vmatpush.msra.mxu0 0.0
  %6846 = vmatpush.msra.mxu0 0.0
  %6847 = vmatpush.msra.mxu0 0.0
  %6848 = vmatpush.msra.mxu0 0.0
  %6849 = vmatpush.msra.mxu0 0.0
  %6850 = vmatpush.msra.mxu0 0.0
  %6851 = vmatpush.msra.mxu0 0.0
  %6852 = vmatpush.msra.mxu0 0.0
  %6853 = vmatpush.msra.mxu0 0.0
  %6854 = vmatpush.msra.mxu0 0.0
  %6855 = vmatpush.msra.mxu0 0.0
  %6856 = vmatpush.msra.mxu0 0.0
  %6857 = vmatpush.msra.mxu0 0.0
  %6858 = vmatpush.msra.mxu0 0.0
  %6859 = vmatpush.msra.mxu0 0.0
  %v6860 = vand.u32 %v6740, 4294901760
  %v6861 = vsub.f32 %v6740, %v6860
  %v6862 = vand.u32 %v6861, 4294901760
  %6863 = vmatpush.msra.mxu0 %v6862
  %v6864 = vand.u32 %v6743, 4294901760
  %6865 = vmatmul.f32.gmra.mxu0 %v6864
  %v6866 = vpop.f32.mrf.mxu0
  %v6867 = vadd.f32 %v6843, %v6866
  %6868 = vdwg.mxu0
  %6869 = vmatpush.msra.mxu0 0.0
  %6870 = vmatpush.msra.mxu0 0.0
  %6871 = vmatpush.msra.mxu0 0.0
  %6872 = vmatpush.msra.mxu0 0.0
  %6873 = vmatpush.msra.mxu0 0.0
  %6874 = vmatpush.msra.mxu0 0.0
  %6875 = vmatpush.msra.mxu0 0.0
  %6876 = vmatpush.msra.mxu0 0.0
  %6877 = vmatpush.msra.mxu0 0.0
  %6878 = vmatpush.msra.mxu0 0.0
  %6879 = vmatpush.msra.mxu0 0.0
  %6880 = vmatpush.msra.mxu0 0.0
  %6881 = vmatpush.msra.mxu0 0.0
  %6882 = vmatpush.msra.mxu0 0.0
  %6883 = vmatpush.msra.mxu0 0.0
  %v6884 = vand.u32 %v6740, 4294901760
  %6885 = vmatpush.msra.mxu0 %v6884
  %v6886 = vand.u32 %v6743, 4294901760
  %6887 = vmatmul.f32.gmra.mxu0 %v6886
  %v6888 = vpop.f32.mrf.mxu0
  %v6889 = vadd.f32 %v6867, %v6888
  %6890 = vdwg.mxu0
  %6891 = vrot.lane.b32.xlu0 %v4418, 64
  %v6892 = vpop.permute.xlu0 %6891
  %v6895 = vsel %vm488, %v5826, 0
  %6897 = vmatpush.msra.mxu0 0.0
  %6898 = vmatpush.msra.mxu0 0.0
  %6899 = vmatpush.msra.mxu0 0.0
  %6900 = vmatpush.msra.mxu0 0.0
  %6901 = vmatpush.msra.mxu0 0.0
  %6902 = vmatpush.msra.mxu0 0.0
  %6903 = vmatpush.msra.mxu0 0.0
  %6904 = vmatpush.msra.mxu0 0.0
  %6905 = vmatpush.msra.mxu0 0.0
  %6906 = vmatpush.msra.mxu0 0.0
  %6907 = vmatpush.msra.mxu0 0.0
  %6908 = vmatpush.msra.mxu0 0.0
  %6909 = vmatpush.msra.mxu0 0.0
  %6910 = vmatpush.msra.mxu0 0.0
  %6911 = vmatpush.msra.mxu0 0.0
  %v6912 = vand.u32 %v6892, 4294901760
  %6913 = vmatpush.msra.mxu0 %v6912
  %v6914 = vand.u32 %v6895, 4294901760
  %v6915 = vsub.f32 %v6895, %v6914
  %v6916 = vand.u32 %v6915, 4294901760
  %v6917 = vsub.f32 %v6915, %v6916
  %v6918 = vand.u32 %v6917, 4294901760
  %6919 = vmatmul.f32.gmra.mxu0 %v6918
  %v6920 = vpop.f32.mrf.mxu0
  %v6921 = vadd.f32 0.0, %v6920
  %6922 = vdwg.mxu0
  %6923 = vmatpush.msra.mxu0 0.0
  %6924 = vmatpush.msra.mxu0 0.0
  %6925 = vmatpush.msra.mxu0 0.0
  %6926 = vmatpush.msra.mxu0 0.0
  %6927 = vmatpush.msra.mxu0 0.0
  %6928 = vmatpush.msra.mxu0 0.0
  %6929 = vmatpush.msra.mxu0 0.0
  %6930 = vmatpush.msra.mxu0 0.0
  %6931 = vmatpush.msra.mxu0 0.0
  %6932 = vmatpush.msra.mxu0 0.0
  %6933 = vmatpush.msra.mxu0 0.0
  %6934 = vmatpush.msra.mxu0 0.0
  %6935 = vmatpush.msra.mxu0 0.0
  %6936 = vmatpush.msra.mxu0 0.0
  %6937 = vmatpush.msra.mxu0 0.0
  %v6938 = vand.u32 %v6892, 4294901760
  %v6939 = vsub.f32 %v6892, %v6938
  %v6940 = vand.u32 %v6939, 4294901760
  %v6941 = vsub.f32 %v6939, %v6940
  %v6942 = vand.u32 %v6941, 4294901760
  %6943 = vmatpush.msra.mxu0 %v6942
  %v6944 = vand.u32 %v6895, 4294901760
  %6945 = vmatmul.f32.gmra.mxu0 %v6944
  %v6946 = vpop.f32.mrf.mxu0
  %v6947 = vadd.f32 %v6921, %v6946
  %6948 = vdwg.mxu0
  %6949 = vmatpush.msra.mxu0 0.0
  %6950 = vmatpush.msra.mxu0 0.0
  %6951 = vmatpush.msra.mxu0 0.0
  %6952 = vmatpush.msra.mxu0 0.0
  %6953 = vmatpush.msra.mxu0 0.0
  %6954 = vmatpush.msra.mxu0 0.0
  %6955 = vmatpush.msra.mxu0 0.0
  %6956 = vmatpush.msra.mxu0 0.0
  %6957 = vmatpush.msra.mxu0 0.0
  %6958 = vmatpush.msra.mxu0 0.0
  %6959 = vmatpush.msra.mxu0 0.0
  %6960 = vmatpush.msra.mxu0 0.0
  %6961 = vmatpush.msra.mxu0 0.0
  %6962 = vmatpush.msra.mxu0 0.0
  %6963 = vmatpush.msra.mxu0 0.0
  %v6964 = vand.u32 %v6892, 4294901760
  %v6965 = vsub.f32 %v6892, %v6964
  %6966 = vmatpush.msra.mxu0 %v6965
  %v6967 = vand.u32 %v6895, 4294901760
  %v6968 = vsub.f32 %v6895, %v6967
  %6969 = vmatmul.f32.gmra.mxu0 %v6968
  %v6970 = vpop.f32.mrf.mxu0
  %v6971 = vadd.f32 %v6947, %v6970
  %6972 = vdwg.mxu0
  %6973 = vmatpush.msra.mxu0 0.0
  %6974 = vmatpush.msra.mxu0 0.0
  %6975 = vmatpush.msra.mxu0 0.0
  %6976 = vmatpush.msra.mxu0 0.0
  %6977 = vmatpush.msra.mxu0 0.0
  %6978 = vmatpush.msra.mxu0 0.0
  %6979 = vmatpush.msra.mxu0 0.0
  %6980 = vmatpush.msra.mxu0 0.0
  %6981 = vmatpush.msra.mxu0 0.0
  %6982 = vmatpush.msra.mxu0 0.0
  %6983 = vmatpush.msra.mxu0 0.0
  %6984 = vmatpush.msra.mxu0 0.0
  %6985 = vmatpush.msra.mxu0 0.0
  %6986 = vmatpush.msra.mxu0 0.0
  %6987 = vmatpush.msra.mxu0 0.0
  %v6988 = vand.u32 %v6892, 4294901760
  %6989 = vmatpush.msra.mxu0 %v6988
  %v6990 = vand.u32 %v6895, 4294901760
  %v6991 = vsub.f32 %v6895, %v6990
  %v6992 = vand.u32 %v6991, 4294901760
  %6993 = vmatmul.f32.gmra.mxu0 %v6992
  %v6994 = vpop.f32.mrf.mxu0
  %v6995 = vadd.f32 %v6971, %v6994
  %6996 = vdwg.mxu0
  %6997 = vmatpush.msra.mxu0 0.0
  %6998 = vmatpush.msra.mxu0 0.0
  %6999 = vmatpush.msra.mxu0 0.0
  %7000 = vmatpush.msra.mxu0 0.0
  %7001 = vmatpush.msra.mxu0 0.0
  %7002 = vmatpush.msra.mxu0 0.0
  %7003 = vmatpush.msra.mxu0 0.0
  %7004 = vmatpush.msra.mxu0 0.0
  %7005 = vmatpush.msra.mxu0 0.0
  %7006 = vmatpush.msra.mxu0 0.0
  %7007 = vmatpush.msra.mxu0 0.0
  %7008 = vmatpush.msra.mxu0 0.0
  %7009 = vmatpush.msra.mxu0 0.0
  %7010 = vmatpush.msra.mxu0 0.0
  %7011 = vmatpush.msra.mxu0 0.0
  %v7012 = vand.u32 %v6892, 4294901760
  %v7013 = vsub.f32 %v6892, %v7012
  %v7014 = vand.u32 %v7013, 4294901760
  %7015 = vmatpush.msra.mxu0 %v7014
  %v7016 = vand.u32 %v6895, 4294901760
  %7017 = vmatmul.f32.gmra.mxu0 %v7016
  %v7018 = vpop.f32.mrf.mxu0
  %v7019 = vadd.f32 %v6995, %v7018
  %7020 = vdwg.mxu0
  %7021 = vmatpush.msra.mxu0 0.0
  %7022 = vmatpush.msra.mxu0 0.0
  %7023 = vmatpush.msra.mxu0 0.0
  %7024 = vmatpush.msra.mxu0 0.0
  %7025 = vmatpush.msra.mxu0 0.0
  %7026 = vmatpush.msra.mxu0 0.0
  %7027 = vmatpush.msra.mxu0 0.0
  %7028 = vmatpush.msra.mxu0 0.0
  %7029 = vmatpush.msra.mxu0 0.0
  %7030 = vmatpush.msra.mxu0 0.0
  %7031 = vmatpush.msra.mxu0 0.0
  %7032 = vmatpush.msra.mxu0 0.0
  %7033 = vmatpush.msra.mxu0 0.0
  %7034 = vmatpush.msra.mxu0 0.0
  %7035 = vmatpush.msra.mxu0 0.0
  %v7036 = vand.u32 %v6892, 4294901760
  %7037 = vmatpush.msra.mxu0 %v7036
  %v7038 = vand.u32 %v6895, 4294901760
  %7039 = vmatmul.f32.gmra.mxu0 %v7038
  %v7040 = vpop.f32.mrf.mxu0
  %v7041 = vadd.f32 %v7019, %v7040
  %7042 = vdwg.mxu0
  %7045 = vrot.lane.b32.xlu0 %v6281, 8
  %v7046 = vpop.permute.xlu0 %7045
  %7047 = vrot.lane.b32.xlu0 %v6433, 8
  %v7048 = vpop.permute.xlu0 %7047
  %7053 = vrot.lane.b32.xlu0 %v6585, 16
  %v7054 = vpop.permute.xlu0 %7053
  %7055 = vrot.lane.b32.xlu0 %v6737, 16
  %v7056 = vpop.permute.xlu0 %7055
  %7061 = vrot.lane.b32.xlu0 %v6889, 24
  %v7062 = vpop.permute.xlu0 %7061
  %7063 = vrot.lane.b32.xlu0 %v7041, 24
  %v7064 = vpop.permute.xlu0 %7063
  %v7067 = vsel %vm488, %v5977, %v7046
  %v7068 = vsel %vm488, %v6129, %v7048
  %v7069 = vsel %vm19, %v7067, %v7054
  %v7070 = vsel %vm19, %v7068, %v7056
  %v7071 = vsel %vm3139, %v7069, %v7062
  %v7072 = vsel %vm3139, %v7070, %v7064
  %v7073 = vperm.slane %v4172, 0
  %v7075 = vsel %vm249, %v7071, 0
  %v7078 = vsel %vm249, %v7072, 0
  %7080 = vmatpush.msra.mxu0 0.0
  %7081 = vmatpush.msra.mxu0 0.0
  %7082 = vmatpush.msra.mxu0 0.0
  %7083 = vmatpush.msra.mxu0 0.0
  %7084 = vmatpush.msra.mxu0 0.0
  %7085 = vmatpush.msra.mxu0 0.0
  %7086 = vmatpush.msra.mxu0 0.0
  %7087 = vmatpush.msra.mxu0 0.0
  %7088 = vmatpush.msra.mxu0 0.0
  %7089 = vmatpush.msra.mxu0 0.0
  %7090 = vmatpush.msra.mxu0 0.0
  %7091 = vmatpush.msra.mxu0 0.0
  %v7092 = vand.u32 %v4155, 4294901760
  %7093 = vmatpush.msra.mxu0 %v7092
  %v7094 = vand.u32 %v4154, 4294901760
  %7095 = vmatpush.msra.mxu0 %v7094
  %v7096 = vand.u32 %v4153, 4294901760
  %7097 = vmatpush.msra.mxu0 %v7096
  %v7098 = vand.u32 %v4152, 4294901760
  %7099 = vmatpush.msra.mxu0 %v7098
  %v7100 = vand.u32 %v7075, 4294901760
  %v7101 = vsub.f32 %v7075, %v7100
  %v7102 = vand.u32 %v7101, 4294901760
  %v7103 = vsub.f32 %v7101, %v7102
  %v7104 = vand.u32 %v7103, 4294901760
  %7105 = vmatmul.f32.gmra.mxu0 %v7104
  %v7106 = vpop.f32.mrf.mxu0
  %v7107 = vadd.f32 %v7073, %v7106
  %v7108 = vand.u32 %v7078, 4294901760
  %v7109 = vsub.f32 %v7078, %v7108
  %v7110 = vand.u32 %v7109, 4294901760
  %v7111 = vsub.f32 %v7109, %v7110
  %v7112 = vand.u32 %v7111, 4294901760
  %7113 = vmatmul.f32.gmra.mxu0 %v7112
  %v7114 = vpop.f32.mrf.mxu0
  %v7115 = vadd.f32 %v7073, %v7114
  %7116 = vdwg.mxu0
  %7117 = vmatpush.msra.mxu0 0.0
  %7118 = vmatpush.msra.mxu0 0.0
  %7119 = vmatpush.msra.mxu0 0.0
  %7120 = vmatpush.msra.mxu0 0.0
  %7121 = vmatpush.msra.mxu0 0.0
  %7122 = vmatpush.msra.mxu0 0.0
  %7123 = vmatpush.msra.mxu0 0.0
  %7124 = vmatpush.msra.mxu0 0.0
  %7125 = vmatpush.msra.mxu0 0.0
  %7126 = vmatpush.msra.mxu0 0.0
  %7127 = vmatpush.msra.mxu0 0.0
  %7128 = vmatpush.msra.mxu0 0.0
  %v7129 = vand.u32 %v4155, 4294901760
  %v7130 = vsub.f32 %v4155, %v7129
  %v7131 = vand.u32 %v7130, 4294901760
  %v7132 = vsub.f32 %v7130, %v7131
  %v7133 = vand.u32 %v7132, 4294901760
  %7134 = vmatpush.msra.mxu0 %v7133
  %v7135 = vand.u32 %v4154, 4294901760
  %v7136 = vsub.f32 %v4154, %v7135
  %v7137 = vand.u32 %v7136, 4294901760
  %v7138 = vsub.f32 %v7136, %v7137
  %v7139 = vand.u32 %v7138, 4294901760
  %7140 = vmatpush.msra.mxu0 %v7139
  %v7141 = vand.u32 %v4153, 4294901760
  %v7142 = vsub.f32 %v4153, %v7141
  %v7143 = vand.u32 %v7142, 4294901760
  %v7144 = vsub.f32 %v7142, %v7143
  %v7145 = vand.u32 %v7144, 4294901760
  %7146 = vmatpush.msra.mxu0 %v7145
  %v7147 = vand.u32 %v4152, 4294901760
  %v7148 = vsub.f32 %v4152, %v7147
  %v7149 = vand.u32 %v7148, 4294901760
  %v7150 = vsub.f32 %v7148, %v7149
  %v7151 = vand.u32 %v7150, 4294901760
  %7152 = vmatpush.msra.mxu0 %v7151
  %v7153 = vand.u32 %v7075, 4294901760
  %7154 = vmatmul.f32.gmra.mxu0 %v7153
  %v7155 = vpop.f32.mrf.mxu0
  %v7156 = vadd.f32 %v7107, %v7155
  %v7157 = vand.u32 %v7078, 4294901760
  %7158 = vmatmul.f32.gmra.mxu0 %v7157
  %v7159 = vpop.f32.mrf.mxu0
  %v7160 = vadd.f32 %v7115, %v7159
  %7161 = vdwg.mxu0
  %7162 = vmatpush.msra.mxu0 0.0
  %7163 = vmatpush.msra.mxu0 0.0
  %7164 = vmatpush.msra.mxu0 0.0
  %7165 = vmatpush.msra.mxu0 0.0
  %7166 = vmatpush.msra.mxu0 0.0
  %7167 = vmatpush.msra.mxu0 0.0
  %7168 = vmatpush.msra.mxu0 0.0
  %7169 = vmatpush.msra.mxu0 0.0
  %7170 = vmatpush.msra.mxu0 0.0
  %7171 = vmatpush.msra.mxu0 0.0
  %7172 = vmatpush.msra.mxu0 0.0
  %7173 = vmatpush.msra.mxu0 0.0
  %v7174 = vand.u32 %v4155, 4294901760
  %v7175 = vsub.f32 %v4155, %v7174
  %7176 = vmatpush.msra.mxu0 %v7175
  %v7177 = vand.u32 %v4154, 4294901760
  %v7178 = vsub.f32 %v4154, %v7177
  %7179 = vmatpush.msra.mxu0 %v7178
  %v7180 = vand.u32 %v4153, 4294901760
  %v7181 = vsub.f32 %v4153, %v7180
  %7182 = vmatpush.msra.mxu0 %v7181
  %v7183 = vand.u32 %v4152, 4294901760
  %v7184 = vsub.f32 %v4152, %v7183
  %7185 = vmatpush.msra.mxu0 %v7184
  %v7186 = vand.u32 %v7075, 4294901760
  %v7187 = vsub.f32 %v7075, %v7186
  %7188 = vmatmul.f32.gmra.mxu0 %v7187
  %v7189 = vpop.f32.mrf.mxu0
  %v7190 = vadd.f32 %v7156, %v7189
  %v7191 = vand.u32 %v7078, 4294901760
  %v7192 = vsub.f32 %v7078, %v7191
  %7193 = vmatmul.f32.gmra.mxu0 %v7192
  %v7194 = vpop.f32.mrf.mxu0
  %v7195 = vadd.f32 %v7160, %v7194
  %7196 = vdwg.mxu0
  %7197 = vmatpush.msra.mxu0 0.0
  %7198 = vmatpush.msra.mxu0 0.0
  %7199 = vmatpush.msra.mxu0 0.0
  %7200 = vmatpush.msra.mxu0 0.0
  %7201 = vmatpush.msra.mxu0 0.0
  %7202 = vmatpush.msra.mxu0 0.0
  %7203 = vmatpush.msra.mxu0 0.0
  %7204 = vmatpush.msra.mxu0 0.0
  %7205 = vmatpush.msra.mxu0 0.0
  %7206 = vmatpush.msra.mxu0 0.0
  %7207 = vmatpush.msra.mxu0 0.0
  %7208 = vmatpush.msra.mxu0 0.0
  %v7209 = vand.u32 %v4155, 4294901760
  %7210 = vmatpush.msra.mxu0 %v7209
  %v7211 = vand.u32 %v4154, 4294901760
  %7212 = vmatpush.msra.mxu0 %v7211
  %v7213 = vand.u32 %v4153, 4294901760
  %7214 = vmatpush.msra.mxu0 %v7213
  %v7215 = vand.u32 %v4152, 4294901760
  %7216 = vmatpush.msra.mxu0 %v7215
  %v7217 = vand.u32 %v7075, 4294901760
  %v7218 = vsub.f32 %v7075, %v7217
  %v7219 = vand.u32 %v7218, 4294901760
  %7220 = vmatmul.f32.gmra.mxu0 %v7219
  %v7221 = vpop.f32.mrf.mxu0
  %v7222 = vadd.f32 %v7190, %v7221
  %v7223 = vand.u32 %v7078, 4294901760
  %v7224 = vsub.f32 %v7078, %v7223
  %v7225 = vand.u32 %v7224, 4294901760
  %7226 = vmatmul.f32.gmra.mxu0 %v7225
  %v7227 = vpop.f32.mrf.mxu0
  %v7228 = vadd.f32 %v7195, %v7227
  %7229 = vdwg.mxu0
  %7230 = vmatpush.msra.mxu0 0.0
  %7231 = vmatpush.msra.mxu0 0.0
  %7232 = vmatpush.msra.mxu0 0.0
  %7233 = vmatpush.msra.mxu0 0.0
  %7234 = vmatpush.msra.mxu0 0.0
  %7235 = vmatpush.msra.mxu0 0.0
  %7236 = vmatpush.msra.mxu0 0.0
  %7237 = vmatpush.msra.mxu0 0.0
  %7238 = vmatpush.msra.mxu0 0.0
  %7239 = vmatpush.msra.mxu0 0.0
  %7240 = vmatpush.msra.mxu0 0.0
  %7241 = vmatpush.msra.mxu0 0.0
  %v7242 = vand.u32 %v4155, 4294901760
  %v7243 = vsub.f32 %v4155, %v7242
  %v7244 = vand.u32 %v7243, 4294901760
  %7245 = vmatpush.msra.mxu0 %v7244
  %v7246 = vand.u32 %v4154, 4294901760
  %v7247 = vsub.f32 %v4154, %v7246
  %v7248 = vand.u32 %v7247, 4294901760
  %7249 = vmatpush.msra.mxu0 %v7248
  %v7250 = vand.u32 %v4153, 4294901760
  %v7251 = vsub.f32 %v4153, %v7250
  %v7252 = vand.u32 %v7251, 4294901760
  %7253 = vmatpush.msra.mxu0 %v7252
  %v7254 = vand.u32 %v4152, 4294901760
  %v7255 = vsub.f32 %v4152, %v7254
  %v7256 = vand.u32 %v7255, 4294901760
  %7257 = vmatpush.msra.mxu0 %v7256
  %v7258 = vand.u32 %v7075, 4294901760
  %7259 = vmatmul.f32.gmra.mxu0 %v7258
  %v7260 = vpop.f32.mrf.mxu0
  %v7261 = vadd.f32 %v7222, %v7260
  %v7262 = vand.u32 %v7078, 4294901760
  %7263 = vmatmul.f32.gmra.mxu0 %v7262
  %v7264 = vpop.f32.mrf.mxu0
  %v7265 = vadd.f32 %v7228, %v7264
  %7266 = vdwg.mxu0
  %7267 = vmatpush.msra.mxu0 0.0
  %7268 = vmatpush.msra.mxu0 0.0
  %7269 = vmatpush.msra.mxu0 0.0
  %7270 = vmatpush.msra.mxu0 0.0
  %7271 = vmatpush.msra.mxu0 0.0
  %7272 = vmatpush.msra.mxu0 0.0
  %7273 = vmatpush.msra.mxu0 0.0
  %7274 = vmatpush.msra.mxu0 0.0
  %7275 = vmatpush.msra.mxu0 0.0
  %7276 = vmatpush.msra.mxu0 0.0
  %7277 = vmatpush.msra.mxu0 0.0
  %7278 = vmatpush.msra.mxu0 0.0
  %v7279 = vand.u32 %v4155, 4294901760
  %7280 = vmatpush.msra.mxu0 %v7279
  %v7281 = vand.u32 %v4154, 4294901760
  %7282 = vmatpush.msra.mxu0 %v7281
  %v7283 = vand.u32 %v4153, 4294901760
  %7284 = vmatpush.msra.mxu0 %v7283
  %v7285 = vand.u32 %v4152, 4294901760
  %7286 = vmatpush.msra.mxu0 %v7285
  %v7287 = vand.u32 %v7075, 4294901760
  %7288 = vmatmul.f32.gmra.mxu0 %v7287
  %v7289 = vpop.f32.mrf.mxu0
  %v7290 = vadd.f32 %v7261, %v7289
  %v7291 = vand.u32 %v7078, 4294901760
  %7292 = vmatmul.f32.gmra.mxu0 %v7291
  %v7293 = vpop.f32.mrf.mxu0
  %v7294 = vadd.f32 %v7265, %v7293
  %7295 = vdwg.mxu0
  %v7296 = vadd.f32 %v4150, %v7290
  %v7297 = vadd.f32 %v4151, %v7294
  %v7298 = vsel %vm249, %v7296, 0.0
  %7299 = vadd.xlane.f32.xlu0 %v7298
  %v7300 = vpop.xlane.xlu0 %7299
  %v7301 = vsel %vm249, %v7297, 0.0
  %7302 = vadd.xlane.f32.xlu0 %v7301
  %v7303 = vpop.xlane.xlu0 %7302
  %v7304 = vmul.f32 %v7300, %v3379
  %v7305 = vmul.f32 %v7303, %v3379
  %v7306 = vsub.f32 %v7296, %v7304
  %v7307 = vsub.f32 %v7297, %v7305
  %v7308 = vmul.f32 %v7306, %v7306
  %v7309 = vmul.f32 %v7307, %v7307
  %v7310 = vsel %vm249, %v7308, 0.0
  %7311 = vadd.xlane.f32.xlu0 %v7310
  %v7312 = vpop.xlane.xlu0 %7311
  %v7313 = vsel %vm249, %v7309, 0.0
  %7314 = vadd.xlane.f32.xlu0 %v7313
  %v7315 = vpop.xlane.xlu0 %7314
  %v7316 = vmul.f32 %v7312, %v3379
  %v7317 = vmul.f32 %v7315, %v3379
  %v7318 = vadd.f32 %v7316, 1e-05
  %v7319 = vadd.f32 %v7317, 1e-05
  %v7320 = vrsqrt.pop %v7318
  %v7321 = vmul.f32 %v7320, %v7318
  %v7322 = vmul.f32 %v7321, %v7320
  %v7323 = vmul.f32 0.5, %v7322
  %v7324 = vsub.f32 1.5, %v7323
  %v7325 = vmul.f32 %v7320, %v7324
  %vm7326 = vweird.f32 %v7318
  %vm7327 = vweird.f32 %v7320
  %vm7328 = vmor %vm7326, %vm7327
  %v7329 = vsel %vm7328, %v7320, %v7325
  %v7330 = vrsqrt.pop %v7319
  %v7331 = vmul.f32 %v7330, %v7319
  %v7332 = vmul.f32 %v7331, %v7330
  %v7333 = vmul.f32 0.5, %v7332
  %v7334 = vsub.f32 1.5, %v7333
  %v7335 = vmul.f32 %v7330, %v7334
  %vm7336 = vweird.f32 %v7319
  %vm7337 = vweird.f32 %v7330
  %vm7338 = vmor %vm7336, %vm7337
  %v7339 = vsel %vm7338, %v7330, %v7335
  %v7340 = vmul.f32 %v7306, %v7329
  %v7341 = vmul.f32 %v7307, %v7339
  %v7342 = vperm.slane %v4172, 1
  %v7343 = vmul.f32 %v7340, %v7342
  %v7344 = vmul.f32 %v7341, %v7342
  %v7345 = vperm.slane %v4172, 2
  %v7346 = vadd.f32 %v7343, %v7345
  %v7347 = vadd.f32 %v7344, %v7345
  %v7348 = vperm.slane %v4181, 1
  %v7350 = vsel %vm249, %v7346, 0
  %v7353 = vsel %vm249, %v7347, 0
  %7355 = vmatpush.msra.mxu0 0.0
  %7356 = vmatpush.msra.mxu0 0.0
  %7357 = vmatpush.msra.mxu0 0.0
  %7358 = vmatpush.msra.mxu0 0.0
  %7359 = vmatpush.msra.mxu0 0.0
  %7360 = vmatpush.msra.mxu0 0.0
  %7361 = vmatpush.msra.mxu0 0.0
  %7362 = vmatpush.msra.mxu0 0.0
  %7363 = vmatpush.msra.mxu0 0.0
  %7364 = vmatpush.msra.mxu0 0.0
  %7365 = vmatpush.msra.mxu0 0.0
  %7366 = vmatpush.msra.mxu0 0.0
  %v7367 = vand.u32 %v4180, 4294901760
  %7368 = vmatpush.msra.mxu0 %v7367
  %v7369 = vand.u32 %v4179, 4294901760
  %7370 = vmatpush.msra.mxu0 %v7369
  %v7371 = vand.u32 %v4178, 4294901760
  %7372 = vmatpush.msra.mxu0 %v7371
  %v7373 = vand.u32 %v4177, 4294901760
  %7374 = vmatpush.msra.mxu0 %v7373
  %v7375 = vand.u32 %v7350, 4294901760
  %v7376 = vsub.f32 %v7350, %v7375
  %v7377 = vand.u32 %v7376, 4294901760
  %v7378 = vsub.f32 %v7376, %v7377
  %v7379 = vand.u32 %v7378, 4294901760
  %7380 = vmatmul.f32.gmra.mxu0 %v7379
  %v7381 = vpop.f32.mrf.mxu0
  %v7382 = vadd.f32 %v7348, %v7381
  %v7383 = vand.u32 %v7353, 4294901760
  %v7384 = vsub.f32 %v7353, %v7383
  %v7385 = vand.u32 %v7384, 4294901760
  %v7386 = vsub.f32 %v7384, %v7385
  %v7387 = vand.u32 %v7386, 4294901760
  %7388 = vmatmul.f32.gmra.mxu0 %v7387
  %v7389 = vpop.f32.mrf.mxu0
  %v7390 = vadd.f32 %v7348, %v7389
  %7391 = vdwg.mxu0
  %7392 = vmatpush.msra.mxu0 0.0
  %7393 = vmatpush.msra.mxu0 0.0
  %7394 = vmatpush.msra.mxu0 0.0
  %7395 = vmatpush.msra.mxu0 0.0
  %7396 = vmatpush.msra.mxu0 0.0
  %7397 = vmatpush.msra.mxu0 0.0
  %7398 = vmatpush.msra.mxu0 0.0
  %7399 = vmatpush.msra.mxu0 0.0
  %7400 = vmatpush.msra.mxu0 0.0
  %7401 = vmatpush.msra.mxu0 0.0
  %7402 = vmatpush.msra.mxu0 0.0
  %7403 = vmatpush.msra.mxu0 0.0
  %v7404 = vand.u32 %v4180, 4294901760
  %v7405 = vsub.f32 %v4180, %v7404
  %v7406 = vand.u32 %v7405, 4294901760
  %v7407 = vsub.f32 %v7405, %v7406
  %v7408 = vand.u32 %v7407, 4294901760
  %7409 = vmatpush.msra.mxu0 %v7408
  %v7410 = vand.u32 %v4179, 4294901760
  %v7411 = vsub.f32 %v4179, %v7410
  %v7412 = vand.u32 %v7411, 4294901760
  %v7413 = vsub.f32 %v7411, %v7412
  %v7414 = vand.u32 %v7413, 4294901760
  %7415 = vmatpush.msra.mxu0 %v7414
  %v7416 = vand.u32 %v4178, 4294901760
  %v7417 = vsub.f32 %v4178, %v7416
  %v7418 = vand.u32 %v7417, 4294901760
  %v7419 = vsub.f32 %v7417, %v7418
  %v7420 = vand.u32 %v7419, 4294901760
  %7421 = vmatpush.msra.mxu0 %v7420
  %v7422 = vand.u32 %v4177, 4294901760
  %v7423 = vsub.f32 %v4177, %v7422
  %v7424 = vand.u32 %v7423, 4294901760
  %v7425 = vsub.f32 %v7423, %v7424
  %v7426 = vand.u32 %v7425, 4294901760
  %7427 = vmatpush.msra.mxu0 %v7426
  %v7428 = vand.u32 %v7350, 4294901760
  %7429 = vmatmul.f32.gmra.mxu0 %v7428
  %v7430 = vpop.f32.mrf.mxu0
  %v7431 = vadd.f32 %v7382, %v7430
  %v7432 = vand.u32 %v7353, 4294901760
  %7433 = vmatmul.f32.gmra.mxu0 %v7432
  %v7434 = vpop.f32.mrf.mxu0
  %v7435 = vadd.f32 %v7390, %v7434
  %7436 = vdwg.mxu0
  %7437 = vmatpush.msra.mxu0 0.0
  %7438 = vmatpush.msra.mxu0 0.0
  %7439 = vmatpush.msra.mxu0 0.0
  %7440 = vmatpush.msra.mxu0 0.0
  %7441 = vmatpush.msra.mxu0 0.0
  %7442 = vmatpush.msra.mxu0 0.0
  %7443 = vmatpush.msra.mxu0 0.0
  %7444 = vmatpush.msra.mxu0 0.0
  %7445 = vmatpush.msra.mxu0 0.0
  %7446 = vmatpush.msra.mxu0 0.0
  %7447 = vmatpush.msra.mxu0 0.0
  %7448 = vmatpush.msra.mxu0 0.0
  %v7449 = vand.u32 %v4180, 4294901760
  %v7450 = vsub.f32 %v4180, %v7449
  %7451 = vmatpush.msra.mxu0 %v7450
  %v7452 = vand.u32 %v4179, 4294901760
  %v7453 = vsub.f32 %v4179, %v7452
  %7454 = vmatpush.msra.mxu0 %v7453
  %v7455 = vand.u32 %v4178, 4294901760
  %v7456 = vsub.f32 %v4178, %v7455
  %7457 = vmatpush.msra.mxu0 %v7456
  %v7458 = vand.u32 %v4177, 4294901760
  %v7459 = vsub.f32 %v4177, %v7458
  %7460 = vmatpush.msra.mxu0 %v7459
  %v7461 = vand.u32 %v7350, 4294901760
  %v7462 = vsub.f32 %v7350, %v7461
  %7463 = vmatmul.f32.gmra.mxu0 %v7462
  %v7464 = vpop.f32.mrf.mxu0
  %v7465 = vadd.f32 %v7431, %v7464
  %v7466 = vand.u32 %v7353, 4294901760
  %v7467 = vsub.f32 %v7353, %v7466
  %7468 = vmatmul.f32.gmra.mxu0 %v7467
  %v7469 = vpop.f32.mrf.mxu0
  %v7470 = vadd.f32 %v7435, %v7469
  %7471 = vdwg.mxu0
  %7472 = vmatpush.msra.mxu0 0.0
  %7473 = vmatpush.msra.mxu0 0.0
  %7474 = vmatpush.msra.mxu0 0.0
  %7475 = vmatpush.msra.mxu0 0.0
  %7476 = vmatpush.msra.mxu0 0.0
  %7477 = vmatpush.msra.mxu0 0.0
  %7478 = vmatpush.msra.mxu0 0.0
  %7479 = vmatpush.msra.mxu0 0.0
  %7480 = vmatpush.msra.mxu0 0.0
  %7481 = vmatpush.msra.mxu0 0.0
  %7482 = vmatpush.msra.mxu0 0.0
  %7483 = vmatpush.msra.mxu0 0.0
  %v7484 = vand.u32 %v4180, 4294901760
  %7485 = vmatpush.msra.mxu0 %v7484
  %v7486 = vand.u32 %v4179, 4294901760
  %7487 = vmatpush.msra.mxu0 %v7486
  %v7488 = vand.u32 %v4178, 4294901760
  %7489 = vmatpush.msra.mxu0 %v7488
  %v7490 = vand.u32 %v4177, 4294901760
  %7491 = vmatpush.msra.mxu0 %v7490
  %v7492 = vand.u32 %v7350, 4294901760
  %v7493 = vsub.f32 %v7350, %v7492
  %v7494 = vand.u32 %v7493, 4294901760
  %7495 = vmatmul.f32.gmra.mxu0 %v7494
  %v7496 = vpop.f32.mrf.mxu0
  %v7497 = vadd.f32 %v7465, %v7496
  %v7498 = vand.u32 %v7353, 4294901760
  %v7499 = vsub.f32 %v7353, %v7498
  %v7500 = vand.u32 %v7499, 4294901760
  %7501 = vmatmul.f32.gmra.mxu0 %v7500
  %v7502 = vpop.f32.mrf.mxu0
  %v7503 = vadd.f32 %v7470, %v7502
  %7504 = vdwg.mxu0
  %7505 = vmatpush.msra.mxu0 0.0
  %7506 = vmatpush.msra.mxu0 0.0
  %7507 = vmatpush.msra.mxu0 0.0
  %7508 = vmatpush.msra.mxu0 0.0
  %7509 = vmatpush.msra.mxu0 0.0
  %7510 = vmatpush.msra.mxu0 0.0
  %7511 = vmatpush.msra.mxu0 0.0
  %7512 = vmatpush.msra.mxu0 0.0
  %7513 = vmatpush.msra.mxu0 0.0
  %7514 = vmatpush.msra.mxu0 0.0
  %7515 = vmatpush.msra.mxu0 0.0
  %7516 = vmatpush.msra.mxu0 0.0
  %v7517 = vand.u32 %v4180, 4294901760
  %v7518 = vsub.f32 %v4180, %v7517
  %v7519 = vand.u32 %v7518, 4294901760
  %7520 = vmatpush.msra.mxu0 %v7519
  %v7521 = vand.u32 %v4179, 4294901760
  %v7522 = vsub.f32 %v4179, %v7521
  %v7523 = vand.u32 %v7522, 4294901760
  %7524 = vmatpush.msra.mxu0 %v7523
  %v7525 = vand.u32 %v4178, 4294901760
  %v7526 = vsub.f32 %v4178, %v7525
  %v7527 = vand.u32 %v7526, 4294901760
  %7528 = vmatpush.msra.mxu0 %v7527
  %v7529 = vand.u32 %v4177, 4294901760
  %v7530 = vsub.f32 %v4177, %v7529
  %v7531 = vand.u32 %v7530, 4294901760
  %7532 = vmatpush.msra.mxu0 %v7531
  %v7533 = vand.u32 %v7350, 4294901760
  %7534 = vmatmul.f32.gmra.mxu0 %v7533
  %v7535 = vpop.f32.mrf.mxu0
  %v7536 = vadd.f32 %v7497, %v7535
  %v7537 = vand.u32 %v7353, 4294901760
  %7538 = vmatmul.f32.gmra.mxu0 %v7537
  %v7539 = vpop.f32.mrf.mxu0
  %v7540 = vadd.f32 %v7503, %v7539
  %7541 = vdwg.mxu0
  %7542 = vmatpush.msra.mxu0 0.0
  %7543 = vmatpush.msra.mxu0 0.0
  %7544 = vmatpush.msra.mxu0 0.0
  %7545 = vmatpush.msra.mxu0 0.0
  %7546 = vmatpush.msra.mxu0 0.0
  %7547 = vmatpush.msra.mxu0 0.0
  %7548 = vmatpush.msra.mxu0 0.0
  %7549 = vmatpush.msra.mxu0 0.0
  %7550 = vmatpush.msra.mxu0 0.0
  %7551 = vmatpush.msra.mxu0 0.0
  %7552 = vmatpush.msra.mxu0 0.0
  %7553 = vmatpush.msra.mxu0 0.0
  %v7554 = vand.u32 %v4180, 4294901760
  %7555 = vmatpush.msra.mxu0 %v7554
  %v7556 = vand.u32 %v4179, 4294901760
  %7557 = vmatpush.msra.mxu0 %v7556
  %v7558 = vand.u32 %v4178, 4294901760
  %7559 = vmatpush.msra.mxu0 %v7558
  %v7560 = vand.u32 %v4177, 4294901760
  %7561 = vmatpush.msra.mxu0 %v7560
  %v7562 = vand.u32 %v7350, 4294901760
  %7563 = vmatmul.f32.gmra.mxu0 %v7562
  %v7564 = vpop.f32.mrf.mxu0
  %v7565 = vadd.f32 %v7536, %v7564
  %v7566 = vand.u32 %v7353, 4294901760
  %7567 = vmatmul.f32.gmra.mxu0 %v7566
  %v7568 = vpop.f32.mrf.mxu0
  %v7569 = vadd.f32 %v7540, %v7568
  %7570 = vdwg.mxu0
  %v7571 = vmul.f32 %v7565, 0.5
  %v7572 = vmul.f32 %v7569, 0.5
  %v7573 = vmul.f32 %v7565, 0.70710677
  %v7574 = vmul.f32 %v7569, 0.70710677
  %v7575 = vand.u32 2147483647, %v7573
  %v7576 = vand.u32 2147483647, %v7574
  %v7577 = vmul.f32 %v7575, 0.3275911
  %v7578 = vmul.f32 %v7576, 0.3275911
  %v7579 = vadd.f32 %v7577, 1.0
  %v7580 = vadd.f32 %v7578, 1.0
  %v7581 = vrcp.pop %v7579
  %v7582 = vmul.f32 %v7579, %v7581
  %v7583 = vsub.f32 1.0, %v7582
  %v7584 = vmul.f32 %v7581, %v7583
  %v7585 = vadd.f32 %v7581, %v7584
  %vm7586 = vweird.f32 %v7579
  %vm7587 = vweird.f32 %v7581
  %vm7588 = vmor %vm7586, %vm7587
  %v7589 = vsel %vm7588, %v7581, %v7585
  %v7590 = vand.u32 2147483647, %v7579
  %vm7591 = vcmp.eq.f32.partialorder %v7590, 8.507059e+37
  %v7592 = vand.u32 %v7579, 2147483648
  %v7593 = vor.u32 1.1754944e-38, %v7592
  %v7594 = vsel %vm7591, %v7593, %v7589
  %v7595 = vmul.f32 1.0, %v7594
  %v7596 = vrcp.pop %v7580
  %v7597 = vmul.f32 %v7580, %v7596
  %v7598 = vsub.f32 1.0, %v7597
  %v7599 = vmul.f32 %v7596, %v7598
  %v7600 = vadd.f32 %v7596, %v7599
  %vm7601 = vweird.f32 %v7580
  %vm7602 = vweird.f32 %v7596
  %vm7603 = vmor %vm7601, %vm7602
  %v7604 = vsel %vm7603, %v7596, %v7600
  %v7605 = vand.u32 2147483647, %v7580
  %vm7606 = vcmp.eq.f32.partialorder %v7605, 8.507059e+37
  %v7607 = vand.u32 %v7580, 2147483648
  %v7608 = vor.u32 1.1754944e-38, %v7607
  %v7609 = vsel %vm7606, %v7608, %v7604
  %v7610 = vmul.f32 1.0, %v7609
  %v7611 = vmul.f32 %v7595, 1.0614054
  %v7612 = vmul.f32 %v7610, 1.0614054
  %v7613 = vadd.f32 %v7611, -1.4531521
  %v7614 = vadd.f32 %v7612, -1.4531521
  %v7615 = vmul.f32 %v7613, %v7595
  %v7616 = vmul.f32 %v7614, %v7610
  %v7617 = vadd.f32 %v7615, 1.4214138
  %v7618 = vadd.f32 %v7616, 1.4214138
  %v7619 = vmul.f32 %v7617, %v7595
  %v7620 = vmul.f32 %v7618, %v7610
  %v7621 = vadd.f32 %v7619, -0.28449672
  %v7622 = vadd.f32 %v7620, -0.28449672
  %v7623 = vmul.f32 %v7621, %v7595
  %v7624 = vmul.f32 %v7622, %v7610
  %v7625 = vadd.f32 %v7623, 0.2548296
  %v7626 = vadd.f32 %v7624, 0.2548296
  %v7627 = vmul.f32 %v7625, %v7595
  %v7628 = vmul.f32 %v7626, %v7610
  %v7629 = vsub.f32 0.0, %v7575
  %v7630 = vsub.f32 0.0, %v7576
  %v7631 = vmul.f32 %v7629, %v7575
  %v7632 = vmul.f32 %v7630, %v7576
  %v7633 = vmul.f32 %v7631, 1.442695
  %v7634 = vpow.pop %v7633
  %v7635 = vmul.f32 %v7632, 1.442695
  %v7636 = vpow.pop %v7635
  %v7637 = vmul.f32 %v7627, %v7634
  %v7638 = vmul.f32 %v7628, %v7636
  %v7639 = vsub.f32 1.0, %v7637
  %v7640 = vsub.f32 1.0, %v7638
  %vm7641 = vcmp.ge.f32.partialorder %v7573, 0.0
  %vm7642 = vcmp.ge.f32.partialorder %v7574, 0.0
  %v7643 = vsub.f32 0.0, %v7639
  %v7644 = vsub.f32 0.0, %v7640
  %v7645 = vsel %vm7641, %v7639, %v7643
  %v7646 = vsel %vm7642, %v7640, %v7644
  %v7647 = vadd.f32 %v7645, 1.0
  %v7648 = vadd.f32 %v7646, 1.0
  %v7649 = vmul.f32 %v7571, %v7647
  %v7650 = vmul.f32 %v7572, %v7648
  %v7651 = vperm.slane %v4172, 5
  %v7652 = vand.u32 %v4171, 4294901760
  %7653 = vmatpush.msra.mxu0 %v7652
  %v7654 = vand.u32 %v4170, 4294901760
  %7655 = vmatpush.msra.mxu0 %v7654
  %v7656 = vand.u32 %v4169, 4294901760
  %7657 = vmatpush.msra.mxu0 %v7656
  %v7658 = vand.u32 %v4168, 4294901760
  %7659 = vmatpush.msra.mxu0 %v7658
  %v7660 = vand.u32 %v4167, 4294901760
  %7661 = vmatpush.msra.mxu0 %v7660
  %v7662 = vand.u32 %v4166, 4294901760
  %7663 = vmatpush.msra.mxu0 %v7662
  %v7664 = vand.u32 %v4165, 4294901760
  %7665 = vmatpush.msra.mxu0 %v7664
  %v7666 = vand.u32 %v4164, 4294901760
  %7667 = vmatpush.msra.mxu0 %v7666
  %v7668 = vand.u32 %v4163, 4294901760
  %7669 = vmatpush.msra.mxu0 %v7668
  %v7670 = vand.u32 %v4162, 4294901760
  %7671 = vmatpush.msra.mxu0 %v7670
  %v7672 = vand.u32 %v4161, 4294901760
  %7673 = vmatpush.msra.mxu0 %v7672
  %v7674 = vand.u32 %v4160, 4294901760
  %7675 = vmatpush.msra.mxu0 %v7674
  %v7676 = vand.u32 %v4159, 4294901760
  %7677 = vmatpush.msra.mxu0 %v7676
  %v7678 = vand.u32 %v4158, 4294901760
  %7679 = vmatpush.msra.mxu0 %v7678
  %v7680 = vand.u32 %v4157, 4294901760
  %7681 = vmatpush.msra.mxu0 %v7680
  %v7682 = vand.u32 %v4156, 4294901760
  %7683 = vmatpush.msra.mxu0 %v7682
  %v7684 = vand.u32 %v7649, 4294901760
  %v7685 = vsub.f32 %v7649, %v7684
  %v7686 = vand.u32 %v7685, 4294901760
  %v7687 = vsub.f32 %v7685, %v7686
  %v7688 = vand.u32 %v7687, 4294901760
  %7689 = vmatmul.f32.gmra.mxu0 %v7688
  %v7690 = vpop.f32.mrf.mxu0
  %v7691 = vadd.f32 %v7651, %v7690
  %v7692 = vand.u32 %v7650, 4294901760
  %v7693 = vsub.f32 %v7650, %v7692
  %v7694 = vand.u32 %v7693, 4294901760
  %v7695 = vsub.f32 %v7693, %v7694
  %v7696 = vand.u32 %v7695, 4294901760
  %7697 = vmatmul.f32.gmra.mxu0 %v7696
  %v7698 = vpop.f32.mrf.mxu0
  %v7699 = vadd.f32 %v7651, %v7698
  %7700 = vdwg.mxu0
  %v7701 = vand.u32 %v4171, 4294901760
  %v7702 = vsub.f32 %v4171, %v7701
  %v7703 = vand.u32 %v7702, 4294901760
  %v7704 = vsub.f32 %v7702, %v7703
  %v7705 = vand.u32 %v7704, 4294901760
  %7706 = vmatpush.msra.mxu0 %v7705
  %v7707 = vand.u32 %v4170, 4294901760
  %v7708 = vsub.f32 %v4170, %v7707
  %v7709 = vand.u32 %v7708, 4294901760
  %v7710 = vsub.f32 %v7708, %v7709
  %v7711 = vand.u32 %v7710, 4294901760
  %7712 = vmatpush.msra.mxu0 %v7711
  %v7713 = vand.u32 %v4169, 4294901760
  %v7714 = vsub.f32 %v4169, %v7713
  %v7715 = vand.u32 %v7714, 4294901760
  %v7716 = vsub.f32 %v7714, %v7715
  %v7717 = vand.u32 %v7716, 4294901760
  %7718 = vmatpush.msra.mxu0 %v7717
  %v7719 = vand.u32 %v4168, 4294901760
  %v7720 = vsub.f32 %v4168, %v7719
  %v7721 = vand.u32 %v7720, 4294901760
  %v7722 = vsub.f32 %v7720, %v7721
  %v7723 = vand.u32 %v7722, 4294901760
  %7724 = vmatpush.msra.mxu0 %v7723
  %v7725 = vand.u32 %v4167, 4294901760
  %v7726 = vsub.f32 %v4167, %v7725
  %v7727 = vand.u32 %v7726, 4294901760
  %v7728 = vsub.f32 %v7726, %v7727
  %v7729 = vand.u32 %v7728, 4294901760
  %7730 = vmatpush.msra.mxu0 %v7729
  %v7731 = vand.u32 %v4166, 4294901760
  %v7732 = vsub.f32 %v4166, %v7731
  %v7733 = vand.u32 %v7732, 4294901760
  %v7734 = vsub.f32 %v7732, %v7733
  %v7735 = vand.u32 %v7734, 4294901760
  %7736 = vmatpush.msra.mxu0 %v7735
  %v7737 = vand.u32 %v4165, 4294901760
  %v7738 = vsub.f32 %v4165, %v7737
  %v7739 = vand.u32 %v7738, 4294901760
  %v7740 = vsub.f32 %v7738, %v7739
  %v7741 = vand.u32 %v7740, 4294901760
  %7742 = vmatpush.msra.mxu0 %v7741
  %v7743 = vand.u32 %v4164, 4294901760
  %v7744 = vsub.f32 %v4164, %v7743
  %v7745 = vand.u32 %v7744, 4294901760
  %v7746 = vsub.f32 %v7744, %v7745
  %v7747 = vand.u32 %v7746, 4294901760
  %7748 = vmatpush.msra.mxu0 %v7747
  %v7749 = vand.u32 %v4163, 4294901760
  %v7750 = vsub.f32 %v4163, %v7749
  %v7751 = vand.u32 %v7750, 4294901760
  %v7752 = vsub.f32 %v7750, %v7751
  %v7753 = vand.u32 %v7752, 4294901760
  %7754 = vmatpush.msra.mxu0 %v7753
  %v7755 = vand.u32 %v4162, 4294901760
  %v7756 = vsub.f32 %v4162, %v7755
  %v7757 = vand.u32 %v7756, 4294901760
  %v7758 = vsub.f32 %v7756, %v7757
  %v7759 = vand.u32 %v7758, 4294901760
  %7760 = vmatpush.msra.mxu0 %v7759
  %v7761 = vand.u32 %v4161, 4294901760
  %v7762 = vsub.f32 %v4161, %v7761
  %v7763 = vand.u32 %v7762, 4294901760
  %v7764 = vsub.f32 %v7762, %v7763
  %v7765 = vand.u32 %v7764, 4294901760
  %7766 = vmatpush.msra.mxu0 %v7765
  %v7767 = vand.u32 %v4160, 4294901760
  %v7768 = vsub.f32 %v4160, %v7767
  %v7769 = vand.u32 %v7768, 4294901760
  %v7770 = vsub.f32 %v7768, %v7769
  %v7771 = vand.u32 %v7770, 4294901760
  %7772 = vmatpush.msra.mxu0 %v7771
  %v7773 = vand.u32 %v4159, 4294901760
  %v7774 = vsub.f32 %v4159, %v7773
  %v7775 = vand.u32 %v7774, 4294901760
  %v7776 = vsub.f32 %v7774, %v7775
  %v7777 = vand.u32 %v7776, 4294901760
  %7778 = vmatpush.msra.mxu0 %v7777
  %v7779 = vand.u32 %v4158, 4294901760
  %v7780 = vsub.f32 %v4158, %v7779
  %v7781 = vand.u32 %v7780, 4294901760
  %v7782 = vsub.f32 %v7780, %v7781
  %v7783 = vand.u32 %v7782, 4294901760
  %7784 = vmatpush.msra.mxu0 %v7783
  %v7785 = vand.u32 %v4157, 4294901760
  %v7786 = vsub.f32 %v4157, %v7785
  %v7787 = vand.u32 %v7786, 4294901760
  %v7788 = vsub.f32 %v7786, %v7787
  %v7789 = vand.u32 %v7788, 4294901760
  %7790 = vmatpush.msra.mxu0 %v7789
  %v7791 = vand.u32 %v4156, 4294901760
  %v7792 = vsub.f32 %v4156, %v7791
  %v7793 = vand.u32 %v7792, 4294901760
  %v7794 = vsub.f32 %v7792, %v7793
  %v7795 = vand.u32 %v7794, 4294901760
  %7796 = vmatpush.msra.mxu0 %v7795
  %v7797 = vand.u32 %v7649, 4294901760
  %7798 = vmatmul.f32.gmra.mxu0 %v7797
  %v7799 = vpop.f32.mrf.mxu0
  %v7800 = vadd.f32 %v7691, %v7799
  %v7801 = vand.u32 %v7650, 4294901760
  %7802 = vmatmul.f32.gmra.mxu0 %v7801
  %v7803 = vpop.f32.mrf.mxu0
  %v7804 = vadd.f32 %v7699, %v7803
  %7805 = vdwg.mxu0
  %v7806 = vand.u32 %v4171, 4294901760
  %v7807 = vsub.f32 %v4171, %v7806
  %7808 = vmatpush.msra.mxu0 %v7807
  %v7809 = vand.u32 %v4170, 4294901760
  %v7810 = vsub.f32 %v4170, %v7809
  %7811 = vmatpush.msra.mxu0 %v7810
  %v7812 = vand.u32 %v4169, 4294901760
  %v7813 = vsub.f32 %v4169, %v7812
  %7814 = vmatpush.msra.mxu0 %v7813
  %v7815 = vand.u32 %v4168, 4294901760
  %v7816 = vsub.f32 %v4168, %v7815
  %7817 = vmatpush.msra.mxu0 %v7816
  %v7818 = vand.u32 %v4167, 4294901760
  %v7819 = vsub.f32 %v4167, %v7818
  %7820 = vmatpush.msra.mxu0 %v7819
  %v7821 = vand.u32 %v4166, 4294901760
  %v7822 = vsub.f32 %v4166, %v7821
  %7823 = vmatpush.msra.mxu0 %v7822
  %v7824 = vand.u32 %v4165, 4294901760
  %v7825 = vsub.f32 %v4165, %v7824
  %7826 = vmatpush.msra.mxu0 %v7825
  %v7827 = vand.u32 %v4164, 4294901760
  %v7828 = vsub.f32 %v4164, %v7827
  %7829 = vmatpush.msra.mxu0 %v7828
  %v7830 = vand.u32 %v4163, 4294901760
  %v7831 = vsub.f32 %v4163, %v7830
  %7832 = vmatpush.msra.mxu0 %v7831
  %v7833 = vand.u32 %v4162, 4294901760
  %v7834 = vsub.f32 %v4162, %v7833
  %7835 = vmatpush.msra.mxu0 %v7834
  %v7836 = vand.u32 %v4161, 4294901760
  %v7837 = vsub.f32 %v4161, %v7836
  %7838 = vmatpush.msra.mxu0 %v7837
  %v7839 = vand.u32 %v4160, 4294901760
  %v7840 = vsub.f32 %v4160, %v7839
  %7841 = vmatpush.msra.mxu0 %v7840
  %v7842 = vand.u32 %v4159, 4294901760
  %v7843 = vsub.f32 %v4159, %v7842
  %7844 = vmatpush.msra.mxu0 %v7843
  %v7845 = vand.u32 %v4158, 4294901760
  %v7846 = vsub.f32 %v4158, %v7845
  %7847 = vmatpush.msra.mxu0 %v7846
  %v7848 = vand.u32 %v4157, 4294901760
  %v7849 = vsub.f32 %v4157, %v7848
  %7850 = vmatpush.msra.mxu0 %v7849
  %v7851 = vand.u32 %v4156, 4294901760
  %v7852 = vsub.f32 %v4156, %v7851
  %7853 = vmatpush.msra.mxu0 %v7852
  %v7854 = vand.u32 %v7649, 4294901760
  %v7855 = vsub.f32 %v7649, %v7854
  %7856 = vmatmul.f32.gmra.mxu0 %v7855
  %v7857 = vpop.f32.mrf.mxu0
  %v7858 = vadd.f32 %v7800, %v7857
  %v7859 = vand.u32 %v7650, 4294901760
  %v7860 = vsub.f32 %v7650, %v7859
  %7861 = vmatmul.f32.gmra.mxu0 %v7860
  %v7862 = vpop.f32.mrf.mxu0
  %v7863 = vadd.f32 %v7804, %v7862
  %7864 = vdwg.mxu0
  %v7865 = vand.u32 %v4171, 4294901760
  %7866 = vmatpush.msra.mxu0 %v7865
  %v7867 = vand.u32 %v4170, 4294901760
  %7868 = vmatpush.msra.mxu0 %v7867
  %v7869 = vand.u32 %v4169, 4294901760
  %7870 = vmatpush.msra.mxu0 %v7869
  %v7871 = vand.u32 %v4168, 4294901760
  %7872 = vmatpush.msra.mxu0 %v7871
  %v7873 = vand.u32 %v4167, 4294901760
  %7874 = vmatpush.msra.mxu0 %v7873
  %v7875 = vand.u32 %v4166, 4294901760
  %7876 = vmatpush.msra.mxu0 %v7875
  %v7877 = vand.u32 %v4165, 4294901760
  %7878 = vmatpush.msra.mxu0 %v7877
  %v7879 = vand.u32 %v4164, 4294901760
  %7880 = vmatpush.msra.mxu0 %v7879
  %v7881 = vand.u32 %v4163, 4294901760
  %7882 = vmatpush.msra.mxu0 %v7881
  %v7883 = vand.u32 %v4162, 4294901760
  %7884 = vmatpush.msra.mxu0 %v7883
  %v7885 = vand.u32 %v4161, 4294901760
  %7886 = vmatpush.msra.mxu0 %v7885
  %v7887 = vand.u32 %v4160, 4294901760
  %7888 = vmatpush.msra.mxu0 %v7887
  %v7889 = vand.u32 %v4159, 4294901760
  %7890 = vmatpush.msra.mxu0 %v7889
  %v7891 = vand.u32 %v4158, 4294901760
  %7892 = vmatpush.msra.mxu0 %v7891
  %v7893 = vand.u32 %v4157, 4294901760
  %7894 = vmatpush.msra.mxu0 %v7893
  %v7895 = vand.u32 %v4156, 4294901760
  %7896 = vmatpush.msra.mxu0 %v7895
  %v7897 = vand.u32 %v7649, 4294901760
  %v7898 = vsub.f32 %v7649, %v7897
  %v7899 = vand.u32 %v7898, 4294901760
  %7900 = vmatmul.f32.gmra.mxu0 %v7899
  %v7901 = vpop.f32.mrf.mxu0
  %v7902 = vadd.f32 %v7858, %v7901
  %v7903 = vand.u32 %v7650, 4294901760
  %v7904 = vsub.f32 %v7650, %v7903
  %v7905 = vand.u32 %v7904, 4294901760
  %7906 = vmatmul.f32.gmra.mxu0 %v7905
  %v7907 = vpop.f32.mrf.mxu0
  %v7908 = vadd.f32 %v7863, %v7907
  %7909 = vdwg.mxu0
  %v7910 = vand.u32 %v4171, 4294901760
  %v7911 = vsub.f32 %v4171, %v7910
  %v7912 = vand.u32 %v7911, 4294901760
  %7913 = vmatpush.msra.mxu0 %v7912
  %v7914 = vand.u32 %v4170, 4294901760
  %v7915 = vsub.f32 %v4170, %v7914
  %v7916 = vand.u32 %v7915, 4294901760
  %7917 = vmatpush.msra.mxu0 %v7916
  %v7918 = vand.u32 %v4169, 4294901760
  %v7919 = vsub.f32 %v4169, %v7918
  %v7920 = vand.u32 %v7919, 4294901760
  %7921 = vmatpush.msra.mxu0 %v7920
  %v7922 = vand.u32 %v4168, 4294901760
  %v7923 = vsub.f32 %v4168, %v7922
  %v7924 = vand.u32 %v7923, 4294901760
  %7925 = vmatpush.msra.mxu0 %v7924
  %v7926 = vand.u32 %v4167, 4294901760
  %v7927 = vsub.f32 %v4167, %v7926
  %v7928 = vand.u32 %v7927, 4294901760
  %7929 = vmatpush.msra.mxu0 %v7928
  %v7930 = vand.u32 %v4166, 4294901760
  %v7931 = vsub.f32 %v4166, %v7930
  %v7932 = vand.u32 %v7931, 4294901760
  %7933 = vmatpush.msra.mxu0 %v7932
  %v7934 = vand.u32 %v4165, 4294901760
  %v7935 = vsub.f32 %v4165, %v7934
  %v7936 = vand.u32 %v7935, 4294901760
  %7937 = vmatpush.msra.mxu0 %v7936
  %v7938 = vand.u32 %v4164, 4294901760
  %v7939 = vsub.f32 %v4164, %v7938
  %v7940 = vand.u32 %v7939, 4294901760
  %7941 = vmatpush.msra.mxu0 %v7940
  %v7942 = vand.u32 %v4163, 4294901760
  %v7943 = vsub.f32 %v4163, %v7942
  %v7944 = vand.u32 %v7943, 4294901760
  %7945 = vmatpush.msra.mxu0 %v7944
  %v7946 = vand.u32 %v4162, 4294901760
  %v7947 = vsub.f32 %v4162, %v7946
  %v7948 = vand.u32 %v7947, 4294901760
  %7949 = vmatpush.msra.mxu0 %v7948
  %v7950 = vand.u32 %v4161, 4294901760
  %v7951 = vsub.f32 %v4161, %v7950
  %v7952 = vand.u32 %v7951, 4294901760
  %7953 = vmatpush.msra.mxu0 %v7952
  %v7954 = vand.u32 %v4160, 4294901760
  %v7955 = vsub.f32 %v4160, %v7954
  %v7956 = vand.u32 %v7955, 4294901760
  %7957 = vmatpush.msra.mxu0 %v7956
  %v7958 = vand.u32 %v4159, 4294901760
  %v7959 = vsub.f32 %v4159, %v7958
  %v7960 = vand.u32 %v7959, 4294901760
  %7961 = vmatpush.msra.mxu0 %v7960
  %v7962 = vand.u32 %v4158, 4294901760
  %v7963 = vsub.f32 %v4158, %v7962
  %v7964 = vand.u32 %v7963, 4294901760
  %7965 = vmatpush.msra.mxu0 %v7964
  %v7966 = vand.u32 %v4157, 4294901760
  %v7967 = vsub.f32 %v4157, %v7966
  %v7968 = vand.u32 %v7967, 4294901760
  %7969 = vmatpush.msra.mxu0 %v7968
  %v7970 = vand.u32 %v4156, 4294901760
  %v7971 = vsub.f32 %v4156, %v7970
  %v7972 = vand.u32 %v7971, 4294901760
  %7973 = vmatpush.msra.mxu0 %v7972
  %v7974 = vand.u32 %v7649, 4294901760
  %7975 = vmatmul.f32.gmra.mxu0 %v7974
  %v7976 = vpop.f32.mrf.mxu0
  %v7977 = vadd.f32 %v7902, %v7976
  %v7978 = vand.u32 %v7650, 4294901760
  %7979 = vmatmul.f32.gmra.mxu0 %v7978
  %v7980 = vpop.f32.mrf.mxu0
  %v7981 = vadd.f32 %v7908, %v7980
  %7982 = vdwg.mxu0
  %v7983 = vand.u32 %v4171, 4294901760
  %7984 = vmatpush.msra.mxu0 %v7983
  %v7985 = vand.u32 %v4170, 4294901760
  %7986 = vmatpush.msra.mxu0 %v7985
  %v7987 = vand.u32 %v4169, 4294901760
  %7988 = vmatpush.msra.mxu0 %v7987
  %v7989 = vand.u32 %v4168, 4294901760
  %7990 = vmatpush.msra.mxu0 %v7989
  %v7991 = vand.u32 %v4167, 4294901760
  %7992 = vmatpush.msra.mxu0 %v7991
  %v7993 = vand.u32 %v4166, 4294901760
  %7994 = vmatpush.msra.mxu0 %v7993
  %v7995 = vand.u32 %v4165, 4294901760
  %7996 = vmatpush.msra.mxu0 %v7995
  %v7997 = vand.u32 %v4164, 4294901760
  %7998 = vmatpush.msra.mxu0 %v7997
  %v7999 = vand.u32 %v4163, 4294901760
  %8000 = vmatpush.msra.mxu0 %v7999
  %v8001 = vand.u32 %v4162, 4294901760
  %8002 = vmatpush.msra.mxu0 %v8001
  %v8003 = vand.u32 %v4161, 4294901760
  %8004 = vmatpush.msra.mxu0 %v8003
  %v8005 = vand.u32 %v4160, 4294901760
  %8006 = vmatpush.msra.mxu0 %v8005
  %v8007 = vand.u32 %v4159, 4294901760
  %8008 = vmatpush.msra.mxu0 %v8007
  %v8009 = vand.u32 %v4158, 4294901760
  %8010 = vmatpush.msra.mxu0 %v8009
  %v8011 = vand.u32 %v4157, 4294901760
  %8012 = vmatpush.msra.mxu0 %v8011
  %v8013 = vand.u32 %v4156, 4294901760
  %8014 = vmatpush.msra.mxu0 %v8013
  %v8015 = vand.u32 %v7649, 4294901760
  %8016 = vmatmul.f32.gmra.mxu0 %v8015
  %v8017 = vpop.f32.mrf.mxu0
  %v8018 = vadd.f32 %v7977, %v8017
  %v8019 = vand.u32 %v7650, 4294901760
  %8020 = vmatmul.f32.gmra.mxu0 %v8019
  %v8021 = vpop.f32.mrf.mxu0
  %v8022 = vadd.f32 %v7981, %v8021
  %8023 = vdwg.mxu0
  %v8024 = vadd.f32 %v7346, %v8018
  %v8025 = vadd.f32 %v7347, %v8022
  %v8026 = vsel %vm249, %v8024, 0.0
  %8027 = vadd.xlane.f32.xlu0 %v8026
  %v8028 = vpop.xlane.xlu0 %8027
  %v8029 = vsel %vm249, %v8025, 0.0
  %8030 = vadd.xlane.f32.xlu0 %v8029
  %v8031 = vpop.xlane.xlu0 %8030
  %v8032 = vmul.f32 %v8028, %v3379
  %v8033 = vmul.f32 %v8031, %v3379
  %v8034 = vsub.f32 %v8024, %v8032
  %v8035 = vsub.f32 %v8025, %v8033
  %v8036 = vmul.f32 %v8034, %v8034
  %v8037 = vmul.f32 %v8035, %v8035
  %v8038 = vsel %vm249, %v8036, 0.0
  %8039 = vadd.xlane.f32.xlu0 %v8038
  %v8040 = vpop.xlane.xlu0 %8039
  %v8041 = vsel %vm249, %v8037, 0.0
  %8042 = vadd.xlane.f32.xlu0 %v8041
  %v8043 = vpop.xlane.xlu0 %8042
  %v8044 = vmul.f32 %v8040, %v3379
  %v8045 = vmul.f32 %v8043, %v3379
  %v8046 = vadd.f32 %v8044, 1e-05
  %v8047 = vadd.f32 %v8045, 1e-05
  %v8048 = vrsqrt.pop %v8046
  %v8049 = vmul.f32 %v8048, %v8046
  %v8050 = vmul.f32 %v8049, %v8048
  %v8051 = vmul.f32 0.5, %v8050
  %v8052 = vsub.f32 1.5, %v8051
  %v8053 = vmul.f32 %v8048, %v8052
  %vm8054 = vweird.f32 %v8046
  %vm8055 = vweird.f32 %v8048
  %vm8056 = vmor %vm8054, %vm8055
  %v8057 = vsel %vm8056, %v8048, %v8053
  %v8058 = vrsqrt.pop %v8047
  %v8059 = vmul.f32 %v8058, %v8047
  %v8060 = vmul.f32 %v8059, %v8058
  %v8061 = vmul.f32 0.5, %v8060
  %v8062 = vsub.f32 1.5, %v8061
  %v8063 = vmul.f32 %v8058, %v8062
  %vm8064 = vweird.f32 %v8047
  %vm8065 = vweird.f32 %v8058
  %vm8066 = vmor %vm8064, %vm8065
  %v8067 = vsel %vm8066, %v8058, %v8063
  %v8068 = vmul.f32 %v8034, %v8057
  %v8069 = vmul.f32 %v8035, %v8067
  %v8070 = vperm.slane %v4172, 3
  %v8071 = vmul.f32 %v8068, %v8070
  %v8072 = vmul.f32 %v8069, %v8070
  %v8073 = vperm.slane %v4172, 4
  %v8074 = vadd.f32 %v8071, %v8073
  %v8075 = vadd.f32 %v8072, %v8073
  %v8076 = vld [vmem:[%s1 + $0x18] sm:$0xff]
  %v8077 = vld [vmem:[%s1 + $0x20] sm:$0xff]
  %v8078 = vld [vmem:[%s1 + $0x28] sm:$0xff]
  %v8079 = vld [vmem:[%s1 + $0x30] sm:$0xff]
  %v8080 = vld [vmem:[%s1 + $0x38] sm:$0x1]
  %v8081 = vperm.slane %v8080, 0
  %v8084 = vrot.slane %v8074, 7
  %v8085 = vrot.slane %v8075, 6
  %vm8086 = vcmask 1041409
  %v8087 = vsel %vm8086, %v8085, %v8084
  %v8088 = vsel %vm249, %v8087, 0
  %8090 = vmatpush.msra.mxu0 0.0
  %8091 = vmatpush.msra.mxu0 0.0
  %8092 = vmatpush.msra.mxu0 0.0
  %8093 = vmatpush.msra.mxu0 0.0
  %8094 = vmatpush.msra.mxu0 0.0
  %8095 = vmatpush.msra.mxu0 0.0
  %8096 = vmatpush.msra.mxu0 0.0
  %8097 = vmatpush.msra.mxu0 0.0
  %8098 = vmatpush.msra.mxu0 0.0
  %8099 = vmatpush.msra.mxu0 0.0
  %8100 = vmatpush.msra.mxu0 0.0
  %8101 = vmatpush.msra.mxu0 0.0
  %v8102 = vand.u32 %v8079, 4294901760
  %8103 = vmatpush.msra.mxu0 %v8102
  %v8104 = vand.u32 %v8078, 4294901760
  %8105 = vmatpush.msra.mxu0 %v8104
  %v8106 = vand.u32 %v8077, 4294901760
  %8107 = vmatpush.msra.mxu0 %v8106
  %v8108 = vand.u32 %v8076, 4294901760
  %8109 = vmatpush.msra.mxu0 %v8108
  %v8110 = vand.u32 %v8088, 4294901760
  %v8111 = vsub.f32 %v8088, %v8110
  %v8112 = vand.u32 %v8111, 4294901760
  %v8113 = vsub.f32 %v8111, %v8112
  %v8114 = vand.u32 %v8113, 4294901760
  %8115 = vmatmul.f32.gmra.mxu0 %v8114
  %v8116 = vpop.f32.mrf.mxu0
  %v8117 = vadd.f32 %v8081, %v8116
  %8118 = vdwg.mxu0
  %8119 = vmatpush.msra.mxu0 0.0
  %8120 = vmatpush.msra.mxu0 0.0
  %8121 = vmatpush.msra.mxu0 0.0
  %8122 = vmatpush.msra.mxu0 0.0
  %8123 = vmatpush.msra.mxu0 0.0
  %8124 = vmatpush.msra.mxu0 0.0
  %8125 = vmatpush.msra.mxu0 0.0
  %8126 = vmatpush.msra.mxu0 0.0
  %8127 = vmatpush.msra.mxu0 0.0
  %8128 = vmatpush.msra.mxu0 0.0
  %8129 = vmatpush.msra.mxu0 0.0
  %8130 = vmatpush.msra.mxu0 0.0
  %v8131 = vand.u32 %v8079, 4294901760
  %v8132 = vsub.f32 %v8079, %v8131
  %v8133 = vand.u32 %v8132, 4294901760
  %v8134 = vsub.f32 %v8132, %v8133
  %v8135 = vand.u32 %v8134, 4294901760
  %8136 = vmatpush.msra.mxu0 %v8135
  %v8137 = vand.u32 %v8078, 4294901760
  %v8138 = vsub.f32 %v8078, %v8137
  %v8139 = vand.u32 %v8138, 4294901760
  %v8140 = vsub.f32 %v8138, %v8139
  %v8141 = vand.u32 %v8140, 4294901760
  %8142 = vmatpush.msra.mxu0 %v8141
  %v8143 = vand.u32 %v8077, 4294901760
  %v8144 = vsub.f32 %v8077, %v8143
  %v8145 = vand.u32 %v8144, 4294901760
  %v8146 = vsub.f32 %v8144, %v8145
  %v8147 = vand.u32 %v8146, 4294901760
  %8148 = vmatpush.msra.mxu0 %v8147
  %v8149 = vand.u32 %v8076, 4294901760
  %v8150 = vsub.f32 %v8076, %v8149
  %v8151 = vand.u32 %v8150, 4294901760
  %v8152 = vsub.f32 %v8150, %v8151
  %v8153 = vand.u32 %v8152, 4294901760
  %8154 = vmatpush.msra.mxu0 %v8153
  %v8155 = vand.u32 %v8088, 4294901760
  %8156 = vmatmul.f32.gmra.mxu0 %v8155
  %v8157 = vpop.f32.mrf.mxu0
  %v8158 = vadd.f32 %v8117, %v8157
  %8159 = vdwg.mxu0
  %8160 = vmatpush.msra.mxu0 0.0
  %8161 = vmatpush.msra.mxu0 0.0
  %8162 = vmatpush.msra.mxu0 0.0
  %8163 = vmatpush.msra.mxu0 0.0
  %8164 = vmatpush.msra.mxu0 0.0
  %8165 = vmatpush.msra.mxu0 0.0
  %8166 = vmatpush.msra.mxu0 0.0
  %8167 = vmatpush.msra.mxu0 0.0
  %8168 = vmatpush.msra.mxu0 0.0
  %8169 = vmatpush.msra.mxu0 0.0
  %8170 = vmatpush.msra.mxu0 0.0
  %8171 = vmatpush.msra.mxu0 0.0
  %v8172 = vand.u32 %v8079, 4294901760
  %v8173 = vsub.f32 %v8079, %v8172
  %8174 = vmatpush.msra.mxu0 %v8173
  %v8175 = vand.u32 %v8078, 4294901760
  %v8176 = vsub.f32 %v8078, %v8175
  %8177 = vmatpush.msra.mxu0 %v8176
  %v8178 = vand.u32 %v8077, 4294901760
  %v8179 = vsub.f32 %v8077, %v8178
  %8180 = vmatpush.msra.mxu0 %v8179
  %v8181 = vand.u32 %v8076, 4294901760
  %v8182 = vsub.f32 %v8076, %v8181
  %8183 = vmatpush.msra.mxu0 %v8182
  %v8184 = vand.u32 %v8088, 4294901760
  %v8185 = vsub.f32 %v8088, %v8184
  %8186 = vmatmul.f32.gmra.mxu0 %v8185
  %v8187 = vpop.f32.mrf.mxu0
  %v8188 = vadd.f32 %v8158, %v8187
  %8189 = vdwg.mxu0
  %8190 = vmatpush.msra.mxu0 0.0
  %8191 = vmatpush.msra.mxu0 0.0
  %8192 = vmatpush.msra.mxu0 0.0
  %8193 = vmatpush.msra.mxu0 0.0
  %8194 = vmatpush.msra.mxu0 0.0
  %8195 = vmatpush.msra.mxu0 0.0
  %8196 = vmatpush.msra.mxu0 0.0
  %8197 = vmatpush.msra.mxu0 0.0
  %8198 = vmatpush.msra.mxu0 0.0
  %8199 = vmatpush.msra.mxu0 0.0
  %8200 = vmatpush.msra.mxu0 0.0
  %8201 = vmatpush.msra.mxu0 0.0
  %v8202 = vand.u32 %v8079, 4294901760
  %8203 = vmatpush.msra.mxu0 %v8202
  %v8204 = vand.u32 %v8078, 4294901760
  %8205 = vmatpush.msra.mxu0 %v8204
  %v8206 = vand.u32 %v8077, 4294901760
  %8207 = vmatpush.msra.mxu0 %v8206
  %v8208 = vand.u32 %v8076, 4294901760
  %8209 = vmatpush.msra.mxu0 %v8208
  %v8210 = vand.u32 %v8088, 4294901760
  %v8211 = vsub.f32 %v8088, %v8210
  %v8212 = vand.u32 %v8211, 4294901760
  %8213 = vmatmul.f32.gmra.mxu0 %v8212
  %v8214 = vpop.f32.mrf.mxu0
  %v8215 = vadd.f32 %v8188, %v8214
  %8216 = vdwg.mxu0
  %8217 = vmatpush.msra.mxu0 0.0
  %8218 = vmatpush.msra.mxu0 0.0
  %8219 = vmatpush.msra.mxu0 0.0
  %8220 = vmatpush.msra.mxu0 0.0
  %8221 = vmatpush.msra.mxu0 0.0
  %8222 = vmatpush.msra.mxu0 0.0
  %8223 = vmatpush.msra.mxu0 0.0
  %8224 = vmatpush.msra.mxu0 0.0
  %8225 = vmatpush.msra.mxu0 0.0
  %8226 = vmatpush.msra.mxu0 0.0
  %8227 = vmatpush.msra.mxu0 0.0
  %8228 = vmatpush.msra.mxu0 0.0
  %v8229 = vand.u32 %v8079, 4294901760
  %v8230 = vsub.f32 %v8079, %v8229
  %v8231 = vand.u32 %v8230, 4294901760
  %8232 = vmatpush.msra.mxu0 %v8231
  %v8233 = vand.u32 %v8078, 4294901760
  %v8234 = vsub.f32 %v8078, %v8233
  %v8235 = vand.u32 %v8234, 4294901760
  %8236 = vmatpush.msra.mxu0 %v8235
  %v8237 = vand.u32 %v8077, 4294901760
  %v8238 = vsub.f32 %v8077, %v8237
  %v8239 = vand.u32 %v8238, 4294901760
  %8240 = vmatpush.msra.mxu0 %v8239
  %v8241 = vand.u32 %v8076, 4294901760
  %v8242 = vsub.f32 %v8076, %v8241
  %v8243 = vand.u32 %v8242, 4294901760
  %8244 = vmatpush.msra.mxu0 %v8243
  %v8245 = vand.u32 %v8088, 4294901760
  %8246 = vmatmul.f32.gmra.mxu0 %v8245
  %v8247 = vpop.f32.mrf.mxu0
  %v8248 = vadd.f32 %v8215, %v8247
  %8249 = vdwg.mxu0
  %8250 = vmatpush.msra.mxu0 0.0
  %8251 = vmatpush.msra.mxu0 0.0
  %8252 = vmatpush.msra.mxu0 0.0
  %8253 = vmatpush.msra.mxu0 0.0
  %8254 = vmatpush.msra.mxu0 0.0
  %8255 = vmatpush.msra.mxu0 0.0
  %8256 = vmatpush.msra.mxu0 0.0
  %8257 = vmatpush.msra.mxu0 0.0
  %8258 = vmatpush.msra.mxu0 0.0
  %8259 = vmatpush.msra.mxu0 0.0
  %8260 = vmatpush.msra.mxu0 0.0
  %8261 = vmatpush.msra.mxu0 0.0
  %v8262 = vand.u32 %v8079, 4294901760
  %8263 = vmatpush.msra.mxu0 %v8262
  %v8264 = vand.u32 %v8078, 4294901760
  %8265 = vmatpush.msra.mxu0 %v8264
  %v8266 = vand.u32 %v8077, 4294901760
  %8267 = vmatpush.msra.mxu0 %v8266
  %v8268 = vand.u32 %v8076, 4294901760
  %8269 = vmatpush.msra.mxu0 %v8268
  %v8270 = vand.u32 %v8088, 4294901760
  %8271 = vmatmul.f32.gmra.mxu0 %v8270
  %v8272 = vpop.f32.mrf.mxu0
  %v8273 = vadd.f32 %v8248, %v8272
  %8274 = vdwg.mxu0
  %vm8275 = vcmask 17408
  %8276 = vst.msk [vmem:[%s3] sm:$0x3] %vm8275, %v8273
  // Predicated region
  $region14: #{complexity_transformer_forward.1} parent=0 // pred_check
    _
  $region15: #{complexity_transformer_forward.1} parent=0 // pred_check_branch
    %8278 = sbr.rel (0) target = $region17
  $region16: #{complexity_transformer_forward.1} parent=0 // pred_region
    _
  $region17: #{complexity_transformer_forward.1} parent=0 // pred_fallthru
    _
  // Predicated region
  $region18: #{complexity_transformer_forward.1} parent=0 // pred_check
    _
  $region19: #{complexity_transformer_forward.1} parent=0 // pred_check_branch
    %8280 = sbr.rel (0) target = $region21
  $region20: #{complexity_transformer_forward.1} parent=0 // pred_region
    _
  $region21: #{complexity_transformer_forward.1} parent=0 // pred_fallthru
    _

</llo_original>
